<compile_context>
chip_gen: v7x
topology: tpu7x:2x2x1
jax: 0.10.0
libtpu: 0.0.40
codegen_flags: <defaults>
</compile_context>

<pallas_src>
import math

import jax
import jax.numpy as jnp
from jax import lax
from jax.experimental import pallas as pl
from jax.experimental.pallas import tpu as pltpu

_SQRT2 = math.sqrt(2.0)
_PAR = pltpu.CompilerParams(dimension_semantics=("parallel",))


def _gelu(x):
    # exact (erf-based) GELU, matching torch.nn.GELU() default
    return 0.5 * x * (1.0 + lax.erf(x / _SQRT2))


def _leaky(x):
    # LeakyReLU(negative_slope=0.01)
    return jnp.where(x >= 0, x, 0.01 * x)


# ----------------------------------------------------------------------------
# Kernels
# ----------------------------------------------------------------------------
def _fused_pointwise_kernel(x_ref, w_ref, o0_ref, o1_ref, o2_ref):
    # x_ref: (tm, Cin), w_ref: (Cin, c0+c1+c2) -> three GELU'd outputs (one per branch)
    y = _gelu(jnp.dot(x_ref[...], w_ref[...], preferred_element_type=jnp.float32))
    c0 = o0_ref.shape[-1]
    c1 = o1_ref.shape[-1]
    c2 = o2_ref.shape[-1]
    o0_ref[...] = y[:, :c0]
    o1_ref[...] = y[:, c0:c0 + c1]
    o2_ref[...] = y[:, c0 + c1:c0 + c1 + c2]


def _spatial_kernel(x_ref, w_ref, b_ref, o_ref):
    # (1,3,3) conv, pad 1, bias, LeakyReLU.  In-kernel zero pad + im2col -> one deep-K matmul.
    # x_ref: (P, H, W, Cin), w_ref: (9*Cin, Cout), b_ref: (1, Cout), o_ref: (P, H, W, Cout)
    P, H, W, Cout = o_ref.shape
    Cin = x_ref.shape[-1]
    x = x_ref[...]
    zr = jnp.zeros((P, 1, W, Cin), jnp.float32)
    xh = jnp.concatenate([zr, x, zr], axis=1)                  # (P, H+2, W, Cin)
    zc = jnp.zeros((P, H + 2, 1, Cin), jnp.float32)
    xp = jnp.concatenate([zc, xh, zc], axis=2)                 # (P, H+2, W+2, Cin)
    taps = []
    for dy in range(3):
        for dx in range(3):
            taps.append(xp[:, dy:dy + H, dx:dx + W, :].reshape(P * H * W, Cin))
    patches = jnp.concatenate(taps, axis=-1)                   # (P*H*W, 9*Cin)
    y = jnp.dot(patches, w_ref[...], preferred_element_type=jnp.float32)
    y = _leaky(y + b_ref[...])
    o_ref[...] = y.reshape(P, H, W, Cout)


def _temporal_kernel(x_ref, w_ref, b_ref, o_ref):
    # (3,1,1) conv, pad 1, bias, LeakyReLU.  In-kernel zero pad in T + deep-K matmul.
    # x_ref: (1, T, HW, Cin), w_ref: (3*Cin, Cout), b_ref: (1, Cout), o_ref: (1, T, HW, Cout)
    _, T, HW, Cout = o_ref.shape
    Cin = x_ref.shape[-1]
    x = x_ref[0]                                               # (T, HW, Cin)
    z = jnp.zeros((1, HW, Cin), jnp.float32)
    xp = jnp.concatenate([z, x, z], axis=0)                    # (T+2, HW, Cin)
    taps = [xp[dt:dt + T].reshape(T * HW, Cin) for dt in range(3)]
    patches = jnp.concatenate(taps, axis=-1)                   # (T*HW, 3*Cin)
    y = jnp.dot(patches, w_ref[...], preferred_element_type=jnp.float32)
    y = _leaky(y + b_ref[...])
    o_ref[...] = y.reshape(1, T, HW, Cout)


def _axis_max3(v, axis):
    # max over a size-3 window along `axis`, stride 1.  Boundary handled by index
    # clamping, which is equivalent to -inf padding for max (duplicates are no-ops).
    n = v.shape[axis]
    sl = lambda a, b: lax.slice_in_dim(v, a, b, axis=axis)
    fwd = jnp.concatenate([sl(1, n), sl(n - 1, n)], axis=axis)   # v[i+1], clamped
    bwd = jnp.concatenate([sl(0, 1), sl(0, n - 1)], axis=axis)   # v[i-1], clamped
    return jnp.maximum(v, jnp.maximum(fwd, bwd))


def _pool_pointwise_kernel(x_ref, w_ref, o_ref):
    # MaxPool3d k=3 s=1 p=1 (separable, 9 max ops) fused with 1x1x1 conv + GELU.
    # x_ref: (1, T, H, W, C), w_ref: (C, Cout), o_ref: (1, T, H, W, Cout)
    _, T, H, W, Cout = o_ref.shape
    C = x_ref.shape[-1]
    x = x_ref[0]                                               # (T, H, W, C)
    m = _axis_max3(x, axis=2)                                  # over W
    m = _axis_max3(m, axis=1)                                  # over H
    m = _axis_max3(m, axis=0)                                  # over T
    y = jnp.dot(m.reshape(T * H * W, C), w_ref[...],
                preferred_element_type=jnp.float32)
    o_ref[...] = _gelu(y).reshape(1, T, H, W, Cout)


# ----------------------------------------------------------------------------
# Wrappers (BlockSpecs / grids)
# ----------------------------------------------------------------------------
def _pick_pack(n, target):
    # largest divisor of n that is <= target (>= 1)
    p = max(1, min(n, target))
    while n % p:
        p -= 1
    return p


def fused_input_pointwise(x2d, w0, w1, w2, tm=512):
    # x2d: (M, Cin); weights (Cin, c0)/(Cin, c1)/(Cin, c2).  One matmul, three outputs.
    M, Cin = x2d.shape
    c0, c1, c2 = w0.shape[1], w1.shape[1], w2.shape[1]
    w_cat = jnp.concatenate([w0, w1, w2], axis=1)              # (Cin, c0+c1+c2)
    tm = min(tm, M)
    mp = pl.cdiv(M, tm) * tm
    xin = jnp.pad(x2d, ((0, mp - M), (0, 0))) if mp != M else x2d
    outs = pl.pallas_call(
        _fused_pointwise_kernel,
        out_shape=(jax.ShapeDtypeStruct((mp, c0), jnp.float32),
                   jax.ShapeDtypeStruct((mp, c1), jnp.float32),
                   jax.ShapeDtypeStruct((mp, c2), jnp.float32)),
        grid=(mp // tm,),
        in_specs=[pl.BlockSpec((tm, Cin), lambda i: (i, 0)),
                  pl.BlockSpec((Cin, c0 + c1 + c2), lambda i: (0, 0))],
        out_specs=(pl.BlockSpec((tm, c0), lambda i: (i, 0)),
                   pl.BlockSpec((tm, c1), lambda i: (i, 0)),
                   pl.BlockSpec((tm, c2), lambda i: (i, 0))),
        compiler_params=_PAR,
    )(xin, w_cat)
    if mp != M:
        outs = tuple(o[:M] for o in outs)
    return outs


def spatial_conv3x3(x, w, b, rows_target=512):
    # x: (NT, H, W, Cin), w: (3, 3, Cin, Cout), b: (Cout,)
    NT, H, W, Cin = x.shape
    Cout = w.shape[-1]
    P = _pick_pack(NT, pl.cdiv(rows_target, H * W))   # planes per step (>=512 matmul rows)
    w2 = w.reshape(9 * Cin, Cout)                     # im2col weight: row = (ky*3+kx)*Cin + cin
    return pl.pallas_call(
        _spatial_kernel,
        out_shape=jax.ShapeDtypeStruct((NT, H, W, Cout), jnp.float32),
        grid=(NT // P,),
        in_specs=[pl.BlockSpec((P, H, W, Cin), lambda i: (i, 0, 0, 0)),
                  pl.BlockSpec((9 * Cin, Cout), lambda i: (0, 0)),
                  pl.BlockSpec((1, Cout), lambda i: (0, 0))],
        out_specs=pl.BlockSpec((P, H, W, Cout), lambda i: (i, 0, 0, 0)),
        compiler_params=_PAR,
    )(x, w2, b.reshape(1, Cout))


def temporal_conv3(x, w, b):
    # x: (N, T, HW, Cin), w: (3, Cin, Cout), b: (Cout,)
    # NOTE: for very large T*HW (e.g. T=32, 28x28 frames) this block could be T-chunked
    # with a 2-frame halo to stay comfortably inside v7x's 64 MiB VMEM.
    N, T, HW, Cin = x.shape
    Cout = w.shape[-1]
    w2 = w.reshape(3 * Cin, Cout)                     # im2col weight: row = kt*Cin + cin
    return pl.pallas_call(
        _temporal_kernel,
        out_shape=jax.ShapeDtypeStruct((N, T, HW, Cout), jnp.float32),
        grid=(N,),
        in_specs=[pl.BlockSpec((1, T, HW, Cin), lambda i: (i, 0, 0, 0)),
                  pl.BlockSpec((3 * Cin, Cout), lambda i: (0, 0)),
                  pl.BlockSpec((1, Cout), lambda i: (0, 0))],
        out_specs=pl.BlockSpec((1, T, HW, Cout), lambda i: (i, 0, 0, 0)),
        compiler_params=_PAR,
    )(x, w2, b.reshape(1, Cout))


def maxpool_pointwise_gelu(x, w):
    # x: (N, T, H, W, C), w: (C, Cout).  Fused MaxPool3d(3,1,1) + 1x1x1 conv + GELU.
    N, T, H, W, C = x.shape
    Cout = w.shape[-1]
    return pl.pallas_call(
        _pool_pointwise_kernel,
        out_shape=jax.ShapeDtypeStruct((N, T, H, W, Cout), jnp.float32),
        grid=(N,),
        in_specs=[pl.BlockSpec((1, T, H, W, C), lambda i: (i, 0, 0, 0, 0)),
                  pl.BlockSpec((C, Cout), lambda i: (0, 0))],
        out_specs=pl.BlockSpec((1, T, H, W, Cout), lambda i: (i, 0, 0, 0, 0)),
        compiler_params=_PAR,
    )(x, w)


# ----------------------------------------------------------------------------
# Mixed_3b forward
# ----------------------------------------------------------------------------
def mixed_3b_forward(x, p):
    # x: (N, C=64, T, H, W) float32 (PyTorch NCDHW layout)
    N, C, T, H, W = x.shape
    x_cl = jnp.transpose(x, (0, 2, 3, 4, 1))          # (N, T, H, W, C)
    x2d = x_cl.reshape(N * T * H * W, C)

    # fused input pointwise convs: 64 -> 32 (b0) | 32 (b1) | 16 (b2), GELU
    y0_2d, t1_2d, t2_2d = fused_input_pointwise(x2d, p['b0_w'], p['b1_w0'], p['b2_w0'])
    y0 = y0_2d.reshape(N, T, H, W, 32)

    # branch1: (1,3,3) 32->64 + bias + LReLU, then (3,1,1) 64->64 + bias + LReLU
    t1 = spatial_conv3x3(t1_2d.reshape(N * T, H, W, 32), p['b1_ws'], p['b1_bs'])
    y1 = temporal_conv3(t1.reshape(N, T, H * W, 64), p['b1_wt'], p['b1_bt'])
    y1 = y1.reshape(N, T, H, W, 64)

    # branch2: (1,3,3) 16->16 + bias + LReLU, then (3,1,1) 16->16 + bias + LReLU
    t2 = spatial_conv3x3(t2_2d.reshape(N * T, H, W, 16), p['b2_ws'], p['b2_bs'])
    y2 = temporal_conv3(t2.reshape(N, T, H * W, 16), p['b2_wt'], p['b2_bt'])
    y2 = y2.reshape(N, T, H, W, 16)

    # branch3: MaxPool3d(3,1,1) fused with 1x1x1 conv (64->16) + GELU
    y3 = maxpool_pointwise_gelu(x_cl, p['b3_w'])

    out_cl = jnp.concatenate([y0, y1, y2, y3], axis=-1)   # (N, T, H, W, 128)
    return jnp.transpose(out_cl, (0, 4, 1, 2, 3))          # back to NCDHW


def init_params(key):
    # Weights stored channels-last:
    #   pointwise -> (Cin, Cout); spatial -> (kH, kW, Cin, Cout); temporal -> (kT, Cin, Cout)
    ks = jax.random.split(key, 10)

    def nrm(k, shape, std=0.05):
        return (std * jax.random.normal(k, shape)).astype(jnp.float32)

    return {
        # branch0: BasicConv3d(64, 32, 1) — no bias
        'b0_w': nrm(ks[0], (64, 32)),
        # branch1: BasicConv3d(64, 32, 1) + STConv3d(32, 64, 3, 1, 1)
        'b1_w0': nrm(ks[1], (64, 32)),
        'b1_ws': nrm(ks[2], (3, 3, 32, 64)),
        'b1_bs': nrm(ks[3], (64,), 0.01),
        'b1_wt': nrm(ks[4], (3, 64, 64), 0.01),      # conv2: normal(0, 0.01)
        'b1_bt': jnp.zeros((64,), jnp.float32),       # conv2 bias: 0
        # branch2: BasicConv3d(64, 16, 1) + STConv3d(16, 16, 3, 1, 1)
        'b2_w0': nrm(ks[5], (64, 16)),
        'b2_ws': nrm(ks[6], (3, 3, 16, 16)),
        'b2_bs': nrm(ks[7], (16,), 0.01),
        'b2_wt': nrm(ks[8], (3, 16, 16), 0.01),
        'b2_bt': jnp.zeros((16,), jnp.float32),
        # branch3: MaxPool3d + BasicConv3d(64, 16, 1) — no bias
        'b3_w': nrm(ks[9], (64, 16)),
    }


# ----------------------------------------------------------------------------
# Pure-JAX reference (for correctness check)
# ----------------------------------------------------------------------------
def _ref_forward(x, p):
    def conv3d(inp, w, bias, pad):
        out = lax.conv_general_dilated(
            inp, w, window_strides=(1, 1, 1),
            padding=[(pad[0], pad[0]), (pad[1], pad[1]), (pad[2], pad[2])],
            dimension_numbers=('NCDHW', 'OIDHW', 'NCDHW'))
        if bias is not None:
            out = out + bias.reshape(1, -1, 1, 1, 1)
        return out

    def pw(w):      # (Cin, Cout) -> (Cout, Cin, 1, 1, 1)
        return w.T.reshape(w.shape[1], w.shape[0], 1, 1, 1)

    def sp(w):      # (3, 3, Cin, Cout) -> (Cout, Cin, 1, 3, 3)
        return jnp.transpose(w, (3, 2, 0, 1))[:, :, None, :, :]

    def tp(w):      # (3, Cin, Cout) -> (Cout, Cin, 3, 1, 1)
        return jnp.transpose(w, (2, 1, 0))[:, :, :, None, None]

    gelu = lambda v: jax.nn.gelu(v, approximate=False)

    x0 = gelu(conv3d(x, pw(p['b0_w']), None, (0, 0, 0)))

    x1 = gelu(conv3d(x, pw(p['b1_w0']), None, (0, 0, 0)))
    x1 = _leaky(conv3d(x1, sp(p['b1_ws']), p['b1_bs'], (0, 1, 1)))
    x1 = _leaky(conv3d(x1, tp(p['b1_wt']), p['b1_bt'], (1, 0, 0)))

    x2 = gelu(conv3d(x, pw(p['b2_w0']), None, (0, 0, 0)))
    x2 = _leaky(conv3d(x2, sp(p['b2_ws']), p['b2_bs'], (0, 1, 1)))
    x2 = _leaky(conv3d(x2, tp(p['b2_wt']), p['b2_bt'], (1, 0, 0)))

    x3 = lax.reduce_window(x, -jnp.inf, lax.max,
                           window_dimensions=(1, 1, 3, 3, 3),
                           window_strides=(1, 1, 1, 1, 1),
                           padding=((0, 0), (0, 0), (1, 1), (1, 1), (1, 1)))
    x3 = gelu(conv3d(x3, pw(p['b3_w']), None, (0, 0, 0)))

    return jnp.concatenate([x0, x1, x2, x3], axis=1)


if __name__ == "__main__":
    key = jax.random.PRNGKey(0)
    kx, kp = jax.random.split(key)

    # Small but module-consistent shapes: Cin must be 64 for Mixed_3b.
    N, C, T, H, W = 2, 64, 4, 8, 8
    x = jax.random.normal(kx, (N, C, T, H, W), dtype=jnp.float32)
    params = init_params(kp)

    out = jax.jit(mixed_3b_forward)(x, params)
    out = jax.block_until_ready(out)

    assert out.shape == (N, 32 + 64 + 16 + 16, T, H, W), out.shape
    assert out.dtype == jnp.float32
    assert bool(jnp.all(jnp.isfinite(out)))

    ref = jax.block_until_ready(jax.jit(_ref_forward)(x, params))
    max_err = float(jnp.max(jnp.abs(out - ref)))
    assert max_err < 5e-3, f"max abs error vs reference: {max_err}"

    print("KERNEL_OK")
</pallas_src>

<mosaic_0001>
module attributes {stable_mosaic.version = 11 : i64} {
  func.func @_fused_pointwise_kernel(%arg0: i32, %arg1: memref<512x64xf32, #tpu.memory_space<vmem>>, %arg2: memref<64x80xf32, #tpu.memory_space<vmem>>, %arg3: memref<512x32xf32, #tpu.memory_space<vmem>>, %arg4: memref<512x32xf32, #tpu.memory_space<vmem>>, %arg5: memref<512x16xf32, #tpu.memory_space<vmem>>) attributes {dimension_semantics = [#tpu.dimension_semantics<parallel>], iteration_bounds = array<i64: 1>, scalar_prefetch = 0 : i64, scratch_operands = 0 : i64, tpu.core_type = #tpu.core_type<tc>, window_params = [{transform_indices = @transform_0, window_bounds = array<i64: 512, 64>}, {pipeline_mode = #tpu.pipeline_mode<synchronous>, transform_indices = @transform_1, window_bounds = array<i64: 64, 80>}, {transform_indices = @transform_2, window_bounds = array<i64: 512, 32>}, {transform_indices = @transform_3, window_bounds = array<i64: 512, 32>}, {transform_indices = @transform_4, window_bounds = array<i64: 512, 16>}]} {
    %c0 = arith.constant 0 : index
    %c0_0 = arith.constant 0 : index
    %0 = vector.load %arg1[%c0, %c0_0] : memref<512x64xf32, #tpu.memory_space<vmem>>, vector<512x64xf32>
    %c0_1 = arith.constant 0 : index
    %c0_2 = arith.constant 0 : index
    %1 = vector.load %arg2[%c0_1, %c0_2] : memref<64x80xf32, #tpu.memory_space<vmem>>, vector<64x80xf32>
    %cst = arith.constant dense<0.000000e+00> : vector<512x80xf32>
    %2 = tpu.matmul %0, %1, %cst {dimension_numbers = #tpu.dot_dimension_numbers<[1], [0], [0], [1], [0, 0, 1, 1], [], []>} : vector<512x64xf32>, vector<64x80xf32>, vector<512x80xf32> -> vector<512x80xf32>
    %cst_3 = arith.constant 5.000000e-01 : f32
    %3 = vector.broadcast %cst_3 : f32 to vector<512x80xf32>
    %4 = arith.mulf %3, %2 : vector<512x80xf32>
    %cst_4 = arith.constant 1.41421354 : f32
    %5 = vector.broadcast %cst_4 : f32 to vector<512x80xf32>
    %6 = arith.divf %2, %5 : vector<512x80xf32>
    %7 = math.erf %6 : vector<512x80xf32>
    %cst_5 = arith.constant 1.000000e+00 : f32
    %8 = vector.broadcast %cst_5 : f32 to vector<512x80xf32>
    %9 = arith.addf %8, %7 : vector<512x80xf32>
    %10 = arith.mulf %4, %9 : vector<512x80xf32>
    %11 = vector.extract_strided_slice %10 {offsets = [0, 0], sizes = [512, 32], strides = [1, 1]} : vector<512x80xf32> to vector<512x32xf32>
    %c0_6 = arith.constant 0 : index
    %c0_7 = arith.constant 0 : index
    %12 = vector.load %arg3[%c0_6, %c0_7] : memref<512x32xf32, #tpu.memory_space<vmem>>, vector<512x32xf32>
    tpu.vector_store %arg3[%c0_6, %c0_7], %11 {strides = array<i32>} : memref<512x32xf32, #tpu.memory_space<vmem>>, vector<512x32xf32>,
    %13 = vector.extract_strided_slice %10 {offsets = [0, 32], sizes = [512, 32], strides = [1, 1]} : vector<512x80xf32> to vector<512x32xf32>
    %c0_8 = arith.constant 0 : index
    %c0_9 = arith.constant 0 : index
    %14 = vector.load %arg4[%c0_8, %c0_9] : memref<512x32xf32, #tpu.memory_space<vmem>>, vector<512x32xf32>
    tpu.vector_store %arg4[%c0_8, %c0_9], %13 {strides = array<i32>} : memref<512x32xf32, #tpu.memory_space<vmem>>, vector<512x32xf32>,
    %15 = vector.extract_strided_slice %10 {offsets = [0, 64], sizes = [512, 16], strides = [1, 1]} : vector<512x80xf32> to vector<512x16xf32>
    %c0_10 = arith.constant 0 : index
    %c0_11 = arith.constant 0 : index
    %16 = vector.load %arg5[%c0_10, %c0_11] : memref<512x16xf32, #tpu.memory_space<vmem>>, vector<512x16xf32>
    tpu.vector_store %arg5[%c0_10, %c0_11], %15 {strides = array<i32>} : memref<512x16xf32, #tpu.memory_space<vmem>>, vector<512x16xf32>,
    return
  }
  func.func @transform_0(%arg0: i32) -> (i32, i32) {
    %c0_i32 = arith.constant 0 : i32
    %c0_i32_0 = arith.constant 0 : i32
    return %arg0, %c0_i32 : i32, i32
  }
  func.func @transform_1(%arg0: i32) -> (i32, i32) {
    %c0_i32 = arith.constant 0 : i32
    %c0_i32_0 = arith.constant 0 : i32
    %c0_i32_1 = arith.constant 0 : i32
    return %c0_i32, %c0_i32_0 : i32, i32
  }
  func.func @transform_2(%arg0: i32) -> (i32, i32) {
    %c0_i32 = arith.constant 0 : i32
    %c0_i32_0 = arith.constant 0 : i32
    return %arg0, %c0_i32 : i32, i32
  }
  func.func @transform_3(%arg0: i32) -> (i32, i32) {
    %c0_i32 = arith.constant 0 : i32
    %c0_i32_0 = arith.constant 0 : i32
    return %arg0, %c0_i32 : i32, i32
  }
  func.func @transform_4(%arg0: i32) -> (i32, i32) {
    %c0_i32 = arith.constant 0 : i32
    %c0_i32_0 = arith.constant 0 : i32
    return %arg0, %c0_i32 : i32, i32
  }
}

module attributes {stable_mosaic.version = 11 : i64} {
  func.func @_pool_pointwise_kernel(%arg0: i32, %arg1: memref<1x4x8x8x64xf32, #tpu.memory_space<vmem>>, %arg2: memref<64x16xf32, #tpu.memory_space<vmem>>, %arg3: memref<1x4x8x8x16xf32, #tpu.memory_space<vmem>>) attributes {dimension_semantics = [#tpu.dimension_semantics<parallel>], iteration_bounds = array<i64: 2>, scalar_prefetch = 0 : i64, scratch_operands = 0 : i64, tpu.core_type = #tpu.core_type<tc>, window_params = [{transform_indices = @transform_0, window_bounds = array<i64: 1, 4, 8, 8, 64>}, {pipeline_mode = #tpu.pipeline_mode<synchronous>, transform_indices = @transform_1, window_bounds = array<i64: 64, 16>}, {transform_indices = @transform_2, window_bounds = array<i64: 1, 4, 8, 8, 16>}]} {
    %c0 = arith.constant 0 : index
    %c0_0 = arith.constant 0 : index
    %c0_1 = arith.constant 0 : index
    %c0_2 = arith.constant 0 : index
    %c0_3 = arith.constant 0 : index
    %0 = vector.load %arg1[%c0, %c0_0, %c0_1, %c0_2, %c0_3] : memref<1x4x8x8x64xf32, #tpu.memory_space<vmem>>, vector<1x4x8x8x64xf32>
    %1 = vector.shape_cast %0 : vector<1x4x8x8x64xf32> to vector<4x8x8x64xf32>
    %2 = vector.extract_strided_slice %1 {offsets = [0, 0, 1, 0], sizes = [4, 8, 7, 64], strides = [1, 1, 1, 1]} : vector<4x8x8x64xf32> to vector<4x8x7x64xf32>
    %3 = vector.extract_strided_slice %1 {offsets = [0, 0, 7, 0], sizes = [4, 8, 1, 64], strides = [1, 1, 1, 1]} : vector<4x8x8x64xf32> to vector<4x8x1x64xf32>
    %4 = tpu.concatenate %2, %3 in 2 : vector<4x8x7x64xf32>, vector<4x8x1x64xf32> -> vector<4x8x8x64xf32>
    %5 = vector.extract_strided_slice %1 {offsets = [0, 0, 0, 0], sizes = [4, 8, 1, 64], strides = [1, 1, 1, 1]} : vector<4x8x8x64xf32> to vector<4x8x1x64xf32>
    %6 = vector.extract_strided_slice %1 {offsets = [0, 0, 0, 0], sizes = [4, 8, 7, 64], strides = [1, 1, 1, 1]} : vector<4x8x8x64xf32> to vector<4x8x7x64xf32>
    %7 = tpu.concatenate %5, %6 in 2 : vector<4x8x1x64xf32>, vector<4x8x7x64xf32> -> vector<4x8x8x64xf32>
    %8 = arith.maximumf %4, %7 : vector<4x8x8x64xf32>
    %9 = arith.maximumf %1, %8 : vector<4x8x8x64xf32>
    %10 = vector.extract_strided_slice %9 {offsets = [0, 1, 0, 0], sizes = [4, 7, 8, 64], strides = [1, 1, 1, 1]} : vector<4x8x8x64xf32> to vector<4x7x8x64xf32>
    %11 = vector.extract_strided_slice %9 {offsets = [0, 7, 0, 0], sizes = [4, 1, 8, 64], strides = [1, 1, 1, 1]} : vector<4x8x8x64xf32> to vector<4x1x8x64xf32>
    %12 = tpu.concatenate %10, %11 in 1 : vector<4x7x8x64xf32>, vector<4x1x8x64xf32> -> vector<4x8x8x64xf32>
    %13 = vector.extract_strided_slice %9 {offsets = [0, 0, 0, 0], sizes = [4, 1, 8, 64], strides = [1, 1, 1, 1]} : vector<4x8x8x64xf32> to vector<4x1x8x64xf32>
    %14 = vector.extract_strided_slice %9 {offsets = [0, 0, 0, 0], sizes = [4, 7, 8, 64], strides = [1, 1, 1, 1]} : vector<4x8x8x64xf32> to vector<4x7x8x64xf32>
    %15 = tpu.concatenate %13, %14 in 1 : vector<4x1x8x64xf32>, vector<4x7x8x64xf32> -> vector<4x8x8x64xf32>
    %16 = arith.maximumf %12, %15 : vector<4x8x8x64xf32>
    %17 = arith.maximumf %9, %16 : vector<4x8x8x64xf32>
    %18 = vector.extract_strided_slice %17 {offsets = [1, 0, 0, 0], sizes = [3, 8, 8, 64], strides = [1, 1, 1, 1]} : vector<4x8x8x64xf32> to vector<3x8x8x64xf32>
    %19 = vector.extract_strided_slice %17 {offsets = [3, 0, 0, 0], sizes = [1, 8, 8, 64], strides = [1, 1, 1, 1]} : vector<4x8x8x64xf32> to vector<1x8x8x64xf32>
    %20 = tpu.concatenate %18, %19 in 0 : vector<3x8x8x64xf32>, vector<1x8x8x64xf32> -> vector<4x8x8x64xf32>
    %21 = vector.extract_strided_slice %17 {offsets = [0, 0, 0, 0], sizes = [1, 8, 8, 64], strides = [1, 1, 1, 1]} : vector<4x8x8x64xf32> to vector<1x8x8x64xf32>
    %22 = vector.extract_strided_slice %17 {offsets = [0, 0, 0, 0], sizes = [3, 8, 8, 64], strides = [1, 1, 1, 1]} : vector<4x8x8x64xf32> to vector<3x8x8x64xf32>
    %23 = tpu.concatenate %21, %22 in 0 : vector<1x8x8x64xf32>, vector<3x8x8x64xf32> -> vector<4x8x8x64xf32>
    %24 = arith.maximumf %20, %23 : vector<4x8x8x64xf32>
    %25 = arith.maximumf %17, %24 : vector<4x8x8x64xf32>
    %26 = vector.shape_cast %25 : vector<4x8x8x64xf32> to vector<256x64xf32>
    %c0_4 = arith.constant 0 : index
    %c0_5 = arith.constant 0 : index
    %27 = vector.load %arg2[%c0_4, %c0_5] : memref<64x16xf32, #tpu.memory_space<vmem>>, vector<64x16xf32>
    %cst = arith.constant dense<0.000000e+00> : vector<256x16xf32>
    %28 = tpu.matmul %26, %27, %cst {dimension_numbers = #tpu.dot_dimension_numbers<[1], [0], [0], [1], [0, 0, 1, 1], [], []>} : vector<256x64xf32>, vector<64x16xf32>, vector<256x16xf32> -> vector<256x16xf32>
    %cst_6 = arith.constant 5.000000e-01 : f32
    %29 = vector.broadcast %cst_6 : f32 to vector<256x16xf32>
    %30 = arith.mulf %29, %28 : vector<256x16xf32>
    %cst_7 = arith.constant 1.41421354 : f32
    %31 = vector.broadcast %cst_7 : f32 to vector<256x16xf32>
    %32 = arith.divf %28, %31 : vector<256x16xf32>
    %33 = math.erf %32 : vector<256x16xf32>
    %cst_8 = arith.constant 1.000000e+00 : f32
    %34 = vector.broadcast %cst_8 : f32 to vector<256x16xf32>
    %35 = arith.addf %34, %33 : vector<256x16xf32>
    %36 = arith.mulf %30, %35 : vector<256x16xf32>
    %37 = vector.shape_cast %36 : vector<256x16xf32> to vector<1x4x8x8x16xf32>
    %c0_9 = arith.constant 0 : index
    %c0_10 = arith.constant 0 : index
    %c0_11 = arith.constant 0 : index
    %c0_12 = arith.constant 0 : index
    %c0_13 = arith.constant 0 : index
    %38 = vector.load %arg3[%c0_9, %c0_10, %c0_11, %c0_12, %c0_13] : memref<1x4x8x8x16xf32, #tpu.memory_space<vmem>>, vector<1x4x8x8x16xf32>
    tpu.vector_store %arg3[%c0_9, %c0_10, %c0_11, %c0_12, %c0_13], %37 {strides = array<i32>} : memref<1x4x8x8x16xf32, #tpu.memory_space<vmem>>, vector<1x4x8x8x16xf32>,
    return
  }
  func.func @transform_0(%arg0: i32) -> (i32, i32, i32, i32, i32) {
    %c0_i32 = arith.constant 0 : i32
    %c0_i32_0 = arith.constant 0 : i32
    %c0_i32_1 = arith.constant 0 : i32
    %c0_i32_2 = arith.constant 0 : i32
    %c0_i32_3 = arith.constant 0 : i32
    return %arg0, %c0_i32, %c0_i32_0, %c0_i32_1, %c0_i32_2 : i32, i32, i32, i32, i32
  }
  func.func @transform_1(%arg0: i32) -> (i32, i32) {
    %c0_i32 = arith.constant 0 : i32
    %c0_i32_0 = arith.constant 0 : i32
    %c0_i32_1 = arith.constant 0 : i32
    return %c0_i32, %c0_i32_0 : i32, i32
  }
  func.func @transform_2(%arg0: i32) -> (i32, i32, i32, i32, i32) {
    %c0_i32 = arith.constant 0 : i32
    %c0_i32_0 = arith.constant 0 : i32
    %c0_i32_1 = arith.constant 0 : i32
    %c0_i32_2 = arith.constant 0 : i32
    %c0_i32_3 = arith.constant 0 : i32
    return %arg0, %c0_i32, %c0_i32_0, %c0_i32_1, %c0_i32_2 : i32, i32, i32, i32, i32
  }
}

module attributes {stable_mosaic.version = 11 : i64} {
  func.func @_spatial_kernel(%arg0: i32, %arg1: memref<8x8x8x32xf32, #tpu.memory_space<vmem>>, %arg2: memref<288x64xf32, #tpu.memory_space<vmem>>, %arg3: memref<1x64xf32, #tpu.memory_space<vmem>>, %arg4: memref<8x8x8x64xf32, #tpu.memory_space<vmem>>) attributes {dimension_semantics = [#tpu.dimension_semantics<parallel>], iteration_bounds = array<i64: 1>, scalar_prefetch = 0 : i64, scratch_operands = 0 : i64, tpu.core_type = #tpu.core_type<tc>, window_params = [{transform_indices = @transform_0, window_bounds = array<i64: 8, 8, 8, 32>}, {pipeline_mode = #tpu.pipeline_mode<synchronous>, transform_indices = @transform_1, window_bounds = array<i64: 288, 64>}, {pipeline_mode = #tpu.pipeline_mode<synchronous>, transform_indices = @transform_2, window_bounds = array<i64: 1, 64>}, {transform_indices = @transform_3, window_bounds = array<i64: 8, 8, 8, 64>}]} {
    %c0 = arith.constant 0 : index
    %c0_0 = arith.constant 0 : index
    %c0_1 = arith.constant 0 : index
    %c0_2 = arith.constant 0 : index
    %0 = vector.load %arg1[%c0, %c0_0, %c0_1, %c0_2] : memref<8x8x8x32xf32, #tpu.memory_space<vmem>>, vector<8x8x8x32xf32>
    %cst = arith.constant 0.000000e+00 : f32
    %1 = vector.broadcast %cst : f32 to vector<8x1x8x32xf32>
    %2 = tpu.concatenate %1, %0, %1 in 1 : vector<8x1x8x32xf32>, vector<8x8x8x32xf32>, vector<8x1x8x32xf32> -> vector<8x10x8x32xf32>
    %cst_3 = arith.constant 0.000000e+00 : f32
    %3 = vector.broadcast %cst_3 : f32 to vector<8x10x1x32xf32>
    %4 = tpu.concatenate %3, %2, %3 in 2 : vector<8x10x1x32xf32>, vector<8x10x8x32xf32>, vector<8x10x1x32xf32> -> vector<8x10x10x32xf32>
    %5 = vector.extract_strided_slice %4 {offsets = [0, 0, 0, 0], sizes = [8, 8, 8, 32], strides = [1, 1, 1, 1]} : vector<8x10x10x32xf32> to vector<8x8x8x32xf32>
    %6 = vector.shape_cast %5 : vector<8x8x8x32xf32> to vector<512x32xf32>
    %7 = vector.extract_strided_slice %4 {offsets = [0, 0, 1, 0], sizes = [8, 8, 8, 32], strides = [1, 1, 1, 1]} : vector<8x10x10x32xf32> to vector<8x8x8x32xf32>
    %8 = vector.shape_cast %7 : vector<8x8x8x32xf32> to vector<512x32xf32>
    %9 = vector.extract_strided_slice %4 {offsets = [0, 0, 2, 0], sizes = [8, 8, 8, 32], strides = [1, 1, 1, 1]} : vector<8x10x10x32xf32> to vector<8x8x8x32xf32>
    %10 = vector.shape_cast %9 : vector<8x8x8x32xf32> to vector<512x32xf32>
    %11 = vector.extract_strided_slice %4 {offsets = [0, 1, 0, 0], sizes = [8, 8, 8, 32], strides = [1, 1, 1, 1]} : vector<8x10x10x32xf32> to vector<8x8x8x32xf32>
    %12 = vector.shape_cast %11 : vector<8x8x8x32xf32> to vector<512x32xf32>
    %13 = vector.extract_strided_slice %4 {offsets = [0, 1, 1, 0], sizes = [8, 8, 8, 32], strides = [1, 1, 1, 1]} : vector<8x10x10x32xf32> to vector<8x8x8x32xf32>
    %14 = vector.shape_cast %13 : vector<8x8x8x32xf32> to vector<512x32xf32>
    %15 = vector.extract_strided_slice %4 {offsets = [0, 1, 2, 0], sizes = [8, 8, 8, 32], strides = [1, 1, 1, 1]} : vector<8x10x10x32xf32> to vector<8x8x8x32xf32>
    %16 = vector.shape_cast %15 : vector<8x8x8x32xf32> to vector<512x32xf32>
    %17 = vector.extract_strided_slice %4 {offsets = [0, 2, 0, 0], sizes = [8, 8, 8, 32], strides = [1, 1, 1, 1]} : vector<8x10x10x32xf32> to vector<8x8x8x32xf32>
    %18 = vector.shape_cast %17 : vector<8x8x8x32xf32> to vector<512x32xf32>
    %19 = vector.extract_strided_slice %4 {offsets = [0, 2, 1, 0], sizes = [8, 8, 8, 32], strides = [1, 1, 1, 1]} : vector<8x10x10x32xf32> to vector<8x8x8x32xf32>
    %20 = vector.shape_cast %19 : vector<8x8x8x32xf32> to vector<512x32xf32>
    %21 = vector.extract_strided_slice %4 {offsets = [0, 2, 2, 0], sizes = [8, 8, 8, 32], strides = [1, 1, 1, 1]} : vector<8x10x10x32xf32> to vector<8x8x8x32xf32>
    %22 = vector.shape_cast %21 : vector<8x8x8x32xf32> to vector<512x32xf32>
    %23 = tpu.concatenate %6, %8, %10, %12, %14, %16, %18, %20, %22 in 1 : vector<512x32xf32>, vector<512x32xf32>, vector<512x32xf32>, vector<512x32xf32>, vector<512x32xf32>, vector<512x32xf32>, vector<512x32xf32>, vector<512x32xf32>, vector<512x32xf32> -> vector<512x288xf32>
    %c0_4 = arith.constant 0 : index
    %c0_5 = arith.constant 0 : index
    %24 = vector.load %arg2[%c0_4, %c0_5] : memref<288x64xf32, #tpu.memory_space<vmem>>, vector<288x64xf32>
    %cst_6 = arith.constant dense<0.000000e+00> : vector<512x64xf32>
    %25 = tpu.matmul %23, %24, %cst_6 {dimension_numbers = #tpu.dot_dimension_numbers<[1], [0], [0], [1], [0, 0, 1, 1], [], []>} : vector<512x288xf32>, vector<288x64xf32>, vector<512x64xf32> -> vector<512x64xf32>
    %c0_7 = arith.constant 0 : index
    %c0_8 = arith.constant 0 : index
    %26 = vector.load %arg3[%c0_7, %c0_8] : memref<1x64xf32, #tpu.memory_space<vmem>>, vector<1x64xf32>
    %27 = vector.broadcast %26 : vector<1x64xf32> to vector<512x64xf32>
    %28 = arith.addf %25, %27 : vector<512x64xf32>
    %cst_9 = arith.constant 0.000000e+00 : f32
    %29 = vector.broadcast %cst_9 : f32 to vector<512x64xf32>
    %30 = arith.cmpf oge, %28, %29 : vector<512x64xf32>
    %cst_10 = arith.constant 0.00999999977 : f32
    %31 = vector.broadcast %cst_10 : f32 to vector<512x64xf32>
    %32 = arith.mulf %31, %28 : vector<512x64xf32>
    %33 = arith.select %30, %28, %32 : vector<512x64xi1>, vector<512x64xf32>
    %34 = vector.shape_cast %33 : vector<512x64xf32> to vector<8x8x8x64xf32>
    %c0_11 = arith.constant 0 : index
    %c0_12 = arith.constant 0 : index
    %c0_13 = arith.constant 0 : index
    %c0_14 = arith.constant 0 : index
    %35 = vector.load %arg4[%c0_11, %c0_12, %c0_13, %c0_14] : memref<8x8x8x64xf32, #tpu.memory_space<vmem>>, vector<8x8x8x64xf32>
    tpu.vector_store %arg4[%c0_11, %c0_12, %c0_13, %c0_14], %34 {strides = array<i32>} : memref<8x8x8x64xf32, #tpu.memory_space<vmem>>, vector<8x8x8x64xf32>,
    return
  }
  func.func @transform_0(%arg0: i32) -> (i32, i32, i32, i32) {
    %c0_i32 = arith.constant 0 : i32
    %c0_i32_0 = arith.constant 0 : i32
    %c0_i32_1 = arith.constant 0 : i32
    %c0_i32_2 = arith.constant 0 : i32
    return %arg0, %c0_i32, %c0_i32_0, %c0_i32_1 : i32, i32, i32, i32
  }
  func.func @transform_1(%arg0: i32) -> (i32, i32) {
    %c0_i32 = arith.constant 0 : i32
    %c0_i32_0 = arith.constant 0 : i32
    %c0_i32_1 = arith.constant 0 : i32
    return %c0_i32, %c0_i32_0 : i32, i32
  }
  func.func @transform_2(%arg0: i32) -> (i32, i32) {
    %c0_i32 = arith.constant 0 : i32
    %c0_i32_0 = arith.constant 0 : i32
    %c0_i32_1 = arith.constant 0 : i32
    return %c0_i32, %c0_i32_0 : i32, i32
  }
  func.func @transform_3(%arg0: i32) -> (i32, i32, i32, i32) {
    %c0_i32 = arith.constant 0 : i32
    %c0_i32_0 = arith.constant 0 : i32
    %c0_i32_1 = arith.constant 0 : i32
    %c0_i32_2 = arith.constant 0 : i32
    return %arg0, %c0_i32, %c0_i32_0, %c0_i32_1 : i32, i32, i32, i32
  }
}

module attributes {stable_mosaic.version = 11 : i64} {
  func.func @_temporal_kernel(%arg0: i32, %arg1: memref<1x4x64x64xf32, #tpu.memory_space<vmem>>, %arg2: memref<192x64xf32, #tpu.memory_space<vmem>>, %arg3: memref<1x64xf32, #tpu.memory_space<vmem>>, %arg4: memref<1x4x64x64xf32, #tpu.memory_space<vmem>>) attributes {dimension_semantics = [#tpu.dimension_semantics<parallel>], iteration_bounds = array<i64: 2>, scalar_prefetch = 0 : i64, scratch_operands = 0 : i64, tpu.core_type = #tpu.core_type<tc>, window_params = [{transform_indices = @transform_0, window_bounds = array<i64: 1, 4, 64, 64>}, {pipeline_mode = #tpu.pipeline_mode<synchronous>, transform_indices = @transform_1, window_bounds = array<i64: 192, 64>}, {pipeline_mode = #tpu.pipeline_mode<synchronous>, transform_indices = @transform_2, window_bounds = array<i64: 1, 64>}, {transform_indices = @transform_3, window_bounds = array<i64: 1, 4, 64, 64>}]} {
    %c0 = arith.constant 0 : index
    %c0_0 = arith.constant 0 : index
    %c0_1 = arith.constant 0 : index
    %c0_2 = arith.constant 0 : index
    %0 = vector.load %arg1[%c0, %c0_0, %c0_1, %c0_2] : memref<1x4x64x64xf32, #tpu.memory_space<vmem>>, vector<1x4x64x64xf32>
    %1 = vector.shape_cast %0 : vector<1x4x64x64xf32> to vector<4x64x64xf32>
    %cst = arith.constant 0.000000e+00 : f32
    %2 = vector.broadcast %cst : f32 to vector<1x64x64xf32>
    %3 = tpu.concatenate %2, %1, %2 in 0 : vector<1x64x64xf32>, vector<4x64x64xf32>, vector<1x64x64xf32> -> vector<6x64x64xf32>
    %4 = vector.extract_strided_slice %3 {offsets = [0, 0, 0], sizes = [4, 64, 64], strides = [1, 1, 1]} : vector<6x64x64xf32> to vector<4x64x64xf32>
    %5 = vector.shape_cast %4 : vector<4x64x64xf32> to vector<256x64xf32>
    %6 = vector.extract_strided_slice %3 {offsets = [1, 0, 0], sizes = [4, 64, 64], strides = [1, 1, 1]} : vector<6x64x64xf32> to vector<4x64x64xf32>
    %7 = vector.shape_cast %6 : vector<4x64x64xf32> to vector<256x64xf32>
    %8 = vector.extract_strided_slice %3 {offsets = [2, 0, 0], sizes = [4, 64, 64], strides = [1, 1, 1]} : vector<6x64x64xf32> to vector<4x64x64xf32>
    %9 = vector.shape_cast %8 : vector<4x64x64xf32> to vector<256x64xf32>
    %10 = tpu.concatenate %5, %7, %9 in 1 : vector<256x64xf32>, vector<256x64xf32>, vector<256x64xf32> -> vector<256x192xf32>
    %c0_3 = arith.constant 0 : index
    %c0_4 = arith.constant 0 : index
    %11 = vector.load %arg2[%c0_3, %c0_4] : memref<192x64xf32, #tpu.memory_space<vmem>>, vector<192x64xf32>
    %cst_5 = arith.constant dense<0.000000e+00> : vector<256x64xf32>
    %12 = tpu.matmul %10, %11, %cst_5 {dimension_numbers = #tpu.dot_dimension_numbers<[1], [0], [0], [1], [0, 0, 1, 1], [], []>} : vector<256x192xf32>, vector<192x64xf32>, vector<256x64xf32> -> vector<256x64xf32>
    %c0_6 = arith.constant 0 : index
    %c0_7 = arith.constant 0 : index
    %13 = vector.load %arg3[%c0_6, %c0_7] : memref<1x64xf32, #tpu.memory_space<vmem>>, vector<1x64xf32>
    %14 = vector.broadcast %13 : vector<1x64xf32> to vector<256x64xf32>
    %15 = arith.addf %12, %14 : vector<256x64xf32>
    %cst_8 = arith.constant 0.000000e+00 : f32
    %16 = vector.broadcast %cst_8 : f32 to vector<256x64xf32>
    %17 = arith.cmpf oge, %15, %16 : vector<256x64xf32>
    %cst_9 = arith.constant 0.00999999977 : f32
    %18 = vector.broadcast %cst_9 : f32 to vector<256x64xf32>
    %19 = arith.mulf %18, %15 : vector<256x64xf32>
    %20 = arith.select %17, %15, %19 : vector<256x64xi1>, vector<256x64xf32>
    %21 = vector.shape_cast %20 : vector<256x64xf32> to vector<1x4x64x64xf32>
    %c0_10 = arith.constant 0 : index
    %c0_11 = arith.constant 0 : index
    %c0_12 = arith.constant 0 : index
    %c0_13 = arith.constant 0 : index
    %22 = vector.load %arg4[%c0_10, %c0_11, %c0_12, %c0_13] : memref<1x4x64x64xf32, #tpu.memory_space<vmem>>, vector<1x4x64x64xf32>
    tpu.vector_store %arg4[%c0_10, %c0_11, %c0_12, %c0_13], %21 {strides = array<i32>} : memref<1x4x64x64xf32, #tpu.memory_space<vmem>>, vector<1x4x64x64xf32>,
    return
  }
  func.func @transform_0(%arg0: i32) -> (i32, i32, i32, i32) {
    %c0_i32 = arith.constant 0 : i32
    %c0_i32_0 = arith.constant 0 : i32
    %c0_i32_1 = arith.constant 0 : i32
    %c0_i32_2 = arith.constant 0 : i32
    return %arg0, %c0_i32, %c0_i32_0, %c0_i32_1 : i32, i32, i32, i32
  }
  func.func @transform_1(%arg0: i32) -> (i32, i32) {
    %c0_i32 = arith.constant 0 : i32
    %c0_i32_0 = arith.constant 0 : i32
    %c0_i32_1 = arith.constant 0 : i32
    return %c0_i32, %c0_i32_0 : i32, i32
  }
  func.func @transform_2(%arg0: i32) -> (i32, i32) {
    %c0_i32 = arith.constant 0 : i32
    %c0_i32_0 = arith.constant 0 : i32
    %c0_i32_1 = arith.constant 0 : i32
    return %c0_i32, %c0_i32_0 : i32, i32
  }
  func.func @transform_3(%arg0: i32) -> (i32, i32, i32, i32) {
    %c0_i32 = arith.constant 0 : i32
    %c0_i32_0 = arith.constant 0 : i32
    %c0_i32_1 = arith.constant 0 : i32
    %c0_i32_2 = arith.constant 0 : i32
    return %arg0, %c0_i32, %c0_i32_0, %c0_i32_1 : i32, i32, i32, i32
  }
}

module attributes {stable_mosaic.version = 11 : i64} {
  func.func @_temporal_kernel(%arg0: i32, %arg1: memref<1x4x64x16xf32, #tpu.memory_space<vmem>>, %arg2: memref<48x16xf32, #tpu.memory_space<vmem>>, %arg3: memref<1x16xf32, #tpu.memory_space<vmem>>, %arg4: memref<1x4x64x16xf32, #tpu.memory_space<vmem>>) attributes {dimension_semantics = [#tpu.dimension_semantics<parallel>], iteration_bounds = array<i64: 2>, scalar_prefetch = 0 : i64, scratch_operands = 0 : i64, tpu.core_type = #tpu.core_type<tc>, window_params = [{transform_indices = @transform_0, window_bounds = array<i64: 1, 4, 64, 16>}, {pipeline_mode = #tpu.pipeline_mode<synchronous>, transform_indices = @transform_1, window_bounds = array<i64: 48, 16>}, {pipeline_mode = #tpu.pipeline_mode<synchronous>, transform_indices = @transform_2, window_bounds = array<i64: 1, 16>}, {transform_indices = @transform_3, window_bounds = array<i64: 1, 4, 64, 16>}]} {
    %c0 = arith.constant 0 : index
    %c0_0 = arith.constant 0 : index
    %c0_1 = arith.constant 0 : index
    %c0_2 = arith.constant 0 : index
    %0 = vector.load %arg1[%c0, %c0_0, %c0_1, %c0_2] : memref<1x4x64x16xf32, #tpu.memory_space<vmem>>, vector<1x4x64x16xf32>
    %1 = vector.shape_cast %0 : vector<1x4x64x16xf32> to vector<4x64x16xf32>
    %cst = arith.constant 0.000000e+00 : f32
    %2 = vector.broadcast %cst : f32 to vector<1x64x16xf32>
    %3 = tpu.concatenate %2, %1, %2 in 0 : vector<1x64x16xf32>, vector<4x64x16xf32>, vector<1x64x16xf32> -> vector<6x64x16xf32>
    %4 = vector.extract_strided_slice %3 {offsets = [0, 0, 0], sizes = [4, 64, 16], strides = [1, 1, 1]} : vector<6x64x16xf32> to vector<4x64x16xf32>
    %5 = vector.shape_cast %4 : vector<4x64x16xf32> to vector<256x16xf32>
    %6 = vector.extract_strided_slice %3 {offsets = [1, 0, 0], sizes = [4, 64, 16], strides = [1, 1, 1]} : vector<6x64x16xf32> to vector<4x64x16xf32>
    %7 = vector.shape_cast %6 : vector<4x64x16xf32> to vector<256x16xf32>
    %8 = vector.extract_strided_slice %3 {offsets = [2, 0, 0], sizes = [4, 64, 16], strides = [1, 1, 1]} : vector<6x64x16xf32> to vector<4x64x16xf32>
    %9 = vector.shape_cast %8 : vector<4x64x16xf32> to vector<256x16xf32>
    %10 = tpu.concatenate %5, %7, %9 in 1 : vector<256x16xf32>, vector<256x16xf32>, vector<256x16xf32> -> vector<256x48xf32>
    %c0_3 = arith.constant 0 : index
    %c0_4 = arith.constant 0 : index
    %11 = vector.load %arg2[%c0_3, %c0_4] : memref<48x16xf32, #tpu.memory_space<vmem>>, vector<48x16xf32>
    %cst_5 = arith.constant dense<0.000000e+00> : vector<256x16xf32>
    %12 = tpu.matmul %10, %11, %cst_5 {dimension_numbers = #tpu.dot_dimension_numbers<[1], [0], [0], [1], [0, 0, 1, 1], [], []>} : vector<256x48xf32>, vector<48x16xf32>, vector<256x16xf32> -> vector<256x16xf32>
    %c0_6 = arith.constant 0 : index
    %c0_7 = arith.constant 0 : index
    %13 = vector.load %arg3[%c0_6, %c0_7] : memref<1x16xf32, #tpu.memory_space<vmem>>, vector<1x16xf32>
    %14 = vector.broadcast %13 : vector<1x16xf32> to vector<256x16xf32>
    %15 = arith.addf %12, %14 : vector<256x16xf32>
    %cst_8 = arith.constant 0.000000e+00 : f32
    %16 = vector.broadcast %cst_8 : f32 to vector<256x16xf32>
    %17 = arith.cmpf oge, %15, %16 : vector<256x16xf32>
    %cst_9 = arith.constant 0.00999999977 : f32
    %18 = vector.broadcast %cst_9 : f32 to vector<256x16xf32>
    %19 = arith.mulf %18, %15 : vector<256x16xf32>
    %20 = arith.select %17, %15, %19 : vector<256x16xi1>, vector<256x16xf32>
    %21 = vector.shape_cast %20 : vector<256x16xf32> to vector<1x4x64x16xf32>
    %c0_10 = arith.constant 0 : index
    %c0_11 = arith.constant 0 : index
    %c0_12 = arith.constant 0 : index
    %c0_13 = arith.constant 0 : index
    %22 = vector.load %arg4[%c0_10, %c0_11, %c0_12, %c0_13] : memref<1x4x64x16xf32, #tpu.memory_space<vmem>>, vector<1x4x64x16xf32>
    tpu.vector_store %arg4[%c0_10, %c0_11, %c0_12, %c0_13], %21 {strides = array<i32>} : memref<1x4x64x16xf32, #tpu.memory_space<vmem>>, vector<1x4x64x16xf32>,
    return
  }
  func.func @transform_0(%arg0: i32) -> (i32, i32, i32, i32) {
    %c0_i32 = arith.constant 0 : i32
    %c0_i32_0 = arith.constant 0 : i32
    %c0_i32_1 = arith.constant 0 : i32
    %c0_i32_2 = arith.constant 0 : i32
    return %arg0, %c0_i32, %c0_i32_0, %c0_i32_1 : i32, i32, i32, i32
  }
  func.func @transform_1(%arg0: i32) -> (i32, i32) {
    %c0_i32 = arith.constant 0 : i32
    %c0_i32_0 = arith.constant 0 : i32
    %c0_i32_1 = arith.constant 0 : i32
    return %c0_i32, %c0_i32_0 : i32, i32
  }
  func.func @transform_2(%arg0: i32) -> (i32, i32) {
    %c0_i32 = arith.constant 0 : i32
    %c0_i32_0 = arith.constant 0 : i32
    %c0_i32_1 = arith.constant 0 : i32
    return %c0_i32, %c0_i32_0 : i32, i32
  }
  func.func @transform_3(%arg0: i32) -> (i32, i32, i32, i32) {
    %c0_i32 = arith.constant 0 : i32
    %c0_i32_0 = arith.constant 0 : i32
    %c0_i32_1 = arith.constant 0 : i32
    %c0_i32_2 = arith.constant 0 : i32
    return %arg0, %c0_i32, %c0_i32_0, %c0_i32_1 : i32, i32, i32, i32
  }
}

module attributes {stable_mosaic.version = 11 : i64} {
  func.func @_spatial_kernel(%arg0: i32, %arg1: memref<8x8x8x16xf32, #tpu.memory_space<vmem>>, %arg2: memref<144x16xf32, #tpu.memory_space<vmem>>, %arg3: memref<1x16xf32, #tpu.memory_space<vmem>>, %arg4: memref<8x8x8x16xf32, #tpu.memory_space<vmem>>) attributes {dimension_semantics = [#tpu.dimension_semantics<parallel>], iteration_bounds = array<i64: 1>, scalar_prefetch = 0 : i64, scratch_operands = 0 : i64, tpu.core_type = #tpu.core_type<tc>, window_params = [{transform_indices = @transform_0, window_bounds = array<i64: 8, 8, 8, 16>}, {pipeline_mode = #tpu.pipeline_mode<synchronous>, transform_indices = @transform_1, window_bounds = array<i64: 144, 16>}, {pipeline_mode = #tpu.pipeline_mode<synchronous>, transform_indices = @transform_2, window_bounds = array<i64: 1, 16>}, {transform_indices = @transform_3, window_bounds = array<i64: 8, 8, 8, 16>}]} {
    %c0 = arith.constant 0 : index
    %c0_0 = arith.constant 0 : index
    %c0_1 = arith.constant 0 : index
    %c0_2 = arith.constant 0 : index
    %0 = vector.load %arg1[%c0, %c0_0, %c0_1, %c0_2] : memref<8x8x8x16xf32, #tpu.memory_space<vmem>>, vector<8x8x8x16xf32>
    %cst = arith.constant 0.000000e+00 : f32
    %1 = vector.broadcast %cst : f32 to vector<8x1x8x16xf32>
    %2 = tpu.concatenate %1, %0, %1 in 1 : vector<8x1x8x16xf32>, vector<8x8x8x16xf32>, vector<8x1x8x16xf32> -> vector<8x10x8x16xf32>
    %cst_3 = arith.constant 0.000000e+00 : f32
    %3 = vector.broadcast %cst_3 : f32 to vector<8x10x1x16xf32>
    %4 = tpu.concatenate %3, %2, %3 in 2 : vector<8x10x1x16xf32>, vector<8x10x8x16xf32>, vector<8x10x1x16xf32> -> vector<8x10x10x16xf32>
    %5 = vector.extract_strided_slice %4 {offsets = [0, 0, 0, 0], sizes = [8, 8, 8, 16], strides = [1, 1, 1, 1]} : vector<8x10x10x16xf32> to vector<8x8x8x16xf32>
    %6 = vector.shape_cast %5 : vector<8x8x8x16xf32> to vector<512x16xf32>
    %7 = vector.extract_strided_slice %4 {offsets = [0, 0, 1, 0], sizes = [8, 8, 8, 16], strides = [1, 1, 1, 1]} : vector<8x10x10x16xf32> to vector<8x8x8x16xf32>
    %8 = vector.shape_cast %7 : vector<8x8x8x16xf32> to vector<512x16xf32>
    %9 = vector.extract_strided_slice %4 {offsets = [0, 0, 2, 0], sizes = [8, 8, 8, 16], strides = [1, 1, 1, 1]} : vector<8x10x10x16xf32> to vector<8x8x8x16xf32>
    %10 = vector.shape_cast %9 : vector<8x8x8x16xf32> to vector<512x16xf32>
    %11 = vector.extract_strided_slice %4 {offsets = [0, 1, 0, 0], sizes = [8, 8, 8, 16], strides = [1, 1, 1, 1]} : vector<8x10x10x16xf32> to vector<8x8x8x16xf32>
    %12 = vector.shape_cast %11 : vector<8x8x8x16xf32> to vector<512x16xf32>
    %13 = vector.extract_strided_slice %4 {offsets = [0, 1, 1, 0], sizes = [8, 8, 8, 16], strides = [1, 1, 1, 1]} : vector<8x10x10x16xf32> to vector<8x8x8x16xf32>
    %14 = vector.shape_cast %13 : vector<8x8x8x16xf32> to vector<512x16xf32>
    %15 = vector.extract_strided_slice %4 {offsets = [0, 1, 2, 0], sizes = [8, 8, 8, 16], strides = [1, 1, 1, 1]} : vector<8x10x10x16xf32> to vector<8x8x8x16xf32>
    %16 = vector.shape_cast %15 : vector<8x8x8x16xf32> to vector<512x16xf32>
    %17 = vector.extract_strided_slice %4 {offsets = [0, 2, 0, 0], sizes = [8, 8, 8, 16], strides = [1, 1, 1, 1]} : vector<8x10x10x16xf32> to vector<8x8x8x16xf32>
    %18 = vector.shape_cast %17 : vector<8x8x8x16xf32> to vector<512x16xf32>
    %19 = vector.extract_strided_slice %4 {offsets = [0, 2, 1, 0], sizes = [8, 8, 8, 16], strides = [1, 1, 1, 1]} : vector<8x10x10x16xf32> to vector<8x8x8x16xf32>
    %20 = vector.shape_cast %19 : vector<8x8x8x16xf32> to vector<512x16xf32>
    %21 = vector.extract_strided_slice %4 {offsets = [0, 2, 2, 0], sizes = [8, 8, 8, 16], strides = [1, 1, 1, 1]} : vector<8x10x10x16xf32> to vector<8x8x8x16xf32>
    %22 = vector.shape_cast %21 : vector<8x8x8x16xf32> to vector<512x16xf32>
    %23 = tpu.concatenate %6, %8, %10, %12, %14, %16, %18, %20, %22 in 1 : vector<512x16xf32>, vector<512x16xf32>, vector<512x16xf32>, vector<512x16xf32>, vector<512x16xf32>, vector<512x16xf32>, vector<512x16xf32>, vector<512x16xf32>, vector<512x16xf32> -> vector<512x144xf32>
    %c0_4 = arith.constant 0 : index
    %c0_5 = arith.constant 0 : index
    %24 = vector.load %arg2[%c0_4, %c0_5] : memref<144x16xf32, #tpu.memory_space<vmem>>, vector<144x16xf32>
    %cst_6 = arith.constant dense<0.000000e+00> : vector<512x16xf32>
    %25 = tpu.matmul %23, %24, %cst_6 {dimension_numbers = #tpu.dot_dimension_numbers<[1], [0], [0], [1], [0, 0, 1, 1], [], []>} : vector<512x144xf32>, vector<144x16xf32>, vector<512x16xf32> -> vector<512x16xf32>
    %c0_7 = arith.constant 0 : index
    %c0_8 = arith.constant 0 : index
    %26 = vector.load %arg3[%c0_7, %c0_8] : memref<1x16xf32, #tpu.memory_space<vmem>>, vector<1x16xf32>
    %27 = vector.broadcast %26 : vector<1x16xf32> to vector<512x16xf32>
    %28 = arith.addf %25, %27 : vector<512x16xf32>
    %cst_9 = arith.constant 0.000000e+00 : f32
    %29 = vector.broadcast %cst_9 : f32 to vector<512x16xf32>
    %30 = arith.cmpf oge, %28, %29 : vector<512x16xf32>
    %cst_10 = arith.constant 0.00999999977 : f32
    %31 = vector.broadcast %cst_10 : f32 to vector<512x16xf32>
    %32 = arith.mulf %31, %28 : vector<512x16xf32>
    %33 = arith.select %30, %28, %32 : vector<512x16xi1>, vector<512x16xf32>
    %34 = vector.shape_cast %33 : vector<512x16xf32> to vector<8x8x8x16xf32>
    %c0_11 = arith.constant 0 : index
    %c0_12 = arith.constant 0 : index
    %c0_13 = arith.constant 0 : index
    %c0_14 = arith.constant 0 : index
    %35 = vector.load %arg4[%c0_11, %c0_12, %c0_13, %c0_14] : memref<8x8x8x16xf32, #tpu.memory_space<vmem>>, vector<8x8x8x16xf32>
    tpu.vector_store %arg4[%c0_11, %c0_12, %c0_13, %c0_14], %34 {strides = array<i32>} : memref<8x8x8x16xf32, #tpu.memory_space<vmem>>, vector<8x8x8x16xf32>,
    return
  }
  func.func @transform_0(%arg0: i32) -> (i32, i32, i32, i32) {
    %c0_i32 = arith.constant 0 : i32
    %c0_i32_0 = arith.constant 0 : i32
    %c0_i32_1 = arith.constant 0 : i32
    %c0_i32_2 = arith.constant 0 : i32
    return %arg0, %c0_i32, %c0_i32_0, %c0_i32_1 : i32, i32, i32, i32
  }
  func.func @transform_1(%arg0: i32) -> (i32, i32) {
    %c0_i32 = arith.constant 0 : i32
    %c0_i32_0 = arith.constant 0 : i32
    %c0_i32_1 = arith.constant 0 : i32
    return %c0_i32, %c0_i32_0 : i32, i32
  }
  func.func @transform_2(%arg0: i32) -> (i32, i32) {
    %c0_i32 = arith.constant 0 : i32
    %c0_i32_0 = arith.constant 0 : i32
    %c0_i32_1 = arith.constant 0 : i32
    return %c0_i32, %c0_i32_0 : i32, i32
  }
  func.func @transform_3(%arg0: i32) -> (i32, i32, i32, i32) {
    %c0_i32 = arith.constant 0 : i32
    %c0_i32_0 = arith.constant 0 : i32
    %c0_i32_1 = arith.constant 0 : i32
    %c0_i32_2 = arith.constant 0 : i32
    return %arg0, %c0_i32, %c0_i32_0, %c0_i32_1 : i32, i32, i32, i32
  }
}

</mosaic_0001>

<llo_original>
// kernel: mixed_3b_forward.8
$region0: #{mixed_3b_forward.8}
  #allocation0 [shape = 'u32[]', space=smem, size = 0x4, offset = 0x4, fixed_abs, tag = 'smem constant byte address 0x4 - core index']
  #allocation1 [shape = 'u32[144,128]{1,0:T(1,128)}', space=vmem, size = 0x12000, scoped, tag = 'internal scratch']
  %s0 = inlined_call_operand.vmem [shape: f32[2,4,64,64], index: 0, kind: input, shape index: {}]
  %s1 = inlined_call_operand.vmem [shape: f32[192,64], index: 1, kind: input, shape index: {}]
  %s2 = inlined_call_operand.vmem [shape: f32[1,64], index: 2, kind: input, shape index: {}]
  %s3 = inlined_call_operand.vmem [shape: f32[2,4,64,64], index: 3, kind: output, shape index: {}]
  %s4 = sld [smem:[#allocation0]]
  $region45: #{mixed_3b_forward.8} parent=0
    _
  %s6 = ssub.s32 1, %s4
  %s7 = scalar_select 0, %s6, %s4
  loop: start=0, step=1, limit=4
  $region2: #{mixed_3b_forward.8} parent=0 // loop_pre_header
    _
  $region3: #{mixed_3b_forward.8} parent=0 // loop_header
    %s9 = sphi 0, %s13
    %p10 = scmp.ge.s32.totalorder %s9, 4
    %s19 = sphi 0, %s21
    %s22 = sphi 0, %s19
    %s23 = sphi 0, %s22
    %s39 = sphi 0, %s23
    %s43 = sphi 0, %s43
    %s45 = sphi 0, %s43
    %s46 = sphi 0, %s45
    %s60 = sphi 0, %s46
    %s64 = sphi 0, %s64
    %s66 = sphi 0, %s64
    %s67 = sphi 0, %s66
    %s81 = sphi 0, %s67
    %s87 = sphi 0, %s89
    %s90 = sphi 0, %s87
    %s91 = sphi 0, %s90
    %s107 = sphi 0, %s91
  $region4: #{mixed_3b_forward.8} parent=0 // loop_header_branch
    %12 = sbr.rel (%p10) target = $region8
  $region5: #{mixed_3b_forward.8} parent=0 // loop_body
    %s14 = ssub.s32 %s9, 1
    %s15 = ssub.s32 %s9, 2
    %s16 = sadd.s32 %s9, 1
    %s17 = ssub.s32 %s9, %s16
    %p18 = scmp.eq.s32.totalorder %s17, 0
    %s20 = sadd.s32 %s19, 1
    %s21 = scalar_select %p18, %s19, %s20
    %p24 = pneg %p18
    %p25 = scmp.eq.s32.totalorder %s9, 1
    %p26 = por %p24, %p25
    %p27 = scmp.ne.s32.totalorder %s19, %s22
    %p28 = scmp.eq.s32.totalorder %s9, 0
    %p29 = por %p27, %p28
    %p30 = scmp.ne.s32.totalorder %s19, %s22
    %p31 = scmp.eq.s32.totalorder %s14, 1
    %p32 = por %p30, %p31
    %p33 = scmp.ne.s32.totalorder %s22, %s23
    %p34 = scmp.eq.s32.totalorder %s14, 0
    %p35 = por %p33, %p34
    %p36 = scmp.ne.s32.totalorder %s22, %s23
    %p37 = scmp.eq.s32.totalorder %s15, 1
    %p38 = por %p36, %p37
    %p40 = scmp.ne.s32.totalorder %s23, %s39
    %p41 = scmp.eq.s32.totalorder %s15, 0
    %p42 = por %p40, %p41
    %s44 = sadd.s32 %s43, 1
    %p47 = scmp.eq.s32.totalorder %s9, 1
    %p48 = scmp.ne.s32.totalorder %s43, %s45
    %p49 = scmp.eq.s32.totalorder %s9, 0
    %p50 = por %p48, %p49
    %p51 = scmp.ne.s32.totalorder %s43, %s45
    %p52 = scmp.eq.s32.totalorder %s14, 1
    %p53 = por %p51, %p52
    %p54 = scmp.ne.s32.totalorder %s45, %s46
    %p55 = scmp.eq.s32.totalorder %s14, 0
    %p56 = por %p54, %p55
    %p57 = scmp.ne.s32.totalorder %s45, %s46
    %p58 = scmp.eq.s32.totalorder %s15, 1
    %p59 = por %p57, %p58
    %p61 = scmp.ne.s32.totalorder %s46, %s60
    %p62 = scmp.eq.s32.totalorder %s15, 0
    %p63 = por %p61, %p62
    %s65 = sadd.s32 %s64, 1
    %p68 = scmp.eq.s32.totalorder %s9, 1
    %p69 = scmp.ne.s32.totalorder %s64, %s66
    %p70 = scmp.eq.s32.totalorder %s9, 0
    %p71 = por %p69, %p70
    %p72 = scmp.ne.s32.totalorder %s64, %s66
    %p73 = scmp.eq.s32.totalorder %s14, 1
    %p74 = por %p72, %p73
    %p75 = scmp.ne.s32.totalorder %s66, %s67
    %p76 = scmp.eq.s32.totalorder %s14, 0
    %p77 = por %p75, %p76
    %p78 = scmp.ne.s32.totalorder %s66, %s67
    %p79 = scmp.eq.s32.totalorder %s15, 1
    %p80 = por %p78, %p79
    %p82 = scmp.ne.s32.totalorder %s67, %s81
    %p83 = scmp.eq.s32.totalorder %s15, 0
    %p84 = por %p82, %p83
    %s85 = ssub.s32 %s9, %s16
    %p86 = scmp.eq.s32.totalorder %s85, 0
    %s88 = sadd.s32 %s87, 1
    %s89 = scalar_select %p86, %s87, %s88
    %p92 = pneg %p86
    %p93 = scmp.eq.s32.totalorder %s9, 1
    %p94 = por %p92, %p93
    %p95 = scmp.ne.s32.totalorder %s87, %s90
    %p96 = scmp.eq.s32.totalorder %s9, 0
    %p97 = por %p95, %p96
    %p98 = scmp.ne.s32.totalorder %s87, %s90
    %p99 = scmp.eq.s32.totalorder %s14, 1
    %p100 = por %p98, %p99
    %p101 = scmp.ne.s32.totalorder %s90, %s91
    %p102 = scmp.eq.s32.totalorder %s14, 0
    %p103 = por %p101, %p102
    %p104 = scmp.ne.s32.totalorder %s90, %s91
    %p105 = scmp.eq.s32.totalorder %s15, 1
    %p106 = por %p104, %p105
    %p108 = scmp.ne.s32.totalorder %s91, %s107
    %p109 = scmp.eq.s32.totalorder %s15, 0
    %p110 = por %p108, %p109
    %p111 = scmp.le.s32.totalorder 1, %s9
    %p112 = scmp.lt.s32.totalorder %s9, 3
    %p113 = pnand %p111, %p112
    %p114 = pneg %p113
    // Predicated region
    $region9: #{mixed_3b_forward.8} parent=5 // pred_check
      _
    $region10: #{mixed_3b_forward.8} parent=5 // pred_check_branch
      %116 = sbr.rel (%p113) target = $region12
    $region11: #{mixed_3b_forward.8} parent=5 // pred_region
      %s117 = ssub.s32 %s9, 1
      // Predicated region
      $region13: #{mixed_3b_forward.8} parent=11 // pred_check
        %p118 = pneg %p56
      $region14: #{mixed_3b_forward.8} parent=11 // pred_check_branch
        %120 = sbr.rel (%p118) target = $region16
      $region15: #{mixed_3b_forward.8} parent=11 // pred_region
        _
      $region16: #{mixed_3b_forward.8} parent=11 // pred_fallthru
        _
      // Predicated region
      $region17: #{mixed_3b_forward.8} parent=11 // pred_check
        %p121 = pneg %p77
      $region18: #{mixed_3b_forward.8} parent=11 // pred_check_branch
        %123 = sbr.rel (%p121) target = $region20
      $region19: #{mixed_3b_forward.8} parent=11 // pred_region
        _
      $region20: #{mixed_3b_forward.8} parent=11 // pred_fallthru
        _
    $region12: #{mixed_3b_forward.8} parent=5 // pred_fallthru
      _
    %p124 = scmp.lt.s32.totalorder %s9, 2
    // Predicated region
    $region21: #{mixed_3b_forward.8} parent=5 // pred_check
      %p125 = pneg %p124
    $region22: #{mixed_3b_forward.8} parent=5 // pred_check_branch
      %127 = sbr.rel (%p125) target = $region24
    $region23: #{mixed_3b_forward.8} parent=5 // pred_region
      // Predicated region
      $region25: #{mixed_3b_forward.8} parent=23 // pred_check
        %p128 = pneg %p29
      $region26: #{mixed_3b_forward.8} parent=23 // pred_check_branch
        %130 = sbr.rel (%p128) target = $region28
      $region27: #{mixed_3b_forward.8} parent=23 // pred_region
        %p131 = scmp.lt.s32.totalorder %s9, 1
        %s132 = scalar_select %p131, %s9, 1
        %s133 = smul.addr %s132, 32
        %s134 = smul.addr %s133, 8
        %s135 = scalar_lea.vmem %s0, %s134
      $region28: #{mixed_3b_forward.8} parent=23 // pred_fallthru
        _
    $region24: #{mixed_3b_forward.8} parent=5 // pred_fallthru
      _
    %p136 = scmp.le.s32.totalorder 1, %s9
    %p137 = scmp.lt.s32.totalorder %s9, 3
    %p138 = pnand %p136, %p137
    %p139 = pneg %p138
    // Predicated region
    $region29: #{mixed_3b_forward.8} parent=5 // pred_check
      _
    $region30: #{mixed_3b_forward.8} parent=5 // pred_check_branch
      %141 = sbr.rel (%p138) target = $region32
    $region31: #{mixed_3b_forward.8} parent=5 // pred_region
      %s142 = ssub.s32 %s9, 1
      %p143 = scmp.lt.s32.totalorder %s14, 1
      %s144 = scalar_select %p143, %s14, 1
      %s145 = smul.addr %s144, 32
      %s146 = smul.addr %s145, 8
      %s147 = scalar_lea.vmem %s0, %s146
      %p148 = pneg %p35
      %p149 = pneg %p32
      %p150 = pneg %p56
      %p151 = pneg %p53
      %p152 = pneg %p77
      %p153 = pneg %p74
      %p154 = pneg %p103
      %p155 = pneg %p100
      %p156 = scmp.lt.s32.totalorder %s14, 1
      %s157 = scalar_select %p156, %s14, 1
      %s158 = smul.addr %s157, 32
      %s159 = smul.addr %s158, 8
      %s160 = scalar_lea.vmem %s3, %s159
      %p161 = scmp.lt.s32.totalorder %s14, 1
      %s162 = scalar_select %p161, %s14, 1
      %s163 = smul.addr %s162, 32
      %s164 = smul.addr %s163, 8
      %s165 = scalar_lea.vmem %s0, %s164
      %p166 = scmp.lt.s32.totalorder %s14, 1
      %s167 = scalar_select %p166, %s14, 1
      %s168 = smul.addr %s167, 32
      %s169 = smul.addr %s168, 8
      %s170 = scalar_lea.vmem %s3, %s169
      %v171 = vld [vmem:[%s165] sm:$0xff]
      %v172 = vld [vmem:[%s165 + $0x8] sm:$0xff]
      %v173 = vld [vmem:[%s165 + $0x10] sm:$0xff]
      %v174 = vld [vmem:[%s165 + $0x18] sm:$0xff]
      %v175 = vld [vmem:[%s165 + $0x20] sm:$0xff]
      %v176 = vld [vmem:[%s165 + $0x28] sm:$0xff]
      %v177 = vld [vmem:[%s165 + $0x30] sm:$0xff]
      %v178 = vld [vmem:[%s165 + $0x38] sm:$0xff]
      %v179 = vld [vmem:[%s165 + $0x40] sm:$0xff]
      %v180 = vld [vmem:[%s165 + $0x48] sm:$0xff]
      %v181 = vld [vmem:[%s165 + $0x50] sm:$0xff]
      %v182 = vld [vmem:[%s165 + $0x58] sm:$0xff]
      %v183 = vld [vmem:[%s165 + $0x60] sm:$0xff]
      %v184 = vld [vmem:[%s165 + $0x68] sm:$0xff]
      %v185 = vld [vmem:[%s165 + $0x70] sm:$0xff]
      %v186 = vld [vmem:[%s165 + $0x78] sm:$0xff]
      %v187 = vld [vmem:[%s165 + $0x80] sm:$0xff]
      %v188 = vld [vmem:[%s165 + $0x88] sm:$0xff]
      %v189 = vld [vmem:[%s165 + $0x90] sm:$0xff]
      %v190 = vld [vmem:[%s165 + $0x98] sm:$0xff]
      %v191 = vld [vmem:[%s165 + $0xa0] sm:$0xff]
      %v192 = vld [vmem:[%s165 + $0xa8] sm:$0xff]
      %v193 = vld [vmem:[%s165 + $0xb0] sm:$0xff]
      %v194 = vld [vmem:[%s165 + $0xb8] sm:$0xff]
      %v195 = vld [vmem:[%s165 + $0xc0] sm:$0xff]
      %v196 = vld [vmem:[%s165 + $0xc8] sm:$0xff]
      %v197 = vld [vmem:[%s165 + $0xd0] sm:$0xff]
      %v198 = vld [vmem:[%s165 + $0xd8] sm:$0xff]
      %v199 = vld [vmem:[%s165 + $0xe0] sm:$0xff]
      %v200 = vld [vmem:[%s165 + $0xe8] sm:$0xff]
      %v201 = vld [vmem:[%s165 + $0xf0] sm:$0xff]
      %v202 = vld [vmem:[%s165 + $0xf8] sm:$0xff]
      %235 = vrot.lane.b32.xlu0 %v171, 64
      %v236 = vpop.permute.xlu0 %235
      %237 = vrot.lane.b32.xlu0 %v172, 64
      %v238 = vpop.permute.xlu0 %237
      %239 = vrot.lane.b32.xlu0 %v173, 64
      %v240 = vpop.permute.xlu0 %239
      %241 = vrot.lane.b32.xlu0 %v174, 64
      %v242 = vpop.permute.xlu0 %241
      %243 = vrot.lane.b32.xlu0 %v175, 64
      %v244 = vpop.permute.xlu0 %243
      %245 = vrot.lane.b32.xlu0 %v176, 64
      %v246 = vpop.permute.xlu0 %245
      %247 = vrot.lane.b32.xlu0 %v177, 64
      %v248 = vpop.permute.xlu0 %247
      %249 = vrot.lane.b32.xlu0 %v178, 64
      %v250 = vpop.permute.xlu0 %249
      %251 = vrot.lane.b32.xlu0 %v179, 64
      %v252 = vpop.permute.xlu0 %251
      %253 = vrot.lane.b32.xlu0 %v180, 64
      %v254 = vpop.permute.xlu0 %253
      %255 = vrot.lane.b32.xlu0 %v181, 64
      %v256 = vpop.permute.xlu0 %255
      %257 = vrot.lane.b32.xlu0 %v182, 64
      %v258 = vpop.permute.xlu0 %257
      %259 = vrot.lane.b32.xlu0 %v183, 64
      %v260 = vpop.permute.xlu0 %259
      %261 = vrot.lane.b32.xlu0 %v184, 64
      %v262 = vpop.permute.xlu0 %261
      %263 = vrot.lane.b32.xlu0 %v185, 64
      %v264 = vpop.permute.xlu0 %263
      %265 = vrot.lane.b32.xlu0 %v186, 64
      %v266 = vpop.permute.xlu0 %265
      %267 = vrot.lane.b32.xlu0 %v187, 64
      %v268 = vpop.permute.xlu0 %267
      %269 = vrot.lane.b32.xlu0 %v188, 64
      %v270 = vpop.permute.xlu0 %269
      %271 = vrot.lane.b32.xlu0 %v189, 64
      %v272 = vpop.permute.xlu0 %271
      %273 = vrot.lane.b32.xlu0 %v190, 64
      %v274 = vpop.permute.xlu0 %273
      %275 = vrot.lane.b32.xlu0 %v191, 64
      %v276 = vpop.permute.xlu0 %275
      %277 = vrot.lane.b32.xlu0 %v192, 64
      %v278 = vpop.permute.xlu0 %277
      %279 = vrot.lane.b32.xlu0 %v193, 64
      %v280 = vpop.permute.xlu0 %279
      %281 = vrot.lane.b32.xlu0 %v194, 64
      %v282 = vpop.permute.xlu0 %281
      %283 = vrot.lane.b32.xlu0 %v195, 64
      %v284 = vpop.permute.xlu0 %283
      %285 = vrot.lane.b32.xlu0 %v196, 64
      %v286 = vpop.permute.xlu0 %285
      %287 = vrot.lane.b32.xlu0 %v197, 64
      %v288 = vpop.permute.xlu0 %287
      %289 = vrot.lane.b32.xlu0 %v198, 64
      %v290 = vpop.permute.xlu0 %289
      %291 = vrot.lane.b32.xlu0 %v199, 64
      %v292 = vpop.permute.xlu0 %291
      %293 = vrot.lane.b32.xlu0 %v200, 64
      %v294 = vpop.permute.xlu0 %293
      %295 = vrot.lane.b32.xlu0 %v201, 64
      %v296 = vpop.permute.xlu0 %295
      %297 = vrot.lane.b32.xlu0 %v202, 64
      %v298 = vpop.permute.xlu0 %297
      %vm331 = vcmask 523264
      %v332 = vsel %vm331, 0.0, %v236
      %v333 = vsel %vm331, 0.0, %v238
      %v334 = vsel %vm331, 0.0, %v240
      %v335 = vsel %vm331, 0.0, %v242
      %v336 = vsel %vm331, 0.0, %v244
      %v337 = vsel %vm331, 0.0, %v246
      %v338 = vsel %vm331, 0.0, %v248
      %v339 = vsel %vm331, 0.0, %v250
      %v340 = vsel %vm331, %v171, %v252
      %v341 = vsel %vm331, %v172, %v254
      %v342 = vsel %vm331, %v173, %v256
      %v343 = vsel %vm331, %v174, %v258
      %v344 = vsel %vm331, %v175, %v260
      %v345 = vsel %vm331, %v176, %v262
      %v346 = vsel %vm331, %v177, %v264
      %v347 = vsel %vm331, %v178, %v266
      %v348 = vsel %vm331, %v179, %v268
      %v349 = vsel %vm331, %v180, %v270
      %v350 = vsel %vm331, %v181, %v272
      %v351 = vsel %vm331, %v182, %v274
      %v352 = vsel %vm331, %v183, %v276
      %v353 = vsel %vm331, %v184, %v278
      %v354 = vsel %vm331, %v185, %v280
      %v355 = vsel %vm331, %v186, %v282
      %v356 = vsel %vm331, %v187, %v284
      %v357 = vsel %vm331, %v188, %v286
      %v358 = vsel %vm331, %v189, %v288
      %v359 = vsel %vm331, %v190, %v290
      %v360 = vsel %vm331, %v191, %v292
      %v361 = vsel %vm331, %v192, %v294
      %v362 = vsel %vm331, %v193, %v296
      %v363 = vsel %vm331, %v194, %v298
      %v364 = vld [vmem:[%s1] sm:$0xff]
      %v365 = vld [vmem:[%s1 + $0x8] sm:$0xff]
      %v366 = vld [vmem:[%s1 + $0x10] sm:$0xff]
      %v367 = vld [vmem:[%s1 + $0x18] sm:$0xff]
      %v368 = vld [vmem:[%s1 + $0x20] sm:$0xff]
      %v369 = vld [vmem:[%s1 + $0x28] sm:$0xff]
      %v370 = vld [vmem:[%s1 + $0x30] sm:$0xff]
      %v371 = vld [vmem:[%s1 + $0x38] sm:$0xff]
      %v372 = vld [vmem:[%s1 + $0x40] sm:$0xff]
      %v373 = vld [vmem:[%s1 + $0x48] sm:$0xff]
      %v374 = vld [vmem:[%s1 + $0x50] sm:$0xff]
      %v375 = vld [vmem:[%s1 + $0x58] sm:$0xff]
      %v376 = vld [vmem:[%s1 + $0x60] sm:$0xff]
      %v377 = vld [vmem:[%s1 + $0x68] sm:$0xff]
      %v378 = vld [vmem:[%s1 + $0x70] sm:$0xff]
      %v379 = vld [vmem:[%s1 + $0x78] sm:$0xff]
      %v380 = vld [vmem:[%s1 + $0x80] sm:$0xff]
      %v381 = vld [vmem:[%s1 + $0x88] sm:$0xff]
      %v382 = vld [vmem:[%s1 + $0x90] sm:$0xff]
      %v383 = vld [vmem:[%s1 + $0x98] sm:$0xff]
      %v384 = vld [vmem:[%s1 + $0xa0] sm:$0xff]
      %v385 = vld [vmem:[%s1 + $0xa8] sm:$0xff]
      %v386 = vld [vmem:[%s1 + $0xb0] sm:$0xff]
      %v387 = vld [vmem:[%s1 + $0xb8] sm:$0xff]
      %v388 = vld [vmem:[%s2] sm:$0x1]
      %v390 = vlaneseq
      %v391 = vshrl.u32 %v390, 7
      %v392 = vsub.s32 0, %v391
      %v393 = vrot.slane %v388, %v392
      %v395 = vsel %vm331, %v179, 0
      %v397 = vsel %vm331, %v180, 0
      %v399 = vsel %vm331, %v181, 0
      %v401 = vsel %vm331, %v182, 0
      %v403 = vsel %vm331, %v183, 0
      %v405 = vsel %vm331, %v184, 0
      %v407 = vsel %vm331, %v185, 0
      %v409 = vsel %vm331, %v186, 0
      %v411 = vsel %vm331, %v187, 0
      %v413 = vsel %vm331, %v188, 0
      %v415 = vsel %vm331, %v189, 0
      %v417 = vsel %vm331, %v190, 0
      %v419 = vsel %vm331, %v191, 0
      %v421 = vsel %vm331, %v192, 0
      %v423 = vsel %vm331, %v193, 0
      %v425 = vsel %vm331, %v194, 0
      %v427 = vsel %vm331, %v195, 0
      %v429 = vsel %vm331, %v196, 0
      %v431 = vsel %vm331, %v197, 0
      %v433 = vsel %vm331, %v198, 0
      %v435 = vsel %vm331, %v199, 0
      %v437 = vsel %vm331, %v200, 0
      %v439 = vsel %vm331, %v201, 0
      %v441 = vsel %vm331, %v202, 0
      %v444 = vsel %vm331, 0.0, 0
      %446 = vmatprep.subr.mxu0 0.0
      %447 = vmatpush1.msra.mxu0 %v364
      %448 = vmatprep.subr.mxu0 0.0
      %449 = vmatpush1.msra.mxu0 %v365
      %450 = vmatprep.subr.mxu0 0.0
      %451 = vmatpush1.msra.mxu0 %v366
      %452 = vmatprep.subr.mxu0 0.0
      %453 = vmatpush1.msra.mxu0 %v367
      %454 = vmatprep.subr.mxu0 0.0
      %455 = vmatpush1.msra.mxu0 %v368
      %456 = vmatprep.subr.mxu0 0.0
      %457 = vmatpush1.msra.mxu0 %v369
      %458 = vmatprep.subr.mxu0 0.0
      %459 = vmatpush1.msra.mxu0 %v370
      %460 = vmatprep.subr.mxu0 0.0
      %461 = vmatpush1.msra.mxu0 %v371
      %462 = vmatprep.subr.mxu0 0.0
      %463 = vmatpush1.msra.mxu0 %v372
      %464 = vmatprep.subr.mxu0 0.0
      %465 = vmatpush1.msra.mxu0 %v373
      %466 = vmatprep.subr.mxu0 0.0
      %467 = vmatpush1.msra.mxu0 %v374
      %468 = vmatprep.subr.mxu0 0.0
      %469 = vmatpush1.msra.mxu0 %v375
      %470 = vmatprep.subr.mxu0 0.0
      %471 = vmatpush1.msra.mxu0 %v376
      %472 = vmatprep.subr.mxu0 0.0
      %473 = vmatpush1.msra.mxu0 %v377
      %474 = vmatprep.subr.mxu0 0.0
      %475 = vmatpush1.msra.mxu0 %v378
      %476 = vmatprep.subr.mxu0 0.0
      %477 = vmatpush1.msra.mxu0 %v379
      %478 = vmatprep.subr.mxu0 0.0
      %479 = vmatpush1.msra.mxu0 %v380
      %480 = vmatprep.subr.mxu0 0.0
      %481 = vmatpush1.msra.mxu0 %v381
      %482 = vmatprep.subr.mxu0 0.0
      %483 = vmatpush1.msra.mxu0 %v382
      %484 = vmatprep.subr.mxu0 0.0
      %485 = vmatpush1.msra.mxu0 %v383
      %486 = vmatprep.subr.mxu0 0.0
      %487 = vmatpush1.msra.mxu0 %v384
      %488 = vmatprep.subr.mxu0 0.0
      %489 = vmatpush1.msra.mxu0 %v385
      %490 = vmatprep.subr.mxu0 0.0
      %491 = vmatpush1.msra.mxu0 %v386
      %492 = vmatprep.subr.mxu0 0.0
      %493 = vmatpush1.msra.mxu0 %v387
      %494 = vmatprep.subr.mxu0 0.0
      %495 = vmatpush1.msra.mxu0 0.0
      %496 = vmatprep.subr.mxu0 0.0
      %497 = vmatpush1.msra.mxu0 0.0
      %498 = vmatprep.subr.mxu0 0.0
      %499 = vmatpush1.msra.mxu0 0.0
      %500 = vmatprep.subr.mxu0 0.0
      %501 = vmatpush1.msra.mxu0 0.0
      %502 = vmatprep.subr.mxu0 0.0
      %503 = vmatpush1.msra.mxu0 0.0
      %504 = vmatprep.subr.mxu0 0.0
      %505 = vmatpush1.msra.mxu0 0.0
      %506 = vmatprep.subr.mxu0 0.0
      %507 = vmatpush1.msra.mxu0 0.0
      %508 = vmatprep.subr.mxu0 0.0
      %509 = vmatpush1.msra.mxu0 0.0
      %510 = vmatprep.mubr.f32.mxu0 %v395
      %511 = vmatmul.mubr.f32.gmra.mrb[0].mxu0 %v332
      %v512 = vpop.f32.mrb[0].mxu0
      %v513 = vadd.f32 %v393, %v512
      %v514 = vpop.f32.mrb[0].mxu0
      %515 = vmatprep.mubr.f32.mxu0 %v397
      %516 = vmatmul.mubr.f32.gmra.mrb[0].mxu0 %v333
      %v517 = vpop.f32.mrb[0].mxu0
      %v518 = vadd.f32 %v393, %v517
      %v519 = vpop.f32.mrb[0].mxu0
      %520 = vmatprep.mubr.f32.mxu0 %v399
      %521 = vmatmul.mubr.f32.gmra.mrb[0].mxu0 %v334
      %v522 = vpop.f32.mrb[0].mxu0
      %v523 = vadd.f32 %v393, %v522
      %v524 = vpop.f32.mrb[0].mxu0
      %525 = vmatprep.mubr.f32.mxu0 %v401
      %526 = vmatmul.mubr.f32.gmra.mrb[0].mxu0 %v335
      %v527 = vpop.f32.mrb[0].mxu0
      %v528 = vadd.f32 %v393, %v527
      %v529 = vpop.f32.mrb[0].mxu0
      %530 = vmatprep.mubr.f32.mxu0 %v403
      %531 = vmatmul.mubr.f32.gmra.mrb[0].mxu0 %v336
      %v532 = vpop.f32.mrb[0].mxu0
      %v533 = vadd.f32 %v393, %v532
      %v534 = vpop.f32.mrb[0].mxu0
      %535 = vmatprep.mubr.f32.mxu0 %v405
      %536 = vmatmul.mubr.f32.gmra.mrb[0].mxu0 %v337
      %v537 = vpop.f32.mrb[0].mxu0
      %v538 = vadd.f32 %v393, %v537
      %v539 = vpop.f32.mrb[0].mxu0
      %540 = vmatprep.mubr.f32.mxu0 %v407
      %541 = vmatmul.mubr.f32.gmra.mrb[0].mxu0 %v338
      %v542 = vpop.f32.mrb[0].mxu0
      %v543 = vadd.f32 %v393, %v542
      %v544 = vpop.f32.mrb[0].mxu0
      %545 = vmatprep.mubr.f32.mxu0 %v409
      %546 = vmatmul.mubr.f32.gmra.mrb[0].mxu0 %v339
      %v547 = vpop.f32.mrb[0].mxu0
      %v548 = vadd.f32 %v393, %v547
      %v549 = vpop.f32.mrb[0].mxu0
      %550 = vmatprep.mubr.f32.mxu0 %v411
      %551 = vmatmul.mubr.f32.gmra.mrb[0].mxu0 %v340
      %v552 = vpop.f32.mrb[0].mxu0
      %v553 = vadd.f32 %v393, %v552
      %v554 = vpop.f32.mrb[0].mxu0
      %555 = vmatprep.mubr.f32.mxu0 %v413
      %556 = vmatmul.mubr.f32.gmra.mrb[0].mxu0 %v341
      %v557 = vpop.f32.mrb[0].mxu0
      %v558 = vadd.f32 %v393, %v557
      %v559 = vpop.f32.mrb[0].mxu0
      %560 = vmatprep.mubr.f32.mxu0 %v415
      %561 = vmatmul.mubr.f32.gmra.mrb[0].mxu0 %v342
      %v562 = vpop.f32.mrb[0].mxu0
      %v563 = vadd.f32 %v393, %v562
      %v564 = vpop.f32.mrb[0].mxu0
      %565 = vmatprep.mubr.f32.mxu0 %v417
      %566 = vmatmul.mubr.f32.gmra.mrb[0].mxu0 %v343
      %v567 = vpop.f32.mrb[0].mxu0
      %v568 = vadd.f32 %v393, %v567
      %v569 = vpop.f32.mrb[0].mxu0
      %570 = vmatprep.mubr.f32.mxu0 %v419
      %571 = vmatmul.mubr.f32.gmra.mrb[0].mxu0 %v344
      %v572 = vpop.f32.mrb[0].mxu0
      %v573 = vadd.f32 %v393, %v572
      %v574 = vpop.f32.mrb[0].mxu0
      %575 = vmatprep.mubr.f32.mxu0 %v421
      %576 = vmatmul.mubr.f32.gmra.mrb[0].mxu0 %v345
      %v577 = vpop.f32.mrb[0].mxu0
      %v578 = vadd.f32 %v393, %v577
      %v579 = vpop.f32.mrb[0].mxu0
      %580 = vmatprep.mubr.f32.mxu0 %v423
      %581 = vmatmul.mubr.f32.gmra.mrb[0].mxu0 %v346
      %v582 = vpop.f32.mrb[0].mxu0
      %v583 = vadd.f32 %v393, %v582
      %v584 = vpop.f32.mrb[0].mxu0
      %585 = vmatprep.mubr.f32.mxu0 %v425
      %586 = vmatmul.mubr.f32.gmra.mrb[0].mxu0 %v347
      %v587 = vpop.f32.mrb[0].mxu0
      %v588 = vadd.f32 %v393, %v587
      %v589 = vpop.f32.mrb[0].mxu0
      %590 = vmatprep.mubr.f32.mxu0 %v427
      %591 = vmatmul.mubr.f32.gmra.mrb[0].mxu0 %v348
      %v592 = vpop.f32.mrb[0].mxu0
      %v593 = vadd.f32 %v393, %v592
      %v594 = vpop.f32.mrb[0].mxu0
      %595 = vmatprep.mubr.f32.mxu0 %v429
      %596 = vmatmul.mubr.f32.gmra.mrb[0].mxu0 %v349
      %v597 = vpop.f32.mrb[0].mxu0
      %v598 = vadd.f32 %v393, %v597
      %v599 = vpop.f32.mrb[0].mxu0
      %600 = vmatprep.mubr.f32.mxu0 %v431
      %601 = vmatmul.mubr.f32.gmra.mrb[0].mxu0 %v350
      %v602 = vpop.f32.mrb[0].mxu0
      %v603 = vadd.f32 %v393, %v602
      %v604 = vpop.f32.mrb[0].mxu0
      %605 = vmatprep.mubr.f32.mxu0 %v433
      %606 = vmatmul.mubr.f32.gmra.mrb[0].mxu0 %v351
      %v607 = vpop.f32.mrb[0].mxu0
      %v608 = vadd.f32 %v393, %v607
      %v609 = vpop.f32.mrb[0].mxu0
      %610 = vmatprep.mubr.f32.mxu0 %v435
      %611 = vmatmul.mubr.f32.gmra.mrb[0].mxu0 %v352
      %v612 = vpop.f32.mrb[0].mxu0
      %v613 = vadd.f32 %v393, %v612
      %v614 = vpop.f32.mrb[0].mxu0
      %615 = vmatprep.mubr.f32.mxu0 %v437
      %616 = vmatmul.mubr.f32.gmra.mrb[0].mxu0 %v353
      %v617 = vpop.f32.mrb[0].mxu0
      %v618 = vadd.f32 %v393, %v617
      %v619 = vpop.f32.mrb[0].mxu0
      %620 = vmatprep.mubr.f32.mxu0 %v439
      %621 = vmatmul.mubr.f32.gmra.mrb[0].mxu0 %v354
      %v622 = vpop.f32.mrb[0].mxu0
      %v623 = vadd.f32 %v393, %v622
      %v624 = vpop.f32.mrb[0].mxu0
      %625 = vmatprep.mubr.f32.mxu0 %v441
      %626 = vmatmul.mubr.f32.gmra.mrb[0].mxu0 %v355
      %v627 = vpop.f32.mrb[0].mxu0
      %v628 = vadd.f32 %v393, %v627
      %v629 = vpop.f32.mrb[0].mxu0
      %630 = vmatprep.mubr.f32.mxu0 %v444
      %631 = vmatmul.mubr.f32.gmra.mrb[0].mxu0 %v356
      %v632 = vpop.f32.mrb[0].mxu0
      %v633 = vadd.f32 %v393, %v632
      %v634 = vpop.f32.mrb[0].mxu0
      %635 = vmatprep.mubr.f32.mxu0 %v444
      %636 = vmatmul.mubr.f32.gmra.mrb[0].mxu0 %v357
      %v637 = vpop.f32.mrb[0].mxu0
      %v638 = vadd.f32 %v393, %v637
      %v639 = vpop.f32.mrb[0].mxu0
      %640 = vmatprep.mubr.f32.mxu0 %v444
      %641 = vmatmul.mubr.f32.gmra.mrb[0].mxu0 %v358
      %v642 = vpop.f32.mrb[0].mxu0
      %v643 = vadd.f32 %v393, %v642
      %v644 = vpop.f32.mrb[0].mxu0
      %645 = vmatprep.mubr.f32.mxu0 %v444
      %646 = vmatmul.mubr.f32.gmra.mrb[0].mxu0 %v359
      %v647 = vpop.f32.mrb[0].mxu0
      %v648 = vadd.f32 %v393, %v647
      %v649 = vpop.f32.mrb[0].mxu0
      %650 = vmatprep.mubr.f32.mxu0 %v444
      %651 = vmatmul.mubr.f32.gmra.mrb[0].mxu0 %v360
      %v652 = vpop.f32.mrb[0].mxu0
      %v653 = vadd.f32 %v393, %v652
      %v654 = vpop.f32.mrb[0].mxu0
      %655 = vmatprep.mubr.f32.mxu0 %v444
      %656 = vmatmul.mubr.f32.gmra.mrb[0].mxu0 %v361
      %v657 = vpop.f32.mrb[0].mxu0
      %v658 = vadd.f32 %v393, %v657
      %v659 = vpop.f32.mrb[0].mxu0
      %660 = vmatprep.mubr.f32.mxu0 %v444
      %661 = vmatmul.mubr.f32.gmra.mrb[0].mxu0 %v362
      %v662 = vpop.f32.mrb[0].mxu0
      %v663 = vadd.f32 %v393, %v662
      %v664 = vpop.f32.mrb[0].mxu0
      %665 = vmatprep.mubr.f32.mxu0 %v444
      %666 = vmatmul.mubr.f32.gmra.mrb[0].mxu0 %v363
      %v667 = vpop.f32.mrb[0].mxu0
      %v668 = vadd.f32 %v393, %v667
      %v669 = vpop.f32.mrb[0].mxu0
      %670 = vdwg.mxu0
      %vm671 = vcmp.ge.f32.partialorder %v513, 0.0
      %vm672 = vcmp.ge.f32.partialorder %v518, 0.0
      %vm673 = vcmp.ge.f32.partialorder %v523, 0.0
      %vm674 = vcmp.ge.f32.partialorder %v528, 0.0
      %vm675 = vcmp.ge.f32.partialorder %v533, 0.0
      %vm676 = vcmp.ge.f32.partialorder %v538, 0.0
      %vm677 = vcmp.ge.f32.partialorder %v543, 0.0
      %vm678 = vcmp.ge.f32.partialorder %v548, 0.0
      %vm679 = vcmp.ge.f32.partialorder %v553, 0.0
      %vm680 = vcmp.ge.f32.partialorder %v558, 0.0
      %vm681 = vcmp.ge.f32.partialorder %v563, 0.0
      %vm682 = vcmp.ge.f32.partialorder %v568, 0.0
      %vm683 = vcmp.ge.f32.partialorder %v573, 0.0
      %vm684 = vcmp.ge.f32.partialorder %v578, 0.0
      %vm685 = vcmp.ge.f32.partialorder %v583, 0.0
      %vm686 = vcmp.ge.f32.partialorder %v588, 0.0
      %vm687 = vcmp.ge.f32.partialorder %v593, 0.0
      %vm688 = vcmp.ge.f32.partialorder %v598, 0.0
      %vm689 = vcmp.ge.f32.partialorder %v603, 0.0
      %vm690 = vcmp.ge.f32.partialorder %v608, 0.0
      %vm691 = vcmp.ge.f32.partialorder %v613, 0.0
      %vm692 = vcmp.ge.f32.partialorder %v618, 0.0
      %vm693 = vcmp.ge.f32.partialorder %v623, 0.0
      %vm694 = vcmp.ge.f32.partialorder %v628, 0.0
      %vm695 = vcmp.ge.f32.partialorder %v633, 0.0
      %vm696 = vcmp.ge.f32.partialorder %v638, 0.0
      %vm697 = vcmp.ge.f32.partialorder %v643, 0.0
      %vm698 = vcmp.ge.f32.partialorder %v648, 0.0
      %vm699 = vcmp.ge.f32.partialorder %v653, 0.0
      %vm700 = vcmp.ge.f32.partialorder %v658, 0.0
      %vm701 = vcmp.ge.f32.partialorder %v663, 0.0
      %vm702 = vcmp.ge.f32.partialorder %v668, 0.0
      %v703 = vmul.f32 %v513, 0.01
      %v704 = vmul.f32 %v518, 0.01
      %v705 = vmul.f32 %v523, 0.01
      %v706 = vmul.f32 %v528, 0.01
      %v707 = vmul.f32 %v533, 0.01
      %v708 = vmul.f32 %v538, 0.01
      %v709 = vmul.f32 %v543, 0.01
      %v710 = vmul.f32 %v548, 0.01
      %v711 = vmul.f32 %v553, 0.01
      %v712 = vmul.f32 %v558, 0.01
      %v713 = vmul.f32 %v563, 0.01
      %v714 = vmul.f32 %v568, 0.01
      %v715 = vmul.f32 %v573, 0.01
      %v716 = vmul.f32 %v578, 0.01
      %v717 = vmul.f32 %v583, 0.01
      %v718 = vmul.f32 %v588, 0.01
      %v719 = vmul.f32 %v593, 0.01
      %v720 = vmul.f32 %v598, 0.01
      %v721 = vmul.f32 %v603, 0.01
      %v722 = vmul.f32 %v608, 0.01
      %v723 = vmul.f32 %v613, 0.01
      %v724 = vmul.f32 %v618, 0.01
      %v725 = vmul.f32 %v623, 0.01
      %v726 = vmul.f32 %v628, 0.01
      %v727 = vmul.f32 %v633, 0.01
      %v728 = vmul.f32 %v638, 0.01
      %v729 = vmul.f32 %v643, 0.01
      %v730 = vmul.f32 %v648, 0.01
      %v731 = vmul.f32 %v653, 0.01
      %v732 = vmul.f32 %v658, 0.01
      %v733 = vmul.f32 %v663, 0.01
      %v734 = vmul.f32 %v668, 0.01
      %v735 = vsel %vm671, %v513, %v703
      %v736 = vsel %vm672, %v518, %v704
      %v737 = vsel %vm673, %v523, %v705
      %v738 = vsel %vm674, %v528, %v706
      %v739 = vsel %vm675, %v533, %v707
      %v740 = vsel %vm676, %v538, %v708
      %v741 = vsel %vm677, %v543, %v709
      %v742 = vsel %vm678, %v548, %v710
      %v743 = vsel %vm679, %v553, %v711
      %v744 = vsel %vm680, %v558, %v712
      %v745 = vsel %vm681, %v563, %v713
      %v746 = vsel %vm682, %v568, %v714
      %v747 = vsel %vm683, %v573, %v715
      %v748 = vsel %vm684, %v578, %v716
      %v749 = vsel %vm685, %v583, %v717
      %v750 = vsel %vm686, %v588, %v718
      %v751 = vsel %vm687, %v593, %v719
      %v752 = vsel %vm688, %v598, %v720
      %v753 = vsel %vm689, %v603, %v721
      %v754 = vsel %vm690, %v608, %v722
      %v755 = vsel %vm691, %v613, %v723
      %v756 = vsel %vm692, %v618, %v724
      %v757 = vsel %vm693, %v623, %v725
      %v758 = vsel %vm694, %v628, %v726
      %v759 = vsel %vm695, %v633, %v727
      %v760 = vsel %vm696, %v638, %v728
      %v761 = vsel %vm697, %v643, %v729
      %v762 = vsel %vm698, %v648, %v730
      %v763 = vsel %vm699, %v653, %v731
      %v764 = vsel %vm700, %v658, %v732
      %v765 = vsel %vm701, %v663, %v733
      %v766 = vsel %vm702, %v668, %v734
      %767 = vst.msk [vmem:[%s170] sm:$0xff] %vm331, %v735
      %768 = vst.msk [vmem:[%s170 + $0x8] sm:$0xff] %vm331, %v736
      %769 = vst.msk [vmem:[%s170 + $0x10] sm:$0xff] %vm331, %v737
      %770 = vst.msk [vmem:[%s170 + $0x18] sm:$0xff] %vm331, %v738
      %771 = vst.msk [vmem:[%s170 + $0x20] sm:$0xff] %vm331, %v739
      %772 = vst.msk [vmem:[%s170 + $0x28] sm:$0xff] %vm331, %v740
      %773 = vst.msk [vmem:[%s170 + $0x30] sm:$0xff] %vm331, %v741
      %774 = vst.msk [vmem:[%s170 + $0x38] sm:$0xff] %vm331, %v742
      %775 = vst.msk [vmem:[%s170 + $0x40] sm:$0xff] %vm331, %v743
      %776 = vst.msk [vmem:[%s170 + $0x48] sm:$0xff] %vm331, %v744
      %777 = vst.msk [vmem:[%s170 + $0x50] sm:$0xff] %vm331, %v745
      %778 = vst.msk [vmem:[%s170 + $0x58] sm:$0xff] %vm331, %v746
      %779 = vst.msk [vmem:[%s170 + $0x60] sm:$0xff] %vm331, %v747
      %780 = vst.msk [vmem:[%s170 + $0x68] sm:$0xff] %vm331, %v748
      %781 = vst.msk [vmem:[%s170 + $0x70] sm:$0xff] %vm331, %v749
      %782 = vst.msk [vmem:[%s170 + $0x78] sm:$0xff] %vm331, %v750
      %783 = vst.msk [vmem:[%s170 + $0x80] sm:$0xff] %vm331, %v751
      %784 = vst.msk [vmem:[%s170 + $0x88] sm:$0xff] %vm331, %v752
      %785 = vst.msk [vmem:[%s170 + $0x90] sm:$0xff] %vm331, %v753
      %786 = vst.msk [vmem:[%s170 + $0x98] sm:$0xff] %vm331, %v754
      %787 = vst.msk [vmem:[%s170 + $0xa0] sm:$0xff] %vm331, %v755
      %788 = vst.msk [vmem:[%s170 + $0xa8] sm:$0xff] %vm331, %v756
      %789 = vst.msk [vmem:[%s170 + $0xb0] sm:$0xff] %vm331, %v757
      %790 = vst.msk [vmem:[%s170 + $0xb8] sm:$0xff] %vm331, %v758
      %791 = vst.msk [vmem:[%s170 + $0xc0] sm:$0xff] %vm331, %v759
      %792 = vst.msk [vmem:[%s170 + $0xc8] sm:$0xff] %vm331, %v760
      %793 = vst.msk [vmem:[%s170 + $0xd0] sm:$0xff] %vm331, %v761
      %794 = vst.msk [vmem:[%s170 + $0xd8] sm:$0xff] %vm331, %v762
      %795 = vst.msk [vmem:[%s170 + $0xe0] sm:$0xff] %vm331, %v763
      %796 = vst.msk [vmem:[%s170 + $0xe8] sm:$0xff] %vm331, %v764
      %797 = vst.msk [vmem:[%s170 + $0xf0] sm:$0xff] %vm331, %v765
      %798 = vst.msk [vmem:[%s170 + $0xf8] sm:$0xff] %vm331, %v766
      %p799 = scmp.lt.s32.totalorder %s14, 1
      %s800 = scalar_select %p799, %s14, 1
      %s801 = smul.addr %s800, 32
      %s802 = smul.addr %s801, 8
      %s803 = scalar_lea.vmem %s3, %s802
      // Predicated region
      $region33: #{mixed_3b_forward.8} parent=31 // pred_check
        %p804 = pneg %p100
      $region34: #{mixed_3b_forward.8} parent=31 // pred_check_branch
        %806 = sbr.rel (%p804) target = $region36
      $region35: #{mixed_3b_forward.8} parent=31 // pred_region
        _
      $region36: #{mixed_3b_forward.8} parent=31 // pred_fallthru
        _
    $region32: #{mixed_3b_forward.8} parent=5 // pred_fallthru
      _
    %p807 = scmp.le.s32.totalorder 2, %s9
    // Predicated region
    $region37: #{mixed_3b_forward.8} parent=5 // pred_check
      %p808 = pneg %p807
    $region38: #{mixed_3b_forward.8} parent=5 // pred_check_branch
      %810 = sbr.rel (%p808) target = $region40
    $region39: #{mixed_3b_forward.8} parent=5 // pred_region
      %s811 = ssub.s32 %s9, 2
      // Predicated region
      $region41: #{mixed_3b_forward.8} parent=39 // pred_check
        %p812 = pneg %p106
      $region42: #{mixed_3b_forward.8} parent=39 // pred_check_branch
        %814 = sbr.rel (%p812) target = $region44
      $region43: #{mixed_3b_forward.8} parent=39 // pred_region
        %p815 = scmp.lt.s32.totalorder %s15, 1
        %s816 = scalar_select %p815, %s15, 1
        %s817 = smul.addr %s816, 32
        %s818 = smul.addr %s817, 8
        %s819 = scalar_lea.vmem %s3, %s818
      $region44: #{mixed_3b_forward.8} parent=39 // pred_fallthru
        _
    $region40: #{mixed_3b_forward.8} parent=5 // pred_fallthru
      _
  $region6: #{mixed_3b_forward.8} parent=0 // loop_footer
    %s13 = sadd.s32 1, %s9
  $region7: #{mixed_3b_forward.8} parent=0 // loop_footer_branch
    %8 = sbr.rel target = $region3
  $region8: #{mixed_3b_forward.8} parent=0 // loop_exit
    _

// kernel: mixed_3b_forward.11
$region0: #{mixed_3b_forward.11}
  #allocation0 [shape = 'u32[]', space=smem, size = 0x4, offset = 0x4, fixed_abs, tag = 'smem constant byte address 0x4 - core index']
  #allocation1 [shape = 'u32[144,128]{1,0:T(1,128)}', space=vmem, size = 0x12000, scoped, tag = 'internal scratch']
  %s0 = inlined_call_operand.vmem [shape: f32[2,4,8,8,64], index: 0, kind: input, shape index: {}]
  %s1 = inlined_call_operand.vmem [shape: f32[64,16], index: 1, kind: input, shape index: {}]
  %s2 = inlined_call_operand.vmem [shape: f32[2,4,8,8,16], index: 2, kind: output, shape index: {}]
  %s3 = sld [smem:[#allocation0]]
  $region41: #{mixed_3b_forward.11} parent=0
    _
  %s5 = ssub.s32 1, %s3
  %s6 = scalar_select 0, %s5, %s3
  loop: start=0, step=1, limit=4
  $region2: #{mixed_3b_forward.11} parent=0 // loop_pre_header
    _
  $region3: #{mixed_3b_forward.11} parent=0 // loop_header
    %s8 = sphi 0, %s12
    %p9 = scmp.ge.s32.totalorder %s8, 4
    %s18 = sphi 0, %s20
    %s21 = sphi 0, %s18
    %s22 = sphi 0, %s21
    %s38 = sphi 0, %s22
    %s42 = sphi 0, %s42
    %s44 = sphi 0, %s42
    %s45 = sphi 0, %s44
    %s59 = sphi 0, %s45
    %s65 = sphi 0, %s67
    %s68 = sphi 0, %s65
    %s69 = sphi 0, %s68
    %s85 = sphi 0, %s69
  $region4: #{mixed_3b_forward.11} parent=0 // loop_header_branch
    %11 = sbr.rel (%p9) target = $region8
  $region5: #{mixed_3b_forward.11} parent=0 // loop_body
    %s13 = ssub.s32 %s8, 1
    %s14 = ssub.s32 %s8, 2
    %s15 = sadd.s32 %s8, 1
    %s16 = ssub.s32 %s8, %s15
    %p17 = scmp.eq.s32.totalorder %s16, 0
    %s19 = sadd.s32 %s18, 1
    %s20 = scalar_select %p17, %s18, %s19
    %p23 = pneg %p17
    %p24 = scmp.eq.s32.totalorder %s8, 1
    %p25 = por %p23, %p24
    %p26 = scmp.ne.s32.totalorder %s18, %s21
    %p27 = scmp.eq.s32.totalorder %s8, 0
    %p28 = por %p26, %p27
    %p29 = scmp.ne.s32.totalorder %s18, %s21
    %p30 = scmp.eq.s32.totalorder %s13, 1
    %p31 = por %p29, %p30
    %p32 = scmp.ne.s32.totalorder %s21, %s22
    %p33 = scmp.eq.s32.totalorder %s13, 0
    %p34 = por %p32, %p33
    %p35 = scmp.ne.s32.totalorder %s21, %s22
    %p36 = scmp.eq.s32.totalorder %s14, 1
    %p37 = por %p35, %p36
    %p39 = scmp.ne.s32.totalorder %s22, %s38
    %p40 = scmp.eq.s32.totalorder %s14, 0
    %p41 = por %p39, %p40
    %s43 = sadd.s32 %s42, 1
    %p46 = scmp.eq.s32.totalorder %s8, 1
    %p47 = scmp.ne.s32.totalorder %s42, %s44
    %p48 = scmp.eq.s32.totalorder %s8, 0
    %p49 = por %p47, %p48
    %p50 = scmp.ne.s32.totalorder %s42, %s44
    %p51 = scmp.eq.s32.totalorder %s13, 1
    %p52 = por %p50, %p51
    %p53 = scmp.ne.s32.totalorder %s44, %s45
    %p54 = scmp.eq.s32.totalorder %s13, 0
    %p55 = por %p53, %p54
    %p56 = scmp.ne.s32.totalorder %s44, %s45
    %p57 = scmp.eq.s32.totalorder %s14, 1
    %p58 = por %p56, %p57
    %p60 = scmp.ne.s32.totalorder %s45, %s59
    %p61 = scmp.eq.s32.totalorder %s14, 0
    %p62 = por %p60, %p61
    %s63 = ssub.s32 %s8, %s15
    %p64 = scmp.eq.s32.totalorder %s63, 0
    %s66 = sadd.s32 %s65, 1
    %s67 = scalar_select %p64, %s65, %s66
    %p70 = pneg %p64
    %p71 = scmp.eq.s32.totalorder %s8, 1
    %p72 = por %p70, %p71
    %p73 = scmp.ne.s32.totalorder %s65, %s68
    %p74 = scmp.eq.s32.totalorder %s8, 0
    %p75 = por %p73, %p74
    %p76 = scmp.ne.s32.totalorder %s65, %s68
    %p77 = scmp.eq.s32.totalorder %s13, 1
    %p78 = por %p76, %p77
    %p79 = scmp.ne.s32.totalorder %s68, %s69
    %p80 = scmp.eq.s32.totalorder %s13, 0
    %p81 = por %p79, %p80
    %p82 = scmp.ne.s32.totalorder %s68, %s69
    %p83 = scmp.eq.s32.totalorder %s14, 1
    %p84 = por %p82, %p83
    %p86 = scmp.ne.s32.totalorder %s69, %s85
    %p87 = scmp.eq.s32.totalorder %s14, 0
    %p88 = por %p86, %p87
    %p89 = scmp.le.s32.totalorder 1, %s8
    %p90 = scmp.lt.s32.totalorder %s8, 3
    %p91 = pnand %p89, %p90
    %p92 = pneg %p91
    // Predicated region
    $region9: #{mixed_3b_forward.11} parent=5 // pred_check
      _
    $region10: #{mixed_3b_forward.11} parent=5 // pred_check_branch
      %94 = sbr.rel (%p91) target = $region12
    $region11: #{mixed_3b_forward.11} parent=5 // pred_region
      %s95 = ssub.s32 %s8, 1
      // Predicated region
      $region13: #{mixed_3b_forward.11} parent=11 // pred_check
        %p96 = pneg %p55
      $region14: #{mixed_3b_forward.11} parent=11 // pred_check_branch
        %98 = sbr.rel (%p96) target = $region16
      $region15: #{mixed_3b_forward.11} parent=11 // pred_region
        _
      $region16: #{mixed_3b_forward.11} parent=11 // pred_fallthru
        _
    $region12: #{mixed_3b_forward.11} parent=5 // pred_fallthru
      _
    %p99 = scmp.lt.s32.totalorder %s8, 2
    // Predicated region
    $region17: #{mixed_3b_forward.11} parent=5 // pred_check
      %p100 = pneg %p99
    $region18: #{mixed_3b_forward.11} parent=5 // pred_check_branch
      %102 = sbr.rel (%p100) target = $region20
    $region19: #{mixed_3b_forward.11} parent=5 // pred_region
      // Predicated region
      $region21: #{mixed_3b_forward.11} parent=19 // pred_check
        %p103 = pneg %p28
      $region22: #{mixed_3b_forward.11} parent=19 // pred_check_branch
        %105 = sbr.rel (%p103) target = $region24
      $region23: #{mixed_3b_forward.11} parent=19 // pred_region
        %p106 = scmp.lt.s32.totalorder %s8, 1
        %s107 = scalar_select %p106, %s8, 1
        %s108 = smul.addr %s107, 32
        %s109 = smul.addr %s108, 8
        %s110 = scalar_lea.vmem %s0, %s109
      $region24: #{mixed_3b_forward.11} parent=19 // pred_fallthru
        _
    $region20: #{mixed_3b_forward.11} parent=5 // pred_fallthru
      _
    %p111 = scmp.le.s32.totalorder 1, %s8
    %p112 = scmp.lt.s32.totalorder %s8, 3
    %p113 = pnand %p111, %p112
    %p114 = pneg %p113
    // Predicated region
    $region25: #{mixed_3b_forward.11} parent=5 // pred_check
      _
    $region26: #{mixed_3b_forward.11} parent=5 // pred_check_branch
      %116 = sbr.rel (%p113) target = $region28
    $region27: #{mixed_3b_forward.11} parent=5 // pred_region
      %s117 = ssub.s32 %s8, 1
      %p118 = scmp.lt.s32.totalorder %s13, 1
      %s119 = scalar_select %p118, %s13, 1
      %s120 = smul.addr %s119, 32
      %s121 = smul.addr %s120, 8
      %s122 = scalar_lea.vmem %s0, %s121
      %p123 = pneg %p34
      %p124 = pneg %p31
      %p125 = pneg %p55
      %p126 = pneg %p52
      %p127 = pneg %p81
      %p128 = pneg %p78
      %p129 = scmp.lt.s32.totalorder %s13, 1
      %s130 = scalar_select %p129, %s13, 1
      %s131 = smul.addr %s130, 32
      %s132 = smul.addr %s131, 8
      %s133 = scalar_lea.vmem %s2, %s132
      %p134 = scmp.lt.s32.totalorder %s13, 1
      %s135 = scalar_select %p134, %s13, 1
      %s136 = smul.addr %s135, 32
      %s137 = smul.addr %s136, 8
      %s138 = scalar_lea.vmem %s0, %s137
      %p139 = scmp.lt.s32.totalorder %s13, 1
      %s140 = scalar_select %p139, %s13, 1
      %s141 = smul.addr %s140, 32
      %s142 = smul.addr %s141, 8
      %s143 = scalar_lea.vmem %s2, %s142
      %v144 = vld [vmem:[%s138] sm:$0xff]
      %v145 = vld [vmem:[%s138 + $0x8] sm:$0xff]
      %v146 = vld [vmem:[%s138 + $0x10] sm:$0xff]
      %v147 = vld [vmem:[%s138 + $0x18] sm:$0xff]
      %v148 = vld [vmem:[%s138 + $0x20] sm:$0xff]
      %v149 = vld [vmem:[%s138 + $0x28] sm:$0xff]
      %v150 = vld [vmem:[%s138 + $0x30] sm:$0xff]
      %v151 = vld [vmem:[%s138 + $0x38] sm:$0xff]
      %v152 = vld [vmem:[%s138 + $0x40] sm:$0xff]
      %v153 = vld [vmem:[%s138 + $0x48] sm:$0xff]
      %v154 = vld [vmem:[%s138 + $0x50] sm:$0xff]
      %v155 = vld [vmem:[%s138 + $0x58] sm:$0xff]
      %v156 = vld [vmem:[%s138 + $0x60] sm:$0xff]
      %v157 = vld [vmem:[%s138 + $0x68] sm:$0xff]
      %v158 = vld [vmem:[%s138 + $0x70] sm:$0xff]
      %v159 = vld [vmem:[%s138 + $0x78] sm:$0xff]
      %v160 = vld [vmem:[%s138 + $0x80] sm:$0xff]
      %v161 = vld [vmem:[%s138 + $0x88] sm:$0xff]
      %v162 = vld [vmem:[%s138 + $0x90] sm:$0xff]
      %v163 = vld [vmem:[%s138 + $0x98] sm:$0xff]
      %v164 = vld [vmem:[%s138 + $0xa0] sm:$0xff]
      %v165 = vld [vmem:[%s138 + $0xa8] sm:$0xff]
      %v166 = vld [vmem:[%s138 + $0xb0] sm:$0xff]
      %v167 = vld [vmem:[%s138 + $0xb8] sm:$0xff]
      %v168 = vld [vmem:[%s138 + $0xc0] sm:$0xff]
      %v169 = vld [vmem:[%s138 + $0xc8] sm:$0xff]
      %v170 = vld [vmem:[%s138 + $0xd0] sm:$0xff]
      %v171 = vld [vmem:[%s138 + $0xd8] sm:$0xff]
      %v172 = vld [vmem:[%s138 + $0xe0] sm:$0xff]
      %v173 = vld [vmem:[%s138 + $0xe8] sm:$0xff]
      %v174 = vld [vmem:[%s138 + $0xf0] sm:$0xff]
      %v175 = vld [vmem:[%s138 + $0xf8] sm:$0xff]
      %v208 = vrot.slane %v144, 1
      %v209 = vrot.slane %v145, 1
      %v210 = vrot.slane %v146, 1
      %v211 = vrot.slane %v147, 1
      %v212 = vrot.slane %v148, 1
      %v213 = vrot.slane %v149, 1
      %v214 = vrot.slane %v150, 1
      %v215 = vrot.slane %v151, 1
      %v216 = vrot.slane %v152, 1
      %v217 = vrot.slane %v153, 1
      %v218 = vrot.slane %v154, 1
      %v219 = vrot.slane %v155, 1
      %v220 = vrot.slane %v156, 1
      %v221 = vrot.slane %v157, 1
      %v222 = vrot.slane %v158, 1
      %v223 = vrot.slane %v159, 1
      %v224 = vrot.slane %v160, 1
      %v225 = vrot.slane %v161, 1
      %v226 = vrot.slane %v162, 1
      %v227 = vrot.slane %v163, 1
      %v228 = vrot.slane %v164, 1
      %v229 = vrot.slane %v165, 1
      %v230 = vrot.slane %v166, 1
      %v231 = vrot.slane %v167, 1
      %v232 = vrot.slane %v168, 1
      %v233 = vrot.slane %v169, 1
      %v234 = vrot.slane %v170, 1
      %v235 = vrot.slane %v171, 1
      %v236 = vrot.slane %v172, 1
      %v237 = vrot.slane %v173, 1
      %v238 = vrot.slane %v174, 1
      %v239 = vrot.slane %v175, 1
      %vm272 = vcmask 1046528
      %v273 = vsel %vm272, %v208, %v144
      %v274 = vsel %vm272, %v209, %v145
      %v275 = vsel %vm272, %v210, %v146
      %v276 = vsel %vm272, %v211, %v147
      %v277 = vsel %vm272, %v212, %v148
      %v278 = vsel %vm272, %v213, %v149
      %v279 = vsel %vm272, %v214, %v150
      %v280 = vsel %vm272, %v215, %v151
      %v281 = vsel %vm272, %v216, %v152
      %v282 = vsel %vm272, %v217, %v153
      %v283 = vsel %vm272, %v218, %v154
      %v284 = vsel %vm272, %v219, %v155
      %v285 = vsel %vm272, %v220, %v156
      %v286 = vsel %vm272, %v221, %v157
      %v287 = vsel %vm272, %v222, %v158
      %v288 = vsel %vm272, %v223, %v159
      %v289 = vsel %vm272, %v224, %v160
      %v290 = vsel %vm272, %v225, %v161
      %v291 = vsel %vm272, %v226, %v162
      %v292 = vsel %vm272, %v227, %v163
      %v293 = vsel %vm272, %v228, %v164
      %v294 = vsel %vm272, %v229, %v165
      %v295 = vsel %vm272, %v230, %v166
      %v296 = vsel %vm272, %v231, %v167
      %v297 = vsel %vm272, %v232, %v168
      %v298 = vsel %vm272, %v233, %v169
      %v299 = vsel %vm272, %v234, %v170
      %v300 = vsel %vm272, %v235, %v171
      %v301 = vsel %vm272, %v236, %v172
      %v302 = vsel %vm272, %v237, %v173
      %v303 = vsel %vm272, %v238, %v174
      %v304 = vsel %vm272, %v239, %v175
      %v305 = vrot.slane %v144, 7
      %v306 = vrot.slane %v145, 7
      %v307 = vrot.slane %v146, 7
      %v308 = vrot.slane %v147, 7
      %v309 = vrot.slane %v148, 7
      %v310 = vrot.slane %v149, 7
      %v311 = vrot.slane %v150, 7
      %v312 = vrot.slane %v151, 7
      %v313 = vrot.slane %v152, 7
      %v314 = vrot.slane %v153, 7
      %v315 = vrot.slane %v154, 7
      %v316 = vrot.slane %v155, 7
      %v317 = vrot.slane %v156, 7
      %v318 = vrot.slane %v157, 7
      %v319 = vrot.slane %v158, 7
      %v320 = vrot.slane %v159, 7
      %v321 = vrot.slane %v160, 7
      %v322 = vrot.slane %v161, 7
      %v323 = vrot.slane %v162, 7
      %v324 = vrot.slane %v163, 7
      %v325 = vrot.slane %v164, 7
      %v326 = vrot.slane %v165, 7
      %v327 = vrot.slane %v166, 7
      %v328 = vrot.slane %v167, 7
      %v329 = vrot.slane %v168, 7
      %v330 = vrot.slane %v169, 7
      %v331 = vrot.slane %v170, 7
      %v332 = vrot.slane %v171, 7
      %v333 = vrot.slane %v172, 7
      %v334 = vrot.slane %v173, 7
      %v335 = vrot.slane %v174, 7
      %v336 = vrot.slane %v175, 7
      %vm369 = vcmask 1040384
      %v370 = vsel %vm369, %v144, %v305
      %v371 = vsel %vm369, %v145, %v306
      %v372 = vsel %vm369, %v146, %v307
      %v373 = vsel %vm369, %v147, %v308
      %v374 = vsel %vm369, %v148, %v309
      %v375 = vsel %vm369, %v149, %v310
      %v376 = vsel %vm369, %v150, %v311
      %v377 = vsel %vm369, %v151, %v312
      %v378 = vsel %vm369, %v152, %v313
      %v379 = vsel %vm369, %v153, %v314
      %v380 = vsel %vm369, %v154, %v315
      %v381 = vsel %vm369, %v155, %v316
      %v382 = vsel %vm369, %v156, %v317
      %v383 = vsel %vm369, %v157, %v318
      %v384 = vsel %vm369, %v158, %v319
      %v385 = vsel %vm369, %v159, %v320
      %v386 = vsel %vm369, %v160, %v321
      %v387 = vsel %vm369, %v161, %v322
      %v388 = vsel %vm369, %v162, %v323
      %v389 = vsel %vm369, %v163, %v324
      %v390 = vsel %vm369, %v164, %v325
      %v391 = vsel %vm369, %v165, %v326
      %v392 = vsel %vm369, %v166, %v327
      %v393 = vsel %vm369, %v167, %v328
      %v394 = vsel %vm369, %v168, %v329
      %v395 = vsel %vm369, %v169, %v330
      %v396 = vsel %vm369, %v170, %v331
      %v397 = vsel %vm369, %v171, %v332
      %v398 = vsel %vm369, %v172, %v333
      %v399 = vsel %vm369, %v173, %v334
      %v400 = vsel %vm369, %v174, %v335
      %v401 = vsel %vm369, %v175, %v336
      %v402 = vmax.f32 %v273, %v370
      %v403 = vmax.f32 %v274, %v371
      %v404 = vmax.f32 %v275, %v372
      %v405 = vmax.f32 %v276, %v373
      %v406 = vmax.f32 %v277, %v374
      %v407 = vmax.f32 %v278, %v375
      %v408 = vmax.f32 %v279, %v376
      %v409 = vmax.f32 %v280, %v377
      %v410 = vmax.f32 %v281, %v378
      %v411 = vmax.f32 %v282, %v379
      %v412 = vmax.f32 %v283, %v380
      %v413 = vmax.f32 %v284, %v381
      %v414 = vmax.f32 %v285, %v382
      %v415 = vmax.f32 %v286, %v383
      %v416 = vmax.f32 %v287, %v384
      %v417 = vmax.f32 %v288, %v385
      %v418 = vmax.f32 %v289, %v386
      %v419 = vmax.f32 %v290, %v387
      %v420 = vmax.f32 %v291, %v388
      %v421 = vmax.f32 %v292, %v389
      %v422 = vmax.f32 %v293, %v390
      %v423 = vmax.f32 %v294, %v391
      %v424 = vmax.f32 %v295, %v392
      %v425 = vmax.f32 %v296, %v393
      %v426 = vmax.f32 %v297, %v394
      %v427 = vmax.f32 %v298, %v395
      %v428 = vmax.f32 %v299, %v396
      %v429 = vmax.f32 %v300, %v397
      %v430 = vmax.f32 %v301, %v398
      %v431 = vmax.f32 %v302, %v399
      %v432 = vmax.f32 %v303, %v400
      %v433 = vmax.f32 %v304, %v401
      %v434 = vmax.f32 %v144, %v402
      %v435 = vmax.f32 %v145, %v403
      %v436 = vmax.f32 %v146, %v404
      %v437 = vmax.f32 %v147, %v405
      %v438 = vmax.f32 %v148, %v406
      %v439 = vmax.f32 %v149, %v407
      %v440 = vmax.f32 %v150, %v408
      %v441 = vmax.f32 %v151, %v409
      %v442 = vmax.f32 %v152, %v410
      %v443 = vmax.f32 %v153, %v411
      %v444 = vmax.f32 %v154, %v412
      %v445 = vmax.f32 %v155, %v413
      %v446 = vmax.f32 %v156, %v414
      %v447 = vmax.f32 %v157, %v415
      %v448 = vmax.f32 %v158, %v416
      %v449 = vmax.f32 %v159, %v417
      %v450 = vmax.f32 %v160, %v418
      %v451 = vmax.f32 %v161, %v419
      %v452 = vmax.f32 %v162, %v420
      %v453 = vmax.f32 %v163, %v421
      %v454 = vmax.f32 %v164, %v422
      %v455 = vmax.f32 %v165, %v423
      %v456 = vmax.f32 %v166, %v424
      %v457 = vmax.f32 %v167, %v425
      %v458 = vmax.f32 %v168, %v426
      %v459 = vmax.f32 %v169, %v427
      %v460 = vmax.f32 %v170, %v428
      %v461 = vmax.f32 %v171, %v429
      %v462 = vmax.f32 %v172, %v430
      %v463 = vmax.f32 %v173, %v431
      %v464 = vmax.f32 %v174, %v432
      %v465 = vmax.f32 %v175, %v433
      %v466 = vmax.f32 %v435, %v434
      %v467 = vmax.f32 %v436, %v434
      %v468 = vmax.f32 %v437, %v435
      %v469 = vmax.f32 %v438, %v436
      %v470 = vmax.f32 %v439, %v437
      %v471 = vmax.f32 %v440, %v438
      %v472 = vmax.f32 %v441, %v439
      %v473 = vmax.f32 %v441, %v440
      %v474 = vmax.f32 %v443, %v442
      %v475 = vmax.f32 %v444, %v442
      %v476 = vmax.f32 %v445, %v443
      %v477 = vmax.f32 %v446, %v444
      %v478 = vmax.f32 %v447, %v445
      %v479 = vmax.f32 %v448, %v446
      %v480 = vmax.f32 %v449, %v447
      %v481 = vmax.f32 %v449, %v448
      %v482 = vmax.f32 %v451, %v450
      %v483 = vmax.f32 %v452, %v450
      %v484 = vmax.f32 %v453, %v451
      %v485 = vmax.f32 %v454, %v452
      %v486 = vmax.f32 %v455, %v453
      %v487 = vmax.f32 %v456, %v454
      %v488 = vmax.f32 %v457, %v455
      %v489 = vmax.f32 %v457, %v456
      %v490 = vmax.f32 %v459, %v458
      %v491 = vmax.f32 %v460, %v458
      %v492 = vmax.f32 %v461, %v459
      %v493 = vmax.f32 %v462, %v460
      %v494 = vmax.f32 %v463, %v461
      %v495 = vmax.f32 %v464, %v462
      %v496 = vmax.f32 %v465, %v463
      %v497 = vmax.f32 %v465, %v464
      %v498 = vmax.f32 %v434, %v466
      %v499 = vmax.f32 %v435, %v467
      %v500 = vmax.f32 %v436, %v468
      %v501 = vmax.f32 %v437, %v469
      %v502 = vmax.f32 %v438, %v470
      %v503 = vmax.f32 %v439, %v471
      %v504 = vmax.f32 %v440, %v472
      %v505 = vmax.f32 %v441, %v473
      %v506 = vmax.f32 %v442, %v474
      %v507 = vmax.f32 %v443, %v475
      %v508 = vmax.f32 %v444, %v476
      %v509 = vmax.f32 %v445, %v477
      %v510 = vmax.f32 %v446, %v478
      %v511 = vmax.f32 %v447, %v479
      %v512 = vmax.f32 %v448, %v480
      %v513 = vmax.f32 %v449, %v481
      %v514 = vmax.f32 %v450, %v482
      %v515 = vmax.f32 %v451, %v483
      %v516 = vmax.f32 %v452, %v484
      %v517 = vmax.f32 %v453, %v485
      %v518 = vmax.f32 %v454, %v486
      %v519 = vmax.f32 %v455, %v487
      %v520 = vmax.f32 %v456, %v488
      %v521 = vmax.f32 %v457, %v489
      %v522 = vmax.f32 %v458, %v490
      %v523 = vmax.f32 %v459, %v491
      %v524 = vmax.f32 %v460, %v492
      %v525 = vmax.f32 %v461, %v493
      %v526 = vmax.f32 %v462, %v494
      %v527 = vmax.f32 %v463, %v495
      %v528 = vmax.f32 %v464, %v496
      %v529 = vmax.f32 %v465, %v497
      %v530 = vmax.f32 %v506, %v498
      %v531 = vmax.f32 %v507, %v499
      %v532 = vmax.f32 %v508, %v500
      %v533 = vmax.f32 %v509, %v501
      %v534 = vmax.f32 %v510, %v502
      %v535 = vmax.f32 %v511, %v503
      %v536 = vmax.f32 %v512, %v504
      %v537 = vmax.f32 %v513, %v505
      %v538 = vmax.f32 %v514, %v498
      %v539 = vmax.f32 %v515, %v499
      %v540 = vmax.f32 %v516, %v500
      %v541 = vmax.f32 %v517, %v501
      %v542 = vmax.f32 %v518, %v502
      %v543 = vmax.f32 %v519, %v503
      %v544 = vmax.f32 %v520, %v504
      %v545 = vmax.f32 %v521, %v505
      %v546 = vmax.f32 %v522, %v506
      %v547 = vmax.f32 %v523, %v507
      %v548 = vmax.f32 %v524, %v508
      %v549 = vmax.f32 %v525, %v509
      %v550 = vmax.f32 %v526, %v510
      %v551 = vmax.f32 %v527, %v511
      %v552 = vmax.f32 %v528, %v512
      %v553 = vmax.f32 %v529, %v513
      %v554 = vmax.f32 %v522, %v514
      %v555 = vmax.f32 %v523, %v515
      %v556 = vmax.f32 %v524, %v516
      %v557 = vmax.f32 %v525, %v517
      %v558 = vmax.f32 %v526, %v518
      %v559 = vmax.f32 %v527, %v519
      %v560 = vmax.f32 %v528, %v520
      %v561 = vmax.f32 %v529, %v521
      %v562 = vmax.f32 %v498, %v530
      %v563 = vmax.f32 %v499, %v531
      %v564 = vmax.f32 %v500, %v532
      %v565 = vmax.f32 %v501, %v533
      %v566 = vmax.f32 %v502, %v534
      %v567 = vmax.f32 %v503, %v535
      %v568 = vmax.f32 %v504, %v536
      %v569 = vmax.f32 %v505, %v537
      %v570 = vmax.f32 %v506, %v538
      %v571 = vmax.f32 %v507, %v539
      %v572 = vmax.f32 %v508, %v540
      %v573 = vmax.f32 %v509, %v541
      %v574 = vmax.f32 %v510, %v542
      %v575 = vmax.f32 %v511, %v543
      %v576 = vmax.f32 %v512, %v544
      %v577 = vmax.f32 %v513, %v545
      %v578 = vmax.f32 %v514, %v546
      %v579 = vmax.f32 %v515, %v547
      %v580 = vmax.f32 %v516, %v548
      %v581 = vmax.f32 %v517, %v549
      %v582 = vmax.f32 %v518, %v550
      %v583 = vmax.f32 %v519, %v551
      %v584 = vmax.f32 %v520, %v552
      %v585 = vmax.f32 %v521, %v553
      %v586 = vmax.f32 %v522, %v554
      %v587 = vmax.f32 %v523, %v555
      %v588 = vmax.f32 %v524, %v556
      %v589 = vmax.f32 %v525, %v557
      %v590 = vmax.f32 %v526, %v558
      %v591 = vmax.f32 %v527, %v559
      %v592 = vmax.f32 %v528, %v560
      %v593 = vmax.f32 %v529, %v561
      %v594 = vld [vmem:[%s1] sm:$0xff]
      %v595 = vld [vmem:[%s1 + $0x8] sm:$0xff]
      %v596 = vld [vmem:[%s1 + $0x10] sm:$0xff]
      %v597 = vld [vmem:[%s1 + $0x18] sm:$0xff]
      %v598 = vld [vmem:[%s1 + $0x20] sm:$0xff]
      %v599 = vld [vmem:[%s1 + $0x28] sm:$0xff]
      %v600 = vld [vmem:[%s1 + $0x30] sm:$0xff]
      %v601 = vld [vmem:[%s1 + $0x38] sm:$0xff]
      %vm602 = vcmask 523264
      %v604 = vsel %vm602, %v562, 0
      %v607 = vsel %vm602, %v563, 0
      %v610 = vsel %vm602, %v564, 0
      %v613 = vsel %vm602, %v565, 0
      %v616 = vsel %vm602, %v566, 0
      %v619 = vsel %vm602, %v567, 0
      %v622 = vsel %vm602, %v568, 0
      %v625 = vsel %vm602, %v569, 0
      %v628 = vsel %vm602, %v570, 0
      %v631 = vsel %vm602, %v571, 0
      %v634 = vsel %vm602, %v572, 0
      %v637 = vsel %vm602, %v573, 0
      %v640 = vsel %vm602, %v574, 0
      %v643 = vsel %vm602, %v575, 0
      %v646 = vsel %vm602, %v576, 0
      %v649 = vsel %vm602, %v577, 0
      %v652 = vsel %vm602, %v578, 0
      %v655 = vsel %vm602, %v579, 0
      %v658 = vsel %vm602, %v580, 0
      %v661 = vsel %vm602, %v581, 0
      %v664 = vsel %vm602, %v582, 0
      %v667 = vsel %vm602, %v583, 0
      %v670 = vsel %vm602, %v584, 0
      %v673 = vsel %vm602, %v585, 0
      %v676 = vsel %vm602, %v586, 0
      %v679 = vsel %vm602, %v587, 0
      %v682 = vsel %vm602, %v588, 0
      %v685 = vsel %vm602, %v589, 0
      %v688 = vsel %vm602, %v590, 0
      %v691 = vsel %vm602, %v591, 0
      %v694 = vsel %vm602, %v592, 0
      %v697 = vsel %vm602, %v593, 0
      %699 = vmatprep.subr.mxu0 0.0
      %700 = vmatpush1.msra.mxu0 %v594
      %701 = vmatprep.subr.mxu0 0.0
      %702 = vmatpush1.msra.mxu0 %v595
      %703 = vmatprep.subr.mxu0 0.0
      %704 = vmatpush1.msra.mxu0 %v596
      %705 = vmatprep.subr.mxu0 0.0
      %706 = vmatpush1.msra.mxu0 %v597
      %707 = vmatprep.subr.mxu0 0.0
      %708 = vmatpush1.msra.mxu0 %v598
      %709 = vmatprep.subr.mxu0 0.0
      %710 = vmatpush1.msra.mxu0 %v599
      %711 = vmatprep.subr.mxu0 0.0
      %712 = vmatpush1.msra.mxu0 %v600
      %713 = vmatprep.subr.mxu0 0.0
      %714 = vmatpush1.msra.mxu0 %v601
      %715 = vmatprep.subr.mxu0 0.0
      %716 = vmatpush1.msra.mxu0 0.0
      %717 = vmatprep.subr.mxu0 0.0
      %718 = vmatpush1.msra.mxu0 0.0
      %719 = vmatprep.subr.mxu0 0.0
      %720 = vmatpush1.msra.mxu0 0.0
      %721 = vmatprep.subr.mxu0 0.0
      %722 = vmatpush1.msra.mxu0 0.0
      %723 = vmatprep.subr.mxu0 0.0
      %724 = vmatpush1.msra.mxu0 0.0
      %725 = vmatprep.subr.mxu0 0.0
      %726 = vmatpush1.msra.mxu0 0.0
      %727 = vmatprep.subr.mxu0 0.0
      %728 = vmatpush1.msra.mxu0 0.0
      %729 = vmatprep.subr.mxu0 0.0
      %730 = vmatpush1.msra.mxu0 0.0
      %731 = vmatprep.subr.mxu0 0.0
      %732 = vmatpush1.msra.mxu0 0.0
      %733 = vmatprep.subr.mxu0 0.0
      %734 = vmatpush1.msra.mxu0 0.0
      %735 = vmatprep.subr.mxu0 0.0
      %736 = vmatpush1.msra.mxu0 0.0
      %737 = vmatprep.subr.mxu0 0.0
      %738 = vmatpush1.msra.mxu0 0.0
      %739 = vmatprep.subr.mxu0 0.0
      %740 = vmatpush1.msra.mxu0 0.0
      %741 = vmatprep.subr.mxu0 0.0
      %742 = vmatpush1.msra.mxu0 0.0
      %743 = vmatprep.subr.mxu0 0.0
      %744 = vmatpush1.msra.mxu0 0.0
      %745 = vmatprep.subr.mxu0 0.0
      %746 = vmatpush1.msra.mxu0 0.0
      %747 = vmatprep.subr.mxu0 0.0
      %748 = vmatpush1.msra.mxu0 0.0
      %749 = vmatprep.subr.mxu0 0.0
      %750 = vmatpush1.msra.mxu0 0.0
      %751 = vmatprep.subr.mxu0 0.0
      %752 = vmatpush1.msra.mxu0 0.0
      %753 = vmatprep.subr.mxu0 0.0
      %754 = vmatpush1.msra.mxu0 0.0
      %755 = vmatprep.subr.mxu0 0.0
      %756 = vmatpush1.msra.mxu0 0.0
      %757 = vmatprep.subr.mxu0 0.0
      %758 = vmatpush1.msra.mxu0 0.0
      %759 = vmatprep.subr.mxu0 0.0
      %760 = vmatpush1.msra.mxu0 0.0
      %761 = vmatprep.subr.mxu0 0.0
      %762 = vmatpush1.msra.mxu0 0.0
      %763 = vmatprep.mubr.f32.mxu0 0.0
      %764 = vmatmul.mubr.f32.gmra.mrb[0].mxu0 %v604
      %v765 = vpop.f32.mrb[0].mxu0
      %v766 = vadd.f32 0.0, %v765
      %v767 = vpop.f32.mrb[0].mxu0
      %768 = vmatprep.mubr.f32.mxu0 0.0
      %769 = vmatmul.mubr.f32.gmra.mrb[0].mxu0 %v607
      %v770 = vpop.f32.mrb[0].mxu0
      %v771 = vadd.f32 0.0, %v770
      %v772 = vpop.f32.mrb[0].mxu0
      %773 = vmatprep.mubr.f32.mxu0 0.0
      %774 = vmatmul.mubr.f32.gmra.mrb[0].mxu0 %v610
      %v775 = vpop.f32.mrb[0].mxu0
      %v776 = vadd.f32 0.0, %v775
      %v777 = vpop.f32.mrb[0].mxu0
      %778 = vmatprep.mubr.f32.mxu0 0.0
      %779 = vmatmul.mubr.f32.gmra.mrb[0].mxu0 %v613
      %v780 = vpop.f32.mrb[0].mxu0
      %v781 = vadd.f32 0.0, %v780
      %v782 = vpop.f32.mrb[0].mxu0
      %783 = vmatprep.mubr.f32.mxu0 0.0
      %784 = vmatmul.mubr.f32.gmra.mrb[0].mxu0 %v616
      %v785 = vpop.f32.mrb[0].mxu0
      %v786 = vadd.f32 0.0, %v785
      %v787 = vpop.f32.mrb[0].mxu0
      %788 = vmatprep.mubr.f32.mxu0 0.0
      %789 = vmatmul.mubr.f32.gmra.mrb[0].mxu0 %v619
      %v790 = vpop.f32.mrb[0].mxu0
      %v791 = vadd.f32 0.0, %v790
      %v792 = vpop.f32.mrb[0].mxu0
      %793 = vmatprep.mubr.f32.mxu0 0.0
      %794 = vmatmul.mubr.f32.gmra.mrb[0].mxu0 %v622
      %v795 = vpop.f32.mrb[0].mxu0
      %v796 = vadd.f32 0.0, %v795
      %v797 = vpop.f32.mrb[0].mxu0
      %798 = vmatprep.mubr.f32.mxu0 0.0
      %799 = vmatmul.mubr.f32.gmra.mrb[0].mxu0 %v625
      %v800 = vpop.f32.mrb[0].mxu0
      %v801 = vadd.f32 0.0, %v800
      %v802 = vpop.f32.mrb[0].mxu0
      %803 = vmatprep.mubr.f32.mxu0 0.0
      %804 = vmatmul.mubr.f32.gmra.mrb[0].mxu0 %v628
      %v805 = vpop.f32.mrb[0].mxu0
      %v806 = vadd.f32 0.0, %v805
      %v807 = vpop.f32.mrb[0].mxu0
      %808 = vmatprep.mubr.f32.mxu0 0.0
      %809 = vmatmul.mubr.f32.gmra.mrb[0].mxu0 %v631
      %v810 = vpop.f32.mrb[0].mxu0
      %v811 = vadd.f32 0.0, %v810
      %v812 = vpop.f32.mrb[0].mxu0
      %813 = vmatprep.mubr.f32.mxu0 0.0
      %814 = vmatmul.mubr.f32.gmra.mrb[0].mxu0 %v634
      %v815 = vpop.f32.mrb[0].mxu0
      %v816 = vadd.f32 0.0, %v815
      %v817 = vpop.f32.mrb[0].mxu0
      %818 = vmatprep.mubr.f32.mxu0 0.0
      %819 = vmatmul.mubr.f32.gmra.mrb[0].mxu0 %v637
      %v820 = vpop.f32.mrb[0].mxu0
      %v821 = vadd.f32 0.0, %v820
      %v822 = vpop.f32.mrb[0].mxu0
      %823 = vmatprep.mubr.f32.mxu0 0.0
      %824 = vmatmul.mubr.f32.gmra.mrb[0].mxu0 %v640
      %v825 = vpop.f32.mrb[0].mxu0
      %v826 = vadd.f32 0.0, %v825
      %v827 = vpop.f32.mrb[0].mxu0
      %828 = vmatprep.mubr.f32.mxu0 0.0
      %829 = vmatmul.mubr.f32.gmra.mrb[0].mxu0 %v643
      %v830 = vpop.f32.mrb[0].mxu0
      %v831 = vadd.f32 0.0, %v830
      %v832 = vpop.f32.mrb[0].mxu0
      %833 = vmatprep.mubr.f32.mxu0 0.0
      %834 = vmatmul.mubr.f32.gmra.mrb[0].mxu0 %v646
      %v835 = vpop.f32.mrb[0].mxu0
      %v836 = vadd.f32 0.0, %v835
      %v837 = vpop.f32.mrb[0].mxu0
      %838 = vmatprep.mubr.f32.mxu0 0.0
      %839 = vmatmul.mubr.f32.gmra.mrb[0].mxu0 %v649
      %v840 = vpop.f32.mrb[0].mxu0
      %v841 = vadd.f32 0.0, %v840
      %v842 = vpop.f32.mrb[0].mxu0
      %843 = vmatprep.mubr.f32.mxu0 0.0
      %844 = vmatmul.mubr.f32.gmra.mrb[0].mxu0 %v652
      %v845 = vpop.f32.mrb[0].mxu0
      %v846 = vadd.f32 0.0, %v845
      %v847 = vpop.f32.mrb[0].mxu0
      %848 = vmatprep.mubr.f32.mxu0 0.0
      %849 = vmatmul.mubr.f32.gmra.mrb[0].mxu0 %v655
      %v850 = vpop.f32.mrb[0].mxu0
      %v851 = vadd.f32 0.0, %v850
      %v852 = vpop.f32.mrb[0].mxu0
      %853 = vmatprep.mubr.f32.mxu0 0.0
      %854 = vmatmul.mubr.f32.gmra.mrb[0].mxu0 %v658
      %v855 = vpop.f32.mrb[0].mxu0
      %v856 = vadd.f32 0.0, %v855
      %v857 = vpop.f32.mrb[0].mxu0
      %858 = vmatprep.mubr.f32.mxu0 0.0
      %859 = vmatmul.mubr.f32.gmra.mrb[0].mxu0 %v661
      %v860 = vpop.f32.mrb[0].mxu0
      %v861 = vadd.f32 0.0, %v860
      %v862 = vpop.f32.mrb[0].mxu0
      %863 = vmatprep.mubr.f32.mxu0 0.0
      %864 = vmatmul.mubr.f32.gmra.mrb[0].mxu0 %v664
      %v865 = vpop.f32.mrb[0].mxu0
      %v866 = vadd.f32 0.0, %v865
      %v867 = vpop.f32.mrb[0].mxu0
      %868 = vmatprep.mubr.f32.mxu0 0.0
      %869 = vmatmul.mubr.f32.gmra.mrb[0].mxu0 %v667
      %v870 = vpop.f32.mrb[0].mxu0
      %v871 = vadd.f32 0.0, %v870
      %v872 = vpop.f32.mrb[0].mxu0
      %873 = vmatprep.mubr.f32.mxu0 0.0
      %874 = vmatmul.mubr.f32.gmra.mrb[0].mxu0 %v670
      %v875 = vpop.f32.mrb[0].mxu0
      %v876 = vadd.f32 0.0, %v875
      %v877 = vpop.f32.mrb[0].mxu0
      %878 = vmatprep.mubr.f32.mxu0 0.0
      %879 = vmatmul.mubr.f32.gmra.mrb[0].mxu0 %v673
      %v880 = vpop.f32.mrb[0].mxu0
      %v881 = vadd.f32 0.0, %v880
      %v882 = vpop.f32.mrb[0].mxu0
      %883 = vmatprep.mubr.f32.mxu0 0.0
      %884 = vmatmul.mubr.f32.gmra.mrb[0].mxu0 %v676
      %v885 = vpop.f32.mrb[0].mxu0
      %v886 = vadd.f32 0.0, %v885
      %v887 = vpop.f32.mrb[0].mxu0
      %888 = vmatprep.mubr.f32.mxu0 0.0
      %889 = vmatmul.mubr.f32.gmra.mrb[0].mxu0 %v679
      %v890 = vpop.f32.mrb[0].mxu0
      %v891 = vadd.f32 0.0, %v890
      %v892 = vpop.f32.mrb[0].mxu0
      %893 = vmatprep.mubr.f32.mxu0 0.0
      %894 = vmatmul.mubr.f32.gmra.mrb[0].mxu0 %v682
      %v895 = vpop.f32.mrb[0].mxu0
      %v896 = vadd.f32 0.0, %v895
      %v897 = vpop.f32.mrb[0].mxu0
      %898 = vmatprep.mubr.f32.mxu0 0.0
      %899 = vmatmul.mubr.f32.gmra.mrb[0].mxu0 %v685
      %v900 = vpop.f32.mrb[0].mxu0
      %v901 = vadd.f32 0.0, %v900
      %v902 = vpop.f32.mrb[0].mxu0
      %903 = vmatprep.mubr.f32.mxu0 0.0
      %904 = vmatmul.mubr.f32.gmra.mrb[0].mxu0 %v688
      %v905 = vpop.f32.mrb[0].mxu0
      %v906 = vadd.f32 0.0, %v905
      %v907 = vpop.f32.mrb[0].mxu0
      %908 = vmatprep.mubr.f32.mxu0 0.0
      %909 = vmatmul.mubr.f32.gmra.mrb[0].mxu0 %v691
      %v910 = vpop.f32.mrb[0].mxu0
      %v911 = vadd.f32 0.0, %v910
      %v912 = vpop.f32.mrb[0].mxu0
      %913 = vmatprep.mubr.f32.mxu0 0.0
      %914 = vmatmul.mubr.f32.gmra.mrb[0].mxu0 %v694
      %v915 = vpop.f32.mrb[0].mxu0
      %v916 = vadd.f32 0.0, %v915
      %v917 = vpop.f32.mrb[0].mxu0
      %918 = vmatprep.mubr.f32.mxu0 0.0
      %919 = vmatmul.mubr.f32.gmra.mrb[0].mxu0 %v697
      %v920 = vpop.f32.mrb[0].mxu0
      %v921 = vadd.f32 0.0, %v920
      %v922 = vpop.f32.mrb[0].mxu0
      %923 = vdwg.mxu0
      %v924 = vmul.f32 %v766, 0.5
      %v925 = vmul.f32 %v771, 0.5
      %v926 = vmul.f32 %v776, 0.5
      %v927 = vmul.f32 %v781, 0.5
      %v928 = vmul.f32 %v786, 0.5
      %v929 = vmul.f32 %v791, 0.5
      %v930 = vmul.f32 %v796, 0.5
      %v931 = vmul.f32 %v801, 0.5
      %v932 = vmul.f32 %v806, 0.5
      %v933 = vmul.f32 %v811, 0.5
      %v934 = vmul.f32 %v816, 0.5
      %v935 = vmul.f32 %v821, 0.5
      %v936 = vmul.f32 %v826, 0.5
      %v937 = vmul.f32 %v831, 0.5
      %v938 = vmul.f32 %v836, 0.5
      %v939 = vmul.f32 %v841, 0.5
      %v940 = vmul.f32 %v846, 0.5
      %v941 = vmul.f32 %v851, 0.5
      %v942 = vmul.f32 %v856, 0.5
      %v943 = vmul.f32 %v861, 0.5
      %v944 = vmul.f32 %v866, 0.5
      %v945 = vmul.f32 %v871, 0.5
      %v946 = vmul.f32 %v876, 0.5
      %v947 = vmul.f32 %v881, 0.5
      %v948 = vmul.f32 %v886, 0.5
      %v949 = vmul.f32 %v891, 0.5
      %v950 = vmul.f32 %v896, 0.5
      %v951 = vmul.f32 %v901, 0.5
      %v952 = vmul.f32 %v906, 0.5
      %v953 = vmul.f32 %v911, 0.5
      %v954 = vmul.f32 %v916, 0.5
      %v955 = vmul.f32 %v921, 0.5
      %v956 = vrcp.pop 1.4142135
      %v957 = vmul.f32 %v766, %v956
      %v958 = vmul.f32 %v771, %v956
      %v959 = vmul.f32 %v776, %v956
      %v960 = vmul.f32 %v781, %v956
      %v961 = vmul.f32 %v786, %v956
      %v962 = vmul.f32 %v791, %v956
      %v963 = vmul.f32 %v796, %v956
      %v964 = vmul.f32 %v801, %v956
      %v965 = vmul.f32 %v806, %v956
      %v966 = vmul.f32 %v811, %v956
      %v967 = vmul.f32 %v816, %v956
      %v968 = vmul.f32 %v821, %v956
      %v969 = vmul.f32 %v826, %v956
      %v970 = vmul.f32 %v831, %v956
      %v971 = vmul.f32 %v836, %v956
      %v972 = vmul.f32 %v841, %v956
      %v973 = vmul.f32 %v846, %v956
      %v974 = vmul.f32 %v851, %v956
      %v975 = vmul.f32 %v856, %v956
      %v976 = vmul.f32 %v861, %v956
      %v977 = vmul.f32 %v866, %v956
      %v978 = vmul.f32 %v871, %v956
      %v979 = vmul.f32 %v876, %v956
      %v980 = vmul.f32 %v881, %v956
      %v981 = vmul.f32 %v886, %v956
      %v982 = vmul.f32 %v891, %v956
      %v983 = vmul.f32 %v896, %v956
      %v984 = vmul.f32 %v901, %v956
      %v985 = vmul.f32 %v906, %v956
      %v986 = vmul.f32 %v911, %v956
      %v987 = vmul.f32 %v916, %v956
      %v988 = vmul.f32 %v921, %v956
      %v989 = verf.f32.pop %v957
      %v990 = verf.f32.pop %v958
      %v991 = verf.f32.pop %v959
      %v992 = verf.f32.pop %v960
      %v993 = verf.f32.pop %v961
      %v994 = verf.f32.pop %v962
      %v995 = verf.f32.pop %v963
      %v996 = verf.f32.pop %v964
      %v997 = verf.f32.pop %v965
      %v998 = verf.f32.pop %v966
      %v999 = verf.f32.pop %v967
      %v1000 = verf.f32.pop %v968
      %v1001 = verf.f32.pop %v969
      %v1002 = verf.f32.pop %v970
      %v1003 = verf.f32.pop %v971
      %v1004 = verf.f32.pop %v972
      %v1005 = verf.f32.pop %v973
      %v1006 = verf.f32.pop %v974
      %v1007 = verf.f32.pop %v975
      %v1008 = verf.f32.pop %v976
      %v1009 = verf.f32.pop %v977
      %v1010 = verf.f32.pop %v978
      %v1011 = verf.f32.pop %v979
      %v1012 = verf.f32.pop %v980
      %v1013 = verf.f32.pop %v981
      %v1014 = verf.f32.pop %v982
      %v1015 = verf.f32.pop %v983
      %v1016 = verf.f32.pop %v984
      %v1017 = verf.f32.pop %v985
      %v1018 = verf.f32.pop %v986
      %v1019 = verf.f32.pop %v987
      %v1020 = verf.f32.pop %v988
      %v1021 = vadd.f32 %v989, 1.0
      %v1022 = vadd.f32 %v990, 1.0
      %v1023 = vadd.f32 %v991, 1.0
      %v1024 = vadd.f32 %v992, 1.0
      %v1025 = vadd.f32 %v993, 1.0
      %v1026 = vadd.f32 %v994, 1.0
      %v1027 = vadd.f32 %v995, 1.0
      %v1028 = vadd.f32 %v996, 1.0
      %v1029 = vadd.f32 %v997, 1.0
      %v1030 = vadd.f32 %v998, 1.0
      %v1031 = vadd.f32 %v999, 1.0
      %v1032 = vadd.f32 %v1000, 1.0
      %v1033 = vadd.f32 %v1001, 1.0
      %v1034 = vadd.f32 %v1002, 1.0
      %v1035 = vadd.f32 %v1003, 1.0
      %v1036 = vadd.f32 %v1004, 1.0
      %v1037 = vadd.f32 %v1005, 1.0
      %v1038 = vadd.f32 %v1006, 1.0
      %v1039 = vadd.f32 %v1007, 1.0
      %v1040 = vadd.f32 %v1008, 1.0
      %v1041 = vadd.f32 %v1009, 1.0
      %v1042 = vadd.f32 %v1010, 1.0
      %v1043 = vadd.f32 %v1011, 1.0
      %v1044 = vadd.f32 %v1012, 1.0
      %v1045 = vadd.f32 %v1013, 1.0
      %v1046 = vadd.f32 %v1014, 1.0
      %v1047 = vadd.f32 %v1015, 1.0
      %v1048 = vadd.f32 %v1016, 1.0
      %v1049 = vadd.f32 %v1017, 1.0
      %v1050 = vadd.f32 %v1018, 1.0
      %v1051 = vadd.f32 %v1019, 1.0
      %v1052 = vadd.f32 %v1020, 1.0
      %v1053 = vmul.f32 %v924, %v1021
      %v1054 = vmul.f32 %v925, %v1022
      %v1055 = vmul.f32 %v926, %v1023
      %v1056 = vmul.f32 %v927, %v1024
      %v1057 = vmul.f32 %v928, %v1025
      %v1058 = vmul.f32 %v929, %v1026
      %v1059 = vmul.f32 %v930, %v1027
      %v1060 = vmul.f32 %v931, %v1028
      %v1061 = vmul.f32 %v932, %v1029
      %v1062 = vmul.f32 %v933, %v1030
      %v1063 = vmul.f32 %v934, %v1031
      %v1064 = vmul.f32 %v935, %v1032
      %v1065 = vmul.f32 %v936, %v1033
      %v1066 = vmul.f32 %v937, %v1034
      %v1067 = vmul.f32 %v938, %v1035
      %v1068 = vmul.f32 %v939, %v1036
      %v1069 = vmul.f32 %v940, %v1037
      %v1070 = vmul.f32 %v941, %v1038
      %v1071 = vmul.f32 %v942, %v1039
      %v1072 = vmul.f32 %v943, %v1040
      %v1073 = vmul.f32 %v944, %v1041
      %v1074 = vmul.f32 %v945, %v1042
      %v1075 = vmul.f32 %v946, %v1043
      %v1076 = vmul.f32 %v947, %v1044
      %v1077 = vmul.f32 %v948, %v1045
      %v1078 = vmul.f32 %v949, %v1046
      %v1079 = vmul.f32 %v950, %v1047
      %v1080 = vmul.f32 %v951, %v1048
      %v1081 = vmul.f32 %v952, %v1049
      %v1082 = vmul.f32 %v953, %v1050
      %v1083 = vmul.f32 %v954, %v1051
      %v1084 = vmul.f32 %v955, %v1052
      %vm1085 = vcmask 130048
      %1086 = vst.msk [vmem:[%s143] sm:$0xff] %vm1085, %v1053
      %1087 = vst.msk [vmem:[%s143 + $0x8] sm:$0xff] %vm1085, %v1054
      %1088 = vst.msk [vmem:[%s143 + $0x10] sm:$0xff] %vm1085, %v1055
      %1089 = vst.msk [vmem:[%s143 + $0x18] sm:$0xff] %vm1085, %v1056
      %1090 = vst.msk [vmem:[%s143 + $0x20] sm:$0xff] %vm1085, %v1057
      %1091 = vst.msk [vmem:[%s143 + $0x28] sm:$0xff] %vm1085, %v1058
      %1092 = vst.msk [vmem:[%s143 + $0x30] sm:$0xff] %vm1085, %v1059
      %1093 = vst.msk [vmem:[%s143 + $0x38] sm:$0xff] %vm1085, %v1060
      %1094 = vst.msk [vmem:[%s143 + $0x40] sm:$0xff] %vm1085, %v1061
      %1095 = vst.msk [vmem:[%s143 + $0x48] sm:$0xff] %vm1085, %v1062
      %1096 = vst.msk [vmem:[%s143 + $0x50] sm:$0xff] %vm1085, %v1063
      %1097 = vst.msk [vmem:[%s143 + $0x58] sm:$0xff] %vm1085, %v1064
      %1098 = vst.msk [vmem:[%s143 + $0x60] sm:$0xff] %vm1085, %v1065
      %1099 = vst.msk [vmem:[%s143 + $0x68] sm:$0xff] %vm1085, %v1066
      %1100 = vst.msk [vmem:[%s143 + $0x70] sm:$0xff] %vm1085, %v1067
      %1101 = vst.msk [vmem:[%s143 + $0x78] sm:$0xff] %vm1085, %v1068
      %1102 = vst.msk [vmem:[%s143 + $0x80] sm:$0xff] %vm1085, %v1069
      %1103 = vst.msk [vmem:[%s143 + $0x88] sm:$0xff] %vm1085, %v1070
      %1104 = vst.msk [vmem:[%s143 + $0x90] sm:$0xff] %vm1085, %v1071
      %1105 = vst.msk [vmem:[%s143 + $0x98] sm:$0xff] %vm1085, %v1072
      %1106 = vst.msk [vmem:[%s143 + $0xa0] sm:$0xff] %vm1085, %v1073
      %1107 = vst.msk [vmem:[%s143 + $0xa8] sm:$0xff] %vm1085, %v1074
      %1108 = vst.msk [vmem:[%s143 + $0xb0] sm:$0xff] %vm1085, %v1075
      %1109 = vst.msk [vmem:[%s143 + $0xb8] sm:$0xff] %vm1085, %v1076
      %1110 = vst.msk [vmem:[%s143 + $0xc0] sm:$0xff] %vm1085, %v1077
      %1111 = vst.msk [vmem:[%s143 + $0xc8] sm:$0xff] %vm1085, %v1078
      %1112 = vst.msk [vmem:[%s143 + $0xd0] sm:$0xff] %vm1085, %v1079
      %1113 = vst.msk [vmem:[%s143 + $0xd8] sm:$0xff] %vm1085, %v1080
      %1114 = vst.msk [vmem:[%s143 + $0xe0] sm:$0xff] %vm1085, %v1081
      %1115 = vst.msk [vmem:[%s143 + $0xe8] sm:$0xff] %vm1085, %v1082
      %1116 = vst.msk [vmem:[%s143 + $0xf0] sm:$0xff] %vm1085, %v1083
      %1117 = vst.msk [vmem:[%s143 + $0xf8] sm:$0xff] %vm1085, %v1084
      %p1118 = scmp.lt.s32.totalorder %s13, 1
      %s1119 = scalar_select %p1118, %s13, 1
      %s1120 = smul.addr %s1119, 32
      %s1121 = smul.addr %s1120, 8
      %s1122 = scalar_lea.vmem %s2, %s1121
      // Predicated region
      $region29: #{mixed_3b_forward.11} parent=27 // pred_check
        %p1123 = pneg %p78
      $region30: #{mixed_3b_forward.11} parent=27 // pred_check_branch
        %1125 = sbr.rel (%p1123) target = $region32
      $region31: #{mixed_3b_forward.11} parent=27 // pred_region
        _
      $region32: #{mixed_3b_forward.11} parent=27 // pred_fallthru
        _
    $region28: #{mixed_3b_forward.11} parent=5 // pred_fallthru
      _
    %p1126 = scmp.le.s32.totalorder 2, %s8
    // Predicated region
    $region33: #{mixed_3b_forward.11} parent=5 // pred_check
      %p1127 = pneg %p1126
    $region34: #{mixed_3b_forward.11} parent=5 // pred_check_branch
      %1129 = sbr.rel (%p1127) target = $region36
    $region35: #{mixed_3b_forward.11} parent=5 // pred_region
      %s1130 = ssub.s32 %s8, 2
      // Predicated region
      $region37: #{mixed_3b_forward.11} parent=35 // pred_check
        %p1131 = pneg %p84
      $region38: #{mixed_3b_forward.11} parent=35 // pred_check_branch
        %1133 = sbr.rel (%p1131) target = $region40
      $region39: #{mixed_3b_forward.11} parent=35 // pred_region
        %p1134 = scmp.lt.s32.totalorder %s14, 1
        %s1135 = scalar_select %p1134, %s14, 1
        %s1136 = smul.addr %s1135, 32
        %s1137 = smul.addr %s1136, 8
        %s1138 = scalar_lea.vmem %s2, %s1137
      $region40: #{mixed_3b_forward.11} parent=35 // pred_fallthru
        _
    $region36: #{mixed_3b_forward.11} parent=5 // pred_fallthru
      _
  $region6: #{mixed_3b_forward.11} parent=0 // loop_footer
    %s12 = sadd.s32 1, %s8
  $region7: #{mixed_3b_forward.11} parent=0 // loop_footer_branch
    %7 = sbr.rel target = $region3
  $region8: #{mixed_3b_forward.11} parent=0 // loop_exit
    _

// kernel: mixed_3b_forward.6
$region0: #{mixed_3b_forward.6}
  #allocation0 [shape = 'u32[]', space=smem, size = 0x4, offset = 0x4, fixed_abs, tag = 'smem constant byte address 0x4 - core index']
  #allocation1 [shape = 'u32[144,128]{1,0:T(1,128)}', space=vmem, size = 0x12000, scoped, tag = 'internal scratch']
  %s0 = inlined_call_operand.vmem [shape: f32[512,64], index: 0, kind: input, shape index: {}]
  %s1 = inlined_call_operand.vmem [shape: f32[64,80], index: 1, kind: input, shape index: {}]
  %s2 = inlined_call_operand.vmem [shape: f32[512,32], index: 2, kind: output, shape index: {0}]
  %s3 = inlined_call_operand.vmem [shape: f32[512,32], index: 3, kind: output, shape index: {1}]
  %s4 = inlined_call_operand.vmem [shape: f32[512,16], index: 4, kind: output, shape index: {2}]
  %5 = xla_tuple %s2, %s3, %s4
  %s6 = sld [smem:[#allocation0]]
  $region34: #{mixed_3b_forward.6} parent=0
    _
  %s8 = ssub.s32 1, %s6
  %s9 = scalar_select 0, %s8, %s6
  // Predicated region
  $region2: #{mixed_3b_forward.6} parent=0 // pred_check
    _
  $region3: #{mixed_3b_forward.6} parent=0 // pred_check_branch
    %11 = sbr.rel (0) target = $region5
  $region4: #{mixed_3b_forward.6} parent=0 // pred_region
    _
  $region5: #{mixed_3b_forward.6} parent=0 // pred_fallthru
    _
  // Predicated region
  $region6: #{mixed_3b_forward.6} parent=0 // pred_check
    _
  $region7: #{mixed_3b_forward.6} parent=0 // pred_check_branch
    %13 = sbr.rel (0) target = $region9
  $region8: #{mixed_3b_forward.6} parent=0 // pred_region
    _
  $region9: #{mixed_3b_forward.6} parent=0 // pred_fallthru
    _
  %v14 = vld [vmem:[%s0] sm:$0xff]
  %v15 = vld [vmem:[%s0 + $0x8] sm:$0xff]
  %v16 = vld [vmem:[%s0 + $0x10] sm:$0xff]
  %v17 = vld [vmem:[%s0 + $0x18] sm:$0xff]
  %v18 = vld [vmem:[%s0 + $0x20] sm:$0xff]
  %v19 = vld [vmem:[%s0 + $0x28] sm:$0xff]
  %v20 = vld [vmem:[%s0 + $0x30] sm:$0xff]
  %v21 = vld [vmem:[%s0 + $0x38] sm:$0xff]
  %v22 = vld [vmem:[%s0 + $0x40] sm:$0xff]
  %v23 = vld [vmem:[%s0 + $0x48] sm:$0xff]
  %v24 = vld [vmem:[%s0 + $0x50] sm:$0xff]
  %v25 = vld [vmem:[%s0 + $0x58] sm:$0xff]
  %v26 = vld [vmem:[%s0 + $0x60] sm:$0xff]
  %v27 = vld [vmem:[%s0 + $0x68] sm:$0xff]
  %v28 = vld [vmem:[%s0 + $0x70] sm:$0xff]
  %v29 = vld [vmem:[%s0 + $0x78] sm:$0xff]
  %v30 = vld [vmem:[%s0 + $0x80] sm:$0xff]
  %v31 = vld [vmem:[%s0 + $0x88] sm:$0xff]
  %v32 = vld [vmem:[%s0 + $0x90] sm:$0xff]
  %v33 = vld [vmem:[%s0 + $0x98] sm:$0xff]
  %v34 = vld [vmem:[%s0 + $0xa0] sm:$0xff]
  %v35 = vld [vmem:[%s0 + $0xa8] sm:$0xff]
  %v36 = vld [vmem:[%s0 + $0xb0] sm:$0xff]
  %v37 = vld [vmem:[%s0 + $0xb8] sm:$0xff]
  %v38 = vld [vmem:[%s0 + $0xc0] sm:$0xff]
  %v39 = vld [vmem:[%s0 + $0xc8] sm:$0xff]
  %v40 = vld [vmem:[%s0 + $0xd0] sm:$0xff]
  %v41 = vld [vmem:[%s0 + $0xd8] sm:$0xff]
  %v42 = vld [vmem:[%s0 + $0xe0] sm:$0xff]
  %v43 = vld [vmem:[%s0 + $0xe8] sm:$0xff]
  %v44 = vld [vmem:[%s0 + $0xf0] sm:$0xff]
  %v45 = vld [vmem:[%s0 + $0xf8] sm:$0xff]
  %v46 = vld [vmem:[%s0 + $0x100] sm:$0xff]
  %v47 = vld [vmem:[%s0 + $0x108] sm:$0xff]
  %v48 = vld [vmem:[%s0 + $0x110] sm:$0xff]
  %v49 = vld [vmem:[%s0 + $0x118] sm:$0xff]
  %v50 = vld [vmem:[%s0 + $0x120] sm:$0xff]
  %v51 = vld [vmem:[%s0 + $0x128] sm:$0xff]
  %v52 = vld [vmem:[%s0 + $0x130] sm:$0xff]
  %v53 = vld [vmem:[%s0 + $0x138] sm:$0xff]
  %v54 = vld [vmem:[%s0 + $0x140] sm:$0xff]
  %v55 = vld [vmem:[%s0 + $0x148] sm:$0xff]
  %v56 = vld [vmem:[%s0 + $0x150] sm:$0xff]
  %v57 = vld [vmem:[%s0 + $0x158] sm:$0xff]
  %v58 = vld [vmem:[%s0 + $0x160] sm:$0xff]
  %v59 = vld [vmem:[%s0 + $0x168] sm:$0xff]
  %v60 = vld [vmem:[%s0 + $0x170] sm:$0xff]
  %v61 = vld [vmem:[%s0 + $0x178] sm:$0xff]
  %v62 = vld [vmem:[%s0 + $0x180] sm:$0xff]
  %v63 = vld [vmem:[%s0 + $0x188] sm:$0xff]
  %v64 = vld [vmem:[%s0 + $0x190] sm:$0xff]
  %v65 = vld [vmem:[%s0 + $0x198] sm:$0xff]
  %v66 = vld [vmem:[%s0 + $0x1a0] sm:$0xff]
  %v67 = vld [vmem:[%s0 + $0x1a8] sm:$0xff]
  %v68 = vld [vmem:[%s0 + $0x1b0] sm:$0xff]
  %v69 = vld [vmem:[%s0 + $0x1b8] sm:$0xff]
  %v70 = vld [vmem:[%s0 + $0x1c0] sm:$0xff]
  %v71 = vld [vmem:[%s0 + $0x1c8] sm:$0xff]
  %v72 = vld [vmem:[%s0 + $0x1d0] sm:$0xff]
  %v73 = vld [vmem:[%s0 + $0x1d8] sm:$0xff]
  %v74 = vld [vmem:[%s0 + $0x1e0] sm:$0xff]
  %v75 = vld [vmem:[%s0 + $0x1e8] sm:$0xff]
  %v76 = vld [vmem:[%s0 + $0x1f0] sm:$0xff]
  %v77 = vld [vmem:[%s0 + $0x1f8] sm:$0xff]
  %v78 = vld [vmem:[%s1] sm:$0xff]
  %v79 = vld [vmem:[%s1 + $0x8] sm:$0xff]
  %v80 = vld [vmem:[%s1 + $0x10] sm:$0xff]
  %v81 = vld [vmem:[%s1 + $0x18] sm:$0xff]
  %v82 = vld [vmem:[%s1 + $0x20] sm:$0xff]
  %v83 = vld [vmem:[%s1 + $0x28] sm:$0xff]
  %v84 = vld [vmem:[%s1 + $0x30] sm:$0xff]
  %v85 = vld [vmem:[%s1 + $0x38] sm:$0xff]
  %vm86 = vcmask 523264
  %v88 = vsel %vm86, %v14, 0
  %v91 = vsel %vm86, %v15, 0
  %v94 = vsel %vm86, %v16, 0
  %v97 = vsel %vm86, %v17, 0
  %v100 = vsel %vm86, %v18, 0
  %v103 = vsel %vm86, %v19, 0
  %v106 = vsel %vm86, %v20, 0
  %v109 = vsel %vm86, %v21, 0
  %v112 = vsel %vm86, %v22, 0
  %v115 = vsel %vm86, %v23, 0
  %v118 = vsel %vm86, %v24, 0
  %v121 = vsel %vm86, %v25, 0
  %v124 = vsel %vm86, %v26, 0
  %v127 = vsel %vm86, %v27, 0
  %v130 = vsel %vm86, %v28, 0
  %v133 = vsel %vm86, %v29, 0
  %v136 = vsel %vm86, %v30, 0
  %v139 = vsel %vm86, %v31, 0
  %v142 = vsel %vm86, %v32, 0
  %v145 = vsel %vm86, %v33, 0
  %v148 = vsel %vm86, %v34, 0
  %v151 = vsel %vm86, %v35, 0
  %v154 = vsel %vm86, %v36, 0
  %v157 = vsel %vm86, %v37, 0
  %v160 = vsel %vm86, %v38, 0
  %v163 = vsel %vm86, %v39, 0
  %v166 = vsel %vm86, %v40, 0
  %v169 = vsel %vm86, %v41, 0
  %v172 = vsel %vm86, %v42, 0
  %v175 = vsel %vm86, %v43, 0
  %v178 = vsel %vm86, %v44, 0
  %v181 = vsel %vm86, %v45, 0
  %v184 = vsel %vm86, %v46, 0
  %v187 = vsel %vm86, %v47, 0
  %v190 = vsel %vm86, %v48, 0
  %v193 = vsel %vm86, %v49, 0
  %v196 = vsel %vm86, %v50, 0
  %v199 = vsel %vm86, %v51, 0
  %v202 = vsel %vm86, %v52, 0
  %v205 = vsel %vm86, %v53, 0
  %v208 = vsel %vm86, %v54, 0
  %v211 = vsel %vm86, %v55, 0
  %v214 = vsel %vm86, %v56, 0
  %v217 = vsel %vm86, %v57, 0
  %v220 = vsel %vm86, %v58, 0
  %v223 = vsel %vm86, %v59, 0
  %v226 = vsel %vm86, %v60, 0
  %v229 = vsel %vm86, %v61, 0
  %v232 = vsel %vm86, %v62, 0
  %v235 = vsel %vm86, %v63, 0
  %v238 = vsel %vm86, %v64, 0
  %v241 = vsel %vm86, %v65, 0
  %v244 = vsel %vm86, %v66, 0
  %v247 = vsel %vm86, %v67, 0
  %v250 = vsel %vm86, %v68, 0
  %v253 = vsel %vm86, %v69, 0
  %v256 = vsel %vm86, %v70, 0
  %v259 = vsel %vm86, %v71, 0
  %v262 = vsel %vm86, %v72, 0
  %v265 = vsel %vm86, %v73, 0
  %v268 = vsel %vm86, %v74, 0
  %v271 = vsel %vm86, %v75, 0
  %v274 = vsel %vm86, %v76, 0
  %v277 = vsel %vm86, %v77, 0
  %279 = vmatprep.subr.mxu0 0.0
  %280 = vmatpush1.msra.mxu0 %v78
  %281 = vmatprep.subr.mxu0 0.0
  %282 = vmatpush1.msra.mxu0 %v79
  %283 = vmatprep.subr.mxu0 0.0
  %284 = vmatpush1.msra.mxu0 %v80
  %285 = vmatprep.subr.mxu0 0.0
  %286 = vmatpush1.msra.mxu0 %v81
  %287 = vmatprep.subr.mxu0 0.0
  %288 = vmatpush1.msra.mxu0 %v82
  %289 = vmatprep.subr.mxu0 0.0
  %290 = vmatpush1.msra.mxu0 %v83
  %291 = vmatprep.subr.mxu0 0.0
  %292 = vmatpush1.msra.mxu0 %v84
  %293 = vmatprep.subr.mxu0 0.0
  %294 = vmatpush1.msra.mxu0 %v85
  %295 = vmatprep.subr.mxu0 0.0
  %296 = vmatpush1.msra.mxu0 0.0
  %297 = vmatprep.subr.mxu0 0.0
  %298 = vmatpush1.msra.mxu0 0.0
  %299 = vmatprep.subr.mxu0 0.0
  %300 = vmatpush1.msra.mxu0 0.0
  %301 = vmatprep.subr.mxu0 0.0
  %302 = vmatpush1.msra.mxu0 0.0
  %303 = vmatprep.subr.mxu0 0.0
  %304 = vmatpush1.msra.mxu0 0.0
  %305 = vmatprep.subr.mxu0 0.0
  %306 = vmatpush1.msra.mxu0 0.0
  %307 = vmatprep.subr.mxu0 0.0
  %308 = vmatpush1.msra.mxu0 0.0
  %309 = vmatprep.subr.mxu0 0.0
  %310 = vmatpush1.msra.mxu0 0.0
  %311 = vmatprep.subr.mxu0 0.0
  %312 = vmatpush1.msra.mxu0 0.0
  %313 = vmatprep.subr.mxu0 0.0
  %314 = vmatpush1.msra.mxu0 0.0
  %315 = vmatprep.subr.mxu0 0.0
  %316 = vmatpush1.msra.mxu0 0.0
  %317 = vmatprep.subr.mxu0 0.0
  %318 = vmatpush1.msra.mxu0 0.0
  %319 = vmatprep.subr.mxu0 0.0
  %320 = vmatpush1.msra.mxu0 0.0
  %321 = vmatprep.subr.mxu0 0.0
  %322 = vmatpush1.msra.mxu0 0.0
  %323 = vmatprep.subr.mxu0 0.0
  %324 = vmatpush1.msra.mxu0 0.0
  %325 = vmatprep.subr.mxu0 0.0
  %326 = vmatpush1.msra.mxu0 0.0
  %327 = vmatprep.subr.mxu0 0.0
  %328 = vmatpush1.msra.mxu0 0.0
  %329 = vmatprep.subr.mxu0 0.0
  %330 = vmatpush1.msra.mxu0 0.0
  %331 = vmatprep.subr.mxu0 0.0
  %332 = vmatpush1.msra.mxu0 0.0
  %333 = vmatprep.subr.mxu0 0.0
  %334 = vmatpush1.msra.mxu0 0.0
  %335 = vmatprep.subr.mxu0 0.0
  %336 = vmatpush1.msra.mxu0 0.0
  %337 = vmatprep.subr.mxu0 0.0
  %338 = vmatpush1.msra.mxu0 0.0
  %339 = vmatprep.subr.mxu0 0.0
  %340 = vmatpush1.msra.mxu0 0.0
  %341 = vmatprep.subr.mxu0 0.0
  %342 = vmatpush1.msra.mxu0 0.0
  %343 = vmatprep.mubr.f32.mxu0 0.0
  %344 = vmatmul.mubr.f32.gmra.mrb[0].mxu0 %v88
  %v345 = vpop.f32.mrb[0].mxu0
  %v346 = vadd.f32 0.0, %v345
  %v347 = vpop.f32.mrb[0].mxu0
  %348 = vmatprep.mubr.f32.mxu0 0.0
  %349 = vmatmul.mubr.f32.gmra.mrb[0].mxu0 %v91
  %v350 = vpop.f32.mrb[0].mxu0
  %v351 = vadd.f32 0.0, %v350
  %v352 = vpop.f32.mrb[0].mxu0
  %353 = vmatprep.mubr.f32.mxu0 0.0
  %354 = vmatmul.mubr.f32.gmra.mrb[0].mxu0 %v94
  %v355 = vpop.f32.mrb[0].mxu0
  %v356 = vadd.f32 0.0, %v355
  %v357 = vpop.f32.mrb[0].mxu0
  %358 = vmatprep.mubr.f32.mxu0 0.0
  %359 = vmatmul.mubr.f32.gmra.mrb[0].mxu0 %v97
  %v360 = vpop.f32.mrb[0].mxu0
  %v361 = vadd.f32 0.0, %v360
  %v362 = vpop.f32.mrb[0].mxu0
  %363 = vmatprep.mubr.f32.mxu0 0.0
  %364 = vmatmul.mubr.f32.gmra.mrb[0].mxu0 %v100
  %v365 = vpop.f32.mrb[0].mxu0
  %v366 = vadd.f32 0.0, %v365
  %v367 = vpop.f32.mrb[0].mxu0
  %368 = vmatprep.mubr.f32.mxu0 0.0
  %369 = vmatmul.mubr.f32.gmra.mrb[0].mxu0 %v103
  %v370 = vpop.f32.mrb[0].mxu0
  %v371 = vadd.f32 0.0, %v370
  %v372 = vpop.f32.mrb[0].mxu0
  %373 = vmatprep.mubr.f32.mxu0 0.0
  %374 = vmatmul.mubr.f32.gmra.mrb[0].mxu0 %v106
  %v375 = vpop.f32.mrb[0].mxu0
  %v376 = vadd.f32 0.0, %v375
  %v377 = vpop.f32.mrb[0].mxu0
  %378 = vmatprep.mubr.f32.mxu0 0.0
  %379 = vmatmul.mubr.f32.gmra.mrb[0].mxu0 %v109
  %v380 = vpop.f32.mrb[0].mxu0
  %v381 = vadd.f32 0.0, %v380
  %v382 = vpop.f32.mrb[0].mxu0
  %383 = vmatprep.mubr.f32.mxu0 0.0
  %384 = vmatmul.mubr.f32.gmra.mrb[0].mxu0 %v112
  %v385 = vpop.f32.mrb[0].mxu0
  %v386 = vadd.f32 0.0, %v385
  %v387 = vpop.f32.mrb[0].mxu0
  %388 = vmatprep.mubr.f32.mxu0 0.0
  %389 = vmatmul.mubr.f32.gmra.mrb[0].mxu0 %v115
  %v390 = vpop.f32.mrb[0].mxu0
  %v391 = vadd.f32 0.0, %v390
  %v392 = vpop.f32.mrb[0].mxu0
  %393 = vmatprep.mubr.f32.mxu0 0.0
  %394 = vmatmul.mubr.f32.gmra.mrb[0].mxu0 %v118
  %v395 = vpop.f32.mrb[0].mxu0
  %v396 = vadd.f32 0.0, %v395
  %v397 = vpop.f32.mrb[0].mxu0
  %398 = vmatprep.mubr.f32.mxu0 0.0
  %399 = vmatmul.mubr.f32.gmra.mrb[0].mxu0 %v121
  %v400 = vpop.f32.mrb[0].mxu0
  %v401 = vadd.f32 0.0, %v400
  %v402 = vpop.f32.mrb[0].mxu0
  %403 = vmatprep.mubr.f32.mxu0 0.0
  %404 = vmatmul.mubr.f32.gmra.mrb[0].mxu0 %v124
  %v405 = vpop.f32.mrb[0].mxu0
  %v406 = vadd.f32 0.0, %v405
  %v407 = vpop.f32.mrb[0].mxu0
  %408 = vmatprep.mubr.f32.mxu0 0.0
  %409 = vmatmul.mubr.f32.gmra.mrb[0].mxu0 %v127
  %v410 = vpop.f32.mrb[0].mxu0
  %v411 = vadd.f32 0.0, %v410
  %v412 = vpop.f32.mrb[0].mxu0
  %413 = vmatprep.mubr.f32.mxu0 0.0
  %414 = vmatmul.mubr.f32.gmra.mrb[0].mxu0 %v130
  %v415 = vpop.f32.mrb[0].mxu0
  %v416 = vadd.f32 0.0, %v415
  %v417 = vpop.f32.mrb[0].mxu0
  %418 = vmatprep.mubr.f32.mxu0 0.0
  %419 = vmatmul.mubr.f32.gmra.mrb[0].mxu0 %v133
  %v420 = vpop.f32.mrb[0].mxu0
  %v421 = vadd.f32 0.0, %v420
  %v422 = vpop.f32.mrb[0].mxu0
  %423 = vmatprep.mubr.f32.mxu0 0.0
  %424 = vmatmul.mubr.f32.gmra.mrb[0].mxu0 %v136
  %v425 = vpop.f32.mrb[0].mxu0
  %v426 = vadd.f32 0.0, %v425
  %v427 = vpop.f32.mrb[0].mxu0
  %428 = vmatprep.mubr.f32.mxu0 0.0
  %429 = vmatmul.mubr.f32.gmra.mrb[0].mxu0 %v139
  %v430 = vpop.f32.mrb[0].mxu0
  %v431 = vadd.f32 0.0, %v430
  %v432 = vpop.f32.mrb[0].mxu0
  %433 = vmatprep.mubr.f32.mxu0 0.0
  %434 = vmatmul.mubr.f32.gmra.mrb[0].mxu0 %v142
  %v435 = vpop.f32.mrb[0].mxu0
  %v436 = vadd.f32 0.0, %v435
  %v437 = vpop.f32.mrb[0].mxu0
  %438 = vmatprep.mubr.f32.mxu0 0.0
  %439 = vmatmul.mubr.f32.gmra.mrb[0].mxu0 %v145
  %v440 = vpop.f32.mrb[0].mxu0
  %v441 = vadd.f32 0.0, %v440
  %v442 = vpop.f32.mrb[0].mxu0
  %443 = vmatprep.mubr.f32.mxu0 0.0
  %444 = vmatmul.mubr.f32.gmra.mrb[0].mxu0 %v148
  %v445 = vpop.f32.mrb[0].mxu0
  %v446 = vadd.f32 0.0, %v445
  %v447 = vpop.f32.mrb[0].mxu0
  %448 = vmatprep.mubr.f32.mxu0 0.0
  %449 = vmatmul.mubr.f32.gmra.mrb[0].mxu0 %v151
  %v450 = vpop.f32.mrb[0].mxu0
  %v451 = vadd.f32 0.0, %v450
  %v452 = vpop.f32.mrb[0].mxu0
  %453 = vmatprep.mubr.f32.mxu0 0.0
  %454 = vmatmul.mubr.f32.gmra.mrb[0].mxu0 %v154
  %v455 = vpop.f32.mrb[0].mxu0
  %v456 = vadd.f32 0.0, %v455
  %v457 = vpop.f32.mrb[0].mxu0
  %458 = vmatprep.mubr.f32.mxu0 0.0
  %459 = vmatmul.mubr.f32.gmra.mrb[0].mxu0 %v157
  %v460 = vpop.f32.mrb[0].mxu0
  %v461 = vadd.f32 0.0, %v460
  %v462 = vpop.f32.mrb[0].mxu0
  %463 = vmatprep.mubr.f32.mxu0 0.0
  %464 = vmatmul.mubr.f32.gmra.mrb[0].mxu0 %v160
  %v465 = vpop.f32.mrb[0].mxu0
  %v466 = vadd.f32 0.0, %v465
  %v467 = vpop.f32.mrb[0].mxu0
  %468 = vmatprep.mubr.f32.mxu0 0.0
  %469 = vmatmul.mubr.f32.gmra.mrb[0].mxu0 %v163
  %v470 = vpop.f32.mrb[0].mxu0
  %v471 = vadd.f32 0.0, %v470
  %v472 = vpop.f32.mrb[0].mxu0
  %473 = vmatprep.mubr.f32.mxu0 0.0
  %474 = vmatmul.mubr.f32.gmra.mrb[0].mxu0 %v166
  %v475 = vpop.f32.mrb[0].mxu0
  %v476 = vadd.f32 0.0, %v475
  %v477 = vpop.f32.mrb[0].mxu0
  %478 = vmatprep.mubr.f32.mxu0 0.0
  %479 = vmatmul.mubr.f32.gmra.mrb[0].mxu0 %v169
  %v480 = vpop.f32.mrb[0].mxu0
  %v481 = vadd.f32 0.0, %v480
  %v482 = vpop.f32.mrb[0].mxu0
  %483 = vmatprep.mubr.f32.mxu0 0.0
  %484 = vmatmul.mubr.f32.gmra.mrb[0].mxu0 %v172
  %v485 = vpop.f32.mrb[0].mxu0
  %v486 = vadd.f32 0.0, %v485
  %v487 = vpop.f32.mrb[0].mxu0
  %488 = vmatprep.mubr.f32.mxu0 0.0
  %489 = vmatmul.mubr.f32.gmra.mrb[0].mxu0 %v175
  %v490 = vpop.f32.mrb[0].mxu0
  %v491 = vadd.f32 0.0, %v490
  %v492 = vpop.f32.mrb[0].mxu0
  %493 = vmatprep.mubr.f32.mxu0 0.0
  %494 = vmatmul.mubr.f32.gmra.mrb[0].mxu0 %v178
  %v495 = vpop.f32.mrb[0].mxu0
  %v496 = vadd.f32 0.0, %v495
  %v497 = vpop.f32.mrb[0].mxu0
  %498 = vmatprep.mubr.f32.mxu0 0.0
  %499 = vmatmul.mubr.f32.gmra.mrb[0].mxu0 %v181
  %v500 = vpop.f32.mrb[0].mxu0
  %v501 = vadd.f32 0.0, %v500
  %v502 = vpop.f32.mrb[0].mxu0
  %503 = vmatprep.mubr.f32.mxu0 0.0
  %504 = vmatmul.mubr.f32.gmra.mrb[0].mxu0 %v184
  %v505 = vpop.f32.mrb[0].mxu0
  %v506 = vadd.f32 0.0, %v505
  %v507 = vpop.f32.mrb[0].mxu0
  %508 = vmatprep.mubr.f32.mxu0 0.0
  %509 = vmatmul.mubr.f32.gmra.mrb[0].mxu0 %v187
  %v510 = vpop.f32.mrb[0].mxu0
  %v511 = vadd.f32 0.0, %v510
  %v512 = vpop.f32.mrb[0].mxu0
  %513 = vmatprep.mubr.f32.mxu0 0.0
  %514 = vmatmul.mubr.f32.gmra.mrb[0].mxu0 %v190
  %v515 = vpop.f32.mrb[0].mxu0
  %v516 = vadd.f32 0.0, %v515
  %v517 = vpop.f32.mrb[0].mxu0
  %518 = vmatprep.mubr.f32.mxu0 0.0
  %519 = vmatmul.mubr.f32.gmra.mrb[0].mxu0 %v193
  %v520 = vpop.f32.mrb[0].mxu0
  %v521 = vadd.f32 0.0, %v520
  %v522 = vpop.f32.mrb[0].mxu0
  %523 = vmatprep.mubr.f32.mxu0 0.0
  %524 = vmatmul.mubr.f32.gmra.mrb[0].mxu0 %v196
  %v525 = vpop.f32.mrb[0].mxu0
  %v526 = vadd.f32 0.0, %v525
  %v527 = vpop.f32.mrb[0].mxu0
  %528 = vmatprep.mubr.f32.mxu0 0.0
  %529 = vmatmul.mubr.f32.gmra.mrb[0].mxu0 %v199
  %v530 = vpop.f32.mrb[0].mxu0
  %v531 = vadd.f32 0.0, %v530
  %v532 = vpop.f32.mrb[0].mxu0
  %533 = vmatprep.mubr.f32.mxu0 0.0
  %534 = vmatmul.mubr.f32.gmra.mrb[0].mxu0 %v202
  %v535 = vpop.f32.mrb[0].mxu0
  %v536 = vadd.f32 0.0, %v535
  %v537 = vpop.f32.mrb[0].mxu0
  %538 = vmatprep.mubr.f32.mxu0 0.0
  %539 = vmatmul.mubr.f32.gmra.mrb[0].mxu0 %v205
  %v540 = vpop.f32.mrb[0].mxu0
  %v541 = vadd.f32 0.0, %v540
  %v542 = vpop.f32.mrb[0].mxu0
  %543 = vmatprep.mubr.f32.mxu0 0.0
  %544 = vmatmul.mubr.f32.gmra.mrb[0].mxu0 %v208
  %v545 = vpop.f32.mrb[0].mxu0
  %v546 = vadd.f32 0.0, %v545
  %v547 = vpop.f32.mrb[0].mxu0
  %548 = vmatprep.mubr.f32.mxu0 0.0
  %549 = vmatmul.mubr.f32.gmra.mrb[0].mxu0 %v211
  %v550 = vpop.f32.mrb[0].mxu0
  %v551 = vadd.f32 0.0, %v550
  %v552 = vpop.f32.mrb[0].mxu0
  %553 = vmatprep.mubr.f32.mxu0 0.0
  %554 = vmatmul.mubr.f32.gmra.mrb[0].mxu0 %v214
  %v555 = vpop.f32.mrb[0].mxu0
  %v556 = vadd.f32 0.0, %v555
  %v557 = vpop.f32.mrb[0].mxu0
  %558 = vmatprep.mubr.f32.mxu0 0.0
  %559 = vmatmul.mubr.f32.gmra.mrb[0].mxu0 %v217
  %v560 = vpop.f32.mrb[0].mxu0
  %v561 = vadd.f32 0.0, %v560
  %v562 = vpop.f32.mrb[0].mxu0
  %563 = vmatprep.mubr.f32.mxu0 0.0
  %564 = vmatmul.mubr.f32.gmra.mrb[0].mxu0 %v220
  %v565 = vpop.f32.mrb[0].mxu0
  %v566 = vadd.f32 0.0, %v565
  %v567 = vpop.f32.mrb[0].mxu0
  %568 = vmatprep.mubr.f32.mxu0 0.0
  %569 = vmatmul.mubr.f32.gmra.mrb[0].mxu0 %v223
  %v570 = vpop.f32.mrb[0].mxu0
  %v571 = vadd.f32 0.0, %v570
  %v572 = vpop.f32.mrb[0].mxu0
  %573 = vmatprep.mubr.f32.mxu0 0.0
  %574 = vmatmul.mubr.f32.gmra.mrb[0].mxu0 %v226
  %v575 = vpop.f32.mrb[0].mxu0
  %v576 = vadd.f32 0.0, %v575
  %v577 = vpop.f32.mrb[0].mxu0
  %578 = vmatprep.mubr.f32.mxu0 0.0
  %579 = vmatmul.mubr.f32.gmra.mrb[0].mxu0 %v229
  %v580 = vpop.f32.mrb[0].mxu0
  %v581 = vadd.f32 0.0, %v580
  %v582 = vpop.f32.mrb[0].mxu0
  %583 = vmatprep.mubr.f32.mxu0 0.0
  %584 = vmatmul.mubr.f32.gmra.mrb[0].mxu0 %v232
  %v585 = vpop.f32.mrb[0].mxu0
  %v586 = vadd.f32 0.0, %v585
  %v587 = vpop.f32.mrb[0].mxu0
  %588 = vmatprep.mubr.f32.mxu0 0.0
  %589 = vmatmul.mubr.f32.gmra.mrb[0].mxu0 %v235
  %v590 = vpop.f32.mrb[0].mxu0
  %v591 = vadd.f32 0.0, %v590
  %v592 = vpop.f32.mrb[0].mxu0
  %593 = vmatprep.mubr.f32.mxu0 0.0
  %594 = vmatmul.mubr.f32.gmra.mrb[0].mxu0 %v238
  %v595 = vpop.f32.mrb[0].mxu0
  %v596 = vadd.f32 0.0, %v595
  %v597 = vpop.f32.mrb[0].mxu0
  %598 = vmatprep.mubr.f32.mxu0 0.0
  %599 = vmatmul.mubr.f32.gmra.mrb[0].mxu0 %v241
  %v600 = vpop.f32.mrb[0].mxu0
  %v601 = vadd.f32 0.0, %v600
  %v602 = vpop.f32.mrb[0].mxu0
  %603 = vmatprep.mubr.f32.mxu0 0.0
  %604 = vmatmul.mubr.f32.gmra.mrb[0].mxu0 %v244
  %v605 = vpop.f32.mrb[0].mxu0
  %v606 = vadd.f32 0.0, %v605
  %v607 = vpop.f32.mrb[0].mxu0
  %608 = vmatprep.mubr.f32.mxu0 0.0
  %609 = vmatmul.mubr.f32.gmra.mrb[0].mxu0 %v247
  %v610 = vpop.f32.mrb[0].mxu0
  %v611 = vadd.f32 0.0, %v610
  %v612 = vpop.f32.mrb[0].mxu0
  %613 = vmatprep.mubr.f32.mxu0 0.0
  %614 = vmatmul.mubr.f32.gmra.mrb[0].mxu0 %v250
  %v615 = vpop.f32.mrb[0].mxu0
  %v616 = vadd.f32 0.0, %v615
  %v617 = vpop.f32.mrb[0].mxu0
  %618 = vmatprep.mubr.f32.mxu0 0.0
  %619 = vmatmul.mubr.f32.gmra.mrb[0].mxu0 %v253
  %v620 = vpop.f32.mrb[0].mxu0
  %v621 = vadd.f32 0.0, %v620
  %v622 = vpop.f32.mrb[0].mxu0
  %623 = vmatprep.mubr.f32.mxu0 0.0
  %624 = vmatmul.mubr.f32.gmra.mrb[0].mxu0 %v256
  %v625 = vpop.f32.mrb[0].mxu0
  %v626 = vadd.f32 0.0, %v625
  %v627 = vpop.f32.mrb[0].mxu0
  %628 = vmatprep.mubr.f32.mxu0 0.0
  %629 = vmatmul.mubr.f32.gmra.mrb[0].mxu0 %v259
  %v630 = vpop.f32.mrb[0].mxu0
  %v631 = vadd.f32 0.0, %v630
  %v632 = vpop.f32.mrb[0].mxu0
  %633 = vmatprep.mubr.f32.mxu0 0.0
  %634 = vmatmul.mubr.f32.gmra.mrb[0].mxu0 %v262
  %v635 = vpop.f32.mrb[0].mxu0
  %v636 = vadd.f32 0.0, %v635
  %v637 = vpop.f32.mrb[0].mxu0
  %638 = vmatprep.mubr.f32.mxu0 0.0
  %639 = vmatmul.mubr.f32.gmra.mrb[0].mxu0 %v265
  %v640 = vpop.f32.mrb[0].mxu0
  %v641 = vadd.f32 0.0, %v640
  %v642 = vpop.f32.mrb[0].mxu0
  %643 = vmatprep.mubr.f32.mxu0 0.0
  %644 = vmatmul.mubr.f32.gmra.mrb[0].mxu0 %v268
  %v645 = vpop.f32.mrb[0].mxu0
  %v646 = vadd.f32 0.0, %v645
  %v647 = vpop.f32.mrb[0].mxu0
  %648 = vmatprep.mubr.f32.mxu0 0.0
  %649 = vmatmul.mubr.f32.gmra.mrb[0].mxu0 %v271
  %v650 = vpop.f32.mrb[0].mxu0
  %v651 = vadd.f32 0.0, %v650
  %v652 = vpop.f32.mrb[0].mxu0
  %653 = vmatprep.mubr.f32.mxu0 0.0
  %654 = vmatmul.mubr.f32.gmra.mrb[0].mxu0 %v274
  %v655 = vpop.f32.mrb[0].mxu0
  %v656 = vadd.f32 0.0, %v655
  %v657 = vpop.f32.mrb[0].mxu0
  %658 = vmatprep.mubr.f32.mxu0 0.0
  %659 = vmatmul.mubr.f32.gmra.mrb[0].mxu0 %v277
  %v660 = vpop.f32.mrb[0].mxu0
  %v661 = vadd.f32 0.0, %v660
  %v662 = vpop.f32.mrb[0].mxu0
  %663 = vdwg.mxu0
  %v664 = vmul.f32 %v346, 0.5
  %v665 = vmul.f32 %v351, 0.5
  %v666 = vmul.f32 %v356, 0.5
  %v667 = vmul.f32 %v361, 0.5
  %v668 = vmul.f32 %v366, 0.5
  %v669 = vmul.f32 %v371, 0.5
  %v670 = vmul.f32 %v376, 0.5
  %v671 = vmul.f32 %v381, 0.5
  %v672 = vmul.f32 %v386, 0.5
  %v673 = vmul.f32 %v391, 0.5
  %v674 = vmul.f32 %v396, 0.5
  %v675 = vmul.f32 %v401, 0.5
  %v676 = vmul.f32 %v406, 0.5
  %v677 = vmul.f32 %v411, 0.5
  %v678 = vmul.f32 %v416, 0.5
  %v679 = vmul.f32 %v421, 0.5
  %v680 = vmul.f32 %v426, 0.5
  %v681 = vmul.f32 %v431, 0.5
  %v682 = vmul.f32 %v436, 0.5
  %v683 = vmul.f32 %v441, 0.5
  %v684 = vmul.f32 %v446, 0.5
  %v685 = vmul.f32 %v451, 0.5
  %v686 = vmul.f32 %v456, 0.5
  %v687 = vmul.f32 %v461, 0.5
  %v688 = vmul.f32 %v466, 0.5
  %v689 = vmul.f32 %v471, 0.5
  %v690 = vmul.f32 %v476, 0.5
  %v691 = vmul.f32 %v481, 0.5
  %v692 = vmul.f32 %v486, 0.5
  %v693 = vmul.f32 %v491, 0.5
  %v694 = vmul.f32 %v496, 0.5
  %v695 = vmul.f32 %v501, 0.5
  %v696 = vmul.f32 %v506, 0.5
  %v697 = vmul.f32 %v511, 0.5
  %v698 = vmul.f32 %v516, 0.5
  %v699 = vmul.f32 %v521, 0.5
  %v700 = vmul.f32 %v526, 0.5
  %v701 = vmul.f32 %v531, 0.5
  %v702 = vmul.f32 %v536, 0.5
  %v703 = vmul.f32 %v541, 0.5
  %v704 = vmul.f32 %v546, 0.5
  %v705 = vmul.f32 %v551, 0.5
  %v706 = vmul.f32 %v556, 0.5
  %v707 = vmul.f32 %v561, 0.5
  %v708 = vmul.f32 %v566, 0.5
  %v709 = vmul.f32 %v571, 0.5
  %v710 = vmul.f32 %v576, 0.5
  %v711 = vmul.f32 %v581, 0.5
  %v712 = vmul.f32 %v586, 0.5
  %v713 = vmul.f32 %v591, 0.5
  %v714 = vmul.f32 %v596, 0.5
  %v715 = vmul.f32 %v601, 0.5
  %v716 = vmul.f32 %v606, 0.5
  %v717 = vmul.f32 %v611, 0.5
  %v718 = vmul.f32 %v616, 0.5
  %v719 = vmul.f32 %v621, 0.5
  %v720 = vmul.f32 %v626, 0.5
  %v721 = vmul.f32 %v631, 0.5
  %v722 = vmul.f32 %v636, 0.5
  %v723 = vmul.f32 %v641, 0.5
  %v724 = vmul.f32 %v646, 0.5
  %v725 = vmul.f32 %v651, 0.5
  %v726 = vmul.f32 %v656, 0.5
  %v727 = vmul.f32 %v661, 0.5
  %v728 = vrcp.pop 1.4142135
  %v729 = vmul.f32 %v346, %v728
  %v730 = vmul.f32 %v351, %v728
  %v731 = vmul.f32 %v356, %v728
  %v732 = vmul.f32 %v361, %v728
  %v733 = vmul.f32 %v366, %v728
  %v734 = vmul.f32 %v371, %v728
  %v735 = vmul.f32 %v376, %v728
  %v736 = vmul.f32 %v381, %v728
  %v737 = vmul.f32 %v386, %v728
  %v738 = vmul.f32 %v391, %v728
  %v739 = vmul.f32 %v396, %v728
  %v740 = vmul.f32 %v401, %v728
  %v741 = vmul.f32 %v406, %v728
  %v742 = vmul.f32 %v411, %v728
  %v743 = vmul.f32 %v416, %v728
  %v744 = vmul.f32 %v421, %v728
  %v745 = vmul.f32 %v426, %v728
  %v746 = vmul.f32 %v431, %v728
  %v747 = vmul.f32 %v436, %v728
  %v748 = vmul.f32 %v441, %v728
  %v749 = vmul.f32 %v446, %v728
  %v750 = vmul.f32 %v451, %v728
  %v751 = vmul.f32 %v456, %v728
  %v752 = vmul.f32 %v461, %v728
  %v753 = vmul.f32 %v466, %v728
  %v754 = vmul.f32 %v471, %v728
  %v755 = vmul.f32 %v476, %v728
  %v756 = vmul.f32 %v481, %v728
  %v757 = vmul.f32 %v486, %v728
  %v758 = vmul.f32 %v491, %v728
  %v759 = vmul.f32 %v496, %v728
  %v760 = vmul.f32 %v501, %v728
  %v761 = vmul.f32 %v506, %v728
  %v762 = vmul.f32 %v511, %v728
  %v763 = vmul.f32 %v516, %v728
  %v764 = vmul.f32 %v521, %v728
  %v765 = vmul.f32 %v526, %v728
  %v766 = vmul.f32 %v531, %v728
  %v767 = vmul.f32 %v536, %v728
  %v768 = vmul.f32 %v541, %v728
  %v769 = vmul.f32 %v546, %v728
  %v770 = vmul.f32 %v551, %v728
  %v771 = vmul.f32 %v556, %v728
  %v772 = vmul.f32 %v561, %v728
  %v773 = vmul.f32 %v566, %v728
  %v774 = vmul.f32 %v571, %v728
  %v775 = vmul.f32 %v576, %v728
  %v776 = vmul.f32 %v581, %v728
  %v777 = vmul.f32 %v586, %v728
  %v778 = vmul.f32 %v591, %v728
  %v779 = vmul.f32 %v596, %v728
  %v780 = vmul.f32 %v601, %v728
  %v781 = vmul.f32 %v606, %v728
  %v782 = vmul.f32 %v611, %v728
  %v783 = vmul.f32 %v616, %v728
  %v784 = vmul.f32 %v621, %v728
  %v785 = vmul.f32 %v626, %v728
  %v786 = vmul.f32 %v631, %v728
  %v787 = vmul.f32 %v636, %v728
  %v788 = vmul.f32 %v641, %v728
  %v789 = vmul.f32 %v646, %v728
  %v790 = vmul.f32 %v651, %v728
  %v791 = vmul.f32 %v656, %v728
  %v792 = vmul.f32 %v661, %v728
  %v793 = verf.f32.pop %v729
  %v794 = verf.f32.pop %v730
  %v795 = verf.f32.pop %v731
  %v796 = verf.f32.pop %v732
  %v797 = verf.f32.pop %v733
  %v798 = verf.f32.pop %v734
  %v799 = verf.f32.pop %v735
  %v800 = verf.f32.pop %v736
  %v801 = verf.f32.pop %v737
  %v802 = verf.f32.pop %v738
  %v803 = verf.f32.pop %v739
  %v804 = verf.f32.pop %v740
  %v805 = verf.f32.pop %v741
  %v806 = verf.f32.pop %v742
  %v807 = verf.f32.pop %v743
  %v808 = verf.f32.pop %v744
  %v809 = verf.f32.pop %v745
  %v810 = verf.f32.pop %v746
  %v811 = verf.f32.pop %v747
  %v812 = verf.f32.pop %v748
  %v813 = verf.f32.pop %v749
  %v814 = verf.f32.pop %v750
  %v815 = verf.f32.pop %v751
  %v816 = verf.f32.pop %v752
  %v817 = verf.f32.pop %v753
  %v818 = verf.f32.pop %v754
  %v819 = verf.f32.pop %v755
  %v820 = verf.f32.pop %v756
  %v821 = verf.f32.pop %v757
  %v822 = verf.f32.pop %v758
  %v823 = verf.f32.pop %v759
  %v824 = verf.f32.pop %v760
  %v825 = verf.f32.pop %v761
  %v826 = verf.f32.pop %v762
  %v827 = verf.f32.pop %v763
  %v828 = verf.f32.pop %v764
  %v829 = verf.f32.pop %v765
  %v830 = verf.f32.pop %v766
  %v831 = verf.f32.pop %v767
  %v832 = verf.f32.pop %v768
  %v833 = verf.f32.pop %v769
  %v834 = verf.f32.pop %v770
  %v835 = verf.f32.pop %v771
  %v836 = verf.f32.pop %v772
  %v837 = verf.f32.pop %v773
  %v838 = verf.f32.pop %v774
  %v839 = verf.f32.pop %v775
  %v840 = verf.f32.pop %v776
  %v841 = verf.f32.pop %v777
  %v842 = verf.f32.pop %v778
  %v843 = verf.f32.pop %v779
  %v844 = verf.f32.pop %v780
  %v845 = verf.f32.pop %v781
  %v846 = verf.f32.pop %v782
  %v847 = verf.f32.pop %v783
  %v848 = verf.f32.pop %v784
  %v849 = verf.f32.pop %v785
  %v850 = verf.f32.pop %v786
  %v851 = verf.f32.pop %v787
  %v852 = verf.f32.pop %v788
  %v853 = verf.f32.pop %v789
  %v854 = verf.f32.pop %v790
  %v855 = verf.f32.pop %v791
  %v856 = verf.f32.pop %v792
  %v857 = vadd.f32 %v793, 1.0
  %v858 = vadd.f32 %v794, 1.0
  %v859 = vadd.f32 %v795, 1.0
  %v860 = vadd.f32 %v796, 1.0
  %v861 = vadd.f32 %v797, 1.0
  %v862 = vadd.f32 %v798, 1.0
  %v863 = vadd.f32 %v799, 1.0
  %v864 = vadd.f32 %v800, 1.0
  %v865 = vadd.f32 %v801, 1.0
  %v866 = vadd.f32 %v802, 1.0
  %v867 = vadd.f32 %v803, 1.0
  %v868 = vadd.f32 %v804, 1.0
  %v869 = vadd.f32 %v805, 1.0
  %v870 = vadd.f32 %v806, 1.0
  %v871 = vadd.f32 %v807, 1.0
  %v872 = vadd.f32 %v808, 1.0
  %v873 = vadd.f32 %v809, 1.0
  %v874 = vadd.f32 %v810, 1.0
  %v875 = vadd.f32 %v811, 1.0
  %v876 = vadd.f32 %v812, 1.0
  %v877 = vadd.f32 %v813, 1.0
  %v878 = vadd.f32 %v814, 1.0
  %v879 = vadd.f32 %v815, 1.0
  %v880 = vadd.f32 %v816, 1.0
  %v881 = vadd.f32 %v817, 1.0
  %v882 = vadd.f32 %v818, 1.0
  %v883 = vadd.f32 %v819, 1.0
  %v884 = vadd.f32 %v820, 1.0
  %v885 = vadd.f32 %v821, 1.0
  %v886 = vadd.f32 %v822, 1.0
  %v887 = vadd.f32 %v823, 1.0
  %v888 = vadd.f32 %v824, 1.0
  %v889 = vadd.f32 %v825, 1.0
  %v890 = vadd.f32 %v826, 1.0
  %v891 = vadd.f32 %v827, 1.0
  %v892 = vadd.f32 %v828, 1.0
  %v893 = vadd.f32 %v829, 1.0
  %v894 = vadd.f32 %v830, 1.0
  %v895 = vadd.f32 %v831, 1.0
  %v896 = vadd.f32 %v832, 1.0
  %v897 = vadd.f32 %v833, 1.0
  %v898 = vadd.f32 %v834, 1.0
  %v899 = vadd.f32 %v835, 1.0
  %v900 = vadd.f32 %v836, 1.0
  %v901 = vadd.f32 %v837, 1.0
  %v902 = vadd.f32 %v838, 1.0
  %v903 = vadd.f32 %v839, 1.0
  %v904 = vadd.f32 %v840, 1.0
  %v905 = vadd.f32 %v841, 1.0
  %v906 = vadd.f32 %v842, 1.0
  %v907 = vadd.f32 %v843, 1.0
  %v908 = vadd.f32 %v844, 1.0
  %v909 = vadd.f32 %v845, 1.0
  %v910 = vadd.f32 %v846, 1.0
  %v911 = vadd.f32 %v847, 1.0
  %v912 = vadd.f32 %v848, 1.0
  %v913 = vadd.f32 %v849, 1.0
  %v914 = vadd.f32 %v850, 1.0
  %v915 = vadd.f32 %v851, 1.0
  %v916 = vadd.f32 %v852, 1.0
  %v917 = vadd.f32 %v853, 1.0
  %v918 = vadd.f32 %v854, 1.0
  %v919 = vadd.f32 %v855, 1.0
  %v920 = vadd.f32 %v856, 1.0
  %v921 = vmul.f32 %v664, %v857
  %v922 = vmul.f32 %v665, %v858
  %v923 = vmul.f32 %v666, %v859
  %v924 = vmul.f32 %v667, %v860
  %v925 = vmul.f32 %v668, %v861
  %v926 = vmul.f32 %v669, %v862
  %v927 = vmul.f32 %v670, %v863
  %v928 = vmul.f32 %v671, %v864
  %v929 = vmul.f32 %v672, %v865
  %v930 = vmul.f32 %v673, %v866
  %v931 = vmul.f32 %v674, %v867
  %v932 = vmul.f32 %v675, %v868
  %v933 = vmul.f32 %v676, %v869
  %v934 = vmul.f32 %v677, %v870
  %v935 = vmul.f32 %v678, %v871
  %v936 = vmul.f32 %v679, %v872
  %v937 = vmul.f32 %v680, %v873
  %v938 = vmul.f32 %v681, %v874
  %v939 = vmul.f32 %v682, %v875
  %v940 = vmul.f32 %v683, %v876
  %v941 = vmul.f32 %v684, %v877
  %v942 = vmul.f32 %v685, %v878
  %v943 = vmul.f32 %v686, %v879
  %v944 = vmul.f32 %v687, %v880
  %v945 = vmul.f32 %v688, %v881
  %v946 = vmul.f32 %v689, %v882
  %v947 = vmul.f32 %v690, %v883
  %v948 = vmul.f32 %v691, %v884
  %v949 = vmul.f32 %v692, %v885
  %v950 = vmul.f32 %v693, %v886
  %v951 = vmul.f32 %v694, %v887
  %v952 = vmul.f32 %v695, %v888
  %v953 = vmul.f32 %v696, %v889
  %v954 = vmul.f32 %v697, %v890
  %v955 = vmul.f32 %v698, %v891
  %v956 = vmul.f32 %v699, %v892
  %v957 = vmul.f32 %v700, %v893
  %v958 = vmul.f32 %v701, %v894
  %v959 = vmul.f32 %v702, %v895
  %v960 = vmul.f32 %v703, %v896
  %v961 = vmul.f32 %v704, %v897
  %v962 = vmul.f32 %v705, %v898
  %v963 = vmul.f32 %v706, %v899
  %v964 = vmul.f32 %v707, %v900
  %v965 = vmul.f32 %v708, %v901
  %v966 = vmul.f32 %v709, %v902
  %v967 = vmul.f32 %v710, %v903
  %v968 = vmul.f32 %v711, %v904
  %v969 = vmul.f32 %v712, %v905
  %v970 = vmul.f32 %v713, %v906
  %v971 = vmul.f32 %v714, %v907
  %v972 = vmul.f32 %v715, %v908
  %v973 = vmul.f32 %v716, %v909
  %v974 = vmul.f32 %v717, %v910
  %v975 = vmul.f32 %v718, %v911
  %v976 = vmul.f32 %v719, %v912
  %v977 = vmul.f32 %v720, %v913
  %v978 = vmul.f32 %v721, %v914
  %v979 = vmul.f32 %v722, %v915
  %v980 = vmul.f32 %v723, %v916
  %v981 = vmul.f32 %v724, %v917
  %v982 = vmul.f32 %v725, %v918
  %v983 = vmul.f32 %v726, %v919
  %v984 = vmul.f32 %v727, %v920
  %vm985 = vcmask 261120
  %986 = vst.msk [vmem:[%s2] sm:$0xff] %vm985, %v921
  %987 = vst.msk [vmem:[%s2 + $0x8] sm:$0xff] %vm985, %v922
  %988 = vst.msk [vmem:[%s2 + $0x10] sm:$0xff] %vm985, %v923
  %989 = vst.msk [vmem:[%s2 + $0x18] sm:$0xff] %vm985, %v924
  %990 = vst.msk [vmem:[%s2 + $0x20] sm:$0xff] %vm985, %v925
  %991 = vst.msk [vmem:[%s2 + $0x28] sm:$0xff] %vm985, %v926
  %992 = vst.msk [vmem:[%s2 + $0x30] sm:$0xff] %vm985, %v927
  %993 = vst.msk [vmem:[%s2 + $0x38] sm:$0xff] %vm985, %v928
  %994 = vst.msk [vmem:[%s2 + $0x40] sm:$0xff] %vm985, %v929
  %995 = vst.msk [vmem:[%s2 + $0x48] sm:$0xff] %vm985, %v930
  %996 = vst.msk [vmem:[%s2 + $0x50] sm:$0xff] %vm985, %v931
  %997 = vst.msk [vmem:[%s2 + $0x58] sm:$0xff] %vm985, %v932
  %998 = vst.msk [vmem:[%s2 + $0x60] sm:$0xff] %vm985, %v933
  %999 = vst.msk [vmem:[%s2 + $0x68] sm:$0xff] %vm985, %v934
  %1000 = vst.msk [vmem:[%s2 + $0x70] sm:$0xff] %vm985, %v935
  %1001 = vst.msk [vmem:[%s2 + $0x78] sm:$0xff] %vm985, %v936
  %1002 = vst.msk [vmem:[%s2 + $0x80] sm:$0xff] %vm985, %v937
  %1003 = vst.msk [vmem:[%s2 + $0x88] sm:$0xff] %vm985, %v938
  %1004 = vst.msk [vmem:[%s2 + $0x90] sm:$0xff] %vm985, %v939
  %1005 = vst.msk [vmem:[%s2 + $0x98] sm:$0xff] %vm985, %v940
  %1006 = vst.msk [vmem:[%s2 + $0xa0] sm:$0xff] %vm985, %v941
  %1007 = vst.msk [vmem:[%s2 + $0xa8] sm:$0xff] %vm985, %v942
  %1008 = vst.msk [vmem:[%s2 + $0xb0] sm:$0xff] %vm985, %v943
  %1009 = vst.msk [vmem:[%s2 + $0xb8] sm:$0xff] %vm985, %v944
  %1010 = vst.msk [vmem:[%s2 + $0xc0] sm:$0xff] %vm985, %v945
  %1011 = vst.msk [vmem:[%s2 + $0xc8] sm:$0xff] %vm985, %v946
  %1012 = vst.msk [vmem:[%s2 + $0xd0] sm:$0xff] %vm985, %v947
  %1013 = vst.msk [vmem:[%s2 + $0xd8] sm:$0xff] %vm985, %v948
  %1014 = vst.msk [vmem:[%s2 + $0xe0] sm:$0xff] %vm985, %v949
  %1015 = vst.msk [vmem:[%s2 + $0xe8] sm:$0xff] %vm985, %v950
  %1016 = vst.msk [vmem:[%s2 + $0xf0] sm:$0xff] %vm985, %v951
  %1017 = vst.msk [vmem:[%s2 + $0xf8] sm:$0xff] %vm985, %v952
  %1018 = vst.msk [vmem:[%s2 + $0x100] sm:$0xff] %vm985, %v953
  %1019 = vst.msk [vmem:[%s2 + $0x108] sm:$0xff] %vm985, %v954
  %1020 = vst.msk [vmem:[%s2 + $0x110] sm:$0xff] %vm985, %v955
  %1021 = vst.msk [vmem:[%s2 + $0x118] sm:$0xff] %vm985, %v956
  %1022 = vst.msk [vmem:[%s2 + $0x120] sm:$0xff] %vm985, %v957
  %1023 = vst.msk [vmem:[%s2 + $0x128] sm:$0xff] %vm985, %v958
  %1024 = vst.msk [vmem:[%s2 + $0x130] sm:$0xff] %vm985, %v959
  %1025 = vst.msk [vmem:[%s2 + $0x138] sm:$0xff] %vm985, %v960
  %1026 = vst.msk [vmem:[%s2 + $0x140] sm:$0xff] %vm985, %v961
  %1027 = vst.msk [vmem:[%s2 + $0x148] sm:$0xff] %vm985, %v962
  %1028 = vst.msk [vmem:[%s2 + $0x150] sm:$0xff] %vm985, %v963
  %1029 = vst.msk [vmem:[%s2 + $0x158] sm:$0xff] %vm985, %v964
  %1030 = vst.msk [vmem:[%s2 + $0x160] sm:$0xff] %vm985, %v965
  %1031 = vst.msk [vmem:[%s2 + $0x168] sm:$0xff] %vm985, %v966
  %1032 = vst.msk [vmem:[%s2 + $0x170] sm:$0xff] %vm985, %v967
  %1033 = vst.msk [vmem:[%s2 + $0x178] sm:$0xff] %vm985, %v968
  %1034 = vst.msk [vmem:[%s2 + $0x180] sm:$0xff] %vm985, %v969
  %1035 = vst.msk [vmem:[%s2 + $0x188] sm:$0xff] %vm985, %v970
  %1036 = vst.msk [vmem:[%s2 + $0x190] sm:$0xff] %vm985, %v971
  %1037 = vst.msk [vmem:[%s2 + $0x198] sm:$0xff] %vm985, %v972
  %1038 = vst.msk [vmem:[%s2 + $0x1a0] sm:$0xff] %vm985, %v973
  %1039 = vst.msk [vmem:[%s2 + $0x1a8] sm:$0xff] %vm985, %v974
  %1040 = vst.msk [vmem:[%s2 + $0x1b0] sm:$0xff] %vm985, %v975
  %1041 = vst.msk [vmem:[%s2 + $0x1b8] sm:$0xff] %vm985, %v976
  %1042 = vst.msk [vmem:[%s2 + $0x1c0] sm:$0xff] %vm985, %v977
  %1043 = vst.msk [vmem:[%s2 + $0x1c8] sm:$0xff] %vm985, %v978
  %1044 = vst.msk [vmem:[%s2 + $0x1d0] sm:$0xff] %vm985, %v979
  %1045 = vst.msk [vmem:[%s2 + $0x1d8] sm:$0xff] %vm985, %v980
  %1046 = vst.msk [vmem:[%s2 + $0x1e0] sm:$0xff] %vm985, %v981
  %1047 = vst.msk [vmem:[%s2 + $0x1e8] sm:$0xff] %vm985, %v982
  %1048 = vst.msk [vmem:[%s2 + $0x1f0] sm:$0xff] %vm985, %v983
  %1049 = vst.msk [vmem:[%s2 + $0x1f8] sm:$0xff] %vm985, %v984
  %1114 = vrot.lane.b32.xlu0 %v921, 96
  %v1115 = vpop.permute.xlu0 %1114
  %1116 = vrot.lane.b32.xlu0 %v922, 96
  %v1117 = vpop.permute.xlu0 %1116
  %1118 = vrot.lane.b32.xlu0 %v923, 96
  %v1119 = vpop.permute.xlu0 %1118
  %1120 = vrot.lane.b32.xlu0 %v924, 96
  %v1121 = vpop.permute.xlu0 %1120
  %1122 = vrot.lane.b32.xlu0 %v925, 96
  %v1123 = vpop.permute.xlu0 %1122
  %1124 = vrot.lane.b32.xlu0 %v926, 96
  %v1125 = vpop.permute.xlu0 %1124
  %1126 = vrot.lane.b32.xlu0 %v927, 96
  %v1127 = vpop.permute.xlu0 %1126
  %1128 = vrot.lane.b32.xlu0 %v928, 96
  %v1129 = vpop.permute.xlu0 %1128
  %1130 = vrot.lane.b32.xlu0 %v929, 96
  %v1131 = vpop.permute.xlu0 %1130
  %1132 = vrot.lane.b32.xlu0 %v930, 96
  %v1133 = vpop.permute.xlu0 %1132
  %1134 = vrot.lane.b32.xlu0 %v931, 96
  %v1135 = vpop.permute.xlu0 %1134
  %1136 = vrot.lane.b32.xlu0 %v932, 96
  %v1137 = vpop.permute.xlu0 %1136
  %1138 = vrot.lane.b32.xlu0 %v933, 96
  %v1139 = vpop.permute.xlu0 %1138
  %1140 = vrot.lane.b32.xlu0 %v934, 96
  %v1141 = vpop.permute.xlu0 %1140
  %1142 = vrot.lane.b32.xlu0 %v935, 96
  %v1143 = vpop.permute.xlu0 %1142
  %1144 = vrot.lane.b32.xlu0 %v936, 96
  %v1145 = vpop.permute.xlu0 %1144
  %1146 = vrot.lane.b32.xlu0 %v937, 96
  %v1147 = vpop.permute.xlu0 %1146
  %1148 = vrot.lane.b32.xlu0 %v938, 96
  %v1149 = vpop.permute.xlu0 %1148
  %1150 = vrot.lane.b32.xlu0 %v939, 96
  %v1151 = vpop.permute.xlu0 %1150
  %1152 = vrot.lane.b32.xlu0 %v940, 96
  %v1153 = vpop.permute.xlu0 %1152
  %1154 = vrot.lane.b32.xlu0 %v941, 96
  %v1155 = vpop.permute.xlu0 %1154
  %1156 = vrot.lane.b32.xlu0 %v942, 96
  %v1157 = vpop.permute.xlu0 %1156
  %1158 = vrot.lane.b32.xlu0 %v943, 96
  %v1159 = vpop.permute.xlu0 %1158
  %1160 = vrot.lane.b32.xlu0 %v944, 96
  %v1161 = vpop.permute.xlu0 %1160
  %1162 = vrot.lane.b32.xlu0 %v945, 96
  %v1163 = vpop.permute.xlu0 %1162
  %1164 = vrot.lane.b32.xlu0 %v946, 96
  %v1165 = vpop.permute.xlu0 %1164
  %1166 = vrot.lane.b32.xlu0 %v947, 96
  %v1167 = vpop.permute.xlu0 %1166
  %1168 = vrot.lane.b32.xlu0 %v948, 96
  %v1169 = vpop.permute.xlu0 %1168
  %1170 = vrot.lane.b32.xlu0 %v949, 96
  %v1171 = vpop.permute.xlu0 %1170
  %1172 = vrot.lane.b32.xlu0 %v950, 96
  %v1173 = vpop.permute.xlu0 %1172
  %1174 = vrot.lane.b32.xlu0 %v951, 96
  %v1175 = vpop.permute.xlu0 %1174
  %1176 = vrot.lane.b32.xlu0 %v952, 96
  %v1177 = vpop.permute.xlu0 %1176
  %1178 = vrot.lane.b32.xlu0 %v953, 96
  %v1179 = vpop.permute.xlu0 %1178
  %1180 = vrot.lane.b32.xlu0 %v954, 96
  %v1181 = vpop.permute.xlu0 %1180
  %1182 = vrot.lane.b32.xlu0 %v955, 96
  %v1183 = vpop.permute.xlu0 %1182
  %1184 = vrot.lane.b32.xlu0 %v956, 96
  %v1185 = vpop.permute.xlu0 %1184
  %1186 = vrot.lane.b32.xlu0 %v957, 96
  %v1187 = vpop.permute.xlu0 %1186
  %1188 = vrot.lane.b32.xlu0 %v958, 96
  %v1189 = vpop.permute.xlu0 %1188
  %1190 = vrot.lane.b32.xlu0 %v959, 96
  %v1191 = vpop.permute.xlu0 %1190
  %1192 = vrot.lane.b32.xlu0 %v960, 96
  %v1193 = vpop.permute.xlu0 %1192
  %1194 = vrot.lane.b32.xlu0 %v961, 96
  %v1195 = vpop.permute.xlu0 %1194
  %1196 = vrot.lane.b32.xlu0 %v962, 96
  %v1197 = vpop.permute.xlu0 %1196
  %1198 = vrot.lane.b32.xlu0 %v963, 96
  %v1199 = vpop.permute.xlu0 %1198
  %1200 = vrot.lane.b32.xlu0 %v964, 96
  %v1201 = vpop.permute.xlu0 %1200
  %1202 = vrot.lane.b32.xlu0 %v965, 96
  %v1203 = vpop.permute.xlu0 %1202
  %1204 = vrot.lane.b32.xlu0 %v966, 96
  %v1205 = vpop.permute.xlu0 %1204
  %1206 = vrot.lane.b32.xlu0 %v967, 96
  %v1207 = vpop.permute.xlu0 %1206
  %1208 = vrot.lane.b32.xlu0 %v968, 96
  %v1209 = vpop.permute.xlu0 %1208
  %1210 = vrot.lane.b32.xlu0 %v969, 96
  %v1211 = vpop.permute.xlu0 %1210
  %1212 = vrot.lane.b32.xlu0 %v970, 96
  %v1213 = vpop.permute.xlu0 %1212
  %1214 = vrot.lane.b32.xlu0 %v971, 96
  %v1215 = vpop.permute.xlu0 %1214
  %1216 = vrot.lane.b32.xlu0 %v972, 96
  %v1217 = vpop.permute.xlu0 %1216
  %1218 = vrot.lane.b32.xlu0 %v973, 96
  %v1219 = vpop.permute.xlu0 %1218
  %1220 = vrot.lane.b32.xlu0 %v974, 96
  %v1221 = vpop.permute.xlu0 %1220
  %1222 = vrot.lane.b32.xlu0 %v975, 96
  %v1223 = vpop.permute.xlu0 %1222
  %1224 = vrot.lane.b32.xlu0 %v976, 96
  %v1225 = vpop.permute.xlu0 %1224
  %1226 = vrot.lane.b32.xlu0 %v977, 96
  %v1227 = vpop.permute.xlu0 %1226
  %1228 = vrot.lane.b32.xlu0 %v978, 96
  %v1229 = vpop.permute.xlu0 %1228
  %1230 = vrot.lane.b32.xlu0 %v979, 96
  %v1231 = vpop.permute.xlu0 %1230
  %1232 = vrot.lane.b32.xlu0 %v980, 96
  %v1233 = vpop.permute.xlu0 %1232
  %1234 = vrot.lane.b32.xlu0 %v981, 96
  %v1235 = vpop.permute.xlu0 %1234
  %1236 = vrot.lane.b32.xlu0 %v982, 96
  %v1237 = vpop.permute.xlu0 %1236
  %1238 = vrot.lane.b32.xlu0 %v983, 96
  %v1239 = vpop.permute.xlu0 %1238
  %1240 = vrot.lane.b32.xlu0 %v984, 96
  %v1241 = vpop.permute.xlu0 %1240
  %1306 = vst.msk [vmem:[%s3] sm:$0xff] %vm985, %v1115
  %1307 = vst.msk [vmem:[%s3 + $0x8] sm:$0xff] %vm985, %v1117
  %1308 = vst.msk [vmem:[%s3 + $0x10] sm:$0xff] %vm985, %v1119
  %1309 = vst.msk [vmem:[%s3 + $0x18] sm:$0xff] %vm985, %v1121
  %1310 = vst.msk [vmem:[%s3 + $0x20] sm:$0xff] %vm985, %v1123
  %1311 = vst.msk [vmem:[%s3 + $0x28] sm:$0xff] %vm985, %v1125
  %1312 = vst.msk [vmem:[%s3 + $0x30] sm:$0xff] %vm985, %v1127
  %1313 = vst.msk [vmem:[%s3 + $0x38] sm:$0xff] %vm985, %v1129
  %1314 = vst.msk [vmem:[%s3 + $0x40] sm:$0xff] %vm985, %v1131
  %1315 = vst.msk [vmem:[%s3 + $0x48] sm:$0xff] %vm985, %v1133
  %1316 = vst.msk [vmem:[%s3 + $0x50] sm:$0xff] %vm985, %v1135
  %1317 = vst.msk [vmem:[%s3 + $0x58] sm:$0xff] %vm985, %v1137
  %1318 = vst.msk [vmem:[%s3 + $0x60] sm:$0xff] %vm985, %v1139
  %1319 = vst.msk [vmem:[%s3 + $0x68] sm:$0xff] %vm985, %v1141
  %1320 = vst.msk [vmem:[%s3 + $0x70] sm:$0xff] %vm985, %v1143
  %1321 = vst.msk [vmem:[%s3 + $0x78] sm:$0xff] %vm985, %v1145
  %1322 = vst.msk [vmem:[%s3 + $0x80] sm:$0xff] %vm985, %v1147
  %1323 = vst.msk [vmem:[%s3 + $0x88] sm:$0xff] %vm985, %v1149
  %1324 = vst.msk [vmem:[%s3 + $0x90] sm:$0xff] %vm985, %v1151
  %1325 = vst.msk [vmem:[%s3 + $0x98] sm:$0xff] %vm985, %v1153
  %1326 = vst.msk [vmem:[%s3 + $0xa0] sm:$0xff] %vm985, %v1155
  %1327 = vst.msk [vmem:[%s3 + $0xa8] sm:$0xff] %vm985, %v1157
  %1328 = vst.msk [vmem:[%s3 + $0xb0] sm:$0xff] %vm985, %v1159
  %1329 = vst.msk [vmem:[%s3 + $0xb8] sm:$0xff] %vm985, %v1161
  %1330 = vst.msk [vmem:[%s3 + $0xc0] sm:$0xff] %vm985, %v1163
  %1331 = vst.msk [vmem:[%s3 + $0xc8] sm:$0xff] %vm985, %v1165
  %1332 = vst.msk [vmem:[%s3 + $0xd0] sm:$0xff] %vm985, %v1167
  %1333 = vst.msk [vmem:[%s3 + $0xd8] sm:$0xff] %vm985, %v1169
  %1334 = vst.msk [vmem:[%s3 + $0xe0] sm:$0xff] %vm985, %v1171
  %1335 = vst.msk [vmem:[%s3 + $0xe8] sm:$0xff] %vm985, %v1173
  %1336 = vst.msk [vmem:[%s3 + $0xf0] sm:$0xff] %vm985, %v1175
  %1337 = vst.msk [vmem:[%s3 + $0xf8] sm:$0xff] %vm985, %v1177
  %1338 = vst.msk [vmem:[%s3 + $0x100] sm:$0xff] %vm985, %v1179
  %1339 = vst.msk [vmem:[%s3 + $0x108] sm:$0xff] %vm985, %v1181
  %1340 = vst.msk [vmem:[%s3 + $0x110] sm:$0xff] %vm985, %v1183
  %1341 = vst.msk [vmem:[%s3 + $0x118] sm:$0xff] %vm985, %v1185
  %1342 = vst.msk [vmem:[%s3 + $0x120] sm:$0xff] %vm985, %v1187
  %1343 = vst.msk [vmem:[%s3 + $0x128] sm:$0xff] %vm985, %v1189
  %1344 = vst.msk [vmem:[%s3 + $0x130] sm:$0xff] %vm985, %v1191
  %1345 = vst.msk [vmem:[%s3 + $0x138] sm:$0xff] %vm985, %v1193
  %1346 = vst.msk [vmem:[%s3 + $0x140] sm:$0xff] %vm985, %v1195
  %1347 = vst.msk [vmem:[%s3 + $0x148] sm:$0xff] %vm985, %v1197
  %1348 = vst.msk [vmem:[%s3 + $0x150] sm:$0xff] %vm985, %v1199
  %1349 = vst.msk [vmem:[%s3 + $0x158] sm:$0xff] %vm985, %v1201
  %1350 = vst.msk [vmem:[%s3 + $0x160] sm:$0xff] %vm985, %v1203
  %1351 = vst.msk [vmem:[%s3 + $0x168] sm:$0xff] %vm985, %v1205
  %1352 = vst.msk [vmem:[%s3 + $0x170] sm:$0xff] %vm985, %v1207
  %1353 = vst.msk [vmem:[%s3 + $0x178] sm:$0xff] %vm985, %v1209
  %1354 = vst.msk [vmem:[%s3 + $0x180] sm:$0xff] %vm985, %v1211
  %1355 = vst.msk [vmem:[%s3 + $0x188] sm:$0xff] %vm985, %v1213
  %1356 = vst.msk [vmem:[%s3 + $0x190] sm:$0xff] %vm985, %v1215
  %1357 = vst.msk [vmem:[%s3 + $0x198] sm:$0xff] %vm985, %v1217
  %1358 = vst.msk [vmem:[%s3 + $0x1a0] sm:$0xff] %vm985, %v1219
  %1359 = vst.msk [vmem:[%s3 + $0x1a8] sm:$0xff] %vm985, %v1221
  %1360 = vst.msk [vmem:[%s3 + $0x1b0] sm:$0xff] %vm985, %v1223
  %1361 = vst.msk [vmem:[%s3 + $0x1b8] sm:$0xff] %vm985, %v1225
  %1362 = vst.msk [vmem:[%s3 + $0x1c0] sm:$0xff] %vm985, %v1227
  %1363 = vst.msk [vmem:[%s3 + $0x1c8] sm:$0xff] %vm985, %v1229
  %1364 = vst.msk [vmem:[%s3 + $0x1d0] sm:$0xff] %vm985, %v1231
  %1365 = vst.msk [vmem:[%s3 + $0x1d8] sm:$0xff] %vm985, %v1233
  %1366 = vst.msk [vmem:[%s3 + $0x1e0] sm:$0xff] %vm985, %v1235
  %1367 = vst.msk [vmem:[%s3 + $0x1e8] sm:$0xff] %vm985, %v1237
  %1368 = vst.msk [vmem:[%s3 + $0x1f0] sm:$0xff] %vm985, %v1239
  %1369 = vst.msk [vmem:[%s3 + $0x1f8] sm:$0xff] %vm985, %v1241
  %1370 = vrot.lane.b32.xlu0 %v921, 64
  %v1371 = vpop.permute.xlu0 %1370
  %1372 = vrot.lane.b32.xlu0 %v922, 64
  %v1373 = vpop.permute.xlu0 %1372
  %1374 = vrot.lane.b32.xlu0 %v923, 64
  %v1375 = vpop.permute.xlu0 %1374
  %1376 = vrot.lane.b32.xlu0 %v924, 64
  %v1377 = vpop.permute.xlu0 %1376
  %1378 = vrot.lane.b32.xlu0 %v925, 64
  %v1379 = vpop.permute.xlu0 %1378
  %1380 = vrot.lane.b32.xlu0 %v926, 64
  %v1381 = vpop.permute.xlu0 %1380
  %1382 = vrot.lane.b32.xlu0 %v927, 64
  %v1383 = vpop.permute.xlu0 %1382
  %1384 = vrot.lane.b32.xlu0 %v928, 64
  %v1385 = vpop.permute.xlu0 %1384
  %1386 = vrot.lane.b32.xlu0 %v929, 64
  %v1387 = vpop.permute.xlu0 %1386
  %1388 = vrot.lane.b32.xlu0 %v930, 64
  %v1389 = vpop.permute.xlu0 %1388
  %1390 = vrot.lane.b32.xlu0 %v931, 64
  %v1391 = vpop.permute.xlu0 %1390
  %1392 = vrot.lane.b32.xlu0 %v932, 64
  %v1393 = vpop.permute.xlu0 %1392
  %1394 = vrot.lane.b32.xlu0 %v933, 64
  %v1395 = vpop.permute.xlu0 %1394
  %1396 = vrot.lane.b32.xlu0 %v934, 64
  %v1397 = vpop.permute.xlu0 %1396
  %1398 = vrot.lane.b32.xlu0 %v935, 64
  %v1399 = vpop.permute.xlu0 %1398
  %1400 = vrot.lane.b32.xlu0 %v936, 64
  %v1401 = vpop.permute.xlu0 %1400
  %1402 = vrot.lane.b32.xlu0 %v937, 64
  %v1403 = vpop.permute.xlu0 %1402
  %1404 = vrot.lane.b32.xlu0 %v938, 64
  %v1405 = vpop.permute.xlu0 %1404
  %1406 = vrot.lane.b32.xlu0 %v939, 64
  %v1407 = vpop.permute.xlu0 %1406
  %1408 = vrot.lane.b32.xlu0 %v940, 64
  %v1409 = vpop.permute.xlu0 %1408
  %1410 = vrot.lane.b32.xlu0 %v941, 64
  %v1411 = vpop.permute.xlu0 %1410
  %1412 = vrot.lane.b32.xlu0 %v942, 64
  %v1413 = vpop.permute.xlu0 %1412
  %1414 = vrot.lane.b32.xlu0 %v943, 64
  %v1415 = vpop.permute.xlu0 %1414
  %1416 = vrot.lane.b32.xlu0 %v944, 64
  %v1417 = vpop.permute.xlu0 %1416
  %1418 = vrot.lane.b32.xlu0 %v945, 64
  %v1419 = vpop.permute.xlu0 %1418
  %1420 = vrot.lane.b32.xlu0 %v946, 64
  %v1421 = vpop.permute.xlu0 %1420
  %1422 = vrot.lane.b32.xlu0 %v947, 64
  %v1423 = vpop.permute.xlu0 %1422
  %1424 = vrot.lane.b32.xlu0 %v948, 64
  %v1425 = vpop.permute.xlu0 %1424
  %1426 = vrot.lane.b32.xlu0 %v949, 64
  %v1427 = vpop.permute.xlu0 %1426
  %1428 = vrot.lane.b32.xlu0 %v950, 64
  %v1429 = vpop.permute.xlu0 %1428
  %1430 = vrot.lane.b32.xlu0 %v951, 64
  %v1431 = vpop.permute.xlu0 %1430
  %1432 = vrot.lane.b32.xlu0 %v952, 64
  %v1433 = vpop.permute.xlu0 %1432
  %1434 = vrot.lane.b32.xlu0 %v953, 64
  %v1435 = vpop.permute.xlu0 %1434
  %1436 = vrot.lane.b32.xlu0 %v954, 64
  %v1437 = vpop.permute.xlu0 %1436
  %1438 = vrot.lane.b32.xlu0 %v955, 64
  %v1439 = vpop.permute.xlu0 %1438
  %1440 = vrot.lane.b32.xlu0 %v956, 64
  %v1441 = vpop.permute.xlu0 %1440
  %1442 = vrot.lane.b32.xlu0 %v957, 64
  %v1443 = vpop.permute.xlu0 %1442
  %1444 = vrot.lane.b32.xlu0 %v958, 64
  %v1445 = vpop.permute.xlu0 %1444
  %1446 = vrot.lane.b32.xlu0 %v959, 64
  %v1447 = vpop.permute.xlu0 %1446
  %1448 = vrot.lane.b32.xlu0 %v960, 64
  %v1449 = vpop.permute.xlu0 %1448
  %1450 = vrot.lane.b32.xlu0 %v961, 64
  %v1451 = vpop.permute.xlu0 %1450
  %1452 = vrot.lane.b32.xlu0 %v962, 64
  %v1453 = vpop.permute.xlu0 %1452
  %1454 = vrot.lane.b32.xlu0 %v963, 64
  %v1455 = vpop.permute.xlu0 %1454
  %1456 = vrot.lane.b32.xlu0 %v964, 64
  %v1457 = vpop.permute.xlu0 %1456
  %1458 = vrot.lane.b32.xlu0 %v965, 64
  %v1459 = vpop.permute.xlu0 %1458
  %1460 = vrot.lane.b32.xlu0 %v966, 64
  %v1461 = vpop.permute.xlu0 %1460
  %1462 = vrot.lane.b32.xlu0 %v967, 64
  %v1463 = vpop.permute.xlu0 %1462
  %1464 = vrot.lane.b32.xlu0 %v968, 64
  %v1465 = vpop.permute.xlu0 %1464
  %1466 = vrot.lane.b32.xlu0 %v969, 64
  %v1467 = vpop.permute.xlu0 %1466
  %1468 = vrot.lane.b32.xlu0 %v970, 64
  %v1469 = vpop.permute.xlu0 %1468
  %1470 = vrot.lane.b32.xlu0 %v971, 64
  %v1471 = vpop.permute.xlu0 %1470
  %1472 = vrot.lane.b32.xlu0 %v972, 64
  %v1473 = vpop.permute.xlu0 %1472
  %1474 = vrot.lane.b32.xlu0 %v973, 64
  %v1475 = vpop.permute.xlu0 %1474
  %1476 = vrot.lane.b32.xlu0 %v974, 64
  %v1477 = vpop.permute.xlu0 %1476
  %1478 = vrot.lane.b32.xlu0 %v975, 64
  %v1479 = vpop.permute.xlu0 %1478
  %1480 = vrot.lane.b32.xlu0 %v976, 64
  %v1481 = vpop.permute.xlu0 %1480
  %1482 = vrot.lane.b32.xlu0 %v977, 64
  %v1483 = vpop.permute.xlu0 %1482
  %1484 = vrot.lane.b32.xlu0 %v978, 64
  %v1485 = vpop.permute.xlu0 %1484
  %1486 = vrot.lane.b32.xlu0 %v979, 64
  %v1487 = vpop.permute.xlu0 %1486
  %1488 = vrot.lane.b32.xlu0 %v980, 64
  %v1489 = vpop.permute.xlu0 %1488
  %1490 = vrot.lane.b32.xlu0 %v981, 64
  %v1491 = vpop.permute.xlu0 %1490
  %1492 = vrot.lane.b32.xlu0 %v982, 64
  %v1493 = vpop.permute.xlu0 %1492
  %1494 = vrot.lane.b32.xlu0 %v983, 64
  %v1495 = vpop.permute.xlu0 %1494
  %1496 = vrot.lane.b32.xlu0 %v984, 64
  %v1497 = vpop.permute.xlu0 %1496
  %vm1562 = vcmask 130048
  %1563 = vst.msk [vmem:[%s4] sm:$0xff] %vm1562, %v1371
  %1564 = vst.msk [vmem:[%s4 + $0x8] sm:$0xff] %vm1562, %v1373
  %1565 = vst.msk [vmem:[%s4 + $0x10] sm:$0xff] %vm1562, %v1375
  %1566 = vst.msk [vmem:[%s4 + $0x18] sm:$0xff] %vm1562, %v1377
  %1567 = vst.msk [vmem:[%s4 + $0x20] sm:$0xff] %vm1562, %v1379
  %1568 = vst.msk [vmem:[%s4 + $0x28] sm:$0xff] %vm1562, %v1381
  %1569 = vst.msk [vmem:[%s4 + $0x30] sm:$0xff] %vm1562, %v1383
  %1570 = vst.msk [vmem:[%s4 + $0x38] sm:$0xff] %vm1562, %v1385
  %1571 = vst.msk [vmem:[%s4 + $0x40] sm:$0xff] %vm1562, %v1387
  %1572 = vst.msk [vmem:[%s4 + $0x48] sm:$0xff] %vm1562, %v1389
  %1573 = vst.msk [vmem:[%s4 + $0x50] sm:$0xff] %vm1562, %v1391
  %1574 = vst.msk [vmem:[%s4 + $0x58] sm:$0xff] %vm1562, %v1393
  %1575 = vst.msk [vmem:[%s4 + $0x60] sm:$0xff] %vm1562, %v1395
  %1576 = vst.msk [vmem:[%s4 + $0x68] sm:$0xff] %vm1562, %v1397
  %1577 = vst.msk [vmem:[%s4 + $0x70] sm:$0xff] %vm1562, %v1399
  %1578 = vst.msk [vmem:[%s4 + $0x78] sm:$0xff] %vm1562, %v1401
  %1579 = vst.msk [vmem:[%s4 + $0x80] sm:$0xff] %vm1562, %v1403
  %1580 = vst.msk [vmem:[%s4 + $0x88] sm:$0xff] %vm1562, %v1405
  %1581 = vst.msk [vmem:[%s4 + $0x90] sm:$0xff] %vm1562, %v1407
  %1582 = vst.msk [vmem:[%s4 + $0x98] sm:$0xff] %vm1562, %v1409
  %1583 = vst.msk [vmem:[%s4 + $0xa0] sm:$0xff] %vm1562, %v1411
  %1584 = vst.msk [vmem:[%s4 + $0xa8] sm:$0xff] %vm1562, %v1413
  %1585 = vst.msk [vmem:[%s4 + $0xb0] sm:$0xff] %vm1562, %v1415
  %1586 = vst.msk [vmem:[%s4 + $0xb8] sm:$0xff] %vm1562, %v1417
  %1587 = vst.msk [vmem:[%s4 + $0xc0] sm:$0xff] %vm1562, %v1419
  %1588 = vst.msk [vmem:[%s4 + $0xc8] sm:$0xff] %vm1562, %v1421
  %1589 = vst.msk [vmem:[%s4 + $0xd0] sm:$0xff] %vm1562, %v1423
  %1590 = vst.msk [vmem:[%s4 + $0xd8] sm:$0xff] %vm1562, %v1425
  %1591 = vst.msk [vmem:[%s4 + $0xe0] sm:$0xff] %vm1562, %v1427
  %1592 = vst.msk [vmem:[%s4 + $0xe8] sm:$0xff] %vm1562, %v1429
  %1593 = vst.msk [vmem:[%s4 + $0xf0] sm:$0xff] %vm1562, %v1431
  %1594 = vst.msk [vmem:[%s4 + $0xf8] sm:$0xff] %vm1562, %v1433
  %1595 = vst.msk [vmem:[%s4 + $0x100] sm:$0xff] %vm1562, %v1435
  %1596 = vst.msk [vmem:[%s4 + $0x108] sm:$0xff] %vm1562, %v1437
  %1597 = vst.msk [vmem:[%s4 + $0x110] sm:$0xff] %vm1562, %v1439
  %1598 = vst.msk [vmem:[%s4 + $0x118] sm:$0xff] %vm1562, %v1441
  %1599 = vst.msk [vmem:[%s4 + $0x120] sm:$0xff] %vm1562, %v1443
  %1600 = vst.msk [vmem:[%s4 + $0x128] sm:$0xff] %vm1562, %v1445
  %1601 = vst.msk [vmem:[%s4 + $0x130] sm:$0xff] %vm1562, %v1447
  %1602 = vst.msk [vmem:[%s4 + $0x138] sm:$0xff] %vm1562, %v1449
  %1603 = vst.msk [vmem:[%s4 + $0x140] sm:$0xff] %vm1562, %v1451
  %1604 = vst.msk [vmem:[%s4 + $0x148] sm:$0xff] %vm1562, %v1453
  %1605 = vst.msk [vmem:[%s4 + $0x150] sm:$0xff] %vm1562, %v1455
  %1606 = vst.msk [vmem:[%s4 + $0x158] sm:$0xff] %vm1562, %v1457
  %1607 = vst.msk [vmem:[%s4 + $0x160] sm:$0xff] %vm1562, %v1459
  %1608 = vst.msk [vmem:[%s4 + $0x168] sm:$0xff] %vm1562, %v1461
  %1609 = vst.msk [vmem:[%s4 + $0x170] sm:$0xff] %vm1562, %v1463
  %1610 = vst.msk [vmem:[%s4 + $0x178] sm:$0xff] %vm1562, %v1465
  %1611 = vst.msk [vmem:[%s4 + $0x180] sm:$0xff] %vm1562, %v1467
  %1612 = vst.msk [vmem:[%s4 + $0x188] sm:$0xff] %vm1562, %v1469
  %1613 = vst.msk [vmem:[%s4 + $0x190] sm:$0xff] %vm1562, %v1471
  %1614 = vst.msk [vmem:[%s4 + $0x198] sm:$0xff] %vm1562, %v1473
  %1615 = vst.msk [vmem:[%s4 + $0x1a0] sm:$0xff] %vm1562, %v1475
  %1616 = vst.msk [vmem:[%s4 + $0x1a8] sm:$0xff] %vm1562, %v1477
  %1617 = vst.msk [vmem:[%s4 + $0x1b0] sm:$0xff] %vm1562, %v1479
  %1618 = vst.msk [vmem:[%s4 + $0x1b8] sm:$0xff] %vm1562, %v1481
  %1619 = vst.msk [vmem:[%s4 + $0x1c0] sm:$0xff] %vm1562, %v1483
  %1620 = vst.msk [vmem:[%s4 + $0x1c8] sm:$0xff] %vm1562, %v1485
  %1621 = vst.msk [vmem:[%s4 + $0x1d0] sm:$0xff] %vm1562, %v1487
  %1622 = vst.msk [vmem:[%s4 + $0x1d8] sm:$0xff] %vm1562, %v1489
  %1623 = vst.msk [vmem:[%s4 + $0x1e0] sm:$0xff] %vm1562, %v1491
  %1624 = vst.msk [vmem:[%s4 + $0x1e8] sm:$0xff] %vm1562, %v1493
  %1625 = vst.msk [vmem:[%s4 + $0x1f0] sm:$0xff] %vm1562, %v1495
  %1626 = vst.msk [vmem:[%s4 + $0x1f8] sm:$0xff] %vm1562, %v1497
  // Predicated region
  $region10: #{mixed_3b_forward.6} parent=0 // pred_check
    _
  $region11: #{mixed_3b_forward.6} parent=0 // pred_check_branch
    %1628 = sbr.rel (0) target = $region13
  $region12: #{mixed_3b_forward.6} parent=0 // pred_region
    _
  $region13: #{mixed_3b_forward.6} parent=0 // pred_fallthru
    _
  // Predicated region
  $region14: #{mixed_3b_forward.6} parent=0 // pred_check
    _
  $region15: #{mixed_3b_forward.6} parent=0 // pred_check_branch
    %1630 = sbr.rel (0) target = $region17
  $region16: #{mixed_3b_forward.6} parent=0 // pred_region
    _
  $region17: #{mixed_3b_forward.6} parent=0 // pred_fallthru
    _
  // Predicated region
  $region18: #{mixed_3b_forward.6} parent=0 // pred_check
    _
  $region19: #{mixed_3b_forward.6} parent=0 // pred_check_branch
    %1632 = sbr.rel (0) target = $region21
  $region20: #{mixed_3b_forward.6} parent=0 // pred_region
    _
  $region21: #{mixed_3b_forward.6} parent=0 // pred_fallthru
    _
  // Predicated region
  $region22: #{mixed_3b_forward.6} parent=0 // pred_check
    _
  $region23: #{mixed_3b_forward.6} parent=0 // pred_check_branch
    %1634 = sbr.rel (0) target = $region25
  $region24: #{mixed_3b_forward.6} parent=0 // pred_region
    _
  $region25: #{mixed_3b_forward.6} parent=0 // pred_fallthru
    _
  // Predicated region
  $region26: #{mixed_3b_forward.6} parent=0 // pred_check
    _
  $region27: #{mixed_3b_forward.6} parent=0 // pred_check_branch
    %1636 = sbr.rel (0) target = $region29
  $region28: #{mixed_3b_forward.6} parent=0 // pred_region
    _
  $region29: #{mixed_3b_forward.6} parent=0 // pred_fallthru
    _
  // Predicated region
  $region30: #{mixed_3b_forward.6} parent=0 // pred_check
    _
  $region31: #{mixed_3b_forward.6} parent=0 // pred_check_branch
    %1638 = sbr.rel (0) target = $region33
  $region32: #{mixed_3b_forward.6} parent=0 // pred_region
    _
  $region33: #{mixed_3b_forward.6} parent=0 // pred_fallthru
    _

// kernel: mixed_3b_forward.10
$region0: #{mixed_3b_forward.10}
  #allocation0 [shape = 'u32[]', space=smem, size = 0x4, offset = 0x4, fixed_abs, tag = 'smem constant byte address 0x4 - core index']
  #allocation1 [shape = 'u32[144,128]{1,0:T(1,128)}', space=vmem, size = 0x12000, scoped, tag = 'internal scratch']
  %s0 = inlined_call_operand.vmem [shape: f32[2,4,64,16], index: 0, kind: input, shape index: {}]
  %s1 = inlined_call_operand.vmem [shape: f32[48,16], index: 1, kind: input, shape index: {}]
  %s2 = inlined_call_operand.vmem [shape: f32[1,16], index: 2, kind: input, shape index: {}]
  %s3 = inlined_call_operand.vmem [shape: f32[2,4,64,16], index: 3, kind: output, shape index: {}]
  %s4 = sld [smem:[#allocation0]]
  $region45: #{mixed_3b_forward.10} parent=0
    _
  %s6 = ssub.s32 1, %s4
  %s7 = scalar_select 0, %s6, %s4
  loop: start=0, step=1, limit=4
  $region2: #{mixed_3b_forward.10} parent=0 // loop_pre_header
    _
  $region3: #{mixed_3b_forward.10} parent=0 // loop_header
    %s9 = sphi 0, %s13
    %p10 = scmp.ge.s32.totalorder %s9, 4
    %s19 = sphi 0, %s21
    %s22 = sphi 0, %s19
    %s23 = sphi 0, %s22
    %s39 = sphi 0, %s23
    %s43 = sphi 0, %s43
    %s45 = sphi 0, %s43
    %s46 = sphi 0, %s45
    %s60 = sphi 0, %s46
    %s64 = sphi 0, %s64
    %s66 = sphi 0, %s64
    %s67 = sphi 0, %s66
    %s81 = sphi 0, %s67
    %s87 = sphi 0, %s89
    %s90 = sphi 0, %s87
    %s91 = sphi 0, %s90
    %s107 = sphi 0, %s91
  $region4: #{mixed_3b_forward.10} parent=0 // loop_header_branch
    %12 = sbr.rel (%p10) target = $region8
  $region5: #{mixed_3b_forward.10} parent=0 // loop_body
    %s14 = ssub.s32 %s9, 1
    %s15 = ssub.s32 %s9, 2
    %s16 = sadd.s32 %s9, 1
    %s17 = ssub.s32 %s9, %s16
    %p18 = scmp.eq.s32.totalorder %s17, 0
    %s20 = sadd.s32 %s19, 1
    %s21 = scalar_select %p18, %s19, %s20
    %p24 = pneg %p18
    %p25 = scmp.eq.s32.totalorder %s9, 1
    %p26 = por %p24, %p25
    %p27 = scmp.ne.s32.totalorder %s19, %s22
    %p28 = scmp.eq.s32.totalorder %s9, 0
    %p29 = por %p27, %p28
    %p30 = scmp.ne.s32.totalorder %s19, %s22
    %p31 = scmp.eq.s32.totalorder %s14, 1
    %p32 = por %p30, %p31
    %p33 = scmp.ne.s32.totalorder %s22, %s23
    %p34 = scmp.eq.s32.totalorder %s14, 0
    %p35 = por %p33, %p34
    %p36 = scmp.ne.s32.totalorder %s22, %s23
    %p37 = scmp.eq.s32.totalorder %s15, 1
    %p38 = por %p36, %p37
    %p40 = scmp.ne.s32.totalorder %s23, %s39
    %p41 = scmp.eq.s32.totalorder %s15, 0
    %p42 = por %p40, %p41
    %s44 = sadd.s32 %s43, 1
    %p47 = scmp.eq.s32.totalorder %s9, 1
    %p48 = scmp.ne.s32.totalorder %s43, %s45
    %p49 = scmp.eq.s32.totalorder %s9, 0
    %p50 = por %p48, %p49
    %p51 = scmp.ne.s32.totalorder %s43, %s45
    %p52 = scmp.eq.s32.totalorder %s14, 1
    %p53 = por %p51, %p52
    %p54 = scmp.ne.s32.totalorder %s45, %s46
    %p55 = scmp.eq.s32.totalorder %s14, 0
    %p56 = por %p54, %p55
    %p57 = scmp.ne.s32.totalorder %s45, %s46
    %p58 = scmp.eq.s32.totalorder %s15, 1
    %p59 = por %p57, %p58
    %p61 = scmp.ne.s32.totalorder %s46, %s60
    %p62 = scmp.eq.s32.totalorder %s15, 0
    %p63 = por %p61, %p62
    %s65 = sadd.s32 %s64, 1
    %p68 = scmp.eq.s32.totalorder %s9, 1
    %p69 = scmp.ne.s32.totalorder %s64, %s66
    %p70 = scmp.eq.s32.totalorder %s9, 0
    %p71 = por %p69, %p70
    %p72 = scmp.ne.s32.totalorder %s64, %s66
    %p73 = scmp.eq.s32.totalorder %s14, 1
    %p74 = por %p72, %p73
    %p75 = scmp.ne.s32.totalorder %s66, %s67
    %p76 = scmp.eq.s32.totalorder %s14, 0
    %p77 = por %p75, %p76
    %p78 = scmp.ne.s32.totalorder %s66, %s67
    %p79 = scmp.eq.s32.totalorder %s15, 1
    %p80 = por %p78, %p79
    %p82 = scmp.ne.s32.totalorder %s67, %s81
    %p83 = scmp.eq.s32.totalorder %s15, 0
    %p84 = por %p82, %p83
    %s85 = ssub.s32 %s9, %s16
    %p86 = scmp.eq.s32.totalorder %s85, 0
    %s88 = sadd.s32 %s87, 1
    %s89 = scalar_select %p86, %s87, %s88
    %p92 = pneg %p86
    %p93 = scmp.eq.s32.totalorder %s9, 1
    %p94 = por %p92, %p93
    %p95 = scmp.ne.s32.totalorder %s87, %s90
    %p96 = scmp.eq.s32.totalorder %s9, 0
    %p97 = por %p95, %p96
    %p98 = scmp.ne.s32.totalorder %s87, %s90
    %p99 = scmp.eq.s32.totalorder %s14, 1
    %p100 = por %p98, %p99
    %p101 = scmp.ne.s32.totalorder %s90, %s91
    %p102 = scmp.eq.s32.totalorder %s14, 0
    %p103 = por %p101, %p102
    %p104 = scmp.ne.s32.totalorder %s90, %s91
    %p105 = scmp.eq.s32.totalorder %s15, 1
    %p106 = por %p104, %p105
    %p108 = scmp.ne.s32.totalorder %s91, %s107
    %p109 = scmp.eq.s32.totalorder %s15, 0
    %p110 = por %p108, %p109
    %p111 = scmp.le.s32.totalorder 1, %s9
    %p112 = scmp.lt.s32.totalorder %s9, 3
    %p113 = pnand %p111, %p112
    %p114 = pneg %p113
    // Predicated region
    $region9: #{mixed_3b_forward.10} parent=5 // pred_check
      _
    $region10: #{mixed_3b_forward.10} parent=5 // pred_check_branch
      %116 = sbr.rel (%p113) target = $region12
    $region11: #{mixed_3b_forward.10} parent=5 // pred_region
      %s117 = ssub.s32 %s9, 1
      // Predicated region
      $region13: #{mixed_3b_forward.10} parent=11 // pred_check
        %p118 = pneg %p56
      $region14: #{mixed_3b_forward.10} parent=11 // pred_check_branch
        %120 = sbr.rel (%p118) target = $region16
      $region15: #{mixed_3b_forward.10} parent=11 // pred_region
        _
      $region16: #{mixed_3b_forward.10} parent=11 // pred_fallthru
        _
      // Predicated region
      $region17: #{mixed_3b_forward.10} parent=11 // pred_check
        %p121 = pneg %p77
      $region18: #{mixed_3b_forward.10} parent=11 // pred_check_branch
        %123 = sbr.rel (%p121) target = $region20
      $region19: #{mixed_3b_forward.10} parent=11 // pred_region
        _
      $region20: #{mixed_3b_forward.10} parent=11 // pred_fallthru
        _
    $region12: #{mixed_3b_forward.10} parent=5 // pred_fallthru
      _
    %p124 = scmp.lt.s32.totalorder %s9, 2
    // Predicated region
    $region21: #{mixed_3b_forward.10} parent=5 // pred_check
      %p125 = pneg %p124
    $region22: #{mixed_3b_forward.10} parent=5 // pred_check_branch
      %127 = sbr.rel (%p125) target = $region24
    $region23: #{mixed_3b_forward.10} parent=5 // pred_region
      // Predicated region
      $region25: #{mixed_3b_forward.10} parent=23 // pred_check
        %p128 = pneg %p29
      $region26: #{mixed_3b_forward.10} parent=23 // pred_check_branch
        %130 = sbr.rel (%p128) target = $region28
      $region27: #{mixed_3b_forward.10} parent=23 // pred_region
        %p131 = scmp.lt.s32.totalorder %s9, 1
        %s132 = scalar_select %p131, %s9, 1
        %s133 = smul.addr %s132, 32
        %s134 = smul.addr %s133, 8
        %s135 = scalar_lea.vmem %s0, %s134
      $region28: #{mixed_3b_forward.10} parent=23 // pred_fallthru
        _
    $region24: #{mixed_3b_forward.10} parent=5 // pred_fallthru
      _
    %p136 = scmp.le.s32.totalorder 1, %s9
    %p137 = scmp.lt.s32.totalorder %s9, 3
    %p138 = pnand %p136, %p137
    %p139 = pneg %p138
    // Predicated region
    $region29: #{mixed_3b_forward.10} parent=5 // pred_check
      _
    $region30: #{mixed_3b_forward.10} parent=5 // pred_check_branch
      %141 = sbr.rel (%p138) target = $region32
    $region31: #{mixed_3b_forward.10} parent=5 // pred_region
      %s142 = ssub.s32 %s9, 1
      %p143 = scmp.lt.s32.totalorder %s14, 1
      %s144 = scalar_select %p143, %s14, 1
      %s145 = smul.addr %s144, 32
      %s146 = smul.addr %s145, 8
      %s147 = scalar_lea.vmem %s0, %s146
      %p148 = pneg %p35
      %p149 = pneg %p32
      %p150 = pneg %p56
      %p151 = pneg %p53
      %p152 = pneg %p77
      %p153 = pneg %p74
      %p154 = pneg %p103
      %p155 = pneg %p100
      %p156 = scmp.lt.s32.totalorder %s14, 1
      %s157 = scalar_select %p156, %s14, 1
      %s158 = smul.addr %s157, 32
      %s159 = smul.addr %s158, 8
      %s160 = scalar_lea.vmem %s3, %s159
      %p161 = scmp.lt.s32.totalorder %s14, 1
      %s162 = scalar_select %p161, %s14, 1
      %s163 = smul.addr %s162, 32
      %s164 = smul.addr %s163, 8
      %s165 = scalar_lea.vmem %s0, %s164
      %p166 = scmp.lt.s32.totalorder %s14, 1
      %s167 = scalar_select %p166, %s14, 1
      %s168 = smul.addr %s167, 32
      %s169 = smul.addr %s168, 8
      %s170 = scalar_lea.vmem %s3, %s169
      %v171 = vld [vmem:[%s165] sm:$0xff]
      %v172 = vld [vmem:[%s165 + $0x8] sm:$0xff]
      %v173 = vld [vmem:[%s165 + $0x10] sm:$0xff]
      %v174 = vld [vmem:[%s165 + $0x18] sm:$0xff]
      %v175 = vld [vmem:[%s165 + $0x20] sm:$0xff]
      %v176 = vld [vmem:[%s165 + $0x28] sm:$0xff]
      %v177 = vld [vmem:[%s165 + $0x30] sm:$0xff]
      %v178 = vld [vmem:[%s165 + $0x38] sm:$0xff]
      %v179 = vld [vmem:[%s165 + $0x40] sm:$0xff]
      %v180 = vld [vmem:[%s165 + $0x48] sm:$0xff]
      %v181 = vld [vmem:[%s165 + $0x50] sm:$0xff]
      %v182 = vld [vmem:[%s165 + $0x58] sm:$0xff]
      %v183 = vld [vmem:[%s165 + $0x60] sm:$0xff]
      %v184 = vld [vmem:[%s165 + $0x68] sm:$0xff]
      %v185 = vld [vmem:[%s165 + $0x70] sm:$0xff]
      %v186 = vld [vmem:[%s165 + $0x78] sm:$0xff]
      %v187 = vld [vmem:[%s165 + $0x80] sm:$0xff]
      %v188 = vld [vmem:[%s165 + $0x88] sm:$0xff]
      %v189 = vld [vmem:[%s165 + $0x90] sm:$0xff]
      %v190 = vld [vmem:[%s165 + $0x98] sm:$0xff]
      %v191 = vld [vmem:[%s165 + $0xa0] sm:$0xff]
      %v192 = vld [vmem:[%s165 + $0xa8] sm:$0xff]
      %v193 = vld [vmem:[%s165 + $0xb0] sm:$0xff]
      %v194 = vld [vmem:[%s165 + $0xb8] sm:$0xff]
      %v195 = vld [vmem:[%s165 + $0xc0] sm:$0xff]
      %v196 = vld [vmem:[%s165 + $0xc8] sm:$0xff]
      %v197 = vld [vmem:[%s165 + $0xd0] sm:$0xff]
      %v198 = vld [vmem:[%s165 + $0xd8] sm:$0xff]
      %v199 = vld [vmem:[%s165 + $0xe0] sm:$0xff]
      %v200 = vld [vmem:[%s165 + $0xe8] sm:$0xff]
      %v201 = vld [vmem:[%s165 + $0xf0] sm:$0xff]
      %v202 = vld [vmem:[%s165 + $0xf8] sm:$0xff]
      %235 = vrot.lane.b32.xlu0 %v171, 16
      %v236 = vpop.permute.xlu0 %235
      %237 = vrot.lane.b32.xlu0 %v172, 16
      %v238 = vpop.permute.xlu0 %237
      %239 = vrot.lane.b32.xlu0 %v173, 16
      %v240 = vpop.permute.xlu0 %239
      %241 = vrot.lane.b32.xlu0 %v174, 16
      %v242 = vpop.permute.xlu0 %241
      %243 = vrot.lane.b32.xlu0 %v175, 16
      %v244 = vpop.permute.xlu0 %243
      %245 = vrot.lane.b32.xlu0 %v176, 16
      %v246 = vpop.permute.xlu0 %245
      %247 = vrot.lane.b32.xlu0 %v177, 16
      %v248 = vpop.permute.xlu0 %247
      %249 = vrot.lane.b32.xlu0 %v178, 16
      %v250 = vpop.permute.xlu0 %249
      %251 = vrot.lane.b32.xlu0 %v179, 16
      %v252 = vpop.permute.xlu0 %251
      %253 = vrot.lane.b32.xlu0 %v180, 16
      %v254 = vpop.permute.xlu0 %253
      %255 = vrot.lane.b32.xlu0 %v181, 16
      %v256 = vpop.permute.xlu0 %255
      %257 = vrot.lane.b32.xlu0 %v182, 16
      %v258 = vpop.permute.xlu0 %257
      %259 = vrot.lane.b32.xlu0 %v183, 16
      %v260 = vpop.permute.xlu0 %259
      %261 = vrot.lane.b32.xlu0 %v184, 16
      %v262 = vpop.permute.xlu0 %261
      %263 = vrot.lane.b32.xlu0 %v185, 16
      %v264 = vpop.permute.xlu0 %263
      %265 = vrot.lane.b32.xlu0 %v186, 16
      %v266 = vpop.permute.xlu0 %265
      %267 = vrot.lane.b32.xlu0 %v187, 16
      %v268 = vpop.permute.xlu0 %267
      %269 = vrot.lane.b32.xlu0 %v188, 16
      %v270 = vpop.permute.xlu0 %269
      %271 = vrot.lane.b32.xlu0 %v189, 16
      %v272 = vpop.permute.xlu0 %271
      %273 = vrot.lane.b32.xlu0 %v190, 16
      %v274 = vpop.permute.xlu0 %273
      %275 = vrot.lane.b32.xlu0 %v191, 16
      %v276 = vpop.permute.xlu0 %275
      %277 = vrot.lane.b32.xlu0 %v192, 16
      %v278 = vpop.permute.xlu0 %277
      %279 = vrot.lane.b32.xlu0 %v193, 16
      %v280 = vpop.permute.xlu0 %279
      %281 = vrot.lane.b32.xlu0 %v194, 16
      %v282 = vpop.permute.xlu0 %281
      %283 = vrot.lane.b32.xlu0 %v195, 16
      %v284 = vpop.permute.xlu0 %283
      %285 = vrot.lane.b32.xlu0 %v196, 16
      %v286 = vpop.permute.xlu0 %285
      %287 = vrot.lane.b32.xlu0 %v197, 16
      %v288 = vpop.permute.xlu0 %287
      %289 = vrot.lane.b32.xlu0 %v198, 16
      %v290 = vpop.permute.xlu0 %289
      %291 = vrot.lane.b32.xlu0 %v199, 16
      %v292 = vpop.permute.xlu0 %291
      %293 = vrot.lane.b32.xlu0 %v200, 16
      %v294 = vpop.permute.xlu0 %293
      %295 = vrot.lane.b32.xlu0 %v201, 16
      %v296 = vpop.permute.xlu0 %295
      %297 = vrot.lane.b32.xlu0 %v202, 16
      %v298 = vpop.permute.xlu0 %297
      %332 = vrot.lane.b32.xlu0 %v179, 32
      %v333 = vpop.permute.xlu0 %332
      %334 = vrot.lane.b32.xlu0 %v180, 32
      %v335 = vpop.permute.xlu0 %334
      %336 = vrot.lane.b32.xlu0 %v181, 32
      %v337 = vpop.permute.xlu0 %336
      %338 = vrot.lane.b32.xlu0 %v182, 32
      %v339 = vpop.permute.xlu0 %338
      %340 = vrot.lane.b32.xlu0 %v183, 32
      %v341 = vpop.permute.xlu0 %340
      %342 = vrot.lane.b32.xlu0 %v184, 32
      %v343 = vpop.permute.xlu0 %342
      %344 = vrot.lane.b32.xlu0 %v185, 32
      %v345 = vpop.permute.xlu0 %344
      %346 = vrot.lane.b32.xlu0 %v186, 32
      %v347 = vpop.permute.xlu0 %346
      %348 = vrot.lane.b32.xlu0 %v187, 32
      %v349 = vpop.permute.xlu0 %348
      %350 = vrot.lane.b32.xlu0 %v188, 32
      %v351 = vpop.permute.xlu0 %350
      %352 = vrot.lane.b32.xlu0 %v189, 32
      %v353 = vpop.permute.xlu0 %352
      %354 = vrot.lane.b32.xlu0 %v190, 32
      %v355 = vpop.permute.xlu0 %354
      %356 = vrot.lane.b32.xlu0 %v191, 32
      %v357 = vpop.permute.xlu0 %356
      %358 = vrot.lane.b32.xlu0 %v192, 32
      %v359 = vpop.permute.xlu0 %358
      %360 = vrot.lane.b32.xlu0 %v193, 32
      %v361 = vpop.permute.xlu0 %360
      %362 = vrot.lane.b32.xlu0 %v194, 32
      %v363 = vpop.permute.xlu0 %362
      %364 = vrot.lane.b32.xlu0 %v195, 32
      %v365 = vpop.permute.xlu0 %364
      %366 = vrot.lane.b32.xlu0 %v196, 32
      %v367 = vpop.permute.xlu0 %366
      %368 = vrot.lane.b32.xlu0 %v197, 32
      %v369 = vpop.permute.xlu0 %368
      %370 = vrot.lane.b32.xlu0 %v198, 32
      %v371 = vpop.permute.xlu0 %370
      %372 = vrot.lane.b32.xlu0 %v199, 32
      %v373 = vpop.permute.xlu0 %372
      %374 = vrot.lane.b32.xlu0 %v200, 32
      %v375 = vpop.permute.xlu0 %374
      %376 = vrot.lane.b32.xlu0 %v201, 32
      %v377 = vpop.permute.xlu0 %376
      %378 = vrot.lane.b32.xlu0 %v202, 32
      %v379 = vpop.permute.xlu0 %378
      %380 = vrot.lane.b32.xlu0 0.0, 32
      %v381 = vpop.permute.xlu0 %380
      %vm407 = vcmask 130048
      %v408 = vsel %vm407, 0.0, %v236
      %v409 = vsel %vm407, 0.0, %v238
      %v410 = vsel %vm407, 0.0, %v240
      %v411 = vsel %vm407, 0.0, %v242
      %v412 = vsel %vm407, 0.0, %v244
      %v413 = vsel %vm407, 0.0, %v246
      %v414 = vsel %vm407, 0.0, %v248
      %v415 = vsel %vm407, 0.0, %v250
      %v416 = vsel %vm407, %v171, %v252
      %v417 = vsel %vm407, %v172, %v254
      %v418 = vsel %vm407, %v173, %v256
      %v419 = vsel %vm407, %v174, %v258
      %v420 = vsel %vm407, %v175, %v260
      %v421 = vsel %vm407, %v176, %v262
      %v422 = vsel %vm407, %v177, %v264
      %v423 = vsel %vm407, %v178, %v266
      %v424 = vsel %vm407, %v179, %v268
      %v425 = vsel %vm407, %v180, %v270
      %v426 = vsel %vm407, %v181, %v272
      %v427 = vsel %vm407, %v182, %v274
      %v428 = vsel %vm407, %v183, %v276
      %v429 = vsel %vm407, %v184, %v278
      %v430 = vsel %vm407, %v185, %v280
      %v431 = vsel %vm407, %v186, %v282
      %v432 = vsel %vm407, %v187, %v284
      %v433 = vsel %vm407, %v188, %v286
      %v434 = vsel %vm407, %v189, %v288
      %v435 = vsel %vm407, %v190, %v290
      %v436 = vsel %vm407, %v191, %v292
      %v437 = vsel %vm407, %v192, %v294
      %v438 = vsel %vm407, %v193, %v296
      %v439 = vsel %vm407, %v194, %v298
      %vm440 = vcmask 261120
      %v441 = vsel %vm440, %v408, %v333
      %v442 = vsel %vm440, %v409, %v335
      %v443 = vsel %vm440, %v410, %v337
      %v444 = vsel %vm440, %v411, %v339
      %v445 = vsel %vm440, %v412, %v341
      %v446 = vsel %vm440, %v413, %v343
      %v447 = vsel %vm440, %v414, %v345
      %v448 = vsel %vm440, %v415, %v347
      %v449 = vsel %vm440, %v416, %v349
      %v450 = vsel %vm440, %v417, %v351
      %v451 = vsel %vm440, %v418, %v353
      %v452 = vsel %vm440, %v419, %v355
      %v453 = vsel %vm440, %v420, %v357
      %v454 = vsel %vm440, %v421, %v359
      %v455 = vsel %vm440, %v422, %v361
      %v456 = vsel %vm440, %v423, %v363
      %v457 = vsel %vm440, %v424, %v365
      %v458 = vsel %vm440, %v425, %v367
      %v459 = vsel %vm440, %v426, %v369
      %v460 = vsel %vm440, %v427, %v371
      %v461 = vsel %vm440, %v428, %v373
      %v462 = vsel %vm440, %v429, %v375
      %v463 = vsel %vm440, %v430, %v377
      %v464 = vsel %vm440, %v431, %v379
      %v465 = vsel %vm440, %v432, %v381
      %v466 = vsel %vm440, %v433, %v381
      %v467 = vsel %vm440, %v434, %v381
      %v468 = vsel %vm440, %v435, %v381
      %v469 = vsel %vm440, %v436, %v381
      %v470 = vsel %vm440, %v437, %v381
      %v471 = vsel %vm440, %v438, %v381
      %v472 = vsel %vm440, %v439, %v381
      %v473 = vld [vmem:[%s1] sm:$0xff]
      %v474 = vld [vmem:[%s1 + $0x8] sm:$0xff]
      %v475 = vld [vmem:[%s1 + $0x10] sm:$0xff]
      %v476 = vld [vmem:[%s1 + $0x18] sm:$0xff]
      %v477 = vld [vmem:[%s1 + $0x20] sm:$0xff]
      %v478 = vld [vmem:[%s1 + $0x28] sm:$0xff]
      %v479 = vld [vmem:[%s2] sm:$0x1]
      %v481 = vlaneseq
      %v482 = vshrl.u32 %v481, 7
      %v483 = vsub.s32 0, %v482
      %v484 = vrot.slane %v479, %v483
      %vm486 = vcmask 392192
      %v488 = vsel %vm486, %v441, 0
      %v491 = vsel %vm486, %v442, 0
      %v494 = vsel %vm486, %v443, 0
      %v497 = vsel %vm486, %v444, 0
      %v500 = vsel %vm486, %v445, 0
      %v503 = vsel %vm486, %v446, 0
      %v506 = vsel %vm486, %v447, 0
      %v509 = vsel %vm486, %v448, 0
      %v512 = vsel %vm486, %v449, 0
      %v515 = vsel %vm486, %v450, 0
      %v518 = vsel %vm486, %v451, 0
      %v521 = vsel %vm486, %v452, 0
      %v524 = vsel %vm486, %v453, 0
      %v527 = vsel %vm486, %v454, 0
      %v530 = vsel %vm486, %v455, 0
      %v533 = vsel %vm486, %v456, 0
      %v536 = vsel %vm486, %v457, 0
      %v539 = vsel %vm486, %v458, 0
      %v542 = vsel %vm486, %v459, 0
      %v545 = vsel %vm486, %v460, 0
      %v548 = vsel %vm486, %v461, 0
      %v551 = vsel %vm486, %v462, 0
      %v554 = vsel %vm486, %v463, 0
      %v557 = vsel %vm486, %v464, 0
      %v560 = vsel %vm486, %v465, 0
      %v563 = vsel %vm486, %v466, 0
      %v566 = vsel %vm486, %v467, 0
      %v569 = vsel %vm486, %v468, 0
      %v572 = vsel %vm486, %v469, 0
      %v575 = vsel %vm486, %v470, 0
      %v578 = vsel %vm486, %v471, 0
      %v581 = vsel %vm486, %v472, 0
      %583 = vmatprep.subr.mxu0 0.0
      %584 = vmatpush1.msra.mxu0 %v473
      %585 = vmatprep.subr.mxu0 0.0
      %586 = vmatpush1.msra.mxu0 %v474
      %587 = vmatprep.subr.mxu0 0.0
      %588 = vmatpush1.msra.mxu0 %v475
      %589 = vmatprep.subr.mxu0 0.0
      %590 = vmatpush1.msra.mxu0 %v476
      %591 = vmatprep.subr.mxu0 0.0
      %592 = vmatpush1.msra.mxu0 %v477
      %593 = vmatprep.subr.mxu0 0.0
      %594 = vmatpush1.msra.mxu0 %v478
      %595 = vmatprep.subr.mxu0 0.0
      %596 = vmatpush1.msra.mxu0 0.0
      %597 = vmatprep.subr.mxu0 0.0
      %598 = vmatpush1.msra.mxu0 0.0
      %599 = vmatprep.subr.mxu0 0.0
      %600 = vmatpush1.msra.mxu0 0.0
      %601 = vmatprep.subr.mxu0 0.0
      %602 = vmatpush1.msra.mxu0 0.0
      %603 = vmatprep.subr.mxu0 0.0
      %604 = vmatpush1.msra.mxu0 0.0
      %605 = vmatprep.subr.mxu0 0.0
      %606 = vmatpush1.msra.mxu0 0.0
      %607 = vmatprep.subr.mxu0 0.0
      %608 = vmatpush1.msra.mxu0 0.0
      %609 = vmatprep.subr.mxu0 0.0
      %610 = vmatpush1.msra.mxu0 0.0
      %611 = vmatprep.subr.mxu0 0.0
      %612 = vmatpush1.msra.mxu0 0.0
      %613 = vmatprep.subr.mxu0 0.0
      %614 = vmatpush1.msra.mxu0 0.0
      %615 = vmatprep.subr.mxu0 0.0
      %616 = vmatpush1.msra.mxu0 0.0
      %617 = vmatprep.subr.mxu0 0.0
      %618 = vmatpush1.msra.mxu0 0.0
      %619 = vmatprep.subr.mxu0 0.0
      %620 = vmatpush1.msra.mxu0 0.0
      %621 = vmatprep.subr.mxu0 0.0
      %622 = vmatpush1.msra.mxu0 0.0
      %623 = vmatprep.subr.mxu0 0.0
      %624 = vmatpush1.msra.mxu0 0.0
      %625 = vmatprep.subr.mxu0 0.0
      %626 = vmatpush1.msra.mxu0 0.0
      %627 = vmatprep.subr.mxu0 0.0
      %628 = vmatpush1.msra.mxu0 0.0
      %629 = vmatprep.subr.mxu0 0.0
      %630 = vmatpush1.msra.mxu0 0.0
      %631 = vmatprep.subr.mxu0 0.0
      %632 = vmatpush1.msra.mxu0 0.0
      %633 = vmatprep.subr.mxu0 0.0
      %634 = vmatpush1.msra.mxu0 0.0
      %635 = vmatprep.subr.mxu0 0.0
      %636 = vmatpush1.msra.mxu0 0.0
      %637 = vmatprep.subr.mxu0 0.0
      %638 = vmatpush1.msra.mxu0 0.0
      %639 = vmatprep.subr.mxu0 0.0
      %640 = vmatpush1.msra.mxu0 0.0
      %641 = vmatprep.subr.mxu0 0.0
      %642 = vmatpush1.msra.mxu0 0.0
      %643 = vmatprep.subr.mxu0 0.0
      %644 = vmatpush1.msra.mxu0 0.0
      %645 = vmatprep.subr.mxu0 0.0
      %646 = vmatpush1.msra.mxu0 0.0
      %647 = vmatprep.mubr.f32.mxu0 0.0
      %648 = vmatmul.mubr.f32.gmra.mrb[0].mxu0 %v488
      %v649 = vpop.f32.mrb[0].mxu0
      %v650 = vadd.f32 %v484, %v649
      %v651 = vpop.f32.mrb[0].mxu0
      %652 = vmatprep.mubr.f32.mxu0 0.0
      %653 = vmatmul.mubr.f32.gmra.mrb[0].mxu0 %v491
      %v654 = vpop.f32.mrb[0].mxu0
      %v655 = vadd.f32 %v484, %v654
      %v656 = vpop.f32.mrb[0].mxu0
      %657 = vmatprep.mubr.f32.mxu0 0.0
      %658 = vmatmul.mubr.f32.gmra.mrb[0].mxu0 %v494
      %v659 = vpop.f32.mrb[0].mxu0
      %v660 = vadd.f32 %v484, %v659
      %v661 = vpop.f32.mrb[0].mxu0
      %662 = vmatprep.mubr.f32.mxu0 0.0
      %663 = vmatmul.mubr.f32.gmra.mrb[0].mxu0 %v497
      %v664 = vpop.f32.mrb[0].mxu0
      %v665 = vadd.f32 %v484, %v664
      %v666 = vpop.f32.mrb[0].mxu0
      %667 = vmatprep.mubr.f32.mxu0 0.0
      %668 = vmatmul.mubr.f32.gmra.mrb[0].mxu0 %v500
      %v669 = vpop.f32.mrb[0].mxu0
      %v670 = vadd.f32 %v484, %v669
      %v671 = vpop.f32.mrb[0].mxu0
      %672 = vmatprep.mubr.f32.mxu0 0.0
      %673 = vmatmul.mubr.f32.gmra.mrb[0].mxu0 %v503
      %v674 = vpop.f32.mrb[0].mxu0
      %v675 = vadd.f32 %v484, %v674
      %v676 = vpop.f32.mrb[0].mxu0
      %677 = vmatprep.mubr.f32.mxu0 0.0
      %678 = vmatmul.mubr.f32.gmra.mrb[0].mxu0 %v506
      %v679 = vpop.f32.mrb[0].mxu0
      %v680 = vadd.f32 %v484, %v679
      %v681 = vpop.f32.mrb[0].mxu0
      %682 = vmatprep.mubr.f32.mxu0 0.0
      %683 = vmatmul.mubr.f32.gmra.mrb[0].mxu0 %v509
      %v684 = vpop.f32.mrb[0].mxu0
      %v685 = vadd.f32 %v484, %v684
      %v686 = vpop.f32.mrb[0].mxu0
      %687 = vmatprep.mubr.f32.mxu0 0.0
      %688 = vmatmul.mubr.f32.gmra.mrb[0].mxu0 %v512
      %v689 = vpop.f32.mrb[0].mxu0
      %v690 = vadd.f32 %v484, %v689
      %v691 = vpop.f32.mrb[0].mxu0
      %692 = vmatprep.mubr.f32.mxu0 0.0
      %693 = vmatmul.mubr.f32.gmra.mrb[0].mxu0 %v515
      %v694 = vpop.f32.mrb[0].mxu0
      %v695 = vadd.f32 %v484, %v694
      %v696 = vpop.f32.mrb[0].mxu0
      %697 = vmatprep.mubr.f32.mxu0 0.0
      %698 = vmatmul.mubr.f32.gmra.mrb[0].mxu0 %v518
      %v699 = vpop.f32.mrb[0].mxu0
      %v700 = vadd.f32 %v484, %v699
      %v701 = vpop.f32.mrb[0].mxu0
      %702 = vmatprep.mubr.f32.mxu0 0.0
      %703 = vmatmul.mubr.f32.gmra.mrb[0].mxu0 %v521
      %v704 = vpop.f32.mrb[0].mxu0
      %v705 = vadd.f32 %v484, %v704
      %v706 = vpop.f32.mrb[0].mxu0
      %707 = vmatprep.mubr.f32.mxu0 0.0
      %708 = vmatmul.mubr.f32.gmra.mrb[0].mxu0 %v524
      %v709 = vpop.f32.mrb[0].mxu0
      %v710 = vadd.f32 %v484, %v709
      %v711 = vpop.f32.mrb[0].mxu0
      %712 = vmatprep.mubr.f32.mxu0 0.0
      %713 = vmatmul.mubr.f32.gmra.mrb[0].mxu0 %v527
      %v714 = vpop.f32.mrb[0].mxu0
      %v715 = vadd.f32 %v484, %v714
      %v716 = vpop.f32.mrb[0].mxu0
      %717 = vmatprep.mubr.f32.mxu0 0.0
      %718 = vmatmul.mubr.f32.gmra.mrb[0].mxu0 %v530
      %v719 = vpop.f32.mrb[0].mxu0
      %v720 = vadd.f32 %v484, %v719
      %v721 = vpop.f32.mrb[0].mxu0
      %722 = vmatprep.mubr.f32.mxu0 0.0
      %723 = vmatmul.mubr.f32.gmra.mrb[0].mxu0 %v533
      %v724 = vpop.f32.mrb[0].mxu0
      %v725 = vadd.f32 %v484, %v724
      %v726 = vpop.f32.mrb[0].mxu0
      %727 = vmatprep.mubr.f32.mxu0 0.0
      %728 = vmatmul.mubr.f32.gmra.mrb[0].mxu0 %v536
      %v729 = vpop.f32.mrb[0].mxu0
      %v730 = vadd.f32 %v484, %v729
      %v731 = vpop.f32.mrb[0].mxu0
      %732 = vmatprep.mubr.f32.mxu0 0.0
      %733 = vmatmul.mubr.f32.gmra.mrb[0].mxu0 %v539
      %v734 = vpop.f32.mrb[0].mxu0
      %v735 = vadd.f32 %v484, %v734
      %v736 = vpop.f32.mrb[0].mxu0
      %737 = vmatprep.mubr.f32.mxu0 0.0
      %738 = vmatmul.mubr.f32.gmra.mrb[0].mxu0 %v542
      %v739 = vpop.f32.mrb[0].mxu0
      %v740 = vadd.f32 %v484, %v739
      %v741 = vpop.f32.mrb[0].mxu0
      %742 = vmatprep.mubr.f32.mxu0 0.0
      %743 = vmatmul.mubr.f32.gmra.mrb[0].mxu0 %v545
      %v744 = vpop.f32.mrb[0].mxu0
      %v745 = vadd.f32 %v484, %v744
      %v746 = vpop.f32.mrb[0].mxu0
      %747 = vmatprep.mubr.f32.mxu0 0.0
      %748 = vmatmul.mubr.f32.gmra.mrb[0].mxu0 %v548
      %v749 = vpop.f32.mrb[0].mxu0
      %v750 = vadd.f32 %v484, %v749
      %v751 = vpop.f32.mrb[0].mxu0
      %752 = vmatprep.mubr.f32.mxu0 0.0
      %753 = vmatmul.mubr.f32.gmra.mrb[0].mxu0 %v551
      %v754 = vpop.f32.mrb[0].mxu0
      %v755 = vadd.f32 %v484, %v754
      %v756 = vpop.f32.mrb[0].mxu0
      %757 = vmatprep.mubr.f32.mxu0 0.0
      %758 = vmatmul.mubr.f32.gmra.mrb[0].mxu0 %v554
      %v759 = vpop.f32.mrb[0].mxu0
      %v760 = vadd.f32 %v484, %v759
      %v761 = vpop.f32.mrb[0].mxu0
      %762 = vmatprep.mubr.f32.mxu0 0.0
      %763 = vmatmul.mubr.f32.gmra.mrb[0].mxu0 %v557
      %v764 = vpop.f32.mrb[0].mxu0
      %v765 = vadd.f32 %v484, %v764
      %v766 = vpop.f32.mrb[0].mxu0
      %767 = vmatprep.mubr.f32.mxu0 0.0
      %768 = vmatmul.mubr.f32.gmra.mrb[0].mxu0 %v560
      %v769 = vpop.f32.mrb[0].mxu0
      %v770 = vadd.f32 %v484, %v769
      %v771 = vpop.f32.mrb[0].mxu0
      %772 = vmatprep.mubr.f32.mxu0 0.0
      %773 = vmatmul.mubr.f32.gmra.mrb[0].mxu0 %v563
      %v774 = vpop.f32.mrb[0].mxu0
      %v775 = vadd.f32 %v484, %v774
      %v776 = vpop.f32.mrb[0].mxu0
      %777 = vmatprep.mubr.f32.mxu0 0.0
      %778 = vmatmul.mubr.f32.gmra.mrb[0].mxu0 %v566
      %v779 = vpop.f32.mrb[0].mxu0
      %v780 = vadd.f32 %v484, %v779
      %v781 = vpop.f32.mrb[0].mxu0
      %782 = vmatprep.mubr.f32.mxu0 0.0
      %783 = vmatmul.mubr.f32.gmra.mrb[0].mxu0 %v569
      %v784 = vpop.f32.mrb[0].mxu0
      %v785 = vadd.f32 %v484, %v784
      %v786 = vpop.f32.mrb[0].mxu0
      %787 = vmatprep.mubr.f32.mxu0 0.0
      %788 = vmatmul.mubr.f32.gmra.mrb[0].mxu0 %v572
      %v789 = vpop.f32.mrb[0].mxu0
      %v790 = vadd.f32 %v484, %v789
      %v791 = vpop.f32.mrb[0].mxu0
      %792 = vmatprep.mubr.f32.mxu0 0.0
      %793 = vmatmul.mubr.f32.gmra.mrb[0].mxu0 %v575
      %v794 = vpop.f32.mrb[0].mxu0
      %v795 = vadd.f32 %v484, %v794
      %v796 = vpop.f32.mrb[0].mxu0
      %797 = vmatprep.mubr.f32.mxu0 0.0
      %798 = vmatmul.mubr.f32.gmra.mrb[0].mxu0 %v578
      %v799 = vpop.f32.mrb[0].mxu0
      %v800 = vadd.f32 %v484, %v799
      %v801 = vpop.f32.mrb[0].mxu0
      %802 = vmatprep.mubr.f32.mxu0 0.0
      %803 = vmatmul.mubr.f32.gmra.mrb[0].mxu0 %v581
      %v804 = vpop.f32.mrb[0].mxu0
      %v805 = vadd.f32 %v484, %v804
      %v806 = vpop.f32.mrb[0].mxu0
      %807 = vdwg.mxu0
      %vm808 = vcmp.ge.f32.partialorder %v650, 0.0
      %vm809 = vcmp.ge.f32.partialorder %v655, 0.0
      %vm810 = vcmp.ge.f32.partialorder %v660, 0.0
      %vm811 = vcmp.ge.f32.partialorder %v665, 0.0
      %vm812 = vcmp.ge.f32.partialorder %v670, 0.0
      %vm813 = vcmp.ge.f32.partialorder %v675, 0.0
      %vm814 = vcmp.ge.f32.partialorder %v680, 0.0
      %vm815 = vcmp.ge.f32.partialorder %v685, 0.0
      %vm816 = vcmp.ge.f32.partialorder %v690, 0.0
      %vm817 = vcmp.ge.f32.partialorder %v695, 0.0
      %vm818 = vcmp.ge.f32.partialorder %v700, 0.0
      %vm819 = vcmp.ge.f32.partialorder %v705, 0.0
      %vm820 = vcmp.ge.f32.partialorder %v710, 0.0
      %vm821 = vcmp.ge.f32.partialorder %v715, 0.0
      %vm822 = vcmp.ge.f32.partialorder %v720, 0.0
      %vm823 = vcmp.ge.f32.partialorder %v725, 0.0
      %vm824 = vcmp.ge.f32.partialorder %v730, 0.0
      %vm825 = vcmp.ge.f32.partialorder %v735, 0.0
      %vm826 = vcmp.ge.f32.partialorder %v740, 0.0
      %vm827 = vcmp.ge.f32.partialorder %v745, 0.0
      %vm828 = vcmp.ge.f32.partialorder %v750, 0.0
      %vm829 = vcmp.ge.f32.partialorder %v755, 0.0
      %vm830 = vcmp.ge.f32.partialorder %v760, 0.0
      %vm831 = vcmp.ge.f32.partialorder %v765, 0.0
      %vm832 = vcmp.ge.f32.partialorder %v770, 0.0
      %vm833 = vcmp.ge.f32.partialorder %v775, 0.0
      %vm834 = vcmp.ge.f32.partialorder %v780, 0.0
      %vm835 = vcmp.ge.f32.partialorder %v785, 0.0
      %vm836 = vcmp.ge.f32.partialorder %v790, 0.0
      %vm837 = vcmp.ge.f32.partialorder %v795, 0.0
      %vm838 = vcmp.ge.f32.partialorder %v800, 0.0
      %vm839 = vcmp.ge.f32.partialorder %v805, 0.0
      %v840 = vmul.f32 %v650, 0.01
      %v841 = vmul.f32 %v655, 0.01
      %v842 = vmul.f32 %v660, 0.01
      %v843 = vmul.f32 %v665, 0.01
      %v844 = vmul.f32 %v670, 0.01
      %v845 = vmul.f32 %v675, 0.01
      %v846 = vmul.f32 %v680, 0.01
      %v847 = vmul.f32 %v685, 0.01
      %v848 = vmul.f32 %v690, 0.01
      %v849 = vmul.f32 %v695, 0.01
      %v850 = vmul.f32 %v700, 0.01
      %v851 = vmul.f32 %v705, 0.01
      %v852 = vmul.f32 %v710, 0.01
      %v853 = vmul.f32 %v715, 0.01
      %v854 = vmul.f32 %v720, 0.01
      %v855 = vmul.f32 %v725, 0.01
      %v856 = vmul.f32 %v730, 0.01
      %v857 = vmul.f32 %v735, 0.01
      %v858 = vmul.f32 %v740, 0.01
      %v859 = vmul.f32 %v745, 0.01
      %v860 = vmul.f32 %v750, 0.01
      %v861 = vmul.f32 %v755, 0.01
      %v862 = vmul.f32 %v760, 0.01
      %v863 = vmul.f32 %v765, 0.01
      %v864 = vmul.f32 %v770, 0.01
      %v865 = vmul.f32 %v775, 0.01
      %v866 = vmul.f32 %v780, 0.01
      %v867 = vmul.f32 %v785, 0.01
      %v868 = vmul.f32 %v790, 0.01
      %v869 = vmul.f32 %v795, 0.01
      %v870 = vmul.f32 %v800, 0.01
      %v871 = vmul.f32 %v805, 0.01
      %v872 = vsel %vm808, %v650, %v840
      %v873 = vsel %vm809, %v655, %v841
      %v874 = vsel %vm810, %v660, %v842
      %v875 = vsel %vm811, %v665, %v843
      %v876 = vsel %vm812, %v670, %v844
      %v877 = vsel %vm813, %v675, %v845
      %v878 = vsel %vm814, %v680, %v846
      %v879 = vsel %vm815, %v685, %v847
      %v880 = vsel %vm816, %v690, %v848
      %v881 = vsel %vm817, %v695, %v849
      %v882 = vsel %vm818, %v700, %v850
      %v883 = vsel %vm819, %v705, %v851
      %v884 = vsel %vm820, %v710, %v852
      %v885 = vsel %vm821, %v715, %v853
      %v886 = vsel %vm822, %v720, %v854
      %v887 = vsel %vm823, %v725, %v855
      %v888 = vsel %vm824, %v730, %v856
      %v889 = vsel %vm825, %v735, %v857
      %v890 = vsel %vm826, %v740, %v858
      %v891 = vsel %vm827, %v745, %v859
      %v892 = vsel %vm828, %v750, %v860
      %v893 = vsel %vm829, %v755, %v861
      %v894 = vsel %vm830, %v760, %v862
      %v895 = vsel %vm831, %v765, %v863
      %v896 = vsel %vm832, %v770, %v864
      %v897 = vsel %vm833, %v775, %v865
      %v898 = vsel %vm834, %v780, %v866
      %v899 = vsel %vm835, %v785, %v867
      %v900 = vsel %vm836, %v790, %v868
      %v901 = vsel %vm837, %v795, %v869
      %v902 = vsel %vm838, %v800, %v870
      %v903 = vsel %vm839, %v805, %v871
      %904 = vst.msk [vmem:[%s170] sm:$0xff] %vm407, %v872
      %905 = vst.msk [vmem:[%s170 + $0x8] sm:$0xff] %vm407, %v873
      %906 = vst.msk [vmem:[%s170 + $0x10] sm:$0xff] %vm407, %v874
      %907 = vst.msk [vmem:[%s170 + $0x18] sm:$0xff] %vm407, %v875
      %908 = vst.msk [vmem:[%s170 + $0x20] sm:$0xff] %vm407, %v876
      %909 = vst.msk [vmem:[%s170 + $0x28] sm:$0xff] %vm407, %v877
      %910 = vst.msk [vmem:[%s170 + $0x30] sm:$0xff] %vm407, %v878
      %911 = vst.msk [vmem:[%s170 + $0x38] sm:$0xff] %vm407, %v879
      %912 = vst.msk [vmem:[%s170 + $0x40] sm:$0xff] %vm407, %v880
      %913 = vst.msk [vmem:[%s170 + $0x48] sm:$0xff] %vm407, %v881
      %914 = vst.msk [vmem:[%s170 + $0x50] sm:$0xff] %vm407, %v882
      %915 = vst.msk [vmem:[%s170 + $0x58] sm:$0xff] %vm407, %v883
      %916 = vst.msk [vmem:[%s170 + $0x60] sm:$0xff] %vm407, %v884
      %917 = vst.msk [vmem:[%s170 + $0x68] sm:$0xff] %vm407, %v885
      %918 = vst.msk [vmem:[%s170 + $0x70] sm:$0xff] %vm407, %v886
      %919 = vst.msk [vmem:[%s170 + $0x78] sm:$0xff] %vm407, %v887
      %920 = vst.msk [vmem:[%s170 + $0x80] sm:$0xff] %vm407, %v888
      %921 = vst.msk [vmem:[%s170 + $0x88] sm:$0xff] %vm407, %v889
      %922 = vst.msk [vmem:[%s170 + $0x90] sm:$0xff] %vm407, %v890
      %923 = vst.msk [vmem:[%s170 + $0x98] sm:$0xff] %vm407, %v891
      %924 = vst.msk [vmem:[%s170 + $0xa0] sm:$0xff] %vm407, %v892
      %925 = vst.msk [vmem:[%s170 + $0xa8] sm:$0xff] %vm407, %v893
      %926 = vst.msk [vmem:[%s170 + $0xb0] sm:$0xff] %vm407, %v894
      %927 = vst.msk [vmem:[%s170 + $0xb8] sm:$0xff] %vm407, %v895
      %928 = vst.msk [vmem:[%s170 + $0xc0] sm:$0xff] %vm407, %v896
      %929 = vst.msk [vmem:[%s170 + $0xc8] sm:$0xff] %vm407, %v897
      %930 = vst.msk [vmem:[%s170 + $0xd0] sm:$0xff] %vm407, %v898
      %931 = vst.msk [vmem:[%s170 + $0xd8] sm:$0xff] %vm407, %v899
      %932 = vst.msk [vmem:[%s170 + $0xe0] sm:$0xff] %vm407, %v900
      %933 = vst.msk [vmem:[%s170 + $0xe8] sm:$0xff] %vm407, %v901
      %934 = vst.msk [vmem:[%s170 + $0xf0] sm:$0xff] %vm407, %v902
      %935 = vst.msk [vmem:[%s170 + $0xf8] sm:$0xff] %vm407, %v903
      %p936 = scmp.lt.s32.totalorder %s14, 1
      %s937 = scalar_select %p936, %s14, 1
      %s938 = smul.addr %s937, 32
      %s939 = smul.addr %s938, 8
      %s940 = scalar_lea.vmem %s3, %s939
      // Predicated region
      $region33: #{mixed_3b_forward.10} parent=31 // pred_check
        %p941 = pneg %p100
      $region34: #{mixed_3b_forward.10} parent=31 // pred_check_branch
        %943 = sbr.rel (%p941) target = $region36
      $region35: #{mixed_3b_forward.10} parent=31 // pred_region
        _
      $region36: #{mixed_3b_forward.10} parent=31 // pred_fallthru
        _
    $region32: #{mixed_3b_forward.10} parent=5 // pred_fallthru
      _
    %p944 = scmp.le.s32.totalorder 2, %s9
    // Predicated region
    $region37: #{mixed_3b_forward.10} parent=5 // pred_check
      %p945 = pneg %p944
    $region38: #{mixed_3b_forward.10} parent=5 // pred_check_branch
      %947 = sbr.rel (%p945) target = $region40
    $region39: #{mixed_3b_forward.10} parent=5 // pred_region
      %s948 = ssub.s32 %s9, 2
      // Predicated region
      $region41: #{mixed_3b_forward.10} parent=39 // pred_check
        %p949 = pneg %p106
      $region42: #{mixed_3b_forward.10} parent=39 // pred_check_branch
        %951 = sbr.rel (%p949) target = $region44
      $region43: #{mixed_3b_forward.10} parent=39 // pred_region
        %p952 = scmp.lt.s32.totalorder %s15, 1
        %s953 = scalar_select %p952, %s15, 1
        %s954 = smul.addr %s953, 32
        %s955 = smul.addr %s954, 8
        %s956 = scalar_lea.vmem %s3, %s955
      $region44: #{mixed_3b_forward.10} parent=39 // pred_fallthru
        _
    $region40: #{mixed_3b_forward.10} parent=5 // pred_fallthru
      _
  $region6: #{mixed_3b_forward.10} parent=0 // loop_footer
    %s13 = sadd.s32 1, %s9
  $region7: #{mixed_3b_forward.10} parent=0 // loop_footer_branch
    %8 = sbr.rel target = $region3
  $region8: #{mixed_3b_forward.10} parent=0 // loop_exit
    _

// kernel: mixed_3b_forward.7
$region0: #{mixed_3b_forward.7}
  #allocation0 [shape = 'u32[]', space=smem, size = 0x4, offset = 0x4, fixed_abs, tag = 'smem constant byte address 0x4 - core index']
  #allocation1 [shape = 'u32[144,128]{1,0:T(1,128)}', space=vmem, size = 0x12000, scoped, tag = 'internal scratch']
  %s0 = inlined_call_operand.vmem [shape: f32[8,8,8,32], index: 0, kind: input, shape index: {}]
  %s1 = inlined_call_operand.vmem [shape: f32[288,64], index: 1, kind: input, shape index: {}]
  %s2 = inlined_call_operand.vmem [shape: f32[1,64], index: 2, kind: input, shape index: {}]
  %s3 = inlined_call_operand.vmem [shape: f32[8,8,8,64], index: 3, kind: output, shape index: {}]
  %s4 = sld [smem:[#allocation0]]
  $region22: #{mixed_3b_forward.7} parent=0
    _
  %s6 = ssub.s32 1, %s4
  %s7 = scalar_select 0, %s6, %s4
  // Predicated region
  $region2: #{mixed_3b_forward.7} parent=0 // pred_check
    _
  $region3: #{mixed_3b_forward.7} parent=0 // pred_check_branch
    %9 = sbr.rel (0) target = $region5
  $region4: #{mixed_3b_forward.7} parent=0 // pred_region
    _
  $region5: #{mixed_3b_forward.7} parent=0 // pred_fallthru
    _
  // Predicated region
  $region6: #{mixed_3b_forward.7} parent=0 // pred_check
    _
  $region7: #{mixed_3b_forward.7} parent=0 // pred_check_branch
    %11 = sbr.rel (0) target = $region9
  $region8: #{mixed_3b_forward.7} parent=0 // pred_region
    _
  $region9: #{mixed_3b_forward.7} parent=0 // pred_fallthru
    _
  // Predicated region
  $region10: #{mixed_3b_forward.7} parent=0 // pred_check
    _
  $region11: #{mixed_3b_forward.7} parent=0 // pred_check_branch
    %13 = sbr.rel (0) target = $region13
  $region12: #{mixed_3b_forward.7} parent=0 // pred_region
    _
  $region13: #{mixed_3b_forward.7} parent=0 // pred_fallthru
    _
  %v14 = vld [vmem:[%s0] sm:$0xff]
  %v15 = vld [vmem:[%s0 + $0x8] sm:$0xff]
  %v16 = vld [vmem:[%s0 + $0x10] sm:$0xff]
  %v17 = vld [vmem:[%s0 + $0x18] sm:$0xff]
  %v18 = vld [vmem:[%s0 + $0x20] sm:$0xff]
  %v19 = vld [vmem:[%s0 + $0x28] sm:$0xff]
  %v20 = vld [vmem:[%s0 + $0x30] sm:$0xff]
  %v21 = vld [vmem:[%s0 + $0x38] sm:$0xff]
  %v22 = vld [vmem:[%s0 + $0x40] sm:$0xff]
  %v23 = vld [vmem:[%s0 + $0x48] sm:$0xff]
  %v24 = vld [vmem:[%s0 + $0x50] sm:$0xff]
  %v25 = vld [vmem:[%s0 + $0x58] sm:$0xff]
  %v26 = vld [vmem:[%s0 + $0x60] sm:$0xff]
  %v27 = vld [vmem:[%s0 + $0x68] sm:$0xff]
  %v28 = vld [vmem:[%s0 + $0x70] sm:$0xff]
  %v29 = vld [vmem:[%s0 + $0x78] sm:$0xff]
  %v30 = vld [vmem:[%s0 + $0x80] sm:$0xff]
  %v31 = vld [vmem:[%s0 + $0x88] sm:$0xff]
  %v32 = vld [vmem:[%s0 + $0x90] sm:$0xff]
  %v33 = vld [vmem:[%s0 + $0x98] sm:$0xff]
  %v34 = vld [vmem:[%s0 + $0xa0] sm:$0xff]
  %v35 = vld [vmem:[%s0 + $0xa8] sm:$0xff]
  %v36 = vld [vmem:[%s0 + $0xb0] sm:$0xff]
  %v37 = vld [vmem:[%s0 + $0xb8] sm:$0xff]
  %v38 = vld [vmem:[%s0 + $0xc0] sm:$0xff]
  %v39 = vld [vmem:[%s0 + $0xc8] sm:$0xff]
  %v40 = vld [vmem:[%s0 + $0xd0] sm:$0xff]
  %v41 = vld [vmem:[%s0 + $0xd8] sm:$0xff]
  %v42 = vld [vmem:[%s0 + $0xe0] sm:$0xff]
  %v43 = vld [vmem:[%s0 + $0xe8] sm:$0xff]
  %v44 = vld [vmem:[%s0 + $0xf0] sm:$0xff]
  %v45 = vld [vmem:[%s0 + $0xf8] sm:$0xff]
  %v46 = vld [vmem:[%s0 + $0x100] sm:$0xff]
  %v47 = vld [vmem:[%s0 + $0x108] sm:$0xff]
  %v48 = vld [vmem:[%s0 + $0x110] sm:$0xff]
  %v49 = vld [vmem:[%s0 + $0x118] sm:$0xff]
  %v50 = vld [vmem:[%s0 + $0x120] sm:$0xff]
  %v51 = vld [vmem:[%s0 + $0x128] sm:$0xff]
  %v52 = vld [vmem:[%s0 + $0x130] sm:$0xff]
  %v53 = vld [vmem:[%s0 + $0x138] sm:$0xff]
  %v54 = vld [vmem:[%s0 + $0x140] sm:$0xff]
  %v55 = vld [vmem:[%s0 + $0x148] sm:$0xff]
  %v56 = vld [vmem:[%s0 + $0x150] sm:$0xff]
  %v57 = vld [vmem:[%s0 + $0x158] sm:$0xff]
  %v58 = vld [vmem:[%s0 + $0x160] sm:$0xff]
  %v59 = vld [vmem:[%s0 + $0x168] sm:$0xff]
  %v60 = vld [vmem:[%s0 + $0x170] sm:$0xff]
  %v61 = vld [vmem:[%s0 + $0x178] sm:$0xff]
  %v62 = vld [vmem:[%s0 + $0x180] sm:$0xff]
  %v63 = vld [vmem:[%s0 + $0x188] sm:$0xff]
  %v64 = vld [vmem:[%s0 + $0x190] sm:$0xff]
  %v65 = vld [vmem:[%s0 + $0x198] sm:$0xff]
  %v66 = vld [vmem:[%s0 + $0x1a0] sm:$0xff]
  %v67 = vld [vmem:[%s0 + $0x1a8] sm:$0xff]
  %v68 = vld [vmem:[%s0 + $0x1b0] sm:$0xff]
  %v69 = vld [vmem:[%s0 + $0x1b8] sm:$0xff]
  %v70 = vld [vmem:[%s0 + $0x1c0] sm:$0xff]
  %v71 = vld [vmem:[%s0 + $0x1c8] sm:$0xff]
  %v72 = vld [vmem:[%s0 + $0x1d0] sm:$0xff]
  %v73 = vld [vmem:[%s0 + $0x1d8] sm:$0xff]
  %v74 = vld [vmem:[%s0 + $0x1e0] sm:$0xff]
  %v75 = vld [vmem:[%s0 + $0x1e8] sm:$0xff]
  %v76 = vld [vmem:[%s0 + $0x1f0] sm:$0xff]
  %v77 = vld [vmem:[%s0 + $0x1f8] sm:$0xff]
  %v143 = vrot.slane 0.0, 7
  %v144 = vrot.slane %v14, 7
  %v145 = vrot.slane %v15, 7
  %v146 = vrot.slane %v16, 7
  %v147 = vrot.slane %v17, 7
  %v148 = vrot.slane %v18, 7
  %v149 = vrot.slane %v19, 7
  %v150 = vrot.slane %v20, 7
  %v151 = vrot.slane %v21, 7
  %v152 = vrot.slane %v22, 7
  %v153 = vrot.slane %v23, 7
  %v154 = vrot.slane %v24, 7
  %v155 = vrot.slane %v25, 7
  %v156 = vrot.slane %v26, 7
  %v157 = vrot.slane %v27, 7
  %v158 = vrot.slane %v28, 7
  %v159 = vrot.slane %v29, 7
  %v160 = vrot.slane %v30, 7
  %v161 = vrot.slane %v31, 7
  %v162 = vrot.slane %v32, 7
  %v163 = vrot.slane %v33, 7
  %v164 = vrot.slane %v34, 7
  %v165 = vrot.slane %v35, 7
  %v166 = vrot.slane %v36, 7
  %v167 = vrot.slane %v37, 7
  %v168 = vrot.slane %v38, 7
  %v169 = vrot.slane %v39, 7
  %v170 = vrot.slane %v40, 7
  %v171 = vrot.slane %v41, 7
  %v172 = vrot.slane %v42, 7
  %v173 = vrot.slane %v43, 7
  %v174 = vrot.slane %v44, 7
  %v175 = vrot.slane %v45, 7
  %v176 = vrot.slane %v46, 7
  %v177 = vrot.slane %v47, 7
  %v178 = vrot.slane %v48, 7
  %v179 = vrot.slane %v49, 7
  %v180 = vrot.slane %v50, 7
  %v181 = vrot.slane %v51, 7
  %v182 = vrot.slane %v52, 7
  %v183 = vrot.slane %v53, 7
  %v184 = vrot.slane %v54, 7
  %v185 = vrot.slane %v55, 7
  %v186 = vrot.slane %v56, 7
  %v187 = vrot.slane %v57, 7
  %v188 = vrot.slane %v58, 7
  %v189 = vrot.slane %v59, 7
  %v190 = vrot.slane %v60, 7
  %v191 = vrot.slane %v61, 7
  %v192 = vrot.slane %v62, 7
  %v193 = vrot.slane %v63, 7
  %v194 = vrot.slane %v64, 7
  %v195 = vrot.slane %v65, 7
  %v196 = vrot.slane %v66, 7
  %v197 = vrot.slane %v67, 7
  %v198 = vrot.slane %v68, 7
  %v199 = vrot.slane %v69, 7
  %v200 = vrot.slane %v70, 7
  %v201 = vrot.slane %v71, 7
  %v202 = vrot.slane %v72, 7
  %v203 = vrot.slane %v73, 7
  %v204 = vrot.slane %v74, 7
  %v205 = vrot.slane %v75, 7
  %v206 = vrot.slane %v76, 7
  %v207 = vrot.slane %v77, 7
  %vm273 = vcmask 1040384
  %v274 = vsel %vm273, 0.0, %v143
  %v275 = vsel %vm273, 0.0, %v144
  %v276 = vsel %vm273, 0.0, %v145
  %v277 = vsel %vm273, 0.0, %v146
  %v278 = vsel %vm273, 0.0, %v147
  %v279 = vsel %vm273, 0.0, %v148
  %v280 = vsel %vm273, 0.0, %v149
  %v281 = vsel %vm273, 0.0, %v150
  %v282 = vsel %vm273, 0.0, %v151
  %v283 = vsel %vm273, 0.0, %v152
  %v284 = vsel %vm273, 0.0, %v153
  %v285 = vsel %vm273, 0.0, %v154
  %v286 = vsel %vm273, 0.0, %v155
  %v287 = vsel %vm273, 0.0, %v156
  %v288 = vsel %vm273, 0.0, %v157
  %v289 = vsel %vm273, 0.0, %v158
  %v290 = vsel %vm273, 0.0, %v159
  %v291 = vsel %vm273, 0.0, %v160
  %v292 = vsel %vm273, 0.0, %v161
  %v293 = vsel %vm273, 0.0, %v162
  %v294 = vsel %vm273, 0.0, %v163
  %v295 = vsel %vm273, 0.0, %v164
  %v296 = vsel %vm273, 0.0, %v165
  %v297 = vsel %vm273, 0.0, %v166
  %v298 = vsel %vm273, 0.0, %v167
  %v299 = vsel %vm273, 0.0, %v168
  %v300 = vsel %vm273, 0.0, %v169
  %v301 = vsel %vm273, 0.0, %v170
  %v302 = vsel %vm273, 0.0, %v171
  %v303 = vsel %vm273, 0.0, %v172
  %v304 = vsel %vm273, 0.0, %v173
  %v305 = vsel %vm273, 0.0, %v174
  %v306 = vsel %vm273, 0.0, %v175
  %v307 = vsel %vm273, 0.0, %v176
  %v308 = vsel %vm273, 0.0, %v177
  %v309 = vsel %vm273, 0.0, %v178
  %v310 = vsel %vm273, 0.0, %v179
  %v311 = vsel %vm273, 0.0, %v180
  %v312 = vsel %vm273, 0.0, %v181
  %v313 = vsel %vm273, 0.0, %v182
  %v314 = vsel %vm273, 0.0, %v183
  %v315 = vsel %vm273, 0.0, %v184
  %v316 = vsel %vm273, 0.0, %v185
  %v317 = vsel %vm273, 0.0, %v186
  %v318 = vsel %vm273, 0.0, %v187
  %v319 = vsel %vm273, 0.0, %v188
  %v320 = vsel %vm273, 0.0, %v189
  %v321 = vsel %vm273, 0.0, %v190
  %v322 = vsel %vm273, 0.0, %v191
  %v323 = vsel %vm273, 0.0, %v192
  %v324 = vsel %vm273, 0.0, %v193
  %v325 = vsel %vm273, 0.0, %v194
  %v326 = vsel %vm273, 0.0, %v195
  %v327 = vsel %vm273, 0.0, %v196
  %v328 = vsel %vm273, 0.0, %v197
  %v329 = vsel %vm273, 0.0, %v198
  %v330 = vsel %vm273, 0.0, %v199
  %v331 = vsel %vm273, 0.0, %v200
  %v332 = vsel %vm273, 0.0, %v201
  %v333 = vsel %vm273, 0.0, %v202
  %v334 = vsel %vm273, 0.0, %v203
  %v335 = vsel %vm273, 0.0, %v204
  %v336 = vsel %vm273, 0.0, %v205
  %v337 = vsel %vm273, 0.0, %v206
  %v338 = vsel %vm273, 0.0, %v207
  %v339 = vsel %vm273, %v143, 0.0
  %v340 = vsel %vm273, %v144, 0.0
  %v341 = vsel %vm273, %v145, 0.0
  %v342 = vsel %vm273, %v146, 0.0
  %v343 = vsel %vm273, %v147, 0.0
  %v344 = vsel %vm273, %v148, 0.0
  %v345 = vsel %vm273, %v149, 0.0
  %v346 = vsel %vm273, %v150, 0.0
  %v347 = vsel %vm273, %v151, 0.0
  %v348 = vsel %vm273, %v152, 0.0
  %v349 = vsel %vm273, %v153, 0.0
  %v350 = vsel %vm273, %v154, 0.0
  %v351 = vsel %vm273, %v155, 0.0
  %v352 = vsel %vm273, %v156, 0.0
  %v353 = vsel %vm273, %v157, 0.0
  %v354 = vsel %vm273, %v158, 0.0
  %v355 = vsel %vm273, %v159, 0.0
  %v356 = vsel %vm273, %v160, 0.0
  %v357 = vsel %vm273, %v161, 0.0
  %v358 = vsel %vm273, %v162, 0.0
  %v359 = vsel %vm273, %v163, 0.0
  %v360 = vsel %vm273, %v164, 0.0
  %v361 = vsel %vm273, %v165, 0.0
  %v362 = vsel %vm273, %v166, 0.0
  %v363 = vsel %vm273, %v167, 0.0
  %v364 = vsel %vm273, %v168, 0.0
  %v365 = vsel %vm273, %v169, 0.0
  %v366 = vsel %vm273, %v170, 0.0
  %v367 = vsel %vm273, %v171, 0.0
  %v368 = vsel %vm273, %v172, 0.0
  %v369 = vsel %vm273, %v173, 0.0
  %v370 = vsel %vm273, %v174, 0.0
  %v371 = vsel %vm273, %v175, 0.0
  %v372 = vsel %vm273, %v176, 0.0
  %v373 = vsel %vm273, %v177, 0.0
  %v374 = vsel %vm273, %v178, 0.0
  %v375 = vsel %vm273, %v179, 0.0
  %v376 = vsel %vm273, %v180, 0.0
  %v377 = vsel %vm273, %v181, 0.0
  %v378 = vsel %vm273, %v182, 0.0
  %v379 = vsel %vm273, %v183, 0.0
  %v380 = vsel %vm273, %v184, 0.0
  %v381 = vsel %vm273, %v185, 0.0
  %v382 = vsel %vm273, %v186, 0.0
  %v383 = vsel %vm273, %v187, 0.0
  %v384 = vsel %vm273, %v188, 0.0
  %v385 = vsel %vm273, %v189, 0.0
  %v386 = vsel %vm273, %v190, 0.0
  %v387 = vsel %vm273, %v191, 0.0
  %v388 = vsel %vm273, %v192, 0.0
  %v389 = vsel %vm273, %v193, 0.0
  %v390 = vsel %vm273, %v194, 0.0
  %v391 = vsel %vm273, %v195, 0.0
  %v392 = vsel %vm273, %v196, 0.0
  %v393 = vsel %vm273, %v197, 0.0
  %v394 = vsel %vm273, %v198, 0.0
  %v395 = vsel %vm273, %v199, 0.0
  %v396 = vsel %vm273, %v200, 0.0
  %v397 = vsel %vm273, %v201, 0.0
  %v398 = vsel %vm273, %v202, 0.0
  %v399 = vsel %vm273, %v203, 0.0
  %v400 = vsel %vm273, %v204, 0.0
  %v401 = vsel %vm273, %v205, 0.0
  %v402 = vsel %vm273, %v206, 0.0
  %v403 = vsel %vm273, %v207, 0.0
  %vm518 = vcmask 1046528
  %v519 = vrot.slane %v274, 1
  %v520 = vrot.slane %v339, 1
  %v521 = vsel %vm518, %v519, %v520
  %v522 = vrot.slane %v275, 1
  %v523 = vrot.slane %v340, 1
  %v524 = vsel %vm518, %v522, %v523
  %v525 = vrot.slane %v276, 1
  %v526 = vrot.slane %v341, 1
  %v527 = vsel %vm518, %v525, %v526
  %v528 = vrot.slane %v277, 1
  %v529 = vrot.slane %v342, 1
  %v530 = vsel %vm518, %v528, %v529
  %v531 = vrot.slane %v278, 1
  %v532 = vrot.slane %v343, 1
  %v533 = vsel %vm518, %v531, %v532
  %v534 = vrot.slane %v279, 1
  %v535 = vrot.slane %v344, 1
  %v536 = vsel %vm518, %v534, %v535
  %v537 = vrot.slane %v280, 1
  %v538 = vrot.slane %v345, 1
  %v539 = vsel %vm518, %v537, %v538
  %v540 = vrot.slane %v281, 1
  %v541 = vrot.slane %v346, 1
  %v542 = vsel %vm518, %v540, %v541
  %v543 = vrot.slane %v283, 1
  %v544 = vrot.slane %v348, 1
  %v545 = vsel %vm518, %v543, %v544
  %v546 = vrot.slane %v284, 1
  %v547 = vrot.slane %v349, 1
  %v548 = vsel %vm518, %v546, %v547
  %v549 = vrot.slane %v285, 1
  %v550 = vrot.slane %v350, 1
  %v551 = vsel %vm518, %v549, %v550
  %v552 = vrot.slane %v286, 1
  %v553 = vrot.slane %v351, 1
  %v554 = vsel %vm518, %v552, %v553
  %v555 = vrot.slane %v287, 1
  %v556 = vrot.slane %v352, 1
  %v557 = vsel %vm518, %v555, %v556
  %v558 = vrot.slane %v288, 1
  %v559 = vrot.slane %v353, 1
  %v560 = vsel %vm518, %v558, %v559
  %v561 = vrot.slane %v289, 1
  %v562 = vrot.slane %v354, 1
  %v563 = vsel %vm518, %v561, %v562
  %v564 = vrot.slane %v291, 1
  %v565 = vrot.slane %v356, 1
  %v566 = vsel %vm518, %v564, %v565
  %v567 = vrot.slane %v292, 1
  %v568 = vrot.slane %v357, 1
  %v569 = vsel %vm518, %v567, %v568
  %v570 = vrot.slane %v293, 1
  %v571 = vrot.slane %v358, 1
  %v572 = vsel %vm518, %v570, %v571
  %v573 = vrot.slane %v294, 1
  %v574 = vrot.slane %v359, 1
  %v575 = vsel %vm518, %v573, %v574
  %v576 = vrot.slane %v295, 1
  %v577 = vrot.slane %v360, 1
  %v578 = vsel %vm518, %v576, %v577
  %v579 = vrot.slane %v296, 1
  %v580 = vrot.slane %v361, 1
  %v581 = vsel %vm518, %v579, %v580
  %v582 = vrot.slane %v297, 1
  %v583 = vrot.slane %v362, 1
  %v584 = vsel %vm518, %v582, %v583
  %v585 = vrot.slane %v299, 1
  %v586 = vrot.slane %v364, 1
  %v587 = vsel %vm518, %v585, %v586
  %v588 = vrot.slane %v300, 1
  %v589 = vrot.slane %v365, 1
  %v590 = vsel %vm518, %v588, %v589
  %v591 = vrot.slane %v301, 1
  %v592 = vrot.slane %v366, 1
  %v593 = vsel %vm518, %v591, %v592
  %v594 = vrot.slane %v302, 1
  %v595 = vrot.slane %v367, 1
  %v596 = vsel %vm518, %v594, %v595
  %v597 = vrot.slane %v303, 1
  %v598 = vrot.slane %v368, 1
  %v599 = vsel %vm518, %v597, %v598
  %v600 = vrot.slane %v304, 1
  %v601 = vrot.slane %v369, 1
  %v602 = vsel %vm518, %v600, %v601
  %v603 = vrot.slane %v305, 1
  %v604 = vrot.slane %v370, 1
  %v605 = vsel %vm518, %v603, %v604
  %v606 = vrot.slane %v307, 1
  %v607 = vrot.slane %v372, 1
  %v608 = vsel %vm518, %v606, %v607
  %v609 = vrot.slane %v308, 1
  %v610 = vrot.slane %v373, 1
  %v611 = vsel %vm518, %v609, %v610
  %v612 = vrot.slane %v309, 1
  %v613 = vrot.slane %v374, 1
  %v614 = vsel %vm518, %v612, %v613
  %v615 = vrot.slane %v310, 1
  %v616 = vrot.slane %v375, 1
  %v617 = vsel %vm518, %v615, %v616
  %v618 = vrot.slane %v311, 1
  %v619 = vrot.slane %v376, 1
  %v620 = vsel %vm518, %v618, %v619
  %v621 = vrot.slane %v312, 1
  %v622 = vrot.slane %v377, 1
  %v623 = vsel %vm518, %v621, %v622
  %v624 = vrot.slane %v313, 1
  %v625 = vrot.slane %v378, 1
  %v626 = vsel %vm518, %v624, %v625
  %v627 = vrot.slane %v315, 1
  %v628 = vrot.slane %v380, 1
  %v629 = vsel %vm518, %v627, %v628
  %v630 = vrot.slane %v316, 1
  %v631 = vrot.slane %v381, 1
  %v632 = vsel %vm518, %v630, %v631
  %v633 = vrot.slane %v317, 1
  %v634 = vrot.slane %v382, 1
  %v635 = vsel %vm518, %v633, %v634
  %v636 = vrot.slane %v318, 1
  %v637 = vrot.slane %v383, 1
  %v638 = vsel %vm518, %v636, %v637
  %v639 = vrot.slane %v319, 1
  %v640 = vrot.slane %v384, 1
  %v641 = vsel %vm518, %v639, %v640
  %v642 = vrot.slane %v320, 1
  %v643 = vrot.slane %v385, 1
  %v644 = vsel %vm518, %v642, %v643
  %v645 = vrot.slane %v321, 1
  %v646 = vrot.slane %v386, 1
  %v647 = vsel %vm518, %v645, %v646
  %v648 = vrot.slane %v323, 1
  %v649 = vrot.slane %v388, 1
  %v650 = vsel %vm518, %v648, %v649
  %v651 = vrot.slane %v324, 1
  %v652 = vrot.slane %v389, 1
  %v653 = vsel %vm518, %v651, %v652
  %v654 = vrot.slane %v325, 1
  %v655 = vrot.slane %v390, 1
  %v656 = vsel %vm518, %v654, %v655
  %v657 = vrot.slane %v326, 1
  %v658 = vrot.slane %v391, 1
  %v659 = vsel %vm518, %v657, %v658
  %v660 = vrot.slane %v327, 1
  %v661 = vrot.slane %v392, 1
  %v662 = vsel %vm518, %v660, %v661
  %v663 = vrot.slane %v328, 1
  %v664 = vrot.slane %v393, 1
  %v665 = vsel %vm518, %v663, %v664
  %v666 = vrot.slane %v329, 1
  %v667 = vrot.slane %v394, 1
  %v668 = vsel %vm518, %v666, %v667
  %v669 = vrot.slane %v331, 1
  %v670 = vrot.slane %v396, 1
  %v671 = vsel %vm518, %v669, %v670
  %v672 = vrot.slane %v332, 1
  %v673 = vrot.slane %v397, 1
  %v674 = vsel %vm518, %v672, %v673
  %v675 = vrot.slane %v333, 1
  %v676 = vrot.slane %v398, 1
  %v677 = vsel %vm518, %v675, %v676
  %v678 = vrot.slane %v334, 1
  %v679 = vrot.slane %v399, 1
  %v680 = vsel %vm518, %v678, %v679
  %v681 = vrot.slane %v335, 1
  %v682 = vrot.slane %v400, 1
  %v683 = vsel %vm518, %v681, %v682
  %v684 = vrot.slane %v336, 1
  %v685 = vrot.slane %v401, 1
  %v686 = vsel %vm518, %v684, %v685
  %v687 = vrot.slane %v337, 1
  %v688 = vrot.slane %v402, 1
  %v689 = vsel %vm518, %v687, %v688
  %vm690 = vcmask 1045504
  %v691 = vrot.slane %v274, 2
  %v692 = vrot.slane %v339, 2
  %v693 = vsel %vm690, %v691, %v692
  %v694 = vrot.slane %v275, 2
  %v695 = vrot.slane %v340, 2
  %v696 = vsel %vm690, %v694, %v695
  %v697 = vrot.slane %v276, 2
  %v698 = vrot.slane %v341, 2
  %v699 = vsel %vm690, %v697, %v698
  %v700 = vrot.slane %v277, 2
  %v701 = vrot.slane %v342, 2
  %v702 = vsel %vm690, %v700, %v701
  %v703 = vrot.slane %v278, 2
  %v704 = vrot.slane %v343, 2
  %v705 = vsel %vm690, %v703, %v704
  %v706 = vrot.slane %v279, 2
  %v707 = vrot.slane %v344, 2
  %v708 = vsel %vm690, %v706, %v707
  %v709 = vrot.slane %v280, 2
  %v710 = vrot.slane %v345, 2
  %v711 = vsel %vm690, %v709, %v710
  %v712 = vrot.slane %v281, 2
  %v713 = vrot.slane %v346, 2
  %v714 = vsel %vm690, %v712, %v713
  %v715 = vrot.slane %v283, 2
  %v716 = vrot.slane %v348, 2
  %v717 = vsel %vm690, %v715, %v716
  %v718 = vrot.slane %v284, 2
  %v719 = vrot.slane %v349, 2
  %v720 = vsel %vm690, %v718, %v719
  %v721 = vrot.slane %v285, 2
  %v722 = vrot.slane %v350, 2
  %v723 = vsel %vm690, %v721, %v722
  %v724 = vrot.slane %v286, 2
  %v725 = vrot.slane %v351, 2
  %v726 = vsel %vm690, %v724, %v725
  %v727 = vrot.slane %v287, 2
  %v728 = vrot.slane %v352, 2
  %v729 = vsel %vm690, %v727, %v728
  %v730 = vrot.slane %v288, 2
  %v731 = vrot.slane %v353, 2
  %v732 = vsel %vm690, %v730, %v731
  %v733 = vrot.slane %v289, 2
  %v734 = vrot.slane %v354, 2
  %v735 = vsel %vm690, %v733, %v734
  %v736 = vrot.slane %v291, 2
  %v737 = vrot.slane %v356, 2
  %v738 = vsel %vm690, %v736, %v737
  %v739 = vrot.slane %v292, 2
  %v740 = vrot.slane %v357, 2
  %v741 = vsel %vm690, %v739, %v740
  %v742 = vrot.slane %v293, 2
  %v743 = vrot.slane %v358, 2
  %v744 = vsel %vm690, %v742, %v743
  %v745 = vrot.slane %v294, 2
  %v746 = vrot.slane %v359, 2
  %v747 = vsel %vm690, %v745, %v746
  %v748 = vrot.slane %v295, 2
  %v749 = vrot.slane %v360, 2
  %v750 = vsel %vm690, %v748, %v749
  %v751 = vrot.slane %v296, 2
  %v752 = vrot.slane %v361, 2
  %v753 = vsel %vm690, %v751, %v752
  %v754 = vrot.slane %v297, 2
  %v755 = vrot.slane %v362, 2
  %v756 = vsel %vm690, %v754, %v755
  %v757 = vrot.slane %v299, 2
  %v758 = vrot.slane %v364, 2
  %v759 = vsel %vm690, %v757, %v758
  %v760 = vrot.slane %v300, 2
  %v761 = vrot.slane %v365, 2
  %v762 = vsel %vm690, %v760, %v761
  %v763 = vrot.slane %v301, 2
  %v764 = vrot.slane %v366, 2
  %v765 = vsel %vm690, %v763, %v764
  %v766 = vrot.slane %v302, 2
  %v767 = vrot.slane %v367, 2
  %v768 = vsel %vm690, %v766, %v767
  %v769 = vrot.slane %v303, 2
  %v770 = vrot.slane %v368, 2
  %v771 = vsel %vm690, %v769, %v770
  %v772 = vrot.slane %v304, 2
  %v773 = vrot.slane %v369, 2
  %v774 = vsel %vm690, %v772, %v773
  %v775 = vrot.slane %v305, 2
  %v776 = vrot.slane %v370, 2
  %v777 = vsel %vm690, %v775, %v776
  %v778 = vrot.slane %v307, 2
  %v779 = vrot.slane %v372, 2
  %v780 = vsel %vm690, %v778, %v779
  %v781 = vrot.slane %v308, 2
  %v782 = vrot.slane %v373, 2
  %v783 = vsel %vm690, %v781, %v782
  %v784 = vrot.slane %v309, 2
  %v785 = vrot.slane %v374, 2
  %v786 = vsel %vm690, %v784, %v785
  %v787 = vrot.slane %v310, 2
  %v788 = vrot.slane %v375, 2
  %v789 = vsel %vm690, %v787, %v788
  %v790 = vrot.slane %v311, 2
  %v791 = vrot.slane %v376, 2
  %v792 = vsel %vm690, %v790, %v791
  %v793 = vrot.slane %v312, 2
  %v794 = vrot.slane %v377, 2
  %v795 = vsel %vm690, %v793, %v794
  %v796 = vrot.slane %v313, 2
  %v797 = vrot.slane %v378, 2
  %v798 = vsel %vm690, %v796, %v797
  %v799 = vrot.slane %v315, 2
  %v800 = vrot.slane %v380, 2
  %v801 = vsel %vm690, %v799, %v800
  %v802 = vrot.slane %v316, 2
  %v803 = vrot.slane %v381, 2
  %v804 = vsel %vm690, %v802, %v803
  %v805 = vrot.slane %v317, 2
  %v806 = vrot.slane %v382, 2
  %v807 = vsel %vm690, %v805, %v806
  %v808 = vrot.slane %v318, 2
  %v809 = vrot.slane %v383, 2
  %v810 = vsel %vm690, %v808, %v809
  %v811 = vrot.slane %v319, 2
  %v812 = vrot.slane %v384, 2
  %v813 = vsel %vm690, %v811, %v812
  %v814 = vrot.slane %v320, 2
  %v815 = vrot.slane %v385, 2
  %v816 = vsel %vm690, %v814, %v815
  %v817 = vrot.slane %v321, 2
  %v818 = vrot.slane %v386, 2
  %v819 = vsel %vm690, %v817, %v818
  %v820 = vrot.slane %v323, 2
  %v821 = vrot.slane %v388, 2
  %v822 = vsel %vm690, %v820, %v821
  %v823 = vrot.slane %v324, 2
  %v824 = vrot.slane %v389, 2
  %v825 = vsel %vm690, %v823, %v824
  %v826 = vrot.slane %v325, 2
  %v827 = vrot.slane %v390, 2
  %v828 = vsel %vm690, %v826, %v827
  %v829 = vrot.slane %v326, 2
  %v830 = vrot.slane %v391, 2
  %v831 = vsel %vm690, %v829, %v830
  %v832 = vrot.slane %v327, 2
  %v833 = vrot.slane %v392, 2
  %v834 = vsel %vm690, %v832, %v833
  %v835 = vrot.slane %v328, 2
  %v836 = vrot.slane %v393, 2
  %v837 = vsel %vm690, %v835, %v836
  %v838 = vrot.slane %v329, 2
  %v839 = vrot.slane %v394, 2
  %v840 = vsel %vm690, %v838, %v839
  %v841 = vrot.slane %v331, 2
  %v842 = vrot.slane %v396, 2
  %v843 = vsel %vm690, %v841, %v842
  %v844 = vrot.slane %v332, 2
  %v845 = vrot.slane %v397, 2
  %v846 = vsel %vm690, %v844, %v845
  %v847 = vrot.slane %v333, 2
  %v848 = vrot.slane %v398, 2
  %v849 = vsel %vm690, %v847, %v848
  %v850 = vrot.slane %v334, 2
  %v851 = vrot.slane %v399, 2
  %v852 = vsel %vm690, %v850, %v851
  %v853 = vrot.slane %v335, 2
  %v854 = vrot.slane %v400, 2
  %v855 = vsel %vm690, %v853, %v854
  %v856 = vrot.slane %v336, 2
  %v857 = vrot.slane %v401, 2
  %v858 = vsel %vm690, %v856, %v857
  %v859 = vrot.slane %v337, 2
  %v860 = vrot.slane %v402, 2
  %v861 = vsel %vm690, %v859, %v860
  %v878 = vrot.slane %v282, 1
  %v879 = vrot.slane %v347, 1
  %v880 = vsel %vm518, %v878, %v879
  %v881 = vrot.slane %v290, 1
  %v882 = vrot.slane %v355, 1
  %v883 = vsel %vm518, %v881, %v882
  %v884 = vrot.slane %v298, 1
  %v885 = vrot.slane %v363, 1
  %v886 = vsel %vm518, %v884, %v885
  %v887 = vrot.slane %v306, 1
  %v888 = vrot.slane %v371, 1
  %v889 = vsel %vm518, %v887, %v888
  %v890 = vrot.slane %v314, 1
  %v891 = vrot.slane %v379, 1
  %v892 = vsel %vm518, %v890, %v891
  %v893 = vrot.slane %v322, 1
  %v894 = vrot.slane %v387, 1
  %v895 = vsel %vm518, %v893, %v894
  %v896 = vrot.slane %v330, 1
  %v897 = vrot.slane %v395, 1
  %v898 = vsel %vm518, %v896, %v897
  %v899 = vrot.slane %v338, 1
  %v900 = vrot.slane %v403, 1
  %v901 = vsel %vm518, %v899, %v900
  %v966 = vrot.slane %v282, 2
  %v967 = vrot.slane %v347, 2
  %v968 = vsel %vm690, %v966, %v967
  %v969 = vrot.slane %v290, 2
  %v970 = vrot.slane %v355, 2
  %v971 = vsel %vm690, %v969, %v970
  %v972 = vrot.slane %v298, 2
  %v973 = vrot.slane %v363, 2
  %v974 = vsel %vm690, %v972, %v973
  %v975 = vrot.slane %v306, 2
  %v976 = vrot.slane %v371, 2
  %v977 = vsel %vm690, %v975, %v976
  %v978 = vrot.slane %v314, 2
  %v979 = vrot.slane %v379, 2
  %v980 = vsel %vm690, %v978, %v979
  %v981 = vrot.slane %v322, 2
  %v982 = vrot.slane %v387, 2
  %v983 = vsel %vm690, %v981, %v982
  %v984 = vrot.slane %v330, 2
  %v985 = vrot.slane %v395, 2
  %v986 = vsel %vm690, %v984, %v985
  %v987 = vrot.slane %v338, 2
  %v988 = vrot.slane %v403, 2
  %v989 = vsel %vm690, %v987, %v988
  %990 = vrot.lane.b32.xlu0 %v521, 32
  %v991 = vpop.permute.xlu0 %990
  %992 = vrot.lane.b32.xlu0 %v524, 32
  %v993 = vpop.permute.xlu0 %992
  %994 = vrot.lane.b32.xlu0 %v527, 32
  %v995 = vpop.permute.xlu0 %994
  %996 = vrot.lane.b32.xlu0 %v530, 32
  %v997 = vpop.permute.xlu0 %996
  %998 = vrot.lane.b32.xlu0 %v533, 32
  %v999 = vpop.permute.xlu0 %998
  %1000 = vrot.lane.b32.xlu0 %v536, 32
  %v1001 = vpop.permute.xlu0 %1000
  %1002 = vrot.lane.b32.xlu0 %v539, 32
  %v1003 = vpop.permute.xlu0 %1002
  %1004 = vrot.lane.b32.xlu0 %v542, 32
  %v1005 = vpop.permute.xlu0 %1004
  %1006 = vrot.lane.b32.xlu0 %v545, 32
  %v1007 = vpop.permute.xlu0 %1006
  %1008 = vrot.lane.b32.xlu0 %v548, 32
  %v1009 = vpop.permute.xlu0 %1008
  %1010 = vrot.lane.b32.xlu0 %v551, 32
  %v1011 = vpop.permute.xlu0 %1010
  %1012 = vrot.lane.b32.xlu0 %v554, 32
  %v1013 = vpop.permute.xlu0 %1012
  %1014 = vrot.lane.b32.xlu0 %v557, 32
  %v1015 = vpop.permute.xlu0 %1014
  %1016 = vrot.lane.b32.xlu0 %v560, 32
  %v1017 = vpop.permute.xlu0 %1016
  %1018 = vrot.lane.b32.xlu0 %v563, 32
  %v1019 = vpop.permute.xlu0 %1018
  %1020 = vrot.lane.b32.xlu0 %v566, 32
  %v1021 = vpop.permute.xlu0 %1020
  %1022 = vrot.lane.b32.xlu0 %v569, 32
  %v1023 = vpop.permute.xlu0 %1022
  %1024 = vrot.lane.b32.xlu0 %v572, 32
  %v1025 = vpop.permute.xlu0 %1024
  %1026 = vrot.lane.b32.xlu0 %v575, 32
  %v1027 = vpop.permute.xlu0 %1026
  %1028 = vrot.lane.b32.xlu0 %v578, 32
  %v1029 = vpop.permute.xlu0 %1028
  %1030 = vrot.lane.b32.xlu0 %v581, 32
  %v1031 = vpop.permute.xlu0 %1030
  %1032 = vrot.lane.b32.xlu0 %v584, 32
  %v1033 = vpop.permute.xlu0 %1032
  %1034 = vrot.lane.b32.xlu0 %v587, 32
  %v1035 = vpop.permute.xlu0 %1034
  %1036 = vrot.lane.b32.xlu0 %v590, 32
  %v1037 = vpop.permute.xlu0 %1036
  %1038 = vrot.lane.b32.xlu0 %v593, 32
  %v1039 = vpop.permute.xlu0 %1038
  %1040 = vrot.lane.b32.xlu0 %v596, 32
  %v1041 = vpop.permute.xlu0 %1040
  %1042 = vrot.lane.b32.xlu0 %v599, 32
  %v1043 = vpop.permute.xlu0 %1042
  %1044 = vrot.lane.b32.xlu0 %v602, 32
  %v1045 = vpop.permute.xlu0 %1044
  %1046 = vrot.lane.b32.xlu0 %v605, 32
  %v1047 = vpop.permute.xlu0 %1046
  %1048 = vrot.lane.b32.xlu0 %v608, 32
  %v1049 = vpop.permute.xlu0 %1048
  %1050 = vrot.lane.b32.xlu0 %v611, 32
  %v1051 = vpop.permute.xlu0 %1050
  %1052 = vrot.lane.b32.xlu0 %v614, 32
  %v1053 = vpop.permute.xlu0 %1052
  %1054 = vrot.lane.b32.xlu0 %v617, 32
  %v1055 = vpop.permute.xlu0 %1054
  %1056 = vrot.lane.b32.xlu0 %v620, 32
  %v1057 = vpop.permute.xlu0 %1056
  %1058 = vrot.lane.b32.xlu0 %v623, 32
  %v1059 = vpop.permute.xlu0 %1058
  %1060 = vrot.lane.b32.xlu0 %v626, 32
  %v1061 = vpop.permute.xlu0 %1060
  %1062 = vrot.lane.b32.xlu0 %v629, 32
  %v1063 = vpop.permute.xlu0 %1062
  %1064 = vrot.lane.b32.xlu0 %v632, 32
  %v1065 = vpop.permute.xlu0 %1064
  %1066 = vrot.lane.b32.xlu0 %v635, 32
  %v1067 = vpop.permute.xlu0 %1066
  %1068 = vrot.lane.b32.xlu0 %v638, 32
  %v1069 = vpop.permute.xlu0 %1068
  %1070 = vrot.lane.b32.xlu0 %v641, 32
  %v1071 = vpop.permute.xlu0 %1070
  %1072 = vrot.lane.b32.xlu0 %v644, 32
  %v1073 = vpop.permute.xlu0 %1072
  %1074 = vrot.lane.b32.xlu0 %v647, 32
  %v1075 = vpop.permute.xlu0 %1074
  %1076 = vrot.lane.b32.xlu0 %v650, 32
  %v1077 = vpop.permute.xlu0 %1076
  %1078 = vrot.lane.b32.xlu0 %v653, 32
  %v1079 = vpop.permute.xlu0 %1078
  %1080 = vrot.lane.b32.xlu0 %v656, 32
  %v1081 = vpop.permute.xlu0 %1080
  %1082 = vrot.lane.b32.xlu0 %v659, 32
  %v1083 = vpop.permute.xlu0 %1082
  %1084 = vrot.lane.b32.xlu0 %v662, 32
  %v1085 = vpop.permute.xlu0 %1084
  %1086 = vrot.lane.b32.xlu0 %v665, 32
  %v1087 = vpop.permute.xlu0 %1086
  %1088 = vrot.lane.b32.xlu0 %v668, 32
  %v1089 = vpop.permute.xlu0 %1088
  %1090 = vrot.lane.b32.xlu0 %v671, 32
  %v1091 = vpop.permute.xlu0 %1090
  %1092 = vrot.lane.b32.xlu0 %v674, 32
  %v1093 = vpop.permute.xlu0 %1092
  %1094 = vrot.lane.b32.xlu0 %v677, 32
  %v1095 = vpop.permute.xlu0 %1094
  %1096 = vrot.lane.b32.xlu0 %v680, 32
  %v1097 = vpop.permute.xlu0 %1096
  %1098 = vrot.lane.b32.xlu0 %v683, 32
  %v1099 = vpop.permute.xlu0 %1098
  %1100 = vrot.lane.b32.xlu0 %v686, 32
  %v1101 = vpop.permute.xlu0 %1100
  %1102 = vrot.lane.b32.xlu0 %v689, 32
  %v1103 = vpop.permute.xlu0 %1102
  %1161 = vrot.lane.b32.xlu0 %v693, 64
  %v1162 = vpop.permute.xlu0 %1161
  %1163 = vrot.lane.b32.xlu0 %v696, 64
  %v1164 = vpop.permute.xlu0 %1163
  %1165 = vrot.lane.b32.xlu0 %v699, 64
  %v1166 = vpop.permute.xlu0 %1165
  %1167 = vrot.lane.b32.xlu0 %v702, 64
  %v1168 = vpop.permute.xlu0 %1167
  %1169 = vrot.lane.b32.xlu0 %v705, 64
  %v1170 = vpop.permute.xlu0 %1169
  %1171 = vrot.lane.b32.xlu0 %v708, 64
  %v1172 = vpop.permute.xlu0 %1171
  %1173 = vrot.lane.b32.xlu0 %v711, 64
  %v1174 = vpop.permute.xlu0 %1173
  %1175 = vrot.lane.b32.xlu0 %v714, 64
  %v1176 = vpop.permute.xlu0 %1175
  %1177 = vrot.lane.b32.xlu0 %v717, 64
  %v1178 = vpop.permute.xlu0 %1177
  %1179 = vrot.lane.b32.xlu0 %v720, 64
  %v1180 = vpop.permute.xlu0 %1179
  %1181 = vrot.lane.b32.xlu0 %v723, 64
  %v1182 = vpop.permute.xlu0 %1181
  %1183 = vrot.lane.b32.xlu0 %v726, 64
  %v1184 = vpop.permute.xlu0 %1183
  %1185 = vrot.lane.b32.xlu0 %v729, 64
  %v1186 = vpop.permute.xlu0 %1185
  %1187 = vrot.lane.b32.xlu0 %v732, 64
  %v1188 = vpop.permute.xlu0 %1187
  %1189 = vrot.lane.b32.xlu0 %v735, 64
  %v1190 = vpop.permute.xlu0 %1189
  %1191 = vrot.lane.b32.xlu0 %v738, 64
  %v1192 = vpop.permute.xlu0 %1191
  %1193 = vrot.lane.b32.xlu0 %v741, 64
  %v1194 = vpop.permute.xlu0 %1193
  %1195 = vrot.lane.b32.xlu0 %v744, 64
  %v1196 = vpop.permute.xlu0 %1195
  %1197 = vrot.lane.b32.xlu0 %v747, 64
  %v1198 = vpop.permute.xlu0 %1197
  %1199 = vrot.lane.b32.xlu0 %v750, 64
  %v1200 = vpop.permute.xlu0 %1199
  %1201 = vrot.lane.b32.xlu0 %v753, 64
  %v1202 = vpop.permute.xlu0 %1201
  %1203 = vrot.lane.b32.xlu0 %v756, 64
  %v1204 = vpop.permute.xlu0 %1203
  %1205 = vrot.lane.b32.xlu0 %v759, 64
  %v1206 = vpop.permute.xlu0 %1205
  %1207 = vrot.lane.b32.xlu0 %v762, 64
  %v1208 = vpop.permute.xlu0 %1207
  %1209 = vrot.lane.b32.xlu0 %v765, 64
  %v1210 = vpop.permute.xlu0 %1209
  %1211 = vrot.lane.b32.xlu0 %v768, 64
  %v1212 = vpop.permute.xlu0 %1211
  %1213 = vrot.lane.b32.xlu0 %v771, 64
  %v1214 = vpop.permute.xlu0 %1213
  %1215 = vrot.lane.b32.xlu0 %v774, 64
  %v1216 = vpop.permute.xlu0 %1215
  %1217 = vrot.lane.b32.xlu0 %v777, 64
  %v1218 = vpop.permute.xlu0 %1217
  %1219 = vrot.lane.b32.xlu0 %v780, 64
  %v1220 = vpop.permute.xlu0 %1219
  %1221 = vrot.lane.b32.xlu0 %v783, 64
  %v1222 = vpop.permute.xlu0 %1221
  %1223 = vrot.lane.b32.xlu0 %v786, 64
  %v1224 = vpop.permute.xlu0 %1223
  %1225 = vrot.lane.b32.xlu0 %v789, 64
  %v1226 = vpop.permute.xlu0 %1225
  %1227 = vrot.lane.b32.xlu0 %v792, 64
  %v1228 = vpop.permute.xlu0 %1227
  %1229 = vrot.lane.b32.xlu0 %v795, 64
  %v1230 = vpop.permute.xlu0 %1229
  %1231 = vrot.lane.b32.xlu0 %v798, 64
  %v1232 = vpop.permute.xlu0 %1231
  %1233 = vrot.lane.b32.xlu0 %v801, 64
  %v1234 = vpop.permute.xlu0 %1233
  %1235 = vrot.lane.b32.xlu0 %v804, 64
  %v1236 = vpop.permute.xlu0 %1235
  %1237 = vrot.lane.b32.xlu0 %v807, 64
  %v1238 = vpop.permute.xlu0 %1237
  %1239 = vrot.lane.b32.xlu0 %v810, 64
  %v1240 = vpop.permute.xlu0 %1239
  %1241 = vrot.lane.b32.xlu0 %v813, 64
  %v1242 = vpop.permute.xlu0 %1241
  %1243 = vrot.lane.b32.xlu0 %v816, 64
  %v1244 = vpop.permute.xlu0 %1243
  %1245 = vrot.lane.b32.xlu0 %v819, 64
  %v1246 = vpop.permute.xlu0 %1245
  %1247 = vrot.lane.b32.xlu0 %v822, 64
  %v1248 = vpop.permute.xlu0 %1247
  %1249 = vrot.lane.b32.xlu0 %v825, 64
  %v1250 = vpop.permute.xlu0 %1249
  %1251 = vrot.lane.b32.xlu0 %v828, 64
  %v1252 = vpop.permute.xlu0 %1251
  %1253 = vrot.lane.b32.xlu0 %v831, 64
  %v1254 = vpop.permute.xlu0 %1253
  %1255 = vrot.lane.b32.xlu0 %v834, 64
  %v1256 = vpop.permute.xlu0 %1255
  %1257 = vrot.lane.b32.xlu0 %v837, 64
  %v1258 = vpop.permute.xlu0 %1257
  %1259 = vrot.lane.b32.xlu0 %v840, 64
  %v1260 = vpop.permute.xlu0 %1259
  %1261 = vrot.lane.b32.xlu0 %v843, 64
  %v1262 = vpop.permute.xlu0 %1261
  %1263 = vrot.lane.b32.xlu0 %v846, 64
  %v1264 = vpop.permute.xlu0 %1263
  %1265 = vrot.lane.b32.xlu0 %v849, 64
  %v1266 = vpop.permute.xlu0 %1265
  %1267 = vrot.lane.b32.xlu0 %v852, 64
  %v1268 = vpop.permute.xlu0 %1267
  %1269 = vrot.lane.b32.xlu0 %v855, 64
  %v1270 = vpop.permute.xlu0 %1269
  %1271 = vrot.lane.b32.xlu0 %v858, 64
  %v1272 = vpop.permute.xlu0 %1271
  %1273 = vrot.lane.b32.xlu0 %v861, 64
  %v1274 = vpop.permute.xlu0 %1273
  %1332 = vrot.lane.b32.xlu0 %v275, 96
  %v1333 = vpop.permute.xlu0 %1332
  %1334 = vrot.lane.b32.xlu0 %v276, 96
  %v1335 = vpop.permute.xlu0 %1334
  %1336 = vrot.lane.b32.xlu0 %v277, 96
  %v1337 = vpop.permute.xlu0 %1336
  %1338 = vrot.lane.b32.xlu0 %v278, 96
  %v1339 = vpop.permute.xlu0 %1338
  %1340 = vrot.lane.b32.xlu0 %v279, 96
  %v1341 = vpop.permute.xlu0 %1340
  %1342 = vrot.lane.b32.xlu0 %v280, 96
  %v1343 = vpop.permute.xlu0 %1342
  %1344 = vrot.lane.b32.xlu0 %v281, 96
  %v1345 = vpop.permute.xlu0 %1344
  %1346 = vrot.lane.b32.xlu0 %v282, 96
  %v1347 = vpop.permute.xlu0 %1346
  %1348 = vrot.lane.b32.xlu0 %v283, 96
  %v1349 = vpop.permute.xlu0 %1348
  %1350 = vrot.lane.b32.xlu0 %v284, 96
  %v1351 = vpop.permute.xlu0 %1350
  %1352 = vrot.lane.b32.xlu0 %v285, 96
  %v1353 = vpop.permute.xlu0 %1352
  %1354 = vrot.lane.b32.xlu0 %v286, 96
  %v1355 = vpop.permute.xlu0 %1354
  %1356 = vrot.lane.b32.xlu0 %v287, 96
  %v1357 = vpop.permute.xlu0 %1356
  %1358 = vrot.lane.b32.xlu0 %v288, 96
  %v1359 = vpop.permute.xlu0 %1358
  %1360 = vrot.lane.b32.xlu0 %v289, 96
  %v1361 = vpop.permute.xlu0 %1360
  %1362 = vrot.lane.b32.xlu0 %v290, 96
  %v1363 = vpop.permute.xlu0 %1362
  %1364 = vrot.lane.b32.xlu0 %v291, 96
  %v1365 = vpop.permute.xlu0 %1364
  %1366 = vrot.lane.b32.xlu0 %v292, 96
  %v1367 = vpop.permute.xlu0 %1366
  %1368 = vrot.lane.b32.xlu0 %v293, 96
  %v1369 = vpop.permute.xlu0 %1368
  %1370 = vrot.lane.b32.xlu0 %v294, 96
  %v1371 = vpop.permute.xlu0 %1370
  %1372 = vrot.lane.b32.xlu0 %v295, 96
  %v1373 = vpop.permute.xlu0 %1372
  %1374 = vrot.lane.b32.xlu0 %v296, 96
  %v1375 = vpop.permute.xlu0 %1374
  %1376 = vrot.lane.b32.xlu0 %v297, 96
  %v1377 = vpop.permute.xlu0 %1376
  %1378 = vrot.lane.b32.xlu0 %v298, 96
  %v1379 = vpop.permute.xlu0 %1378
  %1380 = vrot.lane.b32.xlu0 %v299, 96
  %v1381 = vpop.permute.xlu0 %1380
  %1382 = vrot.lane.b32.xlu0 %v300, 96
  %v1383 = vpop.permute.xlu0 %1382
  %1384 = vrot.lane.b32.xlu0 %v301, 96
  %v1385 = vpop.permute.xlu0 %1384
  %1386 = vrot.lane.b32.xlu0 %v302, 96
  %v1387 = vpop.permute.xlu0 %1386
  %1388 = vrot.lane.b32.xlu0 %v303, 96
  %v1389 = vpop.permute.xlu0 %1388
  %1390 = vrot.lane.b32.xlu0 %v304, 96
  %v1391 = vpop.permute.xlu0 %1390
  %1392 = vrot.lane.b32.xlu0 %v305, 96
  %v1393 = vpop.permute.xlu0 %1392
  %1394 = vrot.lane.b32.xlu0 %v306, 96
  %v1395 = vpop.permute.xlu0 %1394
  %1396 = vrot.lane.b32.xlu0 %v307, 96
  %v1397 = vpop.permute.xlu0 %1396
  %1398 = vrot.lane.b32.xlu0 %v308, 96
  %v1399 = vpop.permute.xlu0 %1398
  %1400 = vrot.lane.b32.xlu0 %v309, 96
  %v1401 = vpop.permute.xlu0 %1400
  %1402 = vrot.lane.b32.xlu0 %v310, 96
  %v1403 = vpop.permute.xlu0 %1402
  %1404 = vrot.lane.b32.xlu0 %v311, 96
  %v1405 = vpop.permute.xlu0 %1404
  %1406 = vrot.lane.b32.xlu0 %v312, 96
  %v1407 = vpop.permute.xlu0 %1406
  %1408 = vrot.lane.b32.xlu0 %v313, 96
  %v1409 = vpop.permute.xlu0 %1408
  %1410 = vrot.lane.b32.xlu0 %v314, 96
  %v1411 = vpop.permute.xlu0 %1410
  %1412 = vrot.lane.b32.xlu0 %v315, 96
  %v1413 = vpop.permute.xlu0 %1412
  %1414 = vrot.lane.b32.xlu0 %v316, 96
  %v1415 = vpop.permute.xlu0 %1414
  %1416 = vrot.lane.b32.xlu0 %v317, 96
  %v1417 = vpop.permute.xlu0 %1416
  %1418 = vrot.lane.b32.xlu0 %v318, 96
  %v1419 = vpop.permute.xlu0 %1418
  %1420 = vrot.lane.b32.xlu0 %v319, 96
  %v1421 = vpop.permute.xlu0 %1420
  %1422 = vrot.lane.b32.xlu0 %v320, 96
  %v1423 = vpop.permute.xlu0 %1422
  %1424 = vrot.lane.b32.xlu0 %v321, 96
  %v1425 = vpop.permute.xlu0 %1424
  %1426 = vrot.lane.b32.xlu0 %v322, 96
  %v1427 = vpop.permute.xlu0 %1426
  %1428 = vrot.lane.b32.xlu0 %v323, 96
  %v1429 = vpop.permute.xlu0 %1428
  %1430 = vrot.lane.b32.xlu0 %v324, 96
  %v1431 = vpop.permute.xlu0 %1430
  %1432 = vrot.lane.b32.xlu0 %v325, 96
  %v1433 = vpop.permute.xlu0 %1432
  %1434 = vrot.lane.b32.xlu0 %v326, 96
  %v1435 = vpop.permute.xlu0 %1434
  %1436 = vrot.lane.b32.xlu0 %v327, 96
  %v1437 = vpop.permute.xlu0 %1436
  %1438 = vrot.lane.b32.xlu0 %v328, 96
  %v1439 = vpop.permute.xlu0 %1438
  %1440 = vrot.lane.b32.xlu0 %v329, 96
  %v1441 = vpop.permute.xlu0 %1440
  %1442 = vrot.lane.b32.xlu0 %v330, 96
  %v1443 = vpop.permute.xlu0 %1442
  %1444 = vrot.lane.b32.xlu0 %v331, 96
  %v1445 = vpop.permute.xlu0 %1444
  %1446 = vrot.lane.b32.xlu0 %v332, 96
  %v1447 = vpop.permute.xlu0 %1446
  %1448 = vrot.lane.b32.xlu0 %v333, 96
  %v1449 = vpop.permute.xlu0 %1448
  %1450 = vrot.lane.b32.xlu0 %v334, 96
  %v1451 = vpop.permute.xlu0 %1450
  %1452 = vrot.lane.b32.xlu0 %v335, 96
  %v1453 = vpop.permute.xlu0 %1452
  %1454 = vrot.lane.b32.xlu0 %v336, 96
  %v1455 = vpop.permute.xlu0 %1454
  %1456 = vrot.lane.b32.xlu0 %v337, 96
  %v1457 = vpop.permute.xlu0 %1456
  %1458 = vrot.lane.b32.xlu0 %v338, 96
  %v1459 = vpop.permute.xlu0 %1458
  %1524 = vrot.lane.b32.xlu0 %v696, 32
  %v1525 = vpop.permute.xlu0 %1524
  %1526 = vrot.lane.b32.xlu0 %v699, 32
  %v1527 = vpop.permute.xlu0 %1526
  %1528 = vrot.lane.b32.xlu0 %v702, 32
  %v1529 = vpop.permute.xlu0 %1528
  %1530 = vrot.lane.b32.xlu0 %v705, 32
  %v1531 = vpop.permute.xlu0 %1530
  %1532 = vrot.lane.b32.xlu0 %v708, 32
  %v1533 = vpop.permute.xlu0 %1532
  %1534 = vrot.lane.b32.xlu0 %v711, 32
  %v1535 = vpop.permute.xlu0 %1534
  %1536 = vrot.lane.b32.xlu0 %v714, 32
  %v1537 = vpop.permute.xlu0 %1536
  %1538 = vrot.lane.b32.xlu0 %v968, 32
  %v1539 = vpop.permute.xlu0 %1538
  %1540 = vrot.lane.b32.xlu0 %v717, 32
  %v1541 = vpop.permute.xlu0 %1540
  %1542 = vrot.lane.b32.xlu0 %v720, 32
  %v1543 = vpop.permute.xlu0 %1542
  %1544 = vrot.lane.b32.xlu0 %v723, 32
  %v1545 = vpop.permute.xlu0 %1544
  %1546 = vrot.lane.b32.xlu0 %v726, 32
  %v1547 = vpop.permute.xlu0 %1546
  %1548 = vrot.lane.b32.xlu0 %v729, 32
  %v1549 = vpop.permute.xlu0 %1548
  %1550 = vrot.lane.b32.xlu0 %v732, 32
  %v1551 = vpop.permute.xlu0 %1550
  %1552 = vrot.lane.b32.xlu0 %v735, 32
  %v1553 = vpop.permute.xlu0 %1552
  %1554 = vrot.lane.b32.xlu0 %v971, 32
  %v1555 = vpop.permute.xlu0 %1554
  %1556 = vrot.lane.b32.xlu0 %v738, 32
  %v1557 = vpop.permute.xlu0 %1556
  %1558 = vrot.lane.b32.xlu0 %v741, 32
  %v1559 = vpop.permute.xlu0 %1558
  %1560 = vrot.lane.b32.xlu0 %v744, 32
  %v1561 = vpop.permute.xlu0 %1560
  %1562 = vrot.lane.b32.xlu0 %v747, 32
  %v1563 = vpop.permute.xlu0 %1562
  %1564 = vrot.lane.b32.xlu0 %v750, 32
  %v1565 = vpop.permute.xlu0 %1564
  %1566 = vrot.lane.b32.xlu0 %v753, 32
  %v1567 = vpop.permute.xlu0 %1566
  %1568 = vrot.lane.b32.xlu0 %v756, 32
  %v1569 = vpop.permute.xlu0 %1568
  %1570 = vrot.lane.b32.xlu0 %v974, 32
  %v1571 = vpop.permute.xlu0 %1570
  %1572 = vrot.lane.b32.xlu0 %v759, 32
  %v1573 = vpop.permute.xlu0 %1572
  %1574 = vrot.lane.b32.xlu0 %v762, 32
  %v1575 = vpop.permute.xlu0 %1574
  %1576 = vrot.lane.b32.xlu0 %v765, 32
  %v1577 = vpop.permute.xlu0 %1576
  %1578 = vrot.lane.b32.xlu0 %v768, 32
  %v1579 = vpop.permute.xlu0 %1578
  %1580 = vrot.lane.b32.xlu0 %v771, 32
  %v1581 = vpop.permute.xlu0 %1580
  %1582 = vrot.lane.b32.xlu0 %v774, 32
  %v1583 = vpop.permute.xlu0 %1582
  %1584 = vrot.lane.b32.xlu0 %v777, 32
  %v1585 = vpop.permute.xlu0 %1584
  %1586 = vrot.lane.b32.xlu0 %v977, 32
  %v1587 = vpop.permute.xlu0 %1586
  %1588 = vrot.lane.b32.xlu0 %v780, 32
  %v1589 = vpop.permute.xlu0 %1588
  %1590 = vrot.lane.b32.xlu0 %v783, 32
  %v1591 = vpop.permute.xlu0 %1590
  %1592 = vrot.lane.b32.xlu0 %v786, 32
  %v1593 = vpop.permute.xlu0 %1592
  %1594 = vrot.lane.b32.xlu0 %v789, 32
  %v1595 = vpop.permute.xlu0 %1594
  %1596 = vrot.lane.b32.xlu0 %v792, 32
  %v1597 = vpop.permute.xlu0 %1596
  %1598 = vrot.lane.b32.xlu0 %v795, 32
  %v1599 = vpop.permute.xlu0 %1598
  %1600 = vrot.lane.b32.xlu0 %v798, 32
  %v1601 = vpop.permute.xlu0 %1600
  %1602 = vrot.lane.b32.xlu0 %v980, 32
  %v1603 = vpop.permute.xlu0 %1602
  %1604 = vrot.lane.b32.xlu0 %v801, 32
  %v1605 = vpop.permute.xlu0 %1604
  %1606 = vrot.lane.b32.xlu0 %v804, 32
  %v1607 = vpop.permute.xlu0 %1606
  %1608 = vrot.lane.b32.xlu0 %v807, 32
  %v1609 = vpop.permute.xlu0 %1608
  %1610 = vrot.lane.b32.xlu0 %v810, 32
  %v1611 = vpop.permute.xlu0 %1610
  %1612 = vrot.lane.b32.xlu0 %v813, 32
  %v1613 = vpop.permute.xlu0 %1612
  %1614 = vrot.lane.b32.xlu0 %v816, 32
  %v1615 = vpop.permute.xlu0 %1614
  %1616 = vrot.lane.b32.xlu0 %v819, 32
  %v1617 = vpop.permute.xlu0 %1616
  %1618 = vrot.lane.b32.xlu0 %v983, 32
  %v1619 = vpop.permute.xlu0 %1618
  %1620 = vrot.lane.b32.xlu0 %v822, 32
  %v1621 = vpop.permute.xlu0 %1620
  %1622 = vrot.lane.b32.xlu0 %v825, 32
  %v1623 = vpop.permute.xlu0 %1622
  %1624 = vrot.lane.b32.xlu0 %v828, 32
  %v1625 = vpop.permute.xlu0 %1624
  %1626 = vrot.lane.b32.xlu0 %v831, 32
  %v1627 = vpop.permute.xlu0 %1626
  %1628 = vrot.lane.b32.xlu0 %v834, 32
  %v1629 = vpop.permute.xlu0 %1628
  %1630 = vrot.lane.b32.xlu0 %v837, 32
  %v1631 = vpop.permute.xlu0 %1630
  %1632 = vrot.lane.b32.xlu0 %v840, 32
  %v1633 = vpop.permute.xlu0 %1632
  %1634 = vrot.lane.b32.xlu0 %v986, 32
  %v1635 = vpop.permute.xlu0 %1634
  %1636 = vrot.lane.b32.xlu0 %v843, 32
  %v1637 = vpop.permute.xlu0 %1636
  %1638 = vrot.lane.b32.xlu0 %v846, 32
  %v1639 = vpop.permute.xlu0 %1638
  %1640 = vrot.lane.b32.xlu0 %v849, 32
  %v1641 = vpop.permute.xlu0 %1640
  %1642 = vrot.lane.b32.xlu0 %v852, 32
  %v1643 = vpop.permute.xlu0 %1642
  %1644 = vrot.lane.b32.xlu0 %v855, 32
  %v1645 = vpop.permute.xlu0 %1644
  %1646 = vrot.lane.b32.xlu0 %v858, 32
  %v1647 = vpop.permute.xlu0 %1646
  %1648 = vrot.lane.b32.xlu0 %v861, 32
  %v1649 = vpop.permute.xlu0 %1648
  %1650 = vrot.lane.b32.xlu0 %v989, 32
  %v1651 = vpop.permute.xlu0 %1650
  %1716 = vrot.lane.b32.xlu0 %v276, 64
  %v1717 = vpop.permute.xlu0 %1716
  %1718 = vrot.lane.b32.xlu0 %v277, 64
  %v1719 = vpop.permute.xlu0 %1718
  %1720 = vrot.lane.b32.xlu0 %v278, 64
  %v1721 = vpop.permute.xlu0 %1720
  %1722 = vrot.lane.b32.xlu0 %v279, 64
  %v1723 = vpop.permute.xlu0 %1722
  %1724 = vrot.lane.b32.xlu0 %v280, 64
  %v1725 = vpop.permute.xlu0 %1724
  %1726 = vrot.lane.b32.xlu0 %v281, 64
  %v1727 = vpop.permute.xlu0 %1726
  %1728 = vrot.lane.b32.xlu0 %v282, 64
  %v1729 = vpop.permute.xlu0 %1728
  %1730 = vrot.lane.b32.xlu0 %v274, 64
  %v1731 = vpop.permute.xlu0 %1730
  %1732 = vrot.lane.b32.xlu0 %v284, 64
  %v1733 = vpop.permute.xlu0 %1732
  %1734 = vrot.lane.b32.xlu0 %v285, 64
  %v1735 = vpop.permute.xlu0 %1734
  %1736 = vrot.lane.b32.xlu0 %v286, 64
  %v1737 = vpop.permute.xlu0 %1736
  %1738 = vrot.lane.b32.xlu0 %v287, 64
  %v1739 = vpop.permute.xlu0 %1738
  %1740 = vrot.lane.b32.xlu0 %v288, 64
  %v1741 = vpop.permute.xlu0 %1740
  %1742 = vrot.lane.b32.xlu0 %v289, 64
  %v1743 = vpop.permute.xlu0 %1742
  %1744 = vrot.lane.b32.xlu0 %v290, 64
  %v1745 = vpop.permute.xlu0 %1744
  %1746 = vrot.lane.b32.xlu0 %v292, 64
  %v1747 = vpop.permute.xlu0 %1746
  %1748 = vrot.lane.b32.xlu0 %v293, 64
  %v1749 = vpop.permute.xlu0 %1748
  %1750 = vrot.lane.b32.xlu0 %v294, 64
  %v1751 = vpop.permute.xlu0 %1750
  %1752 = vrot.lane.b32.xlu0 %v295, 64
  %v1753 = vpop.permute.xlu0 %1752
  %1754 = vrot.lane.b32.xlu0 %v296, 64
  %v1755 = vpop.permute.xlu0 %1754
  %1756 = vrot.lane.b32.xlu0 %v297, 64
  %v1757 = vpop.permute.xlu0 %1756
  %1758 = vrot.lane.b32.xlu0 %v298, 64
  %v1759 = vpop.permute.xlu0 %1758
  %1760 = vrot.lane.b32.xlu0 %v300, 64
  %v1761 = vpop.permute.xlu0 %1760
  %1762 = vrot.lane.b32.xlu0 %v301, 64
  %v1763 = vpop.permute.xlu0 %1762
  %1764 = vrot.lane.b32.xlu0 %v302, 64
  %v1765 = vpop.permute.xlu0 %1764
  %1766 = vrot.lane.b32.xlu0 %v303, 64
  %v1767 = vpop.permute.xlu0 %1766
  %1768 = vrot.lane.b32.xlu0 %v304, 64
  %v1769 = vpop.permute.xlu0 %1768
  %1770 = vrot.lane.b32.xlu0 %v305, 64
  %v1771 = vpop.permute.xlu0 %1770
  %1772 = vrot.lane.b32.xlu0 %v306, 64
  %v1773 = vpop.permute.xlu0 %1772
  %1774 = vrot.lane.b32.xlu0 %v308, 64
  %v1775 = vpop.permute.xlu0 %1774
  %1776 = vrot.lane.b32.xlu0 %v309, 64
  %v1777 = vpop.permute.xlu0 %1776
  %1778 = vrot.lane.b32.xlu0 %v310, 64
  %v1779 = vpop.permute.xlu0 %1778
  %1780 = vrot.lane.b32.xlu0 %v311, 64
  %v1781 = vpop.permute.xlu0 %1780
  %1782 = vrot.lane.b32.xlu0 %v312, 64
  %v1783 = vpop.permute.xlu0 %1782
  %1784 = vrot.lane.b32.xlu0 %v313, 64
  %v1785 = vpop.permute.xlu0 %1784
  %1786 = vrot.lane.b32.xlu0 %v314, 64
  %v1787 = vpop.permute.xlu0 %1786
  %1788 = vrot.lane.b32.xlu0 %v316, 64
  %v1789 = vpop.permute.xlu0 %1788
  %1790 = vrot.lane.b32.xlu0 %v317, 64
  %v1791 = vpop.permute.xlu0 %1790
  %1792 = vrot.lane.b32.xlu0 %v318, 64
  %v1793 = vpop.permute.xlu0 %1792
  %1794 = vrot.lane.b32.xlu0 %v319, 64
  %v1795 = vpop.permute.xlu0 %1794
  %1796 = vrot.lane.b32.xlu0 %v320, 64
  %v1797 = vpop.permute.xlu0 %1796
  %1798 = vrot.lane.b32.xlu0 %v321, 64
  %v1799 = vpop.permute.xlu0 %1798
  %1800 = vrot.lane.b32.xlu0 %v322, 64
  %v1801 = vpop.permute.xlu0 %1800
  %1802 = vrot.lane.b32.xlu0 %v324, 64
  %v1803 = vpop.permute.xlu0 %1802
  %1804 = vrot.lane.b32.xlu0 %v325, 64
  %v1805 = vpop.permute.xlu0 %1804
  %1806 = vrot.lane.b32.xlu0 %v326, 64
  %v1807 = vpop.permute.xlu0 %1806
  %1808 = vrot.lane.b32.xlu0 %v327, 64
  %v1809 = vpop.permute.xlu0 %1808
  %1810 = vrot.lane.b32.xlu0 %v328, 64
  %v1811 = vpop.permute.xlu0 %1810
  %1812 = vrot.lane.b32.xlu0 %v329, 64
  %v1813 = vpop.permute.xlu0 %1812
  %1814 = vrot.lane.b32.xlu0 %v330, 64
  %v1815 = vpop.permute.xlu0 %1814
  %1816 = vrot.lane.b32.xlu0 %v332, 64
  %v1817 = vpop.permute.xlu0 %1816
  %1818 = vrot.lane.b32.xlu0 %v333, 64
  %v1819 = vpop.permute.xlu0 %1818
  %1820 = vrot.lane.b32.xlu0 %v334, 64
  %v1821 = vpop.permute.xlu0 %1820
  %1822 = vrot.lane.b32.xlu0 %v335, 64
  %v1823 = vpop.permute.xlu0 %1822
  %1824 = vrot.lane.b32.xlu0 %v336, 64
  %v1825 = vpop.permute.xlu0 %1824
  %1826 = vrot.lane.b32.xlu0 %v337, 64
  %v1827 = vpop.permute.xlu0 %1826
  %1828 = vrot.lane.b32.xlu0 %v338, 64
  %v1829 = vpop.permute.xlu0 %1828
  %1887 = vrot.lane.b32.xlu0 %v527, 96
  %v1888 = vpop.permute.xlu0 %1887
  %1889 = vrot.lane.b32.xlu0 %v530, 96
  %v1890 = vpop.permute.xlu0 %1889
  %1891 = vrot.lane.b32.xlu0 %v533, 96
  %v1892 = vpop.permute.xlu0 %1891
  %1893 = vrot.lane.b32.xlu0 %v536, 96
  %v1894 = vpop.permute.xlu0 %1893
  %1895 = vrot.lane.b32.xlu0 %v539, 96
  %v1896 = vpop.permute.xlu0 %1895
  %1897 = vrot.lane.b32.xlu0 %v542, 96
  %v1898 = vpop.permute.xlu0 %1897
  %1899 = vrot.lane.b32.xlu0 %v880, 96
  %v1900 = vpop.permute.xlu0 %1899
  %1901 = vrot.lane.b32.xlu0 %v521, 96
  %v1902 = vpop.permute.xlu0 %1901
  %1903 = vrot.lane.b32.xlu0 %v548, 96
  %v1904 = vpop.permute.xlu0 %1903
  %1905 = vrot.lane.b32.xlu0 %v551, 96
  %v1906 = vpop.permute.xlu0 %1905
  %1907 = vrot.lane.b32.xlu0 %v554, 96
  %v1908 = vpop.permute.xlu0 %1907
  %1909 = vrot.lane.b32.xlu0 %v557, 96
  %v1910 = vpop.permute.xlu0 %1909
  %1911 = vrot.lane.b32.xlu0 %v560, 96
  %v1912 = vpop.permute.xlu0 %1911
  %1913 = vrot.lane.b32.xlu0 %v563, 96
  %v1914 = vpop.permute.xlu0 %1913
  %1915 = vrot.lane.b32.xlu0 %v883, 96
  %v1916 = vpop.permute.xlu0 %1915
  %1917 = vrot.lane.b32.xlu0 %v569, 96
  %v1918 = vpop.permute.xlu0 %1917
  %1919 = vrot.lane.b32.xlu0 %v572, 96
  %v1920 = vpop.permute.xlu0 %1919
  %1921 = vrot.lane.b32.xlu0 %v575, 96
  %v1922 = vpop.permute.xlu0 %1921
  %1923 = vrot.lane.b32.xlu0 %v578, 96
  %v1924 = vpop.permute.xlu0 %1923
  %1925 = vrot.lane.b32.xlu0 %v581, 96
  %v1926 = vpop.permute.xlu0 %1925
  %1927 = vrot.lane.b32.xlu0 %v584, 96
  %v1928 = vpop.permute.xlu0 %1927
  %1929 = vrot.lane.b32.xlu0 %v886, 96
  %v1930 = vpop.permute.xlu0 %1929
  %1931 = vrot.lane.b32.xlu0 %v590, 96
  %v1932 = vpop.permute.xlu0 %1931
  %1933 = vrot.lane.b32.xlu0 %v593, 96
  %v1934 = vpop.permute.xlu0 %1933
  %1935 = vrot.lane.b32.xlu0 %v596, 96
  %v1936 = vpop.permute.xlu0 %1935
  %1937 = vrot.lane.b32.xlu0 %v599, 96
  %v1938 = vpop.permute.xlu0 %1937
  %1939 = vrot.lane.b32.xlu0 %v602, 96
  %v1940 = vpop.permute.xlu0 %1939
  %1941 = vrot.lane.b32.xlu0 %v605, 96
  %v1942 = vpop.permute.xlu0 %1941
  %1943 = vrot.lane.b32.xlu0 %v889, 96
  %v1944 = vpop.permute.xlu0 %1943
  %1945 = vrot.lane.b32.xlu0 %v611, 96
  %v1946 = vpop.permute.xlu0 %1945
  %1947 = vrot.lane.b32.xlu0 %v614, 96
  %v1948 = vpop.permute.xlu0 %1947
  %1949 = vrot.lane.b32.xlu0 %v617, 96
  %v1950 = vpop.permute.xlu0 %1949
  %1951 = vrot.lane.b32.xlu0 %v620, 96
  %v1952 = vpop.permute.xlu0 %1951
  %1953 = vrot.lane.b32.xlu0 %v623, 96
  %v1954 = vpop.permute.xlu0 %1953
  %1955 = vrot.lane.b32.xlu0 %v626, 96
  %v1956 = vpop.permute.xlu0 %1955
  %1957 = vrot.lane.b32.xlu0 %v892, 96
  %v1958 = vpop.permute.xlu0 %1957
  %1959 = vrot.lane.b32.xlu0 %v632, 96
  %v1960 = vpop.permute.xlu0 %1959
  %1961 = vrot.lane.b32.xlu0 %v635, 96
  %v1962 = vpop.permute.xlu0 %1961
  %1963 = vrot.lane.b32.xlu0 %v638, 96
  %v1964 = vpop.permute.xlu0 %1963
  %1965 = vrot.lane.b32.xlu0 %v641, 96
  %v1966 = vpop.permute.xlu0 %1965
  %1967 = vrot.lane.b32.xlu0 %v644, 96
  %v1968 = vpop.permute.xlu0 %1967
  %1969 = vrot.lane.b32.xlu0 %v647, 96
  %v1970 = vpop.permute.xlu0 %1969
  %1971 = vrot.lane.b32.xlu0 %v895, 96
  %v1972 = vpop.permute.xlu0 %1971
  %1973 = vrot.lane.b32.xlu0 %v653, 96
  %v1974 = vpop.permute.xlu0 %1973
  %1975 = vrot.lane.b32.xlu0 %v656, 96
  %v1976 = vpop.permute.xlu0 %1975
  %1977 = vrot.lane.b32.xlu0 %v659, 96
  %v1978 = vpop.permute.xlu0 %1977
  %1979 = vrot.lane.b32.xlu0 %v662, 96
  %v1980 = vpop.permute.xlu0 %1979
  %1981 = vrot.lane.b32.xlu0 %v665, 96
  %v1982 = vpop.permute.xlu0 %1981
  %1983 = vrot.lane.b32.xlu0 %v668, 96
  %v1984 = vpop.permute.xlu0 %1983
  %1985 = vrot.lane.b32.xlu0 %v898, 96
  %v1986 = vpop.permute.xlu0 %1985
  %1987 = vrot.lane.b32.xlu0 %v674, 96
  %v1988 = vpop.permute.xlu0 %1987
  %1989 = vrot.lane.b32.xlu0 %v677, 96
  %v1990 = vpop.permute.xlu0 %1989
  %1991 = vrot.lane.b32.xlu0 %v680, 96
  %v1992 = vpop.permute.xlu0 %1991
  %1993 = vrot.lane.b32.xlu0 %v683, 96
  %v1994 = vpop.permute.xlu0 %1993
  %1995 = vrot.lane.b32.xlu0 %v686, 96
  %v1996 = vpop.permute.xlu0 %1995
  %1997 = vrot.lane.b32.xlu0 %v689, 96
  %v1998 = vpop.permute.xlu0 %1997
  %1999 = vrot.lane.b32.xlu0 %v901, 96
  %v2000 = vpop.permute.xlu0 %1999
  %vm2058 = vcmask 261120
  %v2059 = vsel %vm2058, %v274, %v991
  %v2060 = vsel %vm2058, %v275, %v993
  %v2061 = vsel %vm2058, %v276, %v995
  %v2062 = vsel %vm2058, %v277, %v997
  %v2063 = vsel %vm2058, %v278, %v999
  %v2064 = vsel %vm2058, %v279, %v1001
  %v2065 = vsel %vm2058, %v280, %v1003
  %v2066 = vsel %vm2058, %v281, %v1005
  %v2067 = vsel %vm2058, %v283, %v1007
  %v2068 = vsel %vm2058, %v284, %v1009
  %v2069 = vsel %vm2058, %v285, %v1011
  %v2070 = vsel %vm2058, %v286, %v1013
  %v2071 = vsel %vm2058, %v287, %v1015
  %v2072 = vsel %vm2058, %v288, %v1017
  %v2073 = vsel %vm2058, %v289, %v1019
  %v2074 = vsel %vm2058, %v291, %v1021
  %v2075 = vsel %vm2058, %v292, %v1023
  %v2076 = vsel %vm2058, %v293, %v1025
  %v2077 = vsel %vm2058, %v294, %v1027
  %v2078 = vsel %vm2058, %v295, %v1029
  %v2079 = vsel %vm2058, %v296, %v1031
  %v2080 = vsel %vm2058, %v297, %v1033
  %v2081 = vsel %vm2058, %v299, %v1035
  %v2082 = vsel %vm2058, %v300, %v1037
  %v2083 = vsel %vm2058, %v301, %v1039
  %v2084 = vsel %vm2058, %v302, %v1041
  %v2085 = vsel %vm2058, %v303, %v1043
  %v2086 = vsel %vm2058, %v304, %v1045
  %v2087 = vsel %vm2058, %v305, %v1047
  %v2088 = vsel %vm2058, %v307, %v1049
  %v2089 = vsel %vm2058, %v308, %v1051
  %v2090 = vsel %vm2058, %v309, %v1053
  %v2091 = vsel %vm2058, %v310, %v1055
  %v2092 = vsel %vm2058, %v311, %v1057
  %v2093 = vsel %vm2058, %v312, %v1059
  %v2094 = vsel %vm2058, %v313, %v1061
  %v2095 = vsel %vm2058, %v315, %v1063
  %v2096 = vsel %vm2058, %v316, %v1065
  %v2097 = vsel %vm2058, %v317, %v1067
  %v2098 = vsel %vm2058, %v318, %v1069
  %v2099 = vsel %vm2058, %v319, %v1071
  %v2100 = vsel %vm2058, %v320, %v1073
  %v2101 = vsel %vm2058, %v321, %v1075
  %v2102 = vsel %vm2058, %v323, %v1077
  %v2103 = vsel %vm2058, %v324, %v1079
  %v2104 = vsel %vm2058, %v325, %v1081
  %v2105 = vsel %vm2058, %v326, %v1083
  %v2106 = vsel %vm2058, %v327, %v1085
  %v2107 = vsel %vm2058, %v328, %v1087
  %v2108 = vsel %vm2058, %v329, %v1089
  %v2109 = vsel %vm2058, %v331, %v1091
  %v2110 = vsel %vm2058, %v332, %v1093
  %v2111 = vsel %vm2058, %v333, %v1095
  %v2112 = vsel %vm2058, %v334, %v1097
  %v2113 = vsel %vm2058, %v335, %v1099
  %v2114 = vsel %vm2058, %v336, %v1101
  %v2115 = vsel %vm2058, %v337, %v1103
  %vm2116 = vcmask 523264
  %v2117 = vsel %vm2116, %v2059, %v1162
  %v2118 = vsel %vm2116, %v2060, %v1164
  %v2119 = vsel %vm2116, %v2061, %v1166
  %v2120 = vsel %vm2116, %v2062, %v1168
  %v2121 = vsel %vm2116, %v2063, %v1170
  %v2122 = vsel %vm2116, %v2064, %v1172
  %v2123 = vsel %vm2116, %v2065, %v1174
  %v2124 = vsel %vm2116, %v2066, %v1176
  %v2125 = vsel %vm2116, %v2067, %v1178
  %v2126 = vsel %vm2116, %v2068, %v1180
  %v2127 = vsel %vm2116, %v2069, %v1182
  %v2128 = vsel %vm2116, %v2070, %v1184
  %v2129 = vsel %vm2116, %v2071, %v1186
  %v2130 = vsel %vm2116, %v2072, %v1188
  %v2131 = vsel %vm2116, %v2073, %v1190
  %v2132 = vsel %vm2116, %v2074, %v1192
  %v2133 = vsel %vm2116, %v2075, %v1194
  %v2134 = vsel %vm2116, %v2076, %v1196
  %v2135 = vsel %vm2116, %v2077, %v1198
  %v2136 = vsel %vm2116, %v2078, %v1200
  %v2137 = vsel %vm2116, %v2079, %v1202
  %v2138 = vsel %vm2116, %v2080, %v1204
  %v2139 = vsel %vm2116, %v2081, %v1206
  %v2140 = vsel %vm2116, %v2082, %v1208
  %v2141 = vsel %vm2116, %v2083, %v1210
  %v2142 = vsel %vm2116, %v2084, %v1212
  %v2143 = vsel %vm2116, %v2085, %v1214
  %v2144 = vsel %vm2116, %v2086, %v1216
  %v2145 = vsel %vm2116, %v2087, %v1218
  %v2146 = vsel %vm2116, %v2088, %v1220
  %v2147 = vsel %vm2116, %v2089, %v1222
  %v2148 = vsel %vm2116, %v2090, %v1224
  %v2149 = vsel %vm2116, %v2091, %v1226
  %v2150 = vsel %vm2116, %v2092, %v1228
  %v2151 = vsel %vm2116, %v2093, %v1230
  %v2152 = vsel %vm2116, %v2094, %v1232
  %v2153 = vsel %vm2116, %v2095, %v1234
  %v2154 = vsel %vm2116, %v2096, %v1236
  %v2155 = vsel %vm2116, %v2097, %v1238
  %v2156 = vsel %vm2116, %v2098, %v1240
  %v2157 = vsel %vm2116, %v2099, %v1242
  %v2158 = vsel %vm2116, %v2100, %v1244
  %v2159 = vsel %vm2116, %v2101, %v1246
  %v2160 = vsel %vm2116, %v2102, %v1248
  %v2161 = vsel %vm2116, %v2103, %v1250
  %v2162 = vsel %vm2116, %v2104, %v1252
  %v2163 = vsel %vm2116, %v2105, %v1254
  %v2164 = vsel %vm2116, %v2106, %v1256
  %v2165 = vsel %vm2116, %v2107, %v1258
  %v2166 = vsel %vm2116, %v2108, %v1260
  %v2167 = vsel %vm2116, %v2109, %v1262
  %v2168 = vsel %vm2116, %v2110, %v1264
  %v2169 = vsel %vm2116, %v2111, %v1266
  %v2170 = vsel %vm2116, %v2112, %v1268
  %v2171 = vsel %vm2116, %v2113, %v1270
  %v2172 = vsel %vm2116, %v2114, %v1272
  %v2173 = vsel %vm2116, %v2115, %v1274
  %vm2174 = vcmask 785408
  %v2175 = vsel %vm2174, %v2117, %v1333
  %v2176 = vsel %vm2174, %v2118, %v1335
  %v2177 = vsel %vm2174, %v2119, %v1337
  %v2178 = vsel %vm2174, %v2120, %v1339
  %v2179 = vsel %vm2174, %v2121, %v1341
  %v2180 = vsel %vm2174, %v2122, %v1343
  %v2181 = vsel %vm2174, %v2123, %v1345
  %v2182 = vsel %vm2174, %v2124, %v1347
  %v2183 = vsel %vm2174, %v2117, %v1349
  %v2184 = vsel %vm2174, %v2125, %v1351
  %v2185 = vsel %vm2174, %v2126, %v1353
  %v2186 = vsel %vm2174, %v2127, %v1355
  %v2187 = vsel %vm2174, %v2128, %v1357
  %v2188 = vsel %vm2174, %v2129, %v1359
  %v2189 = vsel %vm2174, %v2130, %v1361
  %v2190 = vsel %vm2174, %v2131, %v1363
  %v2191 = vsel %vm2174, %v2117, %v1365
  %v2192 = vsel %vm2174, %v2132, %v1367
  %v2193 = vsel %vm2174, %v2133, %v1369
  %v2194 = vsel %vm2174, %v2134, %v1371
  %v2195 = vsel %vm2174, %v2135, %v1373
  %v2196 = vsel %vm2174, %v2136, %v1375
  %v2197 = vsel %vm2174, %v2137, %v1377
  %v2198 = vsel %vm2174, %v2138, %v1379
  %v2199 = vsel %vm2174, %v2117, %v1381
  %v2200 = vsel %vm2174, %v2139, %v1383
  %v2201 = vsel %vm2174, %v2140, %v1385
  %v2202 = vsel %vm2174, %v2141, %v1387
  %v2203 = vsel %vm2174, %v2142, %v1389
  %v2204 = vsel %vm2174, %v2143, %v1391
  %v2205 = vsel %vm2174, %v2144, %v1393
  %v2206 = vsel %vm2174, %v2145, %v1395
  %v2207 = vsel %vm2174, %v2117, %v1397
  %v2208 = vsel %vm2174, %v2146, %v1399
  %v2209 = vsel %vm2174, %v2147, %v1401
  %v2210 = vsel %vm2174, %v2148, %v1403
  %v2211 = vsel %vm2174, %v2149, %v1405
  %v2212 = vsel %vm2174, %v2150, %v1407
  %v2213 = vsel %vm2174, %v2151, %v1409
  %v2214 = vsel %vm2174, %v2152, %v1411
  %v2215 = vsel %vm2174, %v2117, %v1413
  %v2216 = vsel %vm2174, %v2153, %v1415
  %v2217 = vsel %vm2174, %v2154, %v1417
  %v2218 = vsel %vm2174, %v2155, %v1419
  %v2219 = vsel %vm2174, %v2156, %v1421
  %v2220 = vsel %vm2174, %v2157, %v1423
  %v2221 = vsel %vm2174, %v2158, %v1425
  %v2222 = vsel %vm2174, %v2159, %v1427
  %v2223 = vsel %vm2174, %v2117, %v1429
  %v2224 = vsel %vm2174, %v2160, %v1431
  %v2225 = vsel %vm2174, %v2161, %v1433
  %v2226 = vsel %vm2174, %v2162, %v1435
  %v2227 = vsel %vm2174, %v2163, %v1437
  %v2228 = vsel %vm2174, %v2164, %v1439
  %v2229 = vsel %vm2174, %v2165, %v1441
  %v2230 = vsel %vm2174, %v2166, %v1443
  %v2231 = vsel %vm2174, %v2117, %v1445
  %v2232 = vsel %vm2174, %v2167, %v1447
  %v2233 = vsel %vm2174, %v2168, %v1449
  %v2234 = vsel %vm2174, %v2169, %v1451
  %v2235 = vsel %vm2174, %v2170, %v1453
  %v2236 = vsel %vm2174, %v2171, %v1455
  %v2237 = vsel %vm2174, %v2172, %v1457
  %v2238 = vsel %vm2174, %v2173, %v1459
  %v2239 = vsel %vm2058, %v524, %v1525
  %v2240 = vsel %vm2058, %v527, %v1527
  %v2241 = vsel %vm2058, %v530, %v1529
  %v2242 = vsel %vm2058, %v533, %v1531
  %v2243 = vsel %vm2058, %v536, %v1533
  %v2244 = vsel %vm2058, %v539, %v1535
  %v2245 = vsel %vm2058, %v542, %v1537
  %v2246 = vsel %vm2058, %v880, %v1539
  %v2247 = vsel %vm2058, %v545, %v1541
  %v2248 = vsel %vm2058, %v548, %v1543
  %v2249 = vsel %vm2058, %v551, %v1545
  %v2250 = vsel %vm2058, %v554, %v1547
  %v2251 = vsel %vm2058, %v557, %v1549
  %v2252 = vsel %vm2058, %v560, %v1551
  %v2253 = vsel %vm2058, %v563, %v1553
  %v2254 = vsel %vm2058, %v883, %v1555
  %v2255 = vsel %vm2058, %v566, %v1557
  %v2256 = vsel %vm2058, %v569, %v1559
  %v2257 = vsel %vm2058, %v572, %v1561
  %v2258 = vsel %vm2058, %v575, %v1563
  %v2259 = vsel %vm2058, %v578, %v1565
  %v2260 = vsel %vm2058, %v581, %v1567
  %v2261 = vsel %vm2058, %v584, %v1569
  %v2262 = vsel %vm2058, %v886, %v1571
  %v2263 = vsel %vm2058, %v587, %v1573
  %v2264 = vsel %vm2058, %v590, %v1575
  %v2265 = vsel %vm2058, %v593, %v1577
  %v2266 = vsel %vm2058, %v596, %v1579
  %v2267 = vsel %vm2058, %v599, %v1581
  %v2268 = vsel %vm2058, %v602, %v1583
  %v2269 = vsel %vm2058, %v605, %v1585
  %v2270 = vsel %vm2058, %v889, %v1587
  %v2271 = vsel %vm2058, %v608, %v1589
  %v2272 = vsel %vm2058, %v611, %v1591
  %v2273 = vsel %vm2058, %v614, %v1593
  %v2274 = vsel %vm2058, %v617, %v1595
  %v2275 = vsel %vm2058, %v620, %v1597
  %v2276 = vsel %vm2058, %v623, %v1599
  %v2277 = vsel %vm2058, %v626, %v1601
  %v2278 = vsel %vm2058, %v892, %v1603
  %v2279 = vsel %vm2058, %v629, %v1605
  %v2280 = vsel %vm2058, %v632, %v1607
  %v2281 = vsel %vm2058, %v635, %v1609
  %v2282 = vsel %vm2058, %v638, %v1611
  %v2283 = vsel %vm2058, %v641, %v1613
  %v2284 = vsel %vm2058, %v644, %v1615
  %v2285 = vsel %vm2058, %v647, %v1617
  %v2286 = vsel %vm2058, %v895, %v1619
  %v2287 = vsel %vm2058, %v650, %v1621
  %v2288 = vsel %vm2058, %v653, %v1623
  %v2289 = vsel %vm2058, %v656, %v1625
  %v2290 = vsel %vm2058, %v659, %v1627
  %v2291 = vsel %vm2058, %v662, %v1629
  %v2292 = vsel %vm2058, %v665, %v1631
  %v2293 = vsel %vm2058, %v668, %v1633
  %v2294 = vsel %vm2058, %v898, %v1635
  %v2295 = vsel %vm2058, %v671, %v1637
  %v2296 = vsel %vm2058, %v674, %v1639
  %v2297 = vsel %vm2058, %v677, %v1641
  %v2298 = vsel %vm2058, %v680, %v1643
  %v2299 = vsel %vm2058, %v683, %v1645
  %v2300 = vsel %vm2058, %v686, %v1647
  %v2301 = vsel %vm2058, %v689, %v1649
  %v2302 = vsel %vm2058, %v901, %v1651
  %v2303 = vsel %vm2116, %v2239, %v1717
  %v2304 = vsel %vm2116, %v2240, %v1719
  %v2305 = vsel %vm2116, %v2241, %v1721
  %v2306 = vsel %vm2116, %v2242, %v1723
  %v2307 = vsel %vm2116, %v2243, %v1725
  %v2308 = vsel %vm2116, %v2244, %v1727
  %v2309 = vsel %vm2116, %v2245, %v1729
  %v2310 = vsel %vm2116, %v2246, %v1731
  %v2311 = vsel %vm2116, %v2247, %v1733
  %v2312 = vsel %vm2116, %v2248, %v1735
  %v2313 = vsel %vm2116, %v2249, %v1737
  %v2314 = vsel %vm2116, %v2250, %v1739
  %v2315 = vsel %vm2116, %v2251, %v1741
  %v2316 = vsel %vm2116, %v2252, %v1743
  %v2317 = vsel %vm2116, %v2253, %v1745
  %v2318 = vsel %vm2116, %v2254, %v1731
  %v2319 = vsel %vm2116, %v2255, %v1747
  %v2320 = vsel %vm2116, %v2256, %v1749
  %v2321 = vsel %vm2116, %v2257, %v1751
  %v2322 = vsel %vm2116, %v2258, %v1753
  %v2323 = vsel %vm2116, %v2259, %v1755
  %v2324 = vsel %vm2116, %v2260, %v1757
  %v2325 = vsel %vm2116, %v2261, %v1759
  %v2326 = vsel %vm2116, %v2262, %v1731
  %v2327 = vsel %vm2116, %v2263, %v1761
  %v2328 = vsel %vm2116, %v2264, %v1763
  %v2329 = vsel %vm2116, %v2265, %v1765
  %v2330 = vsel %vm2116, %v2266, %v1767
  %v2331 = vsel %vm2116, %v2267, %v1769
  %v2332 = vsel %vm2116, %v2268, %v1771
  %v2333 = vsel %vm2116, %v2269, %v1773
  %v2334 = vsel %vm2116, %v2270, %v1731
  %v2335 = vsel %vm2116, %v2271, %v1775
  %v2336 = vsel %vm2116, %v2272, %v1777
  %v2337 = vsel %vm2116, %v2273, %v1779
  %v2338 = vsel %vm2116, %v2274, %v1781
  %v2339 = vsel %vm2116, %v2275, %v1783
  %v2340 = vsel %vm2116, %v2276, %v1785
  %v2341 = vsel %vm2116, %v2277, %v1787
  %v2342 = vsel %vm2116, %v2278, %v1731
  %v2343 = vsel %vm2116, %v2279, %v1789
  %v2344 = vsel %vm2116, %v2280, %v1791
  %v2345 = vsel %vm2116, %v2281, %v1793
  %v2346 = vsel %vm2116, %v2282, %v1795
  %v2347 = vsel %vm2116, %v2283, %v1797
  %v2348 = vsel %vm2116, %v2284, %v1799
  %v2349 = vsel %vm2116, %v2285, %v1801
  %v2350 = vsel %vm2116, %v2286, %v1731
  %v2351 = vsel %vm2116, %v2287, %v1803
  %v2352 = vsel %vm2116, %v2288, %v1805
  %v2353 = vsel %vm2116, %v2289, %v1807
  %v2354 = vsel %vm2116, %v2290, %v1809
  %v2355 = vsel %vm2116, %v2291, %v1811
  %v2356 = vsel %vm2116, %v2292, %v1813
  %v2357 = vsel %vm2116, %v2293, %v1815
  %v2358 = vsel %vm2116, %v2294, %v1731
  %v2359 = vsel %vm2116, %v2295, %v1817
  %v2360 = vsel %vm2116, %v2296, %v1819
  %v2361 = vsel %vm2116, %v2297, %v1821
  %v2362 = vsel %vm2116, %v2298, %v1823
  %v2363 = vsel %vm2116, %v2299, %v1825
  %v2364 = vsel %vm2116, %v2300, %v1827
  %v2365 = vsel %vm2116, %v2301, %v1829
  %v2366 = vsel %vm2116, %v2302, %v1731
  %v2367 = vsel %vm2174, %v2303, %v1888
  %v2368 = vsel %vm2174, %v2304, %v1890
  %v2369 = vsel %vm2174, %v2305, %v1892
  %v2370 = vsel %vm2174, %v2306, %v1894
  %v2371 = vsel %vm2174, %v2307, %v1896
  %v2372 = vsel %vm2174, %v2308, %v1898
  %v2373 = vsel %vm2174, %v2309, %v1900
  %v2374 = vsel %vm2174, %v2310, %v1902
  %v2375 = vsel %vm2174, %v2311, %v1904
  %v2376 = vsel %vm2174, %v2312, %v1906
  %v2377 = vsel %vm2174, %v2313, %v1908
  %v2378 = vsel %vm2174, %v2314, %v1910
  %v2379 = vsel %vm2174, %v2315, %v1912
  %v2380 = vsel %vm2174, %v2316, %v1914
  %v2381 = vsel %vm2174, %v2317, %v1916
  %v2382 = vsel %vm2174, %v2318, %v1902
  %v2383 = vsel %vm2174, %v2319, %v1918
  %v2384 = vsel %vm2174, %v2320, %v1920
  %v2385 = vsel %vm2174, %v2321, %v1922
  %v2386 = vsel %vm2174, %v2322, %v1924
  %v2387 = vsel %vm2174, %v2323, %v1926
  %v2388 = vsel %vm2174, %v2324, %v1928
  %v2389 = vsel %vm2174, %v2325, %v1930
  %v2390 = vsel %vm2174, %v2326, %v1902
  %v2391 = vsel %vm2174, %v2327, %v1932
  %v2392 = vsel %vm2174, %v2328, %v1934
  %v2393 = vsel %vm2174, %v2329, %v1936
  %v2394 = vsel %vm2174, %v2330, %v1938
  %v2395 = vsel %vm2174, %v2331, %v1940
  %v2396 = vsel %vm2174, %v2332, %v1942
  %v2397 = vsel %vm2174, %v2333, %v1944
  %v2398 = vsel %vm2174, %v2334, %v1902
  %v2399 = vsel %vm2174, %v2335, %v1946
  %v2400 = vsel %vm2174, %v2336, %v1948
  %v2401 = vsel %vm2174, %v2337, %v1950
  %v2402 = vsel %vm2174, %v2338, %v1952
  %v2403 = vsel %vm2174, %v2339, %v1954
  %v2404 = vsel %vm2174, %v2340, %v1956
  %v2405 = vsel %vm2174, %v2341, %v1958
  %v2406 = vsel %vm2174, %v2342, %v1902
  %v2407 = vsel %vm2174, %v2343, %v1960
  %v2408 = vsel %vm2174, %v2344, %v1962
  %v2409 = vsel %vm2174, %v2345, %v1964
  %v2410 = vsel %vm2174, %v2346, %v1966
  %v2411 = vsel %vm2174, %v2347, %v1968
  %v2412 = vsel %vm2174, %v2348, %v1970
  %v2413 = vsel %vm2174, %v2349, %v1972
  %v2414 = vsel %vm2174, %v2350, %v1902
  %v2415 = vsel %vm2174, %v2351, %v1974
  %v2416 = vsel %vm2174, %v2352, %v1976
  %v2417 = vsel %vm2174, %v2353, %v1978
  %v2418 = vsel %vm2174, %v2354, %v1980
  %v2419 = vsel %vm2174, %v2355, %v1982
  %v2420 = vsel %vm2174, %v2356, %v1984
  %v2421 = vsel %vm2174, %v2357, %v1986
  %v2422 = vsel %vm2174, %v2358, %v1902
  %v2423 = vsel %vm2174, %v2359, %v1988
  %v2424 = vsel %vm2174, %v2360, %v1990
  %v2425 = vsel %vm2174, %v2361, %v1992
  %v2426 = vsel %vm2174, %v2362, %v1994
  %v2427 = vsel %vm2174, %v2363, %v1996
  %v2428 = vsel %vm2174, %v2364, %v1998
  %v2429 = vsel %vm2174, %v2365, %v2000
  %v2430 = vsel %vm2174, %v2366, %v1902
  %v2431 = vld [vmem:[%s1] sm:$0xff]
  %v2432 = vld [vmem:[%s1 + $0x8] sm:$0xff]
  %v2433 = vld [vmem:[%s1 + $0x10] sm:$0xff]
  %v2434 = vld [vmem:[%s1 + $0x18] sm:$0xff]
  %v2435 = vld [vmem:[%s1 + $0x20] sm:$0xff]
  %v2436 = vld [vmem:[%s1 + $0x28] sm:$0xff]
  %v2437 = vld [vmem:[%s1 + $0x30] sm:$0xff]
  %v2438 = vld [vmem:[%s1 + $0x38] sm:$0xff]
  %v2439 = vld [vmem:[%s1 + $0x40] sm:$0xff]
  %v2440 = vld [vmem:[%s1 + $0x48] sm:$0xff]
  %v2441 = vld [vmem:[%s1 + $0x50] sm:$0xff]
  %v2442 = vld [vmem:[%s1 + $0x58] sm:$0xff]
  %v2443 = vld [vmem:[%s1 + $0x60] sm:$0xff]
  %v2444 = vld [vmem:[%s1 + $0x68] sm:$0xff]
  %v2445 = vld [vmem:[%s1 + $0x70] sm:$0xff]
  %v2446 = vld [vmem:[%s1 + $0x78] sm:$0xff]
  %v2447 = vld [vmem:[%s1 + $0x80] sm:$0xff]
  %v2448 = vld [vmem:[%s1 + $0x88] sm:$0xff]
  %v2449 = vld [vmem:[%s1 + $0x90] sm:$0xff]
  %v2450 = vld [vmem:[%s1 + $0x98] sm:$0xff]
  %v2451 = vld [vmem:[%s1 + $0xa0] sm:$0xff]
  %v2452 = vld [vmem:[%s1 + $0xa8] sm:$0xff]
  %v2453 = vld [vmem:[%s1 + $0xb0] sm:$0xff]
  %v2454 = vld [vmem:[%s1 + $0xb8] sm:$0xff]
  %v2455 = vld [vmem:[%s1 + $0xc0] sm:$0xff]
  %v2456 = vld [vmem:[%s1 + $0xc8] sm:$0xff]
  %v2457 = vld [vmem:[%s1 + $0xd0] sm:$0xff]
  %v2458 = vld [vmem:[%s1 + $0xd8] sm:$0xff]
  %v2459 = vld [vmem:[%s1 + $0xe0] sm:$0xff]
  %v2460 = vld [vmem:[%s1 + $0xe8] sm:$0xff]
  %v2461 = vld [vmem:[%s1 + $0xf0] sm:$0xff]
  %v2462 = vld [vmem:[%s1 + $0xf8] sm:$0xff]
  %v2463 = vld [vmem:[%s1 + $0x100] sm:$0xff]
  %v2464 = vld [vmem:[%s1 + $0x108] sm:$0xff]
  %v2465 = vld [vmem:[%s1 + $0x110] sm:$0xff]
  %v2466 = vld [vmem:[%s1 + $0x118] sm:$0xff]
  %v2467 = vld [vmem:[%s2] sm:$0x1]
  %v2469 = vlaneseq
  %v2470 = vshrl.u32 %v2469, 7
  %v2471 = vsub.s32 0, %v2470
  %v2472 = vrot.slane %v2467, %v2471
  %v2474 = vsel %vm2058, %v699, 0
  %v2476 = vsel %vm2058, %v702, 0
  %v2478 = vsel %vm2058, %v705, 0
  %v2480 = vsel %vm2058, %v708, 0
  %v2482 = vsel %vm2058, %v711, 0
  %v2484 = vsel %vm2058, %v714, 0
  %v2486 = vsel %vm2058, %v968, 0
  %v2488 = vsel %vm2058, %v693, 0
  %v2490 = vsel %vm2058, %v720, 0
  %v2492 = vsel %vm2058, %v723, 0
  %v2494 = vsel %vm2058, %v726, 0
  %v2496 = vsel %vm2058, %v729, 0
  %v2498 = vsel %vm2058, %v732, 0
  %v2500 = vsel %vm2058, %v735, 0
  %v2502 = vsel %vm2058, %v971, 0
  %v2504 = vsel %vm2058, %v741, 0
  %v2506 = vsel %vm2058, %v744, 0
  %v2508 = vsel %vm2058, %v747, 0
  %v2510 = vsel %vm2058, %v750, 0
  %v2512 = vsel %vm2058, %v753, 0
  %v2514 = vsel %vm2058, %v756, 0
  %v2516 = vsel %vm2058, %v974, 0
  %v2518 = vsel %vm2058, %v762, 0
  %v2520 = vsel %vm2058, %v765, 0
  %v2522 = vsel %vm2058, %v768, 0
  %v2524 = vsel %vm2058, %v771, 0
  %v2526 = vsel %vm2058, %v774, 0
  %v2528 = vsel %vm2058, %v777, 0
  %v2530 = vsel %vm2058, %v977, 0
  %v2532 = vsel %vm2058, %v783, 0
  %v2534 = vsel %vm2058, %v786, 0
  %v2536 = vsel %vm2058, %v789, 0
  %v2538 = vsel %vm2058, %v792, 0
  %v2540 = vsel %vm2058, %v795, 0
  %v2542 = vsel %vm2058, %v798, 0
  %v2544 = vsel %vm2058, %v980, 0
  %v2546 = vsel %vm2058, %v804, 0
  %v2548 = vsel %vm2058, %v807, 0
  %v2550 = vsel %vm2058, %v810, 0
  %v2552 = vsel %vm2058, %v813, 0
  %v2554 = vsel %vm2058, %v816, 0
  %v2556 = vsel %vm2058, %v819, 0
  %v2558 = vsel %vm2058, %v983, 0
  %v2560 = vsel %vm2058, %v825, 0
  %v2562 = vsel %vm2058, %v828, 0
  %v2564 = vsel %vm2058, %v831, 0
  %v2566 = vsel %vm2058, %v834, 0
  %v2568 = vsel %vm2058, %v837, 0
  %v2570 = vsel %vm2058, %v840, 0
  %v2572 = vsel %vm2058, %v986, 0
  %v2574 = vsel %vm2058, %v846, 0
  %v2576 = vsel %vm2058, %v849, 0
  %v2578 = vsel %vm2058, %v852, 0
  %v2580 = vsel %vm2058, %v855, 0
  %v2582 = vsel %vm2058, %v858, 0
  %v2584 = vsel %vm2058, %v861, 0
  %v2586 = vsel %vm2058, %v989, 0
  %2588 = vmatprep.subr.mxu0 0.0
  %2589 = vmatpush1.msra.mxu0 %v2431
  %2590 = vmatprep.subr.mxu0 0.0
  %2591 = vmatpush1.msra.mxu0 %v2432
  %2592 = vmatprep.subr.mxu0 0.0
  %2593 = vmatpush1.msra.mxu0 %v2433
  %2594 = vmatprep.subr.mxu0 0.0
  %2595 = vmatpush1.msra.mxu0 %v2434
  %2596 = vmatprep.subr.mxu0 0.0
  %2597 = vmatpush1.msra.mxu0 %v2435
  %2598 = vmatprep.subr.mxu0 0.0
  %2599 = vmatpush1.msra.mxu0 %v2436
  %2600 = vmatprep.subr.mxu0 0.0
  %2601 = vmatpush1.msra.mxu0 %v2437
  %2602 = vmatprep.subr.mxu0 0.0
  %2603 = vmatpush1.msra.mxu0 %v2438
  %2604 = vmatprep.subr.mxu0 0.0
  %2605 = vmatpush1.msra.mxu0 %v2439
  %2606 = vmatprep.subr.mxu0 0.0
  %2607 = vmatpush1.msra.mxu0 %v2440
  %2608 = vmatprep.subr.mxu0 0.0
  %2609 = vmatpush1.msra.mxu0 %v2441
  %2610 = vmatprep.subr.mxu0 0.0
  %2611 = vmatpush1.msra.mxu0 %v2442
  %2612 = vmatprep.subr.mxu0 0.0
  %2613 = vmatpush1.msra.mxu0 %v2443
  %2614 = vmatprep.subr.mxu0 0.0
  %2615 = vmatpush1.msra.mxu0 %v2444
  %2616 = vmatprep.subr.mxu0 0.0
  %2617 = vmatpush1.msra.mxu0 %v2445
  %2618 = vmatprep.subr.mxu0 0.0
  %2619 = vmatpush1.msra.mxu0 %v2446
  %2620 = vmatprep.subr.mxu0 0.0
  %2621 = vmatpush1.msra.mxu0 %v2447
  %2622 = vmatprep.subr.mxu0 0.0
  %2623 = vmatpush1.msra.mxu0 %v2448
  %2624 = vmatprep.subr.mxu0 0.0
  %2625 = vmatpush1.msra.mxu0 %v2449
  %2626 = vmatprep.subr.mxu0 0.0
  %2627 = vmatpush1.msra.mxu0 %v2450
  %2628 = vmatprep.subr.mxu0 0.0
  %2629 = vmatpush1.msra.mxu0 %v2451
  %2630 = vmatprep.subr.mxu0 0.0
  %2631 = vmatpush1.msra.mxu0 %v2452
  %2632 = vmatprep.subr.mxu0 0.0
  %2633 = vmatpush1.msra.mxu0 %v2453
  %2634 = vmatprep.subr.mxu0 0.0
  %2635 = vmatpush1.msra.mxu0 %v2454
  %2636 = vmatprep.subr.mxu0 0.0
  %2637 = vmatpush1.msra.mxu0 %v2455
  %2638 = vmatprep.subr.mxu0 0.0
  %2639 = vmatpush1.msra.mxu0 %v2456
  %2640 = vmatprep.subr.mxu0 0.0
  %2641 = vmatpush1.msra.mxu0 %v2457
  %2642 = vmatprep.subr.mxu0 0.0
  %2643 = vmatpush1.msra.mxu0 %v2458
  %2644 = vmatprep.subr.mxu0 0.0
  %2645 = vmatpush1.msra.mxu0 %v2459
  %2646 = vmatprep.subr.mxu0 0.0
  %2647 = vmatpush1.msra.mxu0 %v2460
  %2648 = vmatprep.subr.mxu0 0.0
  %2649 = vmatpush1.msra.mxu0 %v2461
  %2650 = vmatprep.subr.mxu0 0.0
  %2651 = vmatpush1.msra.mxu0 %v2462
  %2652 = vmatprep.mubr.f32.mxu0 %v2367
  %2653 = vmatmul.mubr.f32.gmra.mrb[0].mxu0 %v2175
  %v2654 = vpop.f32.mrb[0].mxu0
  %v2655 = vadd.f32 %v2472, %v2654
  %v2656 = vpop.f32.mrb[0].mxu0
  %2657 = vmatprep.mubr.f32.mxu0 %v2368
  %2658 = vmatmul.mubr.f32.gmra.mrb[0].mxu0 %v2176
  %v2659 = vpop.f32.mrb[0].mxu0
  %v2660 = vadd.f32 %v2472, %v2659
  %v2661 = vpop.f32.mrb[0].mxu0
  %2662 = vmatprep.mubr.f32.mxu0 %v2369
  %2663 = vmatmul.mubr.f32.gmra.mrb[0].mxu0 %v2177
  %v2664 = vpop.f32.mrb[0].mxu0
  %v2665 = vadd.f32 %v2472, %v2664
  %v2666 = vpop.f32.mrb[0].mxu0
  %2667 = vmatprep.mubr.f32.mxu0 %v2370
  %2668 = vmatmul.mubr.f32.gmra.mrb[0].mxu0 %v2178
  %v2669 = vpop.f32.mrb[0].mxu0
  %v2670 = vadd.f32 %v2472, %v2669
  %v2671 = vpop.f32.mrb[0].mxu0
  %2672 = vmatprep.mubr.f32.mxu0 %v2371
  %2673 = vmatmul.mubr.f32.gmra.mrb[0].mxu0 %v2179
  %v2674 = vpop.f32.mrb[0].mxu0
  %v2675 = vadd.f32 %v2472, %v2674
  %v2676 = vpop.f32.mrb[0].mxu0
  %2677 = vmatprep.mubr.f32.mxu0 %v2372
  %2678 = vmatmul.mubr.f32.gmra.mrb[0].mxu0 %v2180
  %v2679 = vpop.f32.mrb[0].mxu0
  %v2680 = vadd.f32 %v2472, %v2679
  %v2681 = vpop.f32.mrb[0].mxu0
  %2682 = vmatprep.mubr.f32.mxu0 %v2373
  %2683 = vmatmul.mubr.f32.gmra.mrb[0].mxu0 %v2181
  %v2684 = vpop.f32.mrb[0].mxu0
  %v2685 = vadd.f32 %v2472, %v2684
  %v2686 = vpop.f32.mrb[0].mxu0
  %2687 = vmatprep.mubr.f32.mxu0 %v2374
  %2688 = vmatmul.mubr.f32.gmra.mrb[0].mxu0 %v2182
  %v2689 = vpop.f32.mrb[0].mxu0
  %v2690 = vadd.f32 %v2472, %v2689
  %v2691 = vpop.f32.mrb[0].mxu0
  %2692 = vmatprep.mubr.f32.mxu0 %v2375
  %2693 = vmatmul.mubr.f32.gmra.mrb[0].mxu0 %v2183
  %v2694 = vpop.f32.mrb[0].mxu0
  %v2695 = vadd.f32 %v2472, %v2694
  %v2696 = vpop.f32.mrb[0].mxu0
  %2697 = vmatprep.mubr.f32.mxu0 %v2376
  %2698 = vmatmul.mubr.f32.gmra.mrb[0].mxu0 %v2184
  %v2699 = vpop.f32.mrb[0].mxu0
  %v2700 = vadd.f32 %v2472, %v2699
  %v2701 = vpop.f32.mrb[0].mxu0
  %2702 = vmatprep.mubr.f32.mxu0 %v2377
  %2703 = vmatmul.mubr.f32.gmra.mrb[0].mxu0 %v2185
  %v2704 = vpop.f32.mrb[0].mxu0
  %v2705 = vadd.f32 %v2472, %v2704
  %v2706 = vpop.f32.mrb[0].mxu0
  %2707 = vmatprep.mubr.f32.mxu0 %v2378
  %2708 = vmatmul.mubr.f32.gmra.mrb[0].mxu0 %v2186
  %v2709 = vpop.f32.mrb[0].mxu0
  %v2710 = vadd.f32 %v2472, %v2709
  %v2711 = vpop.f32.mrb[0].mxu0
  %2712 = vmatprep.mubr.f32.mxu0 %v2379
  %2713 = vmatmul.mubr.f32.gmra.mrb[0].mxu0 %v2187
  %v2714 = vpop.f32.mrb[0].mxu0
  %v2715 = vadd.f32 %v2472, %v2714
  %v2716 = vpop.f32.mrb[0].mxu0
  %2717 = vmatprep.mubr.f32.mxu0 %v2380
  %2718 = vmatmul.mubr.f32.gmra.mrb[0].mxu0 %v2188
  %v2719 = vpop.f32.mrb[0].mxu0
  %v2720 = vadd.f32 %v2472, %v2719
  %v2721 = vpop.f32.mrb[0].mxu0
  %2722 = vmatprep.mubr.f32.mxu0 %v2381
  %2723 = vmatmul.mubr.f32.gmra.mrb[0].mxu0 %v2189
  %v2724 = vpop.f32.mrb[0].mxu0
  %v2725 = vadd.f32 %v2472, %v2724
  %v2726 = vpop.f32.mrb[0].mxu0
  %2727 = vmatprep.mubr.f32.mxu0 %v2382
  %2728 = vmatmul.mubr.f32.gmra.mrb[0].mxu0 %v2190
  %v2729 = vpop.f32.mrb[0].mxu0
  %v2730 = vadd.f32 %v2472, %v2729
  %v2731 = vpop.f32.mrb[0].mxu0
  %2732 = vmatprep.mubr.f32.mxu0 %v2383
  %2733 = vmatmul.mubr.f32.gmra.mrb[0].mxu0 %v2191
  %v2734 = vpop.f32.mrb[0].mxu0
  %v2735 = vadd.f32 %v2472, %v2734
  %v2736 = vpop.f32.mrb[0].mxu0
  %2737 = vmatprep.mubr.f32.mxu0 %v2384
  %2738 = vmatmul.mubr.f32.gmra.mrb[0].mxu0 %v2192
  %v2739 = vpop.f32.mrb[0].mxu0
  %v2740 = vadd.f32 %v2472, %v2739
  %v2741 = vpop.f32.mrb[0].mxu0
  %2742 = vmatprep.mubr.f32.mxu0 %v2385
  %2743 = vmatmul.mubr.f32.gmra.mrb[0].mxu0 %v2193
  %v2744 = vpop.f32.mrb[0].mxu0
  %v2745 = vadd.f32 %v2472, %v2744
  %v2746 = vpop.f32.mrb[0].mxu0
  %2747 = vmatprep.mubr.f32.mxu0 %v2386
  %2748 = vmatmul.mubr.f32.gmra.mrb[0].mxu0 %v2194
  %v2749 = vpop.f32.mrb[0].mxu0
  %v2750 = vadd.f32 %v2472, %v2749
  %v2751 = vpop.f32.mrb[0].mxu0
  %2752 = vmatprep.mubr.f32.mxu0 %v2387
  %2753 = vmatmul.mubr.f32.gmra.mrb[0].mxu0 %v2195
  %v2754 = vpop.f32.mrb[0].mxu0
  %v2755 = vadd.f32 %v2472, %v2754
  %v2756 = vpop.f32.mrb[0].mxu0
  %2757 = vmatprep.mubr.f32.mxu0 %v2388
  %2758 = vmatmul.mubr.f32.gmra.mrb[0].mxu0 %v2196
  %v2759 = vpop.f32.mrb[0].mxu0
  %v2760 = vadd.f32 %v2472, %v2759
  %v2761 = vpop.f32.mrb[0].mxu0
  %2762 = vmatprep.mubr.f32.mxu0 %v2389
  %2763 = vmatmul.mubr.f32.gmra.mrb[0].mxu0 %v2197
  %v2764 = vpop.f32.mrb[0].mxu0
  %v2765 = vadd.f32 %v2472, %v2764
  %v2766 = vpop.f32.mrb[0].mxu0
  %2767 = vmatprep.mubr.f32.mxu0 %v2390
  %2768 = vmatmul.mubr.f32.gmra.mrb[0].mxu0 %v2198
  %v2769 = vpop.f32.mrb[0].mxu0
  %v2770 = vadd.f32 %v2472, %v2769
  %v2771 = vpop.f32.mrb[0].mxu0
  %2772 = vmatprep.mubr.f32.mxu0 %v2391
  %2773 = vmatmul.mubr.f32.gmra.mrb[0].mxu0 %v2199
  %v2774 = vpop.f32.mrb[0].mxu0
  %v2775 = vadd.f32 %v2472, %v2774
  %v2776 = vpop.f32.mrb[0].mxu0
  %2777 = vmatprep.mubr.f32.mxu0 %v2392
  %2778 = vmatmul.mubr.f32.gmra.mrb[0].mxu0 %v2200
  %v2779 = vpop.f32.mrb[0].mxu0
  %v2780 = vadd.f32 %v2472, %v2779
  %v2781 = vpop.f32.mrb[0].mxu0
  %2782 = vmatprep.mubr.f32.mxu0 %v2393
  %2783 = vmatmul.mubr.f32.gmra.mrb[0].mxu0 %v2201
  %v2784 = vpop.f32.mrb[0].mxu0
  %v2785 = vadd.f32 %v2472, %v2784
  %v2786 = vpop.f32.mrb[0].mxu0
  %2787 = vmatprep.mubr.f32.mxu0 %v2394
  %2788 = vmatmul.mubr.f32.gmra.mrb[0].mxu0 %v2202
  %v2789 = vpop.f32.mrb[0].mxu0
  %v2790 = vadd.f32 %v2472, %v2789
  %v2791 = vpop.f32.mrb[0].mxu0
  %2792 = vmatprep.mubr.f32.mxu0 %v2395
  %2793 = vmatmul.mubr.f32.gmra.mrb[0].mxu0 %v2203
  %v2794 = vpop.f32.mrb[0].mxu0
  %v2795 = vadd.f32 %v2472, %v2794
  %v2796 = vpop.f32.mrb[0].mxu0
  %2797 = vmatprep.mubr.f32.mxu0 %v2396
  %2798 = vmatmul.mubr.f32.gmra.mrb[0].mxu0 %v2204
  %v2799 = vpop.f32.mrb[0].mxu0
  %v2800 = vadd.f32 %v2472, %v2799
  %v2801 = vpop.f32.mrb[0].mxu0
  %2802 = vmatprep.mubr.f32.mxu0 %v2397
  %2803 = vmatmul.mubr.f32.gmra.mrb[0].mxu0 %v2205
  %v2804 = vpop.f32.mrb[0].mxu0
  %v2805 = vadd.f32 %v2472, %v2804
  %v2806 = vpop.f32.mrb[0].mxu0
  %2807 = vmatprep.mubr.f32.mxu0 %v2398
  %2808 = vmatmul.mubr.f32.gmra.mrb[0].mxu0 %v2206
  %v2809 = vpop.f32.mrb[0].mxu0
  %v2810 = vadd.f32 %v2472, %v2809
  %v2811 = vpop.f32.mrb[0].mxu0
  %2812 = vmatprep.mubr.f32.mxu0 %v2399
  %2813 = vmatmul.mubr.f32.gmra.mrb[0].mxu0 %v2207
  %v2814 = vpop.f32.mrb[0].mxu0
  %v2815 = vadd.f32 %v2472, %v2814
  %v2816 = vpop.f32.mrb[0].mxu0
  %2817 = vmatprep.mubr.f32.mxu0 %v2400
  %2818 = vmatmul.mubr.f32.gmra.mrb[0].mxu0 %v2208
  %v2819 = vpop.f32.mrb[0].mxu0
  %v2820 = vadd.f32 %v2472, %v2819
  %v2821 = vpop.f32.mrb[0].mxu0
  %2822 = vmatprep.mubr.f32.mxu0 %v2401
  %2823 = vmatmul.mubr.f32.gmra.mrb[0].mxu0 %v2209
  %v2824 = vpop.f32.mrb[0].mxu0
  %v2825 = vadd.f32 %v2472, %v2824
  %v2826 = vpop.f32.mrb[0].mxu0
  %2827 = vmatprep.mubr.f32.mxu0 %v2402
  %2828 = vmatmul.mubr.f32.gmra.mrb[0].mxu0 %v2210
  %v2829 = vpop.f32.mrb[0].mxu0
  %v2830 = vadd.f32 %v2472, %v2829
  %v2831 = vpop.f32.mrb[0].mxu0
  %2832 = vmatprep.mubr.f32.mxu0 %v2403
  %2833 = vmatmul.mubr.f32.gmra.mrb[0].mxu0 %v2211
  %v2834 = vpop.f32.mrb[0].mxu0
  %v2835 = vadd.f32 %v2472, %v2834
  %v2836 = vpop.f32.mrb[0].mxu0
  %2837 = vmatprep.mubr.f32.mxu0 %v2404
  %2838 = vmatmul.mubr.f32.gmra.mrb[0].mxu0 %v2212
  %v2839 = vpop.f32.mrb[0].mxu0
  %v2840 = vadd.f32 %v2472, %v2839
  %v2841 = vpop.f32.mrb[0].mxu0
  %2842 = vmatprep.mubr.f32.mxu0 %v2405
  %2843 = vmatmul.mubr.f32.gmra.mrb[0].mxu0 %v2213
  %v2844 = vpop.f32.mrb[0].mxu0
  %v2845 = vadd.f32 %v2472, %v2844
  %v2846 = vpop.f32.mrb[0].mxu0
  %2847 = vmatprep.mubr.f32.mxu0 %v2406
  %2848 = vmatmul.mubr.f32.gmra.mrb[0].mxu0 %v2214
  %v2849 = vpop.f32.mrb[0].mxu0
  %v2850 = vadd.f32 %v2472, %v2849
  %v2851 = vpop.f32.mrb[0].mxu0
  %2852 = vmatprep.mubr.f32.mxu0 %v2407
  %2853 = vmatmul.mubr.f32.gmra.mrb[0].mxu0 %v2215
  %v2854 = vpop.f32.mrb[0].mxu0
  %v2855 = vadd.f32 %v2472, %v2854
  %v2856 = vpop.f32.mrb[0].mxu0
  %2857 = vmatprep.mubr.f32.mxu0 %v2408
  %2858 = vmatmul.mubr.f32.gmra.mrb[0].mxu0 %v2216
  %v2859 = vpop.f32.mrb[0].mxu0
  %v2860 = vadd.f32 %v2472, %v2859
  %v2861 = vpop.f32.mrb[0].mxu0
  %2862 = vmatprep.mubr.f32.mxu0 %v2409
  %2863 = vmatmul.mubr.f32.gmra.mrb[0].mxu0 %v2217
  %v2864 = vpop.f32.mrb[0].mxu0
  %v2865 = vadd.f32 %v2472, %v2864
  %v2866 = vpop.f32.mrb[0].mxu0
  %2867 = vmatprep.mubr.f32.mxu0 %v2410
  %2868 = vmatmul.mubr.f32.gmra.mrb[0].mxu0 %v2218
  %v2869 = vpop.f32.mrb[0].mxu0
  %v2870 = vadd.f32 %v2472, %v2869
  %v2871 = vpop.f32.mrb[0].mxu0
  %2872 = vmatprep.mubr.f32.mxu0 %v2411
  %2873 = vmatmul.mubr.f32.gmra.mrb[0].mxu0 %v2219
  %v2874 = vpop.f32.mrb[0].mxu0
  %v2875 = vadd.f32 %v2472, %v2874
  %v2876 = vpop.f32.mrb[0].mxu0
  %2877 = vmatprep.mubr.f32.mxu0 %v2412
  %2878 = vmatmul.mubr.f32.gmra.mrb[0].mxu0 %v2220
  %v2879 = vpop.f32.mrb[0].mxu0
  %v2880 = vadd.f32 %v2472, %v2879
  %v2881 = vpop.f32.mrb[0].mxu0
  %2882 = vmatprep.mubr.f32.mxu0 %v2413
  %2883 = vmatmul.mubr.f32.gmra.mrb[0].mxu0 %v2221
  %v2884 = vpop.f32.mrb[0].mxu0
  %v2885 = vadd.f32 %v2472, %v2884
  %v2886 = vpop.f32.mrb[0].mxu0
  %2887 = vmatprep.mubr.f32.mxu0 %v2414
  %2888 = vmatmul.mubr.f32.gmra.mrb[0].mxu0 %v2222
  %v2889 = vpop.f32.mrb[0].mxu0
  %v2890 = vadd.f32 %v2472, %v2889
  %v2891 = vpop.f32.mrb[0].mxu0
  %2892 = vmatprep.mubr.f32.mxu0 %v2415
  %2893 = vmatmul.mubr.f32.gmra.mrb[0].mxu0 %v2223
  %v2894 = vpop.f32.mrb[0].mxu0
  %v2895 = vadd.f32 %v2472, %v2894
  %v2896 = vpop.f32.mrb[0].mxu0
  %2897 = vmatprep.mubr.f32.mxu0 %v2416
  %2898 = vmatmul.mubr.f32.gmra.mrb[0].mxu0 %v2224
  %v2899 = vpop.f32.mrb[0].mxu0
  %v2900 = vadd.f32 %v2472, %v2899
  %v2901 = vpop.f32.mrb[0].mxu0
  %2902 = vmatprep.mubr.f32.mxu0 %v2417
  %2903 = vmatmul.mubr.f32.gmra.mrb[0].mxu0 %v2225
  %v2904 = vpop.f32.mrb[0].mxu0
  %v2905 = vadd.f32 %v2472, %v2904
  %v2906 = vpop.f32.mrb[0].mxu0
  %2907 = vmatprep.mubr.f32.mxu0 %v2418
  %2908 = vmatmul.mubr.f32.gmra.mrb[0].mxu0 %v2226
  %v2909 = vpop.f32.mrb[0].mxu0
  %v2910 = vadd.f32 %v2472, %v2909
  %v2911 = vpop.f32.mrb[0].mxu0
  %2912 = vmatprep.mubr.f32.mxu0 %v2419
  %2913 = vmatmul.mubr.f32.gmra.mrb[0].mxu0 %v2227
  %v2914 = vpop.f32.mrb[0].mxu0
  %v2915 = vadd.f32 %v2472, %v2914
  %v2916 = vpop.f32.mrb[0].mxu0
  %2917 = vmatprep.mubr.f32.mxu0 %v2420
  %2918 = vmatmul.mubr.f32.gmra.mrb[0].mxu0 %v2228
  %v2919 = vpop.f32.mrb[0].mxu0
  %v2920 = vadd.f32 %v2472, %v2919
  %v2921 = vpop.f32.mrb[0].mxu0
  %2922 = vmatprep.mubr.f32.mxu0 %v2421
  %2923 = vmatmul.mubr.f32.gmra.mrb[0].mxu0 %v2229
  %v2924 = vpop.f32.mrb[0].mxu0
  %v2925 = vadd.f32 %v2472, %v2924
  %v2926 = vpop.f32.mrb[0].mxu0
  %2927 = vmatprep.mubr.f32.mxu0 %v2422
  %2928 = vmatmul.mubr.f32.gmra.mrb[0].mxu0 %v2230
  %v2929 = vpop.f32.mrb[0].mxu0
  %v2930 = vadd.f32 %v2472, %v2929
  %v2931 = vpop.f32.mrb[0].mxu0
  %2932 = vmatprep.mubr.f32.mxu0 %v2423
  %2933 = vmatmul.mubr.f32.gmra.mrb[0].mxu0 %v2231
  %v2934 = vpop.f32.mrb[0].mxu0
  %v2935 = vadd.f32 %v2472, %v2934
  %v2936 = vpop.f32.mrb[0].mxu0
  %2937 = vmatprep.mubr.f32.mxu0 %v2424
  %2938 = vmatmul.mubr.f32.gmra.mrb[0].mxu0 %v2232
  %v2939 = vpop.f32.mrb[0].mxu0
  %v2940 = vadd.f32 %v2472, %v2939
  %v2941 = vpop.f32.mrb[0].mxu0
  %2942 = vmatprep.mubr.f32.mxu0 %v2425
  %2943 = vmatmul.mubr.f32.gmra.mrb[0].mxu0 %v2233
  %v2944 = vpop.f32.mrb[0].mxu0
  %v2945 = vadd.f32 %v2472, %v2944
  %v2946 = vpop.f32.mrb[0].mxu0
  %2947 = vmatprep.mubr.f32.mxu0 %v2426
  %2948 = vmatmul.mubr.f32.gmra.mrb[0].mxu0 %v2234
  %v2949 = vpop.f32.mrb[0].mxu0
  %v2950 = vadd.f32 %v2472, %v2949
  %v2951 = vpop.f32.mrb[0].mxu0
  %2952 = vmatprep.mubr.f32.mxu0 %v2427
  %2953 = vmatmul.mubr.f32.gmra.mrb[0].mxu0 %v2235
  %v2954 = vpop.f32.mrb[0].mxu0
  %v2955 = vadd.f32 %v2472, %v2954
  %v2956 = vpop.f32.mrb[0].mxu0
  %2957 = vmatprep.mubr.f32.mxu0 %v2428
  %2958 = vmatmul.mubr.f32.gmra.mrb[0].mxu0 %v2236
  %v2959 = vpop.f32.mrb[0].mxu0
  %v2960 = vadd.f32 %v2472, %v2959
  %v2961 = vpop.f32.mrb[0].mxu0
  %2962 = vmatprep.mubr.f32.mxu0 %v2429
  %2963 = vmatmul.mubr.f32.gmra.mrb[0].mxu0 %v2237
  %v2964 = vpop.f32.mrb[0].mxu0
  %v2965 = vadd.f32 %v2472, %v2964
  %v2966 = vpop.f32.mrb[0].mxu0
  %2967 = vmatprep.mubr.f32.mxu0 %v2430
  %2968 = vmatmul.mubr.f32.gmra.mrb[0].mxu0 %v2238
  %v2969 = vpop.f32.mrb[0].mxu0
  %v2970 = vadd.f32 %v2472, %v2969
  %v2971 = vpop.f32.mrb[0].mxu0
  %2972 = vdwg.mxu0
  %2973 = vmatprep.subr.mxu0 0.0
  %2974 = vmatpush1.msra.mxu0 %v2463
  %2975 = vmatprep.subr.mxu0 0.0
  %2976 = vmatpush1.msra.mxu0 %v2464
  %2977 = vmatprep.subr.mxu0 0.0
  %2978 = vmatpush1.msra.mxu0 %v2465
  %2979 = vmatprep.subr.mxu0 0.0
  %2980 = vmatpush1.msra.mxu0 %v2466
  %2981 = vmatprep.subr.mxu0 0.0
  %2982 = vmatpush1.msra.mxu0 0.0
  %2983 = vmatprep.subr.mxu0 0.0
  %2984 = vmatpush1.msra.mxu0 0.0
  %2985 = vmatprep.subr.mxu0 0.0
  %2986 = vmatpush1.msra.mxu0 0.0
  %2987 = vmatprep.subr.mxu0 0.0
  %2988 = vmatpush1.msra.mxu0 0.0
  %2989 = vmatprep.subr.mxu0 0.0
  %2990 = vmatpush1.msra.mxu0 0.0
  %2991 = vmatprep.subr.mxu0 0.0
  %2992 = vmatpush1.msra.mxu0 0.0
  %2993 = vmatprep.subr.mxu0 0.0
  %2994 = vmatpush1.msra.mxu0 0.0
  %2995 = vmatprep.subr.mxu0 0.0
  %2996 = vmatpush1.msra.mxu0 0.0
  %2997 = vmatprep.subr.mxu0 0.0
  %2998 = vmatpush1.msra.mxu0 0.0
  %2999 = vmatprep.subr.mxu0 0.0
  %3000 = vmatpush1.msra.mxu0 0.0
  %3001 = vmatprep.subr.mxu0 0.0
  %3002 = vmatpush1.msra.mxu0 0.0
  %3003 = vmatprep.subr.mxu0 0.0
  %3004 = vmatpush1.msra.mxu0 0.0
  %3005 = vmatprep.subr.mxu0 0.0
  %3006 = vmatpush1.msra.mxu0 0.0
  %3007 = vmatprep.subr.mxu0 0.0
  %3008 = vmatpush1.msra.mxu0 0.0
  %3009 = vmatprep.subr.mxu0 0.0
  %3010 = vmatpush1.msra.mxu0 0.0
  %3011 = vmatprep.subr.mxu0 0.0
  %3012 = vmatpush1.msra.mxu0 0.0
  %3013 = vmatprep.subr.mxu0 0.0
  %3014 = vmatpush1.msra.mxu0 0.0
  %3015 = vmatprep.subr.mxu0 0.0
  %3016 = vmatpush1.msra.mxu0 0.0
  %3017 = vmatprep.subr.mxu0 0.0
  %3018 = vmatpush1.msra.mxu0 0.0
  %3019 = vmatprep.subr.mxu0 0.0
  %3020 = vmatpush1.msra.mxu0 0.0
  %3021 = vmatprep.subr.mxu0 0.0
  %3022 = vmatpush1.msra.mxu0 0.0
  %3023 = vmatprep.subr.mxu0 0.0
  %3024 = vmatpush1.msra.mxu0 0.0
  %3025 = vmatprep.subr.mxu0 0.0
  %3026 = vmatpush1.msra.mxu0 0.0
  %3027 = vmatprep.subr.mxu0 0.0
  %3028 = vmatpush1.msra.mxu0 0.0
  %3029 = vmatprep.subr.mxu0 0.0
  %3030 = vmatpush1.msra.mxu0 0.0
  %3031 = vmatprep.subr.mxu0 0.0
  %3032 = vmatpush1.msra.mxu0 0.0
  %3033 = vmatprep.subr.mxu0 0.0
  %3034 = vmatpush1.msra.mxu0 0.0
  %3035 = vmatprep.subr.mxu0 0.0
  %3036 = vmatpush1.msra.mxu0 0.0
  %3037 = vmatprep.mubr.f32.mxu0 0.0
  %3038 = vmatmul.mubr.f32.gmra.mrb[0].mxu0 %v2474
  %v3039 = vpop.f32.mrb[0].mxu0
  %v3040 = vadd.f32 %v2655, %v3039
  %v3041 = vpop.f32.mrb[0].mxu0
  %3042 = vmatprep.mubr.f32.mxu0 0.0
  %3043 = vmatmul.mubr.f32.gmra.mrb[0].mxu0 %v2476
  %v3044 = vpop.f32.mrb[0].mxu0
  %v3045 = vadd.f32 %v2660, %v3044
  %v3046 = vpop.f32.mrb[0].mxu0
  %3047 = vmatprep.mubr.f32.mxu0 0.0
  %3048 = vmatmul.mubr.f32.gmra.mrb[0].mxu0 %v2478
  %v3049 = vpop.f32.mrb[0].mxu0
  %v3050 = vadd.f32 %v2665, %v3049
  %v3051 = vpop.f32.mrb[0].mxu0
  %3052 = vmatprep.mubr.f32.mxu0 0.0
  %3053 = vmatmul.mubr.f32.gmra.mrb[0].mxu0 %v2480
  %v3054 = vpop.f32.mrb[0].mxu0
  %v3055 = vadd.f32 %v2670, %v3054
  %v3056 = vpop.f32.mrb[0].mxu0
  %3057 = vmatprep.mubr.f32.mxu0 0.0
  %3058 = vmatmul.mubr.f32.gmra.mrb[0].mxu0 %v2482
  %v3059 = vpop.f32.mrb[0].mxu0
  %v3060 = vadd.f32 %v2675, %v3059
  %v3061 = vpop.f32.mrb[0].mxu0
  %3062 = vmatprep.mubr.f32.mxu0 0.0
  %3063 = vmatmul.mubr.f32.gmra.mrb[0].mxu0 %v2484
  %v3064 = vpop.f32.mrb[0].mxu0
  %v3065 = vadd.f32 %v2680, %v3064
  %v3066 = vpop.f32.mrb[0].mxu0
  %3067 = vmatprep.mubr.f32.mxu0 0.0
  %3068 = vmatmul.mubr.f32.gmra.mrb[0].mxu0 %v2486
  %v3069 = vpop.f32.mrb[0].mxu0
  %v3070 = vadd.f32 %v2685, %v3069
  %v3071 = vpop.f32.mrb[0].mxu0
  %3072 = vmatprep.mubr.f32.mxu0 0.0
  %3073 = vmatmul.mubr.f32.gmra.mrb[0].mxu0 %v2488
  %v3074 = vpop.f32.mrb[0].mxu0
  %v3075 = vadd.f32 %v2690, %v3074
  %v3076 = vpop.f32.mrb[0].mxu0
  %3077 = vmatprep.mubr.f32.mxu0 0.0
  %3078 = vmatmul.mubr.f32.gmra.mrb[0].mxu0 %v2490
  %v3079 = vpop.f32.mrb[0].mxu0
  %v3080 = vadd.f32 %v2695, %v3079
  %v3081 = vpop.f32.mrb[0].mxu0
  %3082 = vmatprep.mubr.f32.mxu0 0.0
  %3083 = vmatmul.mubr.f32.gmra.mrb[0].mxu0 %v2492
  %v3084 = vpop.f32.mrb[0].mxu0
  %v3085 = vadd.f32 %v2700, %v3084
  %v3086 = vpop.f32.mrb[0].mxu0
  %3087 = vmatprep.mubr.f32.mxu0 0.0
  %3088 = vmatmul.mubr.f32.gmra.mrb[0].mxu0 %v2494
  %v3089 = vpop.f32.mrb[0].mxu0
  %v3090 = vadd.f32 %v2705, %v3089
  %v3091 = vpop.f32.mrb[0].mxu0
  %3092 = vmatprep.mubr.f32.mxu0 0.0
  %3093 = vmatmul.mubr.f32.gmra.mrb[0].mxu0 %v2496
  %v3094 = vpop.f32.mrb[0].mxu0
  %v3095 = vadd.f32 %v2710, %v3094
  %v3096 = vpop.f32.mrb[0].mxu0
  %3097 = vmatprep.mubr.f32.mxu0 0.0
  %3098 = vmatmul.mubr.f32.gmra.mrb[0].mxu0 %v2498
  %v3099 = vpop.f32.mrb[0].mxu0
  %v3100 = vadd.f32 %v2715, %v3099
  %v3101 = vpop.f32.mrb[0].mxu0
  %3102 = vmatprep.mubr.f32.mxu0 0.0
  %3103 = vmatmul.mubr.f32.gmra.mrb[0].mxu0 %v2500
  %v3104 = vpop.f32.mrb[0].mxu0
  %v3105 = vadd.f32 %v2720, %v3104
  %v3106 = vpop.f32.mrb[0].mxu0
  %3107 = vmatprep.mubr.f32.mxu0 0.0
  %3108 = vmatmul.mubr.f32.gmra.mrb[0].mxu0 %v2502
  %v3109 = vpop.f32.mrb[0].mxu0
  %v3110 = vadd.f32 %v2725, %v3109
  %v3111 = vpop.f32.mrb[0].mxu0
  %3112 = vmatprep.mubr.f32.mxu0 0.0
  %3113 = vmatmul.mubr.f32.gmra.mrb[0].mxu0 %v2488
  %v3114 = vpop.f32.mrb[0].mxu0
  %v3115 = vadd.f32 %v2730, %v3114
  %v3116 = vpop.f32.mrb[0].mxu0
  %3117 = vmatprep.mubr.f32.mxu0 0.0
  %3118 = vmatmul.mubr.f32.gmra.mrb[0].mxu0 %v2504
  %v3119 = vpop.f32.mrb[0].mxu0
  %v3120 = vadd.f32 %v2735, %v3119
  %v3121 = vpop.f32.mrb[0].mxu0
  %3122 = vmatprep.mubr.f32.mxu0 0.0
  %3123 = vmatmul.mubr.f32.gmra.mrb[0].mxu0 %v2506
  %v3124 = vpop.f32.mrb[0].mxu0
  %v3125 = vadd.f32 %v2740, %v3124
  %v3126 = vpop.f32.mrb[0].mxu0
  %3127 = vmatprep.mubr.f32.mxu0 0.0
  %3128 = vmatmul.mubr.f32.gmra.mrb[0].mxu0 %v2508
  %v3129 = vpop.f32.mrb[0].mxu0
  %v3130 = vadd.f32 %v2745, %v3129
  %v3131 = vpop.f32.mrb[0].mxu0
  %3132 = vmatprep.mubr.f32.mxu0 0.0
  %3133 = vmatmul.mubr.f32.gmra.mrb[0].mxu0 %v2510
  %v3134 = vpop.f32.mrb[0].mxu0
  %v3135 = vadd.f32 %v2750, %v3134
  %v3136 = vpop.f32.mrb[0].mxu0
  %3137 = vmatprep.mubr.f32.mxu0 0.0
  %3138 = vmatmul.mubr.f32.gmra.mrb[0].mxu0 %v2512
  %v3139 = vpop.f32.mrb[0].mxu0
  %v3140 = vadd.f32 %v2755, %v3139
  %v3141 = vpop.f32.mrb[0].mxu0
  %3142 = vmatprep.mubr.f32.mxu0 0.0
  %3143 = vmatmul.mubr.f32.gmra.mrb[0].mxu0 %v2514
  %v3144 = vpop.f32.mrb[0].mxu0
  %v3145 = vadd.f32 %v2760, %v3144
  %v3146 = vpop.f32.mrb[0].mxu0
  %3147 = vmatprep.mubr.f32.mxu0 0.0
  %3148 = vmatmul.mubr.f32.gmra.mrb[0].mxu0 %v2516
  %v3149 = vpop.f32.mrb[0].mxu0
  %v3150 = vadd.f32 %v2765, %v3149
  %v3151 = vpop.f32.mrb[0].mxu0
  %3152 = vmatprep.mubr.f32.mxu0 0.0
  %3153 = vmatmul.mubr.f32.gmra.mrb[0].mxu0 %v2488
  %v3154 = vpop.f32.mrb[0].mxu0
  %v3155 = vadd.f32 %v2770, %v3154
  %v3156 = vpop.f32.mrb[0].mxu0
  %3157 = vmatprep.mubr.f32.mxu0 0.0
  %3158 = vmatmul.mubr.f32.gmra.mrb[0].mxu0 %v2518
  %v3159 = vpop.f32.mrb[0].mxu0
  %v3160 = vadd.f32 %v2775, %v3159
  %v3161 = vpop.f32.mrb[0].mxu0
  %3162 = vmatprep.mubr.f32.mxu0 0.0
  %3163 = vmatmul.mubr.f32.gmra.mrb[0].mxu0 %v2520
  %v3164 = vpop.f32.mrb[0].mxu0
  %v3165 = vadd.f32 %v2780, %v3164
  %v3166 = vpop.f32.mrb[0].mxu0
  %3167 = vmatprep.mubr.f32.mxu0 0.0
  %3168 = vmatmul.mubr.f32.gmra.mrb[0].mxu0 %v2522
  %v3169 = vpop.f32.mrb[0].mxu0
  %v3170 = vadd.f32 %v2785, %v3169
  %v3171 = vpop.f32.mrb[0].mxu0
  %3172 = vmatprep.mubr.f32.mxu0 0.0
  %3173 = vmatmul.mubr.f32.gmra.mrb[0].mxu0 %v2524
  %v3174 = vpop.f32.mrb[0].mxu0
  %v3175 = vadd.f32 %v2790, %v3174
  %v3176 = vpop.f32.mrb[0].mxu0
  %3177 = vmatprep.mubr.f32.mxu0 0.0
  %3178 = vmatmul.mubr.f32.gmra.mrb[0].mxu0 %v2526
  %v3179 = vpop.f32.mrb[0].mxu0
  %v3180 = vadd.f32 %v2795, %v3179
  %v3181 = vpop.f32.mrb[0].mxu0
  %3182 = vmatprep.mubr.f32.mxu0 0.0
  %3183 = vmatmul.mubr.f32.gmra.mrb[0].mxu0 %v2528
  %v3184 = vpop.f32.mrb[0].mxu0
  %v3185 = vadd.f32 %v2800, %v3184
  %v3186 = vpop.f32.mrb[0].mxu0
  %3187 = vmatprep.mubr.f32.mxu0 0.0
  %3188 = vmatmul.mubr.f32.gmra.mrb[0].mxu0 %v2530
  %v3189 = vpop.f32.mrb[0].mxu0
  %v3190 = vadd.f32 %v2805, %v3189
  %v3191 = vpop.f32.mrb[0].mxu0
  %3192 = vmatprep.mubr.f32.mxu0 0.0
  %3193 = vmatmul.mubr.f32.gmra.mrb[0].mxu0 %v2488
  %v3194 = vpop.f32.mrb[0].mxu0
  %v3195 = vadd.f32 %v2810, %v3194
  %v3196 = vpop.f32.mrb[0].mxu0
  %3197 = vmatprep.mubr.f32.mxu0 0.0
  %3198 = vmatmul.mubr.f32.gmra.mrb[0].mxu0 %v2532
  %v3199 = vpop.f32.mrb[0].mxu0
  %v3200 = vadd.f32 %v2815, %v3199
  %v3201 = vpop.f32.mrb[0].mxu0
  %3202 = vmatprep.mubr.f32.mxu0 0.0
  %3203 = vmatmul.mubr.f32.gmra.mrb[0].mxu0 %v2534
  %v3204 = vpop.f32.mrb[0].mxu0
  %v3205 = vadd.f32 %v2820, %v3204
  %v3206 = vpop.f32.mrb[0].mxu0
  %3207 = vmatprep.mubr.f32.mxu0 0.0
  %3208 = vmatmul.mubr.f32.gmra.mrb[0].mxu0 %v2536
  %v3209 = vpop.f32.mrb[0].mxu0
  %v3210 = vadd.f32 %v2825, %v3209
  %v3211 = vpop.f32.mrb[0].mxu0
  %3212 = vmatprep.mubr.f32.mxu0 0.0
  %3213 = vmatmul.mubr.f32.gmra.mrb[0].mxu0 %v2538
  %v3214 = vpop.f32.mrb[0].mxu0
  %v3215 = vadd.f32 %v2830, %v3214
  %v3216 = vpop.f32.mrb[0].mxu0
  %3217 = vmatprep.mubr.f32.mxu0 0.0
  %3218 = vmatmul.mubr.f32.gmra.mrb[0].mxu0 %v2540
  %v3219 = vpop.f32.mrb[0].mxu0
  %v3220 = vadd.f32 %v2835, %v3219
  %v3221 = vpop.f32.mrb[0].mxu0
  %3222 = vmatprep.mubr.f32.mxu0 0.0
  %3223 = vmatmul.mubr.f32.gmra.mrb[0].mxu0 %v2542
  %v3224 = vpop.f32.mrb[0].mxu0
  %v3225 = vadd.f32 %v2840, %v3224
  %v3226 = vpop.f32.mrb[0].mxu0
  %3227 = vmatprep.mubr.f32.mxu0 0.0
  %3228 = vmatmul.mubr.f32.gmra.mrb[0].mxu0 %v2544
  %v3229 = vpop.f32.mrb[0].mxu0
  %v3230 = vadd.f32 %v2845, %v3229
  %v3231 = vpop.f32.mrb[0].mxu0
  %3232 = vmatprep.mubr.f32.mxu0 0.0
  %3233 = vmatmul.mubr.f32.gmra.mrb[0].mxu0 %v2488
  %v3234 = vpop.f32.mrb[0].mxu0
  %v3235 = vadd.f32 %v2850, %v3234
  %v3236 = vpop.f32.mrb[0].mxu0
  %3237 = vmatprep.mubr.f32.mxu0 0.0
  %3238 = vmatmul.mubr.f32.gmra.mrb[0].mxu0 %v2546
  %v3239 = vpop.f32.mrb[0].mxu0
  %v3240 = vadd.f32 %v2855, %v3239
  %v3241 = vpop.f32.mrb[0].mxu0
  %3242 = vmatprep.mubr.f32.mxu0 0.0
  %3243 = vmatmul.mubr.f32.gmra.mrb[0].mxu0 %v2548
  %v3244 = vpop.f32.mrb[0].mxu0
  %v3245 = vadd.f32 %v2860, %v3244
  %v3246 = vpop.f32.mrb[0].mxu0
  %3247 = vmatprep.mubr.f32.mxu0 0.0
  %3248 = vmatmul.mubr.f32.gmra.mrb[0].mxu0 %v2550
  %v3249 = vpop.f32.mrb[0].mxu0
  %v3250 = vadd.f32 %v2865, %v3249
  %v3251 = vpop.f32.mrb[0].mxu0
  %3252 = vmatprep.mubr.f32.mxu0 0.0
  %3253 = vmatmul.mubr.f32.gmra.mrb[0].mxu0 %v2552
  %v3254 = vpop.f32.mrb[0].mxu0
  %v3255 = vadd.f32 %v2870, %v3254
  %v3256 = vpop.f32.mrb[0].mxu0
  %3257 = vmatprep.mubr.f32.mxu0 0.0
  %3258 = vmatmul.mubr.f32.gmra.mrb[0].mxu0 %v2554
  %v3259 = vpop.f32.mrb[0].mxu0
  %v3260 = vadd.f32 %v2875, %v3259
  %v3261 = vpop.f32.mrb[0].mxu0
  %3262 = vmatprep.mubr.f32.mxu0 0.0
  %3263 = vmatmul.mubr.f32.gmra.mrb[0].mxu0 %v2556
  %v3264 = vpop.f32.mrb[0].mxu0
  %v3265 = vadd.f32 %v2880, %v3264
  %v3266 = vpop.f32.mrb[0].mxu0
  %3267 = vmatprep.mubr.f32.mxu0 0.0
  %3268 = vmatmul.mubr.f32.gmra.mrb[0].mxu0 %v2558
  %v3269 = vpop.f32.mrb[0].mxu0
  %v3270 = vadd.f32 %v2885, %v3269
  %v3271 = vpop.f32.mrb[0].mxu0
  %3272 = vmatprep.mubr.f32.mxu0 0.0
  %3273 = vmatmul.mubr.f32.gmra.mrb[0].mxu0 %v2488
  %v3274 = vpop.f32.mrb[0].mxu0
  %v3275 = vadd.f32 %v2890, %v3274
  %v3276 = vpop.f32.mrb[0].mxu0
  %3277 = vmatprep.mubr.f32.mxu0 0.0
  %3278 = vmatmul.mubr.f32.gmra.mrb[0].mxu0 %v2560
  %v3279 = vpop.f32.mrb[0].mxu0
  %v3280 = vadd.f32 %v2895, %v3279
  %v3281 = vpop.f32.mrb[0].mxu0
  %3282 = vmatprep.mubr.f32.mxu0 0.0
  %3283 = vmatmul.mubr.f32.gmra.mrb[0].mxu0 %v2562
  %v3284 = vpop.f32.mrb[0].mxu0
  %v3285 = vadd.f32 %v2900, %v3284
  %v3286 = vpop.f32.mrb[0].mxu0
  %3287 = vmatprep.mubr.f32.mxu0 0.0
  %3288 = vmatmul.mubr.f32.gmra.mrb[0].mxu0 %v2564
  %v3289 = vpop.f32.mrb[0].mxu0
  %v3290 = vadd.f32 %v2905, %v3289
  %v3291 = vpop.f32.mrb[0].mxu0
  %3292 = vmatprep.mubr.f32.mxu0 0.0
  %3293 = vmatmul.mubr.f32.gmra.mrb[0].mxu0 %v2566
  %v3294 = vpop.f32.mrb[0].mxu0
  %v3295 = vadd.f32 %v2910, %v3294
  %v3296 = vpop.f32.mrb[0].mxu0
  %3297 = vmatprep.mubr.f32.mxu0 0.0
  %3298 = vmatmul.mubr.f32.gmra.mrb[0].mxu0 %v2568
  %v3299 = vpop.f32.mrb[0].mxu0
  %v3300 = vadd.f32 %v2915, %v3299
  %v3301 = vpop.f32.mrb[0].mxu0
  %3302 = vmatprep.mubr.f32.mxu0 0.0
  %3303 = vmatmul.mubr.f32.gmra.mrb[0].mxu0 %v2570
  %v3304 = vpop.f32.mrb[0].mxu0
  %v3305 = vadd.f32 %v2920, %v3304
  %v3306 = vpop.f32.mrb[0].mxu0
  %3307 = vmatprep.mubr.f32.mxu0 0.0
  %3308 = vmatmul.mubr.f32.gmra.mrb[0].mxu0 %v2572
  %v3309 = vpop.f32.mrb[0].mxu0
  %v3310 = vadd.f32 %v2925, %v3309
  %v3311 = vpop.f32.mrb[0].mxu0
  %3312 = vmatprep.mubr.f32.mxu0 0.0
  %3313 = vmatmul.mubr.f32.gmra.mrb[0].mxu0 %v2488
  %v3314 = vpop.f32.mrb[0].mxu0
  %v3315 = vadd.f32 %v2930, %v3314
  %v3316 = vpop.f32.mrb[0].mxu0
  %3317 = vmatprep.mubr.f32.mxu0 0.0
  %3318 = vmatmul.mubr.f32.gmra.mrb[0].mxu0 %v2574
  %v3319 = vpop.f32.mrb[0].mxu0
  %v3320 = vadd.f32 %v2935, %v3319
  %v3321 = vpop.f32.mrb[0].mxu0
  %3322 = vmatprep.mubr.f32.mxu0 0.0
  %3323 = vmatmul.mubr.f32.gmra.mrb[0].mxu0 %v2576
  %v3324 = vpop.f32.mrb[0].mxu0
  %v3325 = vadd.f32 %v2940, %v3324
  %v3326 = vpop.f32.mrb[0].mxu0
  %3327 = vmatprep.mubr.f32.mxu0 0.0
  %3328 = vmatmul.mubr.f32.gmra.mrb[0].mxu0 %v2578
  %v3329 = vpop.f32.mrb[0].mxu0
  %v3330 = vadd.f32 %v2945, %v3329
  %v3331 = vpop.f32.mrb[0].mxu0
  %3332 = vmatprep.mubr.f32.mxu0 0.0
  %3333 = vmatmul.mubr.f32.gmra.mrb[0].mxu0 %v2580
  %v3334 = vpop.f32.mrb[0].mxu0
  %v3335 = vadd.f32 %v2950, %v3334
  %v3336 = vpop.f32.mrb[0].mxu0
  %3337 = vmatprep.mubr.f32.mxu0 0.0
  %3338 = vmatmul.mubr.f32.gmra.mrb[0].mxu0 %v2582
  %v3339 = vpop.f32.mrb[0].mxu0
  %v3340 = vadd.f32 %v2955, %v3339
  %v3341 = vpop.f32.mrb[0].mxu0
  %3342 = vmatprep.mubr.f32.mxu0 0.0
  %3343 = vmatmul.mubr.f32.gmra.mrb[0].mxu0 %v2584
  %v3344 = vpop.f32.mrb[0].mxu0
  %v3345 = vadd.f32 %v2960, %v3344
  %v3346 = vpop.f32.mrb[0].mxu0
  %3347 = vmatprep.mubr.f32.mxu0 0.0
  %3348 = vmatmul.mubr.f32.gmra.mrb[0].mxu0 %v2586
  %v3349 = vpop.f32.mrb[0].mxu0
  %v3350 = vadd.f32 %v2965, %v3349
  %v3351 = vpop.f32.mrb[0].mxu0
  %3352 = vmatprep.mubr.f32.mxu0 0.0
  %3353 = vmatmul.mubr.f32.gmra.mrb[0].mxu0 %v2488
  %v3354 = vpop.f32.mrb[0].mxu0
  %v3355 = vadd.f32 %v2970, %v3354
  %v3356 = vpop.f32.mrb[0].mxu0
  %3357 = vdwg.mxu0
  %vm3358 = vcmp.ge.f32.partialorder %v3040, 0.0
  %vm3359 = vcmp.ge.f32.partialorder %v3045, 0.0
  %vm3360 = vcmp.ge.f32.partialorder %v3050, 0.0
  %vm3361 = vcmp.ge.f32.partialorder %v3055, 0.0
  %vm3362 = vcmp.ge.f32.partialorder %v3060, 0.0
  %vm3363 = vcmp.ge.f32.partialorder %v3065, 0.0
  %vm3364 = vcmp.ge.f32.partialorder %v3070, 0.0
  %vm3365 = vcmp.ge.f32.partialorder %v3075, 0.0
  %vm3366 = vcmp.ge.f32.partialorder %v3080, 0.0
  %vm3367 = vcmp.ge.f32.partialorder %v3085, 0.0
  %vm3368 = vcmp.ge.f32.partialorder %v3090, 0.0
  %vm3369 = vcmp.ge.f32.partialorder %v3095, 0.0
  %vm3370 = vcmp.ge.f32.partialorder %v3100, 0.0
  %vm3371 = vcmp.ge.f32.partialorder %v3105, 0.0
  %vm3372 = vcmp.ge.f32.partialorder %v3110, 0.0
  %vm3373 = vcmp.ge.f32.partialorder %v3115, 0.0
  %vm3374 = vcmp.ge.f32.partialorder %v3120, 0.0
  %vm3375 = vcmp.ge.f32.partialorder %v3125, 0.0
  %vm3376 = vcmp.ge.f32.partialorder %v3130, 0.0
  %vm3377 = vcmp.ge.f32.partialorder %v3135, 0.0
  %vm3378 = vcmp.ge.f32.partialorder %v3140, 0.0
  %vm3379 = vcmp.ge.f32.partialorder %v3145, 0.0
  %vm3380 = vcmp.ge.f32.partialorder %v3150, 0.0
  %vm3381 = vcmp.ge.f32.partialorder %v3155, 0.0
  %vm3382 = vcmp.ge.f32.partialorder %v3160, 0.0
  %vm3383 = vcmp.ge.f32.partialorder %v3165, 0.0
  %vm3384 = vcmp.ge.f32.partialorder %v3170, 0.0
  %vm3385 = vcmp.ge.f32.partialorder %v3175, 0.0
  %vm3386 = vcmp.ge.f32.partialorder %v3180, 0.0
  %vm3387 = vcmp.ge.f32.partialorder %v3185, 0.0
  %vm3388 = vcmp.ge.f32.partialorder %v3190, 0.0
  %vm3389 = vcmp.ge.f32.partialorder %v3195, 0.0
  %vm3390 = vcmp.ge.f32.partialorder %v3200, 0.0
  %vm3391 = vcmp.ge.f32.partialorder %v3205, 0.0
  %vm3392 = vcmp.ge.f32.partialorder %v3210, 0.0
  %vm3393 = vcmp.ge.f32.partialorder %v3215, 0.0
  %vm3394 = vcmp.ge.f32.partialorder %v3220, 0.0
  %vm3395 = vcmp.ge.f32.partialorder %v3225, 0.0
  %vm3396 = vcmp.ge.f32.partialorder %v3230, 0.0
  %vm3397 = vcmp.ge.f32.partialorder %v3235, 0.0
  %vm3398 = vcmp.ge.f32.partialorder %v3240, 0.0
  %vm3399 = vcmp.ge.f32.partialorder %v3245, 0.0
  %vm3400 = vcmp.ge.f32.partialorder %v3250, 0.0
  %vm3401 = vcmp.ge.f32.partialorder %v3255, 0.0
  %vm3402 = vcmp.ge.f32.partialorder %v3260, 0.0
  %vm3403 = vcmp.ge.f32.partialorder %v3265, 0.0
  %vm3404 = vcmp.ge.f32.partialorder %v3270, 0.0
  %vm3405 = vcmp.ge.f32.partialorder %v3275, 0.0
  %vm3406 = vcmp.ge.f32.partialorder %v3280, 0.0
  %vm3407 = vcmp.ge.f32.partialorder %v3285, 0.0
  %vm3408 = vcmp.ge.f32.partialorder %v3290, 0.0
  %vm3409 = vcmp.ge.f32.partialorder %v3295, 0.0
  %vm3410 = vcmp.ge.f32.partialorder %v3300, 0.0
  %vm3411 = vcmp.ge.f32.partialorder %v3305, 0.0
  %vm3412 = vcmp.ge.f32.partialorder %v3310, 0.0
  %vm3413 = vcmp.ge.f32.partialorder %v3315, 0.0
  %vm3414 = vcmp.ge.f32.partialorder %v3320, 0.0
  %vm3415 = vcmp.ge.f32.partialorder %v3325, 0.0
  %vm3416 = vcmp.ge.f32.partialorder %v3330, 0.0
  %vm3417 = vcmp.ge.f32.partialorder %v3335, 0.0
  %vm3418 = vcmp.ge.f32.partialorder %v3340, 0.0
  %vm3419 = vcmp.ge.f32.partialorder %v3345, 0.0
  %vm3420 = vcmp.ge.f32.partialorder %v3350, 0.0
  %vm3421 = vcmp.ge.f32.partialorder %v3355, 0.0
  %v3422 = vmul.f32 %v3040, 0.01
  %v3423 = vmul.f32 %v3045, 0.01
  %v3424 = vmul.f32 %v3050, 0.01
  %v3425 = vmul.f32 %v3055, 0.01
  %v3426 = vmul.f32 %v3060, 0.01
  %v3427 = vmul.f32 %v3065, 0.01
  %v3428 = vmul.f32 %v3070, 0.01
  %v3429 = vmul.f32 %v3075, 0.01
  %v3430 = vmul.f32 %v3080, 0.01
  %v3431 = vmul.f32 %v3085, 0.01
  %v3432 = vmul.f32 %v3090, 0.01
  %v3433 = vmul.f32 %v3095, 0.01
  %v3434 = vmul.f32 %v3100, 0.01
  %v3435 = vmul.f32 %v3105, 0.01
  %v3436 = vmul.f32 %v3110, 0.01
  %v3437 = vmul.f32 %v3115, 0.01
  %v3438 = vmul.f32 %v3120, 0.01
  %v3439 = vmul.f32 %v3125, 0.01
  %v3440 = vmul.f32 %v3130, 0.01
  %v3441 = vmul.f32 %v3135, 0.01
  %v3442 = vmul.f32 %v3140, 0.01
  %v3443 = vmul.f32 %v3145, 0.01
  %v3444 = vmul.f32 %v3150, 0.01
  %v3445 = vmul.f32 %v3155, 0.01
  %v3446 = vmul.f32 %v3160, 0.01
  %v3447 = vmul.f32 %v3165, 0.01
  %v3448 = vmul.f32 %v3170, 0.01
  %v3449 = vmul.f32 %v3175, 0.01
  %v3450 = vmul.f32 %v3180, 0.01
  %v3451 = vmul.f32 %v3185, 0.01
  %v3452 = vmul.f32 %v3190, 0.01
  %v3453 = vmul.f32 %v3195, 0.01
  %v3454 = vmul.f32 %v3200, 0.01
  %v3455 = vmul.f32 %v3205, 0.01
  %v3456 = vmul.f32 %v3210, 0.01
  %v3457 = vmul.f32 %v3215, 0.01
  %v3458 = vmul.f32 %v3220, 0.01
  %v3459 = vmul.f32 %v3225, 0.01
  %v3460 = vmul.f32 %v3230, 0.01
  %v3461 = vmul.f32 %v3235, 0.01
  %v3462 = vmul.f32 %v3240, 0.01
  %v3463 = vmul.f32 %v3245, 0.01
  %v3464 = vmul.f32 %v3250, 0.01
  %v3465 = vmul.f32 %v3255, 0.01
  %v3466 = vmul.f32 %v3260, 0.01
  %v3467 = vmul.f32 %v3265, 0.01
  %v3468 = vmul.f32 %v3270, 0.01
  %v3469 = vmul.f32 %v3275, 0.01
  %v3470 = vmul.f32 %v3280, 0.01
  %v3471 = vmul.f32 %v3285, 0.01
  %v3472 = vmul.f32 %v3290, 0.01
  %v3473 = vmul.f32 %v3295, 0.01
  %v3474 = vmul.f32 %v3300, 0.01
  %v3475 = vmul.f32 %v3305, 0.01
  %v3476 = vmul.f32 %v3310, 0.01
  %v3477 = vmul.f32 %v3315, 0.01
  %v3478 = vmul.f32 %v3320, 0.01
  %v3479 = vmul.f32 %v3325, 0.01
  %v3480 = vmul.f32 %v3330, 0.01
  %v3481 = vmul.f32 %v3335, 0.01
  %v3482 = vmul.f32 %v3340, 0.01
  %v3483 = vmul.f32 %v3345, 0.01
  %v3484 = vmul.f32 %v3350, 0.01
  %v3485 = vmul.f32 %v3355, 0.01
  %v3486 = vsel %vm3358, %v3040, %v3422
  %v3487 = vsel %vm3359, %v3045, %v3423
  %v3488 = vsel %vm3360, %v3050, %v3424
  %v3489 = vsel %vm3361, %v3055, %v3425
  %v3490 = vsel %vm3362, %v3060, %v3426
  %v3491 = vsel %vm3363, %v3065, %v3427
  %v3492 = vsel %vm3364, %v3070, %v3428
  %v3493 = vsel %vm3365, %v3075, %v3429
  %v3494 = vsel %vm3366, %v3080, %v3430
  %v3495 = vsel %vm3367, %v3085, %v3431
  %v3496 = vsel %vm3368, %v3090, %v3432
  %v3497 = vsel %vm3369, %v3095, %v3433
  %v3498 = vsel %vm3370, %v3100, %v3434
  %v3499 = vsel %vm3371, %v3105, %v3435
  %v3500 = vsel %vm3372, %v3110, %v3436
  %v3501 = vsel %vm3373, %v3115, %v3437
  %v3502 = vsel %vm3374, %v3120, %v3438
  %v3503 = vsel %vm3375, %v3125, %v3439
  %v3504 = vsel %vm3376, %v3130, %v3440
  %v3505 = vsel %vm3377, %v3135, %v3441
  %v3506 = vsel %vm3378, %v3140, %v3442
  %v3507 = vsel %vm3379, %v3145, %v3443
  %v3508 = vsel %vm3380, %v3150, %v3444
  %v3509 = vsel %vm3381, %v3155, %v3445
  %v3510 = vsel %vm3382, %v3160, %v3446
  %v3511 = vsel %vm3383, %v3165, %v3447
  %v3512 = vsel %vm3384, %v3170, %v3448
  %v3513 = vsel %vm3385, %v3175, %v3449
  %v3514 = vsel %vm3386, %v3180, %v3450
  %v3515 = vsel %vm3387, %v3185, %v3451
  %v3516 = vsel %vm3388, %v3190, %v3452
  %v3517 = vsel %vm3389, %v3195, %v3453
  %v3518 = vsel %vm3390, %v3200, %v3454
  %v3519 = vsel %vm3391, %v3205, %v3455
  %v3520 = vsel %vm3392, %v3210, %v3456
  %v3521 = vsel %vm3393, %v3215, %v3457
  %v3522 = vsel %vm3394, %v3220, %v3458
  %v3523 = vsel %vm3395, %v3225, %v3459
  %v3524 = vsel %vm3396, %v3230, %v3460
  %v3525 = vsel %vm3397, %v3235, %v3461
  %v3526 = vsel %vm3398, %v3240, %v3462
  %v3527 = vsel %vm3399, %v3245, %v3463
  %v3528 = vsel %vm3400, %v3250, %v3464
  %v3529 = vsel %vm3401, %v3255, %v3465
  %v3530 = vsel %vm3402, %v3260, %v3466
  %v3531 = vsel %vm3403, %v3265, %v3467
  %v3532 = vsel %vm3404, %v3270, %v3468
  %v3533 = vsel %vm3405, %v3275, %v3469
  %v3534 = vsel %vm3406, %v3280, %v3470
  %v3535 = vsel %vm3407, %v3285, %v3471
  %v3536 = vsel %vm3408, %v3290, %v3472
  %v3537 = vsel %vm3409, %v3295, %v3473
  %v3538 = vsel %vm3410, %v3300, %v3474
  %v3539 = vsel %vm3411, %v3305, %v3475
  %v3540 = vsel %vm3412, %v3310, %v3476
  %v3541 = vsel %vm3413, %v3315, %v3477
  %v3542 = vsel %vm3414, %v3320, %v3478
  %v3543 = vsel %vm3415, %v3325, %v3479
  %v3544 = vsel %vm3416, %v3330, %v3480
  %v3545 = vsel %vm3417, %v3335, %v3481
  %v3546 = vsel %vm3418, %v3340, %v3482
  %v3547 = vsel %vm3419, %v3345, %v3483
  %v3548 = vsel %vm3420, %v3350, %v3484
  %v3549 = vsel %vm3421, %v3355, %v3485
  %3550 = vst.msk [vmem:[%s3] sm:$0xff] %vm2116, %v3486
  %3551 = vst.msk [vmem:[%s3 + $0x8] sm:$0xff] %vm2116, %v3487
  %3552 = vst.msk [vmem:[%s3 + $0x10] sm:$0xff] %vm2116, %v3488
  %3553 = vst.msk [vmem:[%s3 + $0x18] sm:$0xff] %vm2116, %v3489
  %3554 = vst.msk [vmem:[%s3 + $0x20] sm:$0xff] %vm2116, %v3490
  %3555 = vst.msk [vmem:[%s3 + $0x28] sm:$0xff] %vm2116, %v3491
  %3556 = vst.msk [vmem:[%s3 + $0x30] sm:$0xff] %vm2116, %v3492
  %3557 = vst.msk [vmem:[%s3 + $0x38] sm:$0xff] %vm2116, %v3493
  %3558 = vst.msk [vmem:[%s3 + $0x40] sm:$0xff] %vm2116, %v3494
  %3559 = vst.msk [vmem:[%s3 + $0x48] sm:$0xff] %vm2116, %v3495
  %3560 = vst.msk [vmem:[%s3 + $0x50] sm:$0xff] %vm2116, %v3496
  %3561 = vst.msk [vmem:[%s3 + $0x58] sm:$0xff] %vm2116, %v3497
  %3562 = vst.msk [vmem:[%s3 + $0x60] sm:$0xff] %vm2116, %v3498
  %3563 = vst.msk [vmem:[%s3 + $0x68] sm:$0xff] %vm2116, %v3499
  %3564 = vst.msk [vmem:[%s3 + $0x70] sm:$0xff] %vm2116, %v3500
  %3565 = vst.msk [vmem:[%s3 + $0x78] sm:$0xff] %vm2116, %v3501
  %3566 = vst.msk [vmem:[%s3 + $0x80] sm:$0xff] %vm2116, %v3502
  %3567 = vst.msk [vmem:[%s3 + $0x88] sm:$0xff] %vm2116, %v3503
  %3568 = vst.msk [vmem:[%s3 + $0x90] sm:$0xff] %vm2116, %v3504
  %3569 = vst.msk [vmem:[%s3 + $0x98] sm:$0xff] %vm2116, %v3505
  %3570 = vst.msk [vmem:[%s3 + $0xa0] sm:$0xff] %vm2116, %v3506
  %3571 = vst.msk [vmem:[%s3 + $0xa8] sm:$0xff] %vm2116, %v3507
  %3572 = vst.msk [vmem:[%s3 + $0xb0] sm:$0xff] %vm2116, %v3508
  %3573 = vst.msk [vmem:[%s3 + $0xb8] sm:$0xff] %vm2116, %v3509
  %3574 = vst.msk [vmem:[%s3 + $0xc0] sm:$0xff] %vm2116, %v3510
  %3575 = vst.msk [vmem:[%s3 + $0xc8] sm:$0xff] %vm2116, %v3511
  %3576 = vst.msk [vmem:[%s3 + $0xd0] sm:$0xff] %vm2116, %v3512
  %3577 = vst.msk [vmem:[%s3 + $0xd8] sm:$0xff] %vm2116, %v3513
  %3578 = vst.msk [vmem:[%s3 + $0xe0] sm:$0xff] %vm2116, %v3514
  %3579 = vst.msk [vmem:[%s3 + $0xe8] sm:$0xff] %vm2116, %v3515
  %3580 = vst.msk [vmem:[%s3 + $0xf0] sm:$0xff] %vm2116, %v3516
  %3581 = vst.msk [vmem:[%s3 + $0xf8] sm:$0xff] %vm2116, %v3517
  %3582 = vst.msk [vmem:[%s3 + $0x100] sm:$0xff] %vm2116, %v3518
  %3583 = vst.msk [vmem:[%s3 + $0x108] sm:$0xff] %vm2116, %v3519
  %3584 = vst.msk [vmem:[%s3 + $0x110] sm:$0xff] %vm2116, %v3520
  %3585 = vst.msk [vmem:[%s3 + $0x118] sm:$0xff] %vm2116, %v3521
  %3586 = vst.msk [vmem:[%s3 + $0x120] sm:$0xff] %vm2116, %v3522
  %3587 = vst.msk [vmem:[%s3 + $0x128] sm:$0xff] %vm2116, %v3523
  %3588 = vst.msk [vmem:[%s3 + $0x130] sm:$0xff] %vm2116, %v3524
  %3589 = vst.msk [vmem:[%s3 + $0x138] sm:$0xff] %vm2116, %v3525
  %3590 = vst.msk [vmem:[%s3 + $0x140] sm:$0xff] %vm2116, %v3526
  %3591 = vst.msk [vmem:[%s3 + $0x148] sm:$0xff] %vm2116, %v3527
  %3592 = vst.msk [vmem:[%s3 + $0x150] sm:$0xff] %vm2116, %v3528
  %3593 = vst.msk [vmem:[%s3 + $0x158] sm:$0xff] %vm2116, %v3529
  %3594 = vst.msk [vmem:[%s3 + $0x160] sm:$0xff] %vm2116, %v3530
  %3595 = vst.msk [vmem:[%s3 + $0x168] sm:$0xff] %vm2116, %v3531
  %3596 = vst.msk [vmem:[%s3 + $0x170] sm:$0xff] %vm2116, %v3532
  %3597 = vst.msk [vmem:[%s3 + $0x178] sm:$0xff] %vm2116, %v3533
  %3598 = vst.msk [vmem:[%s3 + $0x180] sm:$0xff] %vm2116, %v3534
  %3599 = vst.msk [vmem:[%s3 + $0x188] sm:$0xff] %vm2116, %v3535
  %3600 = vst.msk [vmem:[%s3 + $0x190] sm:$0xff] %vm2116, %v3536
  %3601 = vst.msk [vmem:[%s3 + $0x198] sm:$0xff] %vm2116, %v3537
  %3602 = vst.msk [vmem:[%s3 + $0x1a0] sm:$0xff] %vm2116, %v3538
  %3603 = vst.msk [vmem:[%s3 + $0x1a8] sm:$0xff] %vm2116, %v3539
  %3604 = vst.msk [vmem:[%s3 + $0x1b0] sm:$0xff] %vm2116, %v3540
  %3605 = vst.msk [vmem:[%s3 + $0x1b8] sm:$0xff] %vm2116, %v3541
  %3606 = vst.msk [vmem:[%s3 + $0x1c0] sm:$0xff] %vm2116, %v3542
  %3607 = vst.msk [vmem:[%s3 + $0x1c8] sm:$0xff] %vm2116, %v3543
  %3608 = vst.msk [vmem:[%s3 + $0x1d0] sm:$0xff] %vm2116, %v3544
  %3609 = vst.msk [vmem:[%s3 + $0x1d8] sm:$0xff] %vm2116, %v3545
  %3610 = vst.msk [vmem:[%s3 + $0x1e0] sm:$0xff] %vm2116, %v3546
  %3611 = vst.msk [vmem:[%s3 + $0x1e8] sm:$0xff] %vm2116, %v3547
  %3612 = vst.msk [vmem:[%s3 + $0x1f0] sm:$0xff] %vm2116, %v3548
  %3613 = vst.msk [vmem:[%s3 + $0x1f8] sm:$0xff] %vm2116, %v3549
  // Predicated region
  $region14: #{mixed_3b_forward.7} parent=0 // pred_check
    _
  $region15: #{mixed_3b_forward.7} parent=0 // pred_check_branch
    %3615 = sbr.rel (0) target = $region17
  $region16: #{mixed_3b_forward.7} parent=0 // pred_region
    _
  $region17: #{mixed_3b_forward.7} parent=0 // pred_fallthru
    _
  // Predicated region
  $region18: #{mixed_3b_forward.7} parent=0 // pred_check
    _
  $region19: #{mixed_3b_forward.7} parent=0 // pred_check_branch
    %3617 = sbr.rel (0) target = $region21
  $region20: #{mixed_3b_forward.7} parent=0 // pred_region
    _
  $region21: #{mixed_3b_forward.7} parent=0 // pred_fallthru
    _

// kernel: mixed_3b_forward.9
$region0: #{mixed_3b_forward.9}
  #allocation0 [shape = 'u32[]', space=smem, size = 0x4, offset = 0x4, fixed_abs, tag = 'smem constant byte address 0x4 - core index']
  #allocation1 [shape = 'u32[144,128]{1,0:T(1,128)}', space=vmem, size = 0x12000, scoped, tag = 'internal scratch']
  %s0 = inlined_call_operand.vmem [shape: f32[8,8,8,16], index: 0, kind: input, shape index: {}]
  %s1 = inlined_call_operand.vmem [shape: f32[144,16], index: 1, kind: input, shape index: {}]
  %s2 = inlined_call_operand.vmem [shape: f32[1,16], index: 2, kind: input, shape index: {}]
  %s3 = inlined_call_operand.vmem [shape: f32[8,8,8,16], index: 3, kind: output, shape index: {}]
  %s4 = sld [smem:[#allocation0]]
  $region22: #{mixed_3b_forward.9} parent=0
    _
  %s6 = ssub.s32 1, %s4
  %s7 = scalar_select 0, %s6, %s4
  // Predicated region
  $region2: #{mixed_3b_forward.9} parent=0 // pred_check
    _
  $region3: #{mixed_3b_forward.9} parent=0 // pred_check_branch
    %9 = sbr.rel (0) target = $region5
  $region4: #{mixed_3b_forward.9} parent=0 // pred_region
    _
  $region5: #{mixed_3b_forward.9} parent=0 // pred_fallthru
    _
  // Predicated region
  $region6: #{mixed_3b_forward.9} parent=0 // pred_check
    _
  $region7: #{mixed_3b_forward.9} parent=0 // pred_check_branch
    %11 = sbr.rel (0) target = $region9
  $region8: #{mixed_3b_forward.9} parent=0 // pred_region
    _
  $region9: #{mixed_3b_forward.9} parent=0 // pred_fallthru
    _
  // Predicated region
  $region10: #{mixed_3b_forward.9} parent=0 // pred_check
    _
  $region11: #{mixed_3b_forward.9} parent=0 // pred_check_branch
    %13 = sbr.rel (0) target = $region13
  $region12: #{mixed_3b_forward.9} parent=0 // pred_region
    _
  $region13: #{mixed_3b_forward.9} parent=0 // pred_fallthru
    _
  %v14 = vld [vmem:[%s0] sm:$0xff]
  %v15 = vld [vmem:[%s0 + $0x8] sm:$0xff]
  %v16 = vld [vmem:[%s0 + $0x10] sm:$0xff]
  %v17 = vld [vmem:[%s0 + $0x18] sm:$0xff]
  %v18 = vld [vmem:[%s0 + $0x20] sm:$0xff]
  %v19 = vld [vmem:[%s0 + $0x28] sm:$0xff]
  %v20 = vld [vmem:[%s0 + $0x30] sm:$0xff]
  %v21 = vld [vmem:[%s0 + $0x38] sm:$0xff]
  %v22 = vld [vmem:[%s0 + $0x40] sm:$0xff]
  %v23 = vld [vmem:[%s0 + $0x48] sm:$0xff]
  %v24 = vld [vmem:[%s0 + $0x50] sm:$0xff]
  %v25 = vld [vmem:[%s0 + $0x58] sm:$0xff]
  %v26 = vld [vmem:[%s0 + $0x60] sm:$0xff]
  %v27 = vld [vmem:[%s0 + $0x68] sm:$0xff]
  %v28 = vld [vmem:[%s0 + $0x70] sm:$0xff]
  %v29 = vld [vmem:[%s0 + $0x78] sm:$0xff]
  %v30 = vld [vmem:[%s0 + $0x80] sm:$0xff]
  %v31 = vld [vmem:[%s0 + $0x88] sm:$0xff]
  %v32 = vld [vmem:[%s0 + $0x90] sm:$0xff]
  %v33 = vld [vmem:[%s0 + $0x98] sm:$0xff]
  %v34 = vld [vmem:[%s0 + $0xa0] sm:$0xff]
  %v35 = vld [vmem:[%s0 + $0xa8] sm:$0xff]
  %v36 = vld [vmem:[%s0 + $0xb0] sm:$0xff]
  %v37 = vld [vmem:[%s0 + $0xb8] sm:$0xff]
  %v38 = vld [vmem:[%s0 + $0xc0] sm:$0xff]
  %v39 = vld [vmem:[%s0 + $0xc8] sm:$0xff]
  %v40 = vld [vmem:[%s0 + $0xd0] sm:$0xff]
  %v41 = vld [vmem:[%s0 + $0xd8] sm:$0xff]
  %v42 = vld [vmem:[%s0 + $0xe0] sm:$0xff]
  %v43 = vld [vmem:[%s0 + $0xe8] sm:$0xff]
  %v44 = vld [vmem:[%s0 + $0xf0] sm:$0xff]
  %v45 = vld [vmem:[%s0 + $0xf8] sm:$0xff]
  %v46 = vld [vmem:[%s0 + $0x100] sm:$0xff]
  %v47 = vld [vmem:[%s0 + $0x108] sm:$0xff]
  %v48 = vld [vmem:[%s0 + $0x110] sm:$0xff]
  %v49 = vld [vmem:[%s0 + $0x118] sm:$0xff]
  %v50 = vld [vmem:[%s0 + $0x120] sm:$0xff]
  %v51 = vld [vmem:[%s0 + $0x128] sm:$0xff]
  %v52 = vld [vmem:[%s0 + $0x130] sm:$0xff]
  %v53 = vld [vmem:[%s0 + $0x138] sm:$0xff]
  %v54 = vld [vmem:[%s0 + $0x140] sm:$0xff]
  %v55 = vld [vmem:[%s0 + $0x148] sm:$0xff]
  %v56 = vld [vmem:[%s0 + $0x150] sm:$0xff]
  %v57 = vld [vmem:[%s0 + $0x158] sm:$0xff]
  %v58 = vld [vmem:[%s0 + $0x160] sm:$0xff]
  %v59 = vld [vmem:[%s0 + $0x168] sm:$0xff]
  %v60 = vld [vmem:[%s0 + $0x170] sm:$0xff]
  %v61 = vld [vmem:[%s0 + $0x178] sm:$0xff]
  %v62 = vld [vmem:[%s0 + $0x180] sm:$0xff]
  %v63 = vld [vmem:[%s0 + $0x188] sm:$0xff]
  %v64 = vld [vmem:[%s0 + $0x190] sm:$0xff]
  %v65 = vld [vmem:[%s0 + $0x198] sm:$0xff]
  %v66 = vld [vmem:[%s0 + $0x1a0] sm:$0xff]
  %v67 = vld [vmem:[%s0 + $0x1a8] sm:$0xff]
  %v68 = vld [vmem:[%s0 + $0x1b0] sm:$0xff]
  %v69 = vld [vmem:[%s0 + $0x1b8] sm:$0xff]
  %v70 = vld [vmem:[%s0 + $0x1c0] sm:$0xff]
  %v71 = vld [vmem:[%s0 + $0x1c8] sm:$0xff]
  %v72 = vld [vmem:[%s0 + $0x1d0] sm:$0xff]
  %v73 = vld [vmem:[%s0 + $0x1d8] sm:$0xff]
  %v74 = vld [vmem:[%s0 + $0x1e0] sm:$0xff]
  %v75 = vld [vmem:[%s0 + $0x1e8] sm:$0xff]
  %v76 = vld [vmem:[%s0 + $0x1f0] sm:$0xff]
  %v77 = vld [vmem:[%s0 + $0x1f8] sm:$0xff]
  %v143 = vrot.slane 0.0, 7
  %v144 = vrot.slane %v14, 7
  %v145 = vrot.slane %v15, 7
  %v146 = vrot.slane %v16, 7
  %v147 = vrot.slane %v17, 7
  %v148 = vrot.slane %v18, 7
  %v149 = vrot.slane %v19, 7
  %v150 = vrot.slane %v20, 7
  %v151 = vrot.slane %v21, 7
  %v152 = vrot.slane %v22, 7
  %v153 = vrot.slane %v23, 7
  %v154 = vrot.slane %v24, 7
  %v155 = vrot.slane %v25, 7
  %v156 = vrot.slane %v26, 7
  %v157 = vrot.slane %v27, 7
  %v158 = vrot.slane %v28, 7
  %v159 = vrot.slane %v29, 7
  %v160 = vrot.slane %v30, 7
  %v161 = vrot.slane %v31, 7
  %v162 = vrot.slane %v32, 7
  %v163 = vrot.slane %v33, 7
  %v164 = vrot.slane %v34, 7
  %v165 = vrot.slane %v35, 7
  %v166 = vrot.slane %v36, 7
  %v167 = vrot.slane %v37, 7
  %v168 = vrot.slane %v38, 7
  %v169 = vrot.slane %v39, 7
  %v170 = vrot.slane %v40, 7
  %v171 = vrot.slane %v41, 7
  %v172 = vrot.slane %v42, 7
  %v173 = vrot.slane %v43, 7
  %v174 = vrot.slane %v44, 7
  %v175 = vrot.slane %v45, 7
  %v176 = vrot.slane %v46, 7
  %v177 = vrot.slane %v47, 7
  %v178 = vrot.slane %v48, 7
  %v179 = vrot.slane %v49, 7
  %v180 = vrot.slane %v50, 7
  %v181 = vrot.slane %v51, 7
  %v182 = vrot.slane %v52, 7
  %v183 = vrot.slane %v53, 7
  %v184 = vrot.slane %v54, 7
  %v185 = vrot.slane %v55, 7
  %v186 = vrot.slane %v56, 7
  %v187 = vrot.slane %v57, 7
  %v188 = vrot.slane %v58, 7
  %v189 = vrot.slane %v59, 7
  %v190 = vrot.slane %v60, 7
  %v191 = vrot.slane %v61, 7
  %v192 = vrot.slane %v62, 7
  %v193 = vrot.slane %v63, 7
  %v194 = vrot.slane %v64, 7
  %v195 = vrot.slane %v65, 7
  %v196 = vrot.slane %v66, 7
  %v197 = vrot.slane %v67, 7
  %v198 = vrot.slane %v68, 7
  %v199 = vrot.slane %v69, 7
  %v200 = vrot.slane %v70, 7
  %v201 = vrot.slane %v71, 7
  %v202 = vrot.slane %v72, 7
  %v203 = vrot.slane %v73, 7
  %v204 = vrot.slane %v74, 7
  %v205 = vrot.slane %v75, 7
  %v206 = vrot.slane %v76, 7
  %v207 = vrot.slane %v77, 7
  %vm273 = vcmask 1040384
  %v274 = vsel %vm273, 0.0, %v143
  %v275 = vsel %vm273, 0.0, %v144
  %v276 = vsel %vm273, 0.0, %v145
  %v277 = vsel %vm273, 0.0, %v146
  %v278 = vsel %vm273, 0.0, %v147
  %v279 = vsel %vm273, 0.0, %v148
  %v280 = vsel %vm273, 0.0, %v149
  %v281 = vsel %vm273, 0.0, %v150
  %v282 = vsel %vm273, 0.0, %v151
  %v283 = vsel %vm273, 0.0, %v152
  %v284 = vsel %vm273, 0.0, %v153
  %v285 = vsel %vm273, 0.0, %v154
  %v286 = vsel %vm273, 0.0, %v155
  %v287 = vsel %vm273, 0.0, %v156
  %v288 = vsel %vm273, 0.0, %v157
  %v289 = vsel %vm273, 0.0, %v158
  %v290 = vsel %vm273, 0.0, %v159
  %v291 = vsel %vm273, 0.0, %v160
  %v292 = vsel %vm273, 0.0, %v161
  %v293 = vsel %vm273, 0.0, %v162
  %v294 = vsel %vm273, 0.0, %v163
  %v295 = vsel %vm273, 0.0, %v164
  %v296 = vsel %vm273, 0.0, %v165
  %v297 = vsel %vm273, 0.0, %v166
  %v298 = vsel %vm273, 0.0, %v167
  %v299 = vsel %vm273, 0.0, %v168
  %v300 = vsel %vm273, 0.0, %v169
  %v301 = vsel %vm273, 0.0, %v170
  %v302 = vsel %vm273, 0.0, %v171
  %v303 = vsel %vm273, 0.0, %v172
  %v304 = vsel %vm273, 0.0, %v173
  %v305 = vsel %vm273, 0.0, %v174
  %v306 = vsel %vm273, 0.0, %v175
  %v307 = vsel %vm273, 0.0, %v176
  %v308 = vsel %vm273, 0.0, %v177
  %v309 = vsel %vm273, 0.0, %v178
  %v310 = vsel %vm273, 0.0, %v179
  %v311 = vsel %vm273, 0.0, %v180
  %v312 = vsel %vm273, 0.0, %v181
  %v313 = vsel %vm273, 0.0, %v182
  %v314 = vsel %vm273, 0.0, %v183
  %v315 = vsel %vm273, 0.0, %v184
  %v316 = vsel %vm273, 0.0, %v185
  %v317 = vsel %vm273, 0.0, %v186
  %v318 = vsel %vm273, 0.0, %v187
  %v319 = vsel %vm273, 0.0, %v188
  %v320 = vsel %vm273, 0.0, %v189
  %v321 = vsel %vm273, 0.0, %v190
  %v322 = vsel %vm273, 0.0, %v191
  %v323 = vsel %vm273, 0.0, %v192
  %v324 = vsel %vm273, 0.0, %v193
  %v325 = vsel %vm273, 0.0, %v194
  %v326 = vsel %vm273, 0.0, %v195
  %v327 = vsel %vm273, 0.0, %v196
  %v328 = vsel %vm273, 0.0, %v197
  %v329 = vsel %vm273, 0.0, %v198
  %v330 = vsel %vm273, 0.0, %v199
  %v331 = vsel %vm273, 0.0, %v200
  %v332 = vsel %vm273, 0.0, %v201
  %v333 = vsel %vm273, 0.0, %v202
  %v334 = vsel %vm273, 0.0, %v203
  %v335 = vsel %vm273, 0.0, %v204
  %v336 = vsel %vm273, 0.0, %v205
  %v337 = vsel %vm273, 0.0, %v206
  %v338 = vsel %vm273, 0.0, %v207
  %v339 = vsel %vm273, %v143, 0.0
  %v340 = vsel %vm273, %v144, 0.0
  %v341 = vsel %vm273, %v145, 0.0
  %v342 = vsel %vm273, %v146, 0.0
  %v343 = vsel %vm273, %v147, 0.0
  %v344 = vsel %vm273, %v148, 0.0
  %v345 = vsel %vm273, %v149, 0.0
  %v346 = vsel %vm273, %v150, 0.0
  %v347 = vsel %vm273, %v151, 0.0
  %v348 = vsel %vm273, %v152, 0.0
  %v349 = vsel %vm273, %v153, 0.0
  %v350 = vsel %vm273, %v154, 0.0
  %v351 = vsel %vm273, %v155, 0.0
  %v352 = vsel %vm273, %v156, 0.0
  %v353 = vsel %vm273, %v157, 0.0
  %v354 = vsel %vm273, %v158, 0.0
  %v355 = vsel %vm273, %v159, 0.0
  %v356 = vsel %vm273, %v160, 0.0
  %v357 = vsel %vm273, %v161, 0.0
  %v358 = vsel %vm273, %v162, 0.0
  %v359 = vsel %vm273, %v163, 0.0
  %v360 = vsel %vm273, %v164, 0.0
  %v361 = vsel %vm273, %v165, 0.0
  %v362 = vsel %vm273, %v166, 0.0
  %v363 = vsel %vm273, %v167, 0.0
  %v364 = vsel %vm273, %v168, 0.0
  %v365 = vsel %vm273, %v169, 0.0
  %v366 = vsel %vm273, %v170, 0.0
  %v367 = vsel %vm273, %v171, 0.0
  %v368 = vsel %vm273, %v172, 0.0
  %v369 = vsel %vm273, %v173, 0.0
  %v370 = vsel %vm273, %v174, 0.0
  %v371 = vsel %vm273, %v175, 0.0
  %v372 = vsel %vm273, %v176, 0.0
  %v373 = vsel %vm273, %v177, 0.0
  %v374 = vsel %vm273, %v178, 0.0
  %v375 = vsel %vm273, %v179, 0.0
  %v376 = vsel %vm273, %v180, 0.0
  %v377 = vsel %vm273, %v181, 0.0
  %v378 = vsel %vm273, %v182, 0.0
  %v379 = vsel %vm273, %v183, 0.0
  %v380 = vsel %vm273, %v184, 0.0
  %v381 = vsel %vm273, %v185, 0.0
  %v382 = vsel %vm273, %v186, 0.0
  %v383 = vsel %vm273, %v187, 0.0
  %v384 = vsel %vm273, %v188, 0.0
  %v385 = vsel %vm273, %v189, 0.0
  %v386 = vsel %vm273, %v190, 0.0
  %v387 = vsel %vm273, %v191, 0.0
  %v388 = vsel %vm273, %v192, 0.0
  %v389 = vsel %vm273, %v193, 0.0
  %v390 = vsel %vm273, %v194, 0.0
  %v391 = vsel %vm273, %v195, 0.0
  %v392 = vsel %vm273, %v196, 0.0
  %v393 = vsel %vm273, %v197, 0.0
  %v394 = vsel %vm273, %v198, 0.0
  %v395 = vsel %vm273, %v199, 0.0
  %v396 = vsel %vm273, %v200, 0.0
  %v397 = vsel %vm273, %v201, 0.0
  %v398 = vsel %vm273, %v202, 0.0
  %v399 = vsel %vm273, %v203, 0.0
  %v400 = vsel %vm273, %v204, 0.0
  %v401 = vsel %vm273, %v205, 0.0
  %v402 = vsel %vm273, %v206, 0.0
  %v403 = vsel %vm273, %v207, 0.0
  %vm518 = vcmask 1046528
  %v519 = vrot.slane %v274, 1
  %v520 = vrot.slane %v339, 1
  %v521 = vsel %vm518, %v519, %v520
  %v522 = vrot.slane %v275, 1
  %v523 = vrot.slane %v340, 1
  %v524 = vsel %vm518, %v522, %v523
  %v525 = vrot.slane %v276, 1
  %v526 = vrot.slane %v341, 1
  %v527 = vsel %vm518, %v525, %v526
  %v528 = vrot.slane %v277, 1
  %v529 = vrot.slane %v342, 1
  %v530 = vsel %vm518, %v528, %v529
  %v531 = vrot.slane %v278, 1
  %v532 = vrot.slane %v343, 1
  %v533 = vsel %vm518, %v531, %v532
  %v534 = vrot.slane %v279, 1
  %v535 = vrot.slane %v344, 1
  %v536 = vsel %vm518, %v534, %v535
  %v537 = vrot.slane %v280, 1
  %v538 = vrot.slane %v345, 1
  %v539 = vsel %vm518, %v537, %v538
  %v540 = vrot.slane %v281, 1
  %v541 = vrot.slane %v346, 1
  %v542 = vsel %vm518, %v540, %v541
  %v543 = vrot.slane %v283, 1
  %v544 = vrot.slane %v348, 1
  %v545 = vsel %vm518, %v543, %v544
  %v546 = vrot.slane %v284, 1
  %v547 = vrot.slane %v349, 1
  %v548 = vsel %vm518, %v546, %v547
  %v549 = vrot.slane %v285, 1
  %v550 = vrot.slane %v350, 1
  %v551 = vsel %vm518, %v549, %v550
  %v552 = vrot.slane %v286, 1
  %v553 = vrot.slane %v351, 1
  %v554 = vsel %vm518, %v552, %v553
  %v555 = vrot.slane %v287, 1
  %v556 = vrot.slane %v352, 1
  %v557 = vsel %vm518, %v555, %v556
  %v558 = vrot.slane %v288, 1
  %v559 = vrot.slane %v353, 1
  %v560 = vsel %vm518, %v558, %v559
  %v561 = vrot.slane %v289, 1
  %v562 = vrot.slane %v354, 1
  %v563 = vsel %vm518, %v561, %v562
  %v564 = vrot.slane %v291, 1
  %v565 = vrot.slane %v356, 1
  %v566 = vsel %vm518, %v564, %v565
  %v567 = vrot.slane %v292, 1
  %v568 = vrot.slane %v357, 1
  %v569 = vsel %vm518, %v567, %v568
  %v570 = vrot.slane %v293, 1
  %v571 = vrot.slane %v358, 1
  %v572 = vsel %vm518, %v570, %v571
  %v573 = vrot.slane %v294, 1
  %v574 = vrot.slane %v359, 1
  %v575 = vsel %vm518, %v573, %v574
  %v576 = vrot.slane %v295, 1
  %v577 = vrot.slane %v360, 1
  %v578 = vsel %vm518, %v576, %v577
  %v579 = vrot.slane %v296, 1
  %v580 = vrot.slane %v361, 1
  %v581 = vsel %vm518, %v579, %v580
  %v582 = vrot.slane %v297, 1
  %v583 = vrot.slane %v362, 1
  %v584 = vsel %vm518, %v582, %v583
  %v585 = vrot.slane %v299, 1
  %v586 = vrot.slane %v364, 1
  %v587 = vsel %vm518, %v585, %v586
  %v588 = vrot.slane %v300, 1
  %v589 = vrot.slane %v365, 1
  %v590 = vsel %vm518, %v588, %v589
  %v591 = vrot.slane %v301, 1
  %v592 = vrot.slane %v366, 1
  %v593 = vsel %vm518, %v591, %v592
  %v594 = vrot.slane %v302, 1
  %v595 = vrot.slane %v367, 1
  %v596 = vsel %vm518, %v594, %v595
  %v597 = vrot.slane %v303, 1
  %v598 = vrot.slane %v368, 1
  %v599 = vsel %vm518, %v597, %v598
  %v600 = vrot.slane %v304, 1
  %v601 = vrot.slane %v369, 1
  %v602 = vsel %vm518, %v600, %v601
  %v603 = vrot.slane %v305, 1
  %v604 = vrot.slane %v370, 1
  %v605 = vsel %vm518, %v603, %v604
  %v606 = vrot.slane %v307, 1
  %v607 = vrot.slane %v372, 1
  %v608 = vsel %vm518, %v606, %v607
  %v609 = vrot.slane %v308, 1
  %v610 = vrot.slane %v373, 1
  %v611 = vsel %vm518, %v609, %v610
  %v612 = vrot.slane %v309, 1
  %v613 = vrot.slane %v374, 1
  %v614 = vsel %vm518, %v612, %v613
  %v615 = vrot.slane %v310, 1
  %v616 = vrot.slane %v375, 1
  %v617 = vsel %vm518, %v615, %v616
  %v618 = vrot.slane %v311, 1
  %v619 = vrot.slane %v376, 1
  %v620 = vsel %vm518, %v618, %v619
  %v621 = vrot.slane %v312, 1
  %v622 = vrot.slane %v377, 1
  %v623 = vsel %vm518, %v621, %v622
  %v624 = vrot.slane %v313, 1
  %v625 = vrot.slane %v378, 1
  %v626 = vsel %vm518, %v624, %v625
  %v627 = vrot.slane %v315, 1
  %v628 = vrot.slane %v380, 1
  %v629 = vsel %vm518, %v627, %v628
  %v630 = vrot.slane %v316, 1
  %v631 = vrot.slane %v381, 1
  %v632 = vsel %vm518, %v630, %v631
  %v633 = vrot.slane %v317, 1
  %v634 = vrot.slane %v382, 1
  %v635 = vsel %vm518, %v633, %v634
  %v636 = vrot.slane %v318, 1
  %v637 = vrot.slane %v383, 1
  %v638 = vsel %vm518, %v636, %v637
  %v639 = vrot.slane %v319, 1
  %v640 = vrot.slane %v384, 1
  %v641 = vsel %vm518, %v639, %v640
  %v642 = vrot.slane %v320, 1
  %v643 = vrot.slane %v385, 1
  %v644 = vsel %vm518, %v642, %v643
  %v645 = vrot.slane %v321, 1
  %v646 = vrot.slane %v386, 1
  %v647 = vsel %vm518, %v645, %v646
  %v648 = vrot.slane %v323, 1
  %v649 = vrot.slane %v388, 1
  %v650 = vsel %vm518, %v648, %v649
  %v651 = vrot.slane %v324, 1
  %v652 = vrot.slane %v389, 1
  %v653 = vsel %vm518, %v651, %v652
  %v654 = vrot.slane %v325, 1
  %v655 = vrot.slane %v390, 1
  %v656 = vsel %vm518, %v654, %v655
  %v657 = vrot.slane %v326, 1
  %v658 = vrot.slane %v391, 1
  %v659 = vsel %vm518, %v657, %v658
  %v660 = vrot.slane %v327, 1
  %v661 = vrot.slane %v392, 1
  %v662 = vsel %vm518, %v660, %v661
  %v663 = vrot.slane %v328, 1
  %v664 = vrot.slane %v393, 1
  %v665 = vsel %vm518, %v663, %v664
  %v666 = vrot.slane %v329, 1
  %v667 = vrot.slane %v394, 1
  %v668 = vsel %vm518, %v666, %v667
  %v669 = vrot.slane %v331, 1
  %v670 = vrot.slane %v396, 1
  %v671 = vsel %vm518, %v669, %v670
  %v672 = vrot.slane %v332, 1
  %v673 = vrot.slane %v397, 1
  %v674 = vsel %vm518, %v672, %v673
  %v675 = vrot.slane %v333, 1
  %v676 = vrot.slane %v398, 1
  %v677 = vsel %vm518, %v675, %v676
  %v678 = vrot.slane %v334, 1
  %v679 = vrot.slane %v399, 1
  %v680 = vsel %vm518, %v678, %v679
  %v681 = vrot.slane %v335, 1
  %v682 = vrot.slane %v400, 1
  %v683 = vsel %vm518, %v681, %v682
  %v684 = vrot.slane %v336, 1
  %v685 = vrot.slane %v401, 1
  %v686 = vsel %vm518, %v684, %v685
  %v687 = vrot.slane %v337, 1
  %v688 = vrot.slane %v402, 1
  %v689 = vsel %vm518, %v687, %v688
  %vm690 = vcmask 1045504
  %v691 = vrot.slane %v274, 2
  %v692 = vrot.slane %v339, 2
  %v693 = vsel %vm690, %v691, %v692
  %v694 = vrot.slane %v275, 2
  %v695 = vrot.slane %v340, 2
  %v696 = vsel %vm690, %v694, %v695
  %v697 = vrot.slane %v276, 2
  %v698 = vrot.slane %v341, 2
  %v699 = vsel %vm690, %v697, %v698
  %v700 = vrot.slane %v277, 2
  %v701 = vrot.slane %v342, 2
  %v702 = vsel %vm690, %v700, %v701
  %v703 = vrot.slane %v278, 2
  %v704 = vrot.slane %v343, 2
  %v705 = vsel %vm690, %v703, %v704
  %v706 = vrot.slane %v279, 2
  %v707 = vrot.slane %v344, 2
  %v708 = vsel %vm690, %v706, %v707
  %v709 = vrot.slane %v280, 2
  %v710 = vrot.slane %v345, 2
  %v711 = vsel %vm690, %v709, %v710
  %v712 = vrot.slane %v281, 2
  %v713 = vrot.slane %v346, 2
  %v714 = vsel %vm690, %v712, %v713
  %v715 = vrot.slane %v283, 2
  %v716 = vrot.slane %v348, 2
  %v717 = vsel %vm690, %v715, %v716
  %v718 = vrot.slane %v284, 2
  %v719 = vrot.slane %v349, 2
  %v720 = vsel %vm690, %v718, %v719
  %v721 = vrot.slane %v285, 2
  %v722 = vrot.slane %v350, 2
  %v723 = vsel %vm690, %v721, %v722
  %v724 = vrot.slane %v286, 2
  %v725 = vrot.slane %v351, 2
  %v726 = vsel %vm690, %v724, %v725
  %v727 = vrot.slane %v287, 2
  %v728 = vrot.slane %v352, 2
  %v729 = vsel %vm690, %v727, %v728
  %v730 = vrot.slane %v288, 2
  %v731 = vrot.slane %v353, 2
  %v732 = vsel %vm690, %v730, %v731
  %v733 = vrot.slane %v289, 2
  %v734 = vrot.slane %v354, 2
  %v735 = vsel %vm690, %v733, %v734
  %v736 = vrot.slane %v291, 2
  %v737 = vrot.slane %v356, 2
  %v738 = vsel %vm690, %v736, %v737
  %v739 = vrot.slane %v292, 2
  %v740 = vrot.slane %v357, 2
  %v741 = vsel %vm690, %v739, %v740
  %v742 = vrot.slane %v293, 2
  %v743 = vrot.slane %v358, 2
  %v744 = vsel %vm690, %v742, %v743
  %v745 = vrot.slane %v294, 2
  %v746 = vrot.slane %v359, 2
  %v747 = vsel %vm690, %v745, %v746
  %v748 = vrot.slane %v295, 2
  %v749 = vrot.slane %v360, 2
  %v750 = vsel %vm690, %v748, %v749
  %v751 = vrot.slane %v296, 2
  %v752 = vrot.slane %v361, 2
  %v753 = vsel %vm690, %v751, %v752
  %v754 = vrot.slane %v297, 2
  %v755 = vrot.slane %v362, 2
  %v756 = vsel %vm690, %v754, %v755
  %v757 = vrot.slane %v299, 2
  %v758 = vrot.slane %v364, 2
  %v759 = vsel %vm690, %v757, %v758
  %v760 = vrot.slane %v300, 2
  %v761 = vrot.slane %v365, 2
  %v762 = vsel %vm690, %v760, %v761
  %v763 = vrot.slane %v301, 2
  %v764 = vrot.slane %v366, 2
  %v765 = vsel %vm690, %v763, %v764
  %v766 = vrot.slane %v302, 2
  %v767 = vrot.slane %v367, 2
  %v768 = vsel %vm690, %v766, %v767
  %v769 = vrot.slane %v303, 2
  %v770 = vrot.slane %v368, 2
  %v771 = vsel %vm690, %v769, %v770
  %v772 = vrot.slane %v304, 2
  %v773 = vrot.slane %v369, 2
  %v774 = vsel %vm690, %v772, %v773
  %v775 = vrot.slane %v305, 2
  %v776 = vrot.slane %v370, 2
  %v777 = vsel %vm690, %v775, %v776
  %v778 = vrot.slane %v307, 2
  %v779 = vrot.slane %v372, 2
  %v780 = vsel %vm690, %v778, %v779
  %v781 = vrot.slane %v308, 2
  %v782 = vrot.slane %v373, 2
  %v783 = vsel %vm690, %v781, %v782
  %v784 = vrot.slane %v309, 2
  %v785 = vrot.slane %v374, 2
  %v786 = vsel %vm690, %v784, %v785
  %v787 = vrot.slane %v310, 2
  %v788 = vrot.slane %v375, 2
  %v789 = vsel %vm690, %v787, %v788
  %v790 = vrot.slane %v311, 2
  %v791 = vrot.slane %v376, 2
  %v792 = vsel %vm690, %v790, %v791
  %v793 = vrot.slane %v312, 2
  %v794 = vrot.slane %v377, 2
  %v795 = vsel %vm690, %v793, %v794
  %v796 = vrot.slane %v313, 2
  %v797 = vrot.slane %v378, 2
  %v798 = vsel %vm690, %v796, %v797
  %v799 = vrot.slane %v315, 2
  %v800 = vrot.slane %v380, 2
  %v801 = vsel %vm690, %v799, %v800
  %v802 = vrot.slane %v316, 2
  %v803 = vrot.slane %v381, 2
  %v804 = vsel %vm690, %v802, %v803
  %v805 = vrot.slane %v317, 2
  %v806 = vrot.slane %v382, 2
  %v807 = vsel %vm690, %v805, %v806
  %v808 = vrot.slane %v318, 2
  %v809 = vrot.slane %v383, 2
  %v810 = vsel %vm690, %v808, %v809
  %v811 = vrot.slane %v319, 2
  %v812 = vrot.slane %v384, 2
  %v813 = vsel %vm690, %v811, %v812
  %v814 = vrot.slane %v320, 2
  %v815 = vrot.slane %v385, 2
  %v816 = vsel %vm690, %v814, %v815
  %v817 = vrot.slane %v321, 2
  %v818 = vrot.slane %v386, 2
  %v819 = vsel %vm690, %v817, %v818
  %v820 = vrot.slane %v323, 2
  %v821 = vrot.slane %v388, 2
  %v822 = vsel %vm690, %v820, %v821
  %v823 = vrot.slane %v324, 2
  %v824 = vrot.slane %v389, 2
  %v825 = vsel %vm690, %v823, %v824
  %v826 = vrot.slane %v325, 2
  %v827 = vrot.slane %v390, 2
  %v828 = vsel %vm690, %v826, %v827
  %v829 = vrot.slane %v326, 2
  %v830 = vrot.slane %v391, 2
  %v831 = vsel %vm690, %v829, %v830
  %v832 = vrot.slane %v327, 2
  %v833 = vrot.slane %v392, 2
  %v834 = vsel %vm690, %v832, %v833
  %v835 = vrot.slane %v328, 2
  %v836 = vrot.slane %v393, 2
  %v837 = vsel %vm690, %v835, %v836
  %v838 = vrot.slane %v329, 2
  %v839 = vrot.slane %v394, 2
  %v840 = vsel %vm690, %v838, %v839
  %v841 = vrot.slane %v331, 2
  %v842 = vrot.slane %v396, 2
  %v843 = vsel %vm690, %v841, %v842
  %v844 = vrot.slane %v332, 2
  %v845 = vrot.slane %v397, 2
  %v846 = vsel %vm690, %v844, %v845
  %v847 = vrot.slane %v333, 2
  %v848 = vrot.slane %v398, 2
  %v849 = vsel %vm690, %v847, %v848
  %v850 = vrot.slane %v334, 2
  %v851 = vrot.slane %v399, 2
  %v852 = vsel %vm690, %v850, %v851
  %v853 = vrot.slane %v335, 2
  %v854 = vrot.slane %v400, 2
  %v855 = vsel %vm690, %v853, %v854
  %v856 = vrot.slane %v336, 2
  %v857 = vrot.slane %v401, 2
  %v858 = vsel %vm690, %v856, %v857
  %v859 = vrot.slane %v337, 2
  %v860 = vrot.slane %v402, 2
  %v861 = vsel %vm690, %v859, %v860
  %v878 = vrot.slane %v282, 1
  %v879 = vrot.slane %v347, 1
  %v880 = vsel %vm518, %v878, %v879
  %v881 = vrot.slane %v290, 1
  %v882 = vrot.slane %v355, 1
  %v883 = vsel %vm518, %v881, %v882
  %v884 = vrot.slane %v298, 1
  %v885 = vrot.slane %v363, 1
  %v886 = vsel %vm518, %v884, %v885
  %v887 = vrot.slane %v306, 1
  %v888 = vrot.slane %v371, 1
  %v889 = vsel %vm518, %v887, %v888
  %v890 = vrot.slane %v314, 1
  %v891 = vrot.slane %v379, 1
  %v892 = vsel %vm518, %v890, %v891
  %v893 = vrot.slane %v322, 1
  %v894 = vrot.slane %v387, 1
  %v895 = vsel %vm518, %v893, %v894
  %v896 = vrot.slane %v330, 1
  %v897 = vrot.slane %v395, 1
  %v898 = vsel %vm518, %v896, %v897
  %v899 = vrot.slane %v338, 1
  %v900 = vrot.slane %v403, 1
  %v901 = vsel %vm518, %v899, %v900
  %v902 = vrot.slane %v282, 2
  %v903 = vrot.slane %v347, 2
  %v904 = vsel %vm690, %v902, %v903
  %v905 = vrot.slane %v290, 2
  %v906 = vrot.slane %v355, 2
  %v907 = vsel %vm690, %v905, %v906
  %v908 = vrot.slane %v298, 2
  %v909 = vrot.slane %v363, 2
  %v910 = vsel %vm690, %v908, %v909
  %v911 = vrot.slane %v306, 2
  %v912 = vrot.slane %v371, 2
  %v913 = vsel %vm690, %v911, %v912
  %v914 = vrot.slane %v314, 2
  %v915 = vrot.slane %v379, 2
  %v916 = vsel %vm690, %v914, %v915
  %v917 = vrot.slane %v322, 2
  %v918 = vrot.slane %v387, 2
  %v919 = vsel %vm690, %v917, %v918
  %v920 = vrot.slane %v330, 2
  %v921 = vrot.slane %v395, 2
  %v922 = vsel %vm690, %v920, %v921
  %v923 = vrot.slane %v338, 2
  %v924 = vrot.slane %v403, 2
  %v925 = vsel %vm690, %v923, %v924
  %926 = vrot.lane.b32.xlu0 %v521, 16
  %v927 = vpop.permute.xlu0 %926
  %928 = vrot.lane.b32.xlu0 %v524, 16
  %v929 = vpop.permute.xlu0 %928
  %930 = vrot.lane.b32.xlu0 %v527, 16
  %v931 = vpop.permute.xlu0 %930
  %932 = vrot.lane.b32.xlu0 %v530, 16
  %v933 = vpop.permute.xlu0 %932
  %934 = vrot.lane.b32.xlu0 %v533, 16
  %v935 = vpop.permute.xlu0 %934
  %936 = vrot.lane.b32.xlu0 %v536, 16
  %v937 = vpop.permute.xlu0 %936
  %938 = vrot.lane.b32.xlu0 %v539, 16
  %v939 = vpop.permute.xlu0 %938
  %940 = vrot.lane.b32.xlu0 %v542, 16
  %v941 = vpop.permute.xlu0 %940
  %942 = vrot.lane.b32.xlu0 %v545, 16
  %v943 = vpop.permute.xlu0 %942
  %944 = vrot.lane.b32.xlu0 %v548, 16
  %v945 = vpop.permute.xlu0 %944
  %946 = vrot.lane.b32.xlu0 %v551, 16
  %v947 = vpop.permute.xlu0 %946
  %948 = vrot.lane.b32.xlu0 %v554, 16
  %v949 = vpop.permute.xlu0 %948
  %950 = vrot.lane.b32.xlu0 %v557, 16
  %v951 = vpop.permute.xlu0 %950
  %952 = vrot.lane.b32.xlu0 %v560, 16
  %v953 = vpop.permute.xlu0 %952
  %954 = vrot.lane.b32.xlu0 %v563, 16
  %v955 = vpop.permute.xlu0 %954
  %956 = vrot.lane.b32.xlu0 %v566, 16
  %v957 = vpop.permute.xlu0 %956
  %958 = vrot.lane.b32.xlu0 %v569, 16
  %v959 = vpop.permute.xlu0 %958
  %960 = vrot.lane.b32.xlu0 %v572, 16
  %v961 = vpop.permute.xlu0 %960
  %962 = vrot.lane.b32.xlu0 %v575, 16
  %v963 = vpop.permute.xlu0 %962
  %964 = vrot.lane.b32.xlu0 %v578, 16
  %v965 = vpop.permute.xlu0 %964
  %966 = vrot.lane.b32.xlu0 %v581, 16
  %v967 = vpop.permute.xlu0 %966
  %968 = vrot.lane.b32.xlu0 %v584, 16
  %v969 = vpop.permute.xlu0 %968
  %970 = vrot.lane.b32.xlu0 %v587, 16
  %v971 = vpop.permute.xlu0 %970
  %972 = vrot.lane.b32.xlu0 %v590, 16
  %v973 = vpop.permute.xlu0 %972
  %974 = vrot.lane.b32.xlu0 %v593, 16
  %v975 = vpop.permute.xlu0 %974
  %976 = vrot.lane.b32.xlu0 %v596, 16
  %v977 = vpop.permute.xlu0 %976
  %978 = vrot.lane.b32.xlu0 %v599, 16
  %v979 = vpop.permute.xlu0 %978
  %980 = vrot.lane.b32.xlu0 %v602, 16
  %v981 = vpop.permute.xlu0 %980
  %982 = vrot.lane.b32.xlu0 %v605, 16
  %v983 = vpop.permute.xlu0 %982
  %984 = vrot.lane.b32.xlu0 %v608, 16
  %v985 = vpop.permute.xlu0 %984
  %986 = vrot.lane.b32.xlu0 %v611, 16
  %v987 = vpop.permute.xlu0 %986
  %988 = vrot.lane.b32.xlu0 %v614, 16
  %v989 = vpop.permute.xlu0 %988
  %990 = vrot.lane.b32.xlu0 %v617, 16
  %v991 = vpop.permute.xlu0 %990
  %992 = vrot.lane.b32.xlu0 %v620, 16
  %v993 = vpop.permute.xlu0 %992
  %994 = vrot.lane.b32.xlu0 %v623, 16
  %v995 = vpop.permute.xlu0 %994
  %996 = vrot.lane.b32.xlu0 %v626, 16
  %v997 = vpop.permute.xlu0 %996
  %998 = vrot.lane.b32.xlu0 %v629, 16
  %v999 = vpop.permute.xlu0 %998
  %1000 = vrot.lane.b32.xlu0 %v632, 16
  %v1001 = vpop.permute.xlu0 %1000
  %1002 = vrot.lane.b32.xlu0 %v635, 16
  %v1003 = vpop.permute.xlu0 %1002
  %1004 = vrot.lane.b32.xlu0 %v638, 16
  %v1005 = vpop.permute.xlu0 %1004
  %1006 = vrot.lane.b32.xlu0 %v641, 16
  %v1007 = vpop.permute.xlu0 %1006
  %1008 = vrot.lane.b32.xlu0 %v644, 16
  %v1009 = vpop.permute.xlu0 %1008
  %1010 = vrot.lane.b32.xlu0 %v647, 16
  %v1011 = vpop.permute.xlu0 %1010
  %1012 = vrot.lane.b32.xlu0 %v650, 16
  %v1013 = vpop.permute.xlu0 %1012
  %1014 = vrot.lane.b32.xlu0 %v653, 16
  %v1015 = vpop.permute.xlu0 %1014
  %1016 = vrot.lane.b32.xlu0 %v656, 16
  %v1017 = vpop.permute.xlu0 %1016
  %1018 = vrot.lane.b32.xlu0 %v659, 16
  %v1019 = vpop.permute.xlu0 %1018
  %1020 = vrot.lane.b32.xlu0 %v662, 16
  %v1021 = vpop.permute.xlu0 %1020
  %1022 = vrot.lane.b32.xlu0 %v665, 16
  %v1023 = vpop.permute.xlu0 %1022
  %1024 = vrot.lane.b32.xlu0 %v668, 16
  %v1025 = vpop.permute.xlu0 %1024
  %1026 = vrot.lane.b32.xlu0 %v671, 16
  %v1027 = vpop.permute.xlu0 %1026
  %1028 = vrot.lane.b32.xlu0 %v674, 16
  %v1029 = vpop.permute.xlu0 %1028
  %1030 = vrot.lane.b32.xlu0 %v677, 16
  %v1031 = vpop.permute.xlu0 %1030
  %1032 = vrot.lane.b32.xlu0 %v680, 16
  %v1033 = vpop.permute.xlu0 %1032
  %1034 = vrot.lane.b32.xlu0 %v683, 16
  %v1035 = vpop.permute.xlu0 %1034
  %1036 = vrot.lane.b32.xlu0 %v686, 16
  %v1037 = vpop.permute.xlu0 %1036
  %1038 = vrot.lane.b32.xlu0 %v689, 16
  %v1039 = vpop.permute.xlu0 %1038
  %1097 = vrot.lane.b32.xlu0 %v693, 32
  %v1098 = vpop.permute.xlu0 %1097
  %1099 = vrot.lane.b32.xlu0 %v696, 32
  %v1100 = vpop.permute.xlu0 %1099
  %1101 = vrot.lane.b32.xlu0 %v699, 32
  %v1102 = vpop.permute.xlu0 %1101
  %1103 = vrot.lane.b32.xlu0 %v702, 32
  %v1104 = vpop.permute.xlu0 %1103
  %1105 = vrot.lane.b32.xlu0 %v705, 32
  %v1106 = vpop.permute.xlu0 %1105
  %1107 = vrot.lane.b32.xlu0 %v708, 32
  %v1108 = vpop.permute.xlu0 %1107
  %1109 = vrot.lane.b32.xlu0 %v711, 32
  %v1110 = vpop.permute.xlu0 %1109
  %1111 = vrot.lane.b32.xlu0 %v714, 32
  %v1112 = vpop.permute.xlu0 %1111
  %1113 = vrot.lane.b32.xlu0 %v717, 32
  %v1114 = vpop.permute.xlu0 %1113
  %1115 = vrot.lane.b32.xlu0 %v720, 32
  %v1116 = vpop.permute.xlu0 %1115
  %1117 = vrot.lane.b32.xlu0 %v723, 32
  %v1118 = vpop.permute.xlu0 %1117
  %1119 = vrot.lane.b32.xlu0 %v726, 32
  %v1120 = vpop.permute.xlu0 %1119
  %1121 = vrot.lane.b32.xlu0 %v729, 32
  %v1122 = vpop.permute.xlu0 %1121
  %1123 = vrot.lane.b32.xlu0 %v732, 32
  %v1124 = vpop.permute.xlu0 %1123
  %1125 = vrot.lane.b32.xlu0 %v735, 32
  %v1126 = vpop.permute.xlu0 %1125
  %1127 = vrot.lane.b32.xlu0 %v738, 32
  %v1128 = vpop.permute.xlu0 %1127
  %1129 = vrot.lane.b32.xlu0 %v741, 32
  %v1130 = vpop.permute.xlu0 %1129
  %1131 = vrot.lane.b32.xlu0 %v744, 32
  %v1132 = vpop.permute.xlu0 %1131
  %1133 = vrot.lane.b32.xlu0 %v747, 32
  %v1134 = vpop.permute.xlu0 %1133
  %1135 = vrot.lane.b32.xlu0 %v750, 32
  %v1136 = vpop.permute.xlu0 %1135
  %1137 = vrot.lane.b32.xlu0 %v753, 32
  %v1138 = vpop.permute.xlu0 %1137
  %1139 = vrot.lane.b32.xlu0 %v756, 32
  %v1140 = vpop.permute.xlu0 %1139
  %1141 = vrot.lane.b32.xlu0 %v759, 32
  %v1142 = vpop.permute.xlu0 %1141
  %1143 = vrot.lane.b32.xlu0 %v762, 32
  %v1144 = vpop.permute.xlu0 %1143
  %1145 = vrot.lane.b32.xlu0 %v765, 32
  %v1146 = vpop.permute.xlu0 %1145
  %1147 = vrot.lane.b32.xlu0 %v768, 32
  %v1148 = vpop.permute.xlu0 %1147
  %1149 = vrot.lane.b32.xlu0 %v771, 32
  %v1150 = vpop.permute.xlu0 %1149
  %1151 = vrot.lane.b32.xlu0 %v774, 32
  %v1152 = vpop.permute.xlu0 %1151
  %1153 = vrot.lane.b32.xlu0 %v777, 32
  %v1154 = vpop.permute.xlu0 %1153
  %1155 = vrot.lane.b32.xlu0 %v780, 32
  %v1156 = vpop.permute.xlu0 %1155
  %1157 = vrot.lane.b32.xlu0 %v783, 32
  %v1158 = vpop.permute.xlu0 %1157
  %1159 = vrot.lane.b32.xlu0 %v786, 32
  %v1160 = vpop.permute.xlu0 %1159
  %1161 = vrot.lane.b32.xlu0 %v789, 32
  %v1162 = vpop.permute.xlu0 %1161
  %1163 = vrot.lane.b32.xlu0 %v792, 32
  %v1164 = vpop.permute.xlu0 %1163
  %1165 = vrot.lane.b32.xlu0 %v795, 32
  %v1166 = vpop.permute.xlu0 %1165
  %1167 = vrot.lane.b32.xlu0 %v798, 32
  %v1168 = vpop.permute.xlu0 %1167
  %1169 = vrot.lane.b32.xlu0 %v801, 32
  %v1170 = vpop.permute.xlu0 %1169
  %1171 = vrot.lane.b32.xlu0 %v804, 32
  %v1172 = vpop.permute.xlu0 %1171
  %1173 = vrot.lane.b32.xlu0 %v807, 32
  %v1174 = vpop.permute.xlu0 %1173
  %1175 = vrot.lane.b32.xlu0 %v810, 32
  %v1176 = vpop.permute.xlu0 %1175
  %1177 = vrot.lane.b32.xlu0 %v813, 32
  %v1178 = vpop.permute.xlu0 %1177
  %1179 = vrot.lane.b32.xlu0 %v816, 32
  %v1180 = vpop.permute.xlu0 %1179
  %1181 = vrot.lane.b32.xlu0 %v819, 32
  %v1182 = vpop.permute.xlu0 %1181
  %1183 = vrot.lane.b32.xlu0 %v822, 32
  %v1184 = vpop.permute.xlu0 %1183
  %1185 = vrot.lane.b32.xlu0 %v825, 32
  %v1186 = vpop.permute.xlu0 %1185
  %1187 = vrot.lane.b32.xlu0 %v828, 32
  %v1188 = vpop.permute.xlu0 %1187
  %1189 = vrot.lane.b32.xlu0 %v831, 32
  %v1190 = vpop.permute.xlu0 %1189
  %1191 = vrot.lane.b32.xlu0 %v834, 32
  %v1192 = vpop.permute.xlu0 %1191
  %1193 = vrot.lane.b32.xlu0 %v837, 32
  %v1194 = vpop.permute.xlu0 %1193
  %1195 = vrot.lane.b32.xlu0 %v840, 32
  %v1196 = vpop.permute.xlu0 %1195
  %1197 = vrot.lane.b32.xlu0 %v843, 32
  %v1198 = vpop.permute.xlu0 %1197
  %1199 = vrot.lane.b32.xlu0 %v846, 32
  %v1200 = vpop.permute.xlu0 %1199
  %1201 = vrot.lane.b32.xlu0 %v849, 32
  %v1202 = vpop.permute.xlu0 %1201
  %1203 = vrot.lane.b32.xlu0 %v852, 32
  %v1204 = vpop.permute.xlu0 %1203
  %1205 = vrot.lane.b32.xlu0 %v855, 32
  %v1206 = vpop.permute.xlu0 %1205
  %1207 = vrot.lane.b32.xlu0 %v858, 32
  %v1208 = vpop.permute.xlu0 %1207
  %1209 = vrot.lane.b32.xlu0 %v861, 32
  %v1210 = vpop.permute.xlu0 %1209
  %1268 = vrot.lane.b32.xlu0 %v275, 48
  %v1269 = vpop.permute.xlu0 %1268
  %1270 = vrot.lane.b32.xlu0 %v276, 48
  %v1271 = vpop.permute.xlu0 %1270
  %1272 = vrot.lane.b32.xlu0 %v277, 48
  %v1273 = vpop.permute.xlu0 %1272
  %1274 = vrot.lane.b32.xlu0 %v278, 48
  %v1275 = vpop.permute.xlu0 %1274
  %1276 = vrot.lane.b32.xlu0 %v279, 48
  %v1277 = vpop.permute.xlu0 %1276
  %1278 = vrot.lane.b32.xlu0 %v280, 48
  %v1279 = vpop.permute.xlu0 %1278
  %1280 = vrot.lane.b32.xlu0 %v281, 48
  %v1281 = vpop.permute.xlu0 %1280
  %1282 = vrot.lane.b32.xlu0 %v282, 48
  %v1283 = vpop.permute.xlu0 %1282
  %1284 = vrot.lane.b32.xlu0 %v283, 48
  %v1285 = vpop.permute.xlu0 %1284
  %1286 = vrot.lane.b32.xlu0 %v284, 48
  %v1287 = vpop.permute.xlu0 %1286
  %1288 = vrot.lane.b32.xlu0 %v285, 48
  %v1289 = vpop.permute.xlu0 %1288
  %1290 = vrot.lane.b32.xlu0 %v286, 48
  %v1291 = vpop.permute.xlu0 %1290
  %1292 = vrot.lane.b32.xlu0 %v287, 48
  %v1293 = vpop.permute.xlu0 %1292
  %1294 = vrot.lane.b32.xlu0 %v288, 48
  %v1295 = vpop.permute.xlu0 %1294
  %1296 = vrot.lane.b32.xlu0 %v289, 48
  %v1297 = vpop.permute.xlu0 %1296
  %1298 = vrot.lane.b32.xlu0 %v290, 48
  %v1299 = vpop.permute.xlu0 %1298
  %1300 = vrot.lane.b32.xlu0 %v291, 48
  %v1301 = vpop.permute.xlu0 %1300
  %1302 = vrot.lane.b32.xlu0 %v292, 48
  %v1303 = vpop.permute.xlu0 %1302
  %1304 = vrot.lane.b32.xlu0 %v293, 48
  %v1305 = vpop.permute.xlu0 %1304
  %1306 = vrot.lane.b32.xlu0 %v294, 48
  %v1307 = vpop.permute.xlu0 %1306
  %1308 = vrot.lane.b32.xlu0 %v295, 48
  %v1309 = vpop.permute.xlu0 %1308
  %1310 = vrot.lane.b32.xlu0 %v296, 48
  %v1311 = vpop.permute.xlu0 %1310
  %1312 = vrot.lane.b32.xlu0 %v297, 48
  %v1313 = vpop.permute.xlu0 %1312
  %1314 = vrot.lane.b32.xlu0 %v298, 48
  %v1315 = vpop.permute.xlu0 %1314
  %1316 = vrot.lane.b32.xlu0 %v299, 48
  %v1317 = vpop.permute.xlu0 %1316
  %1318 = vrot.lane.b32.xlu0 %v300, 48
  %v1319 = vpop.permute.xlu0 %1318
  %1320 = vrot.lane.b32.xlu0 %v301, 48
  %v1321 = vpop.permute.xlu0 %1320
  %1322 = vrot.lane.b32.xlu0 %v302, 48
  %v1323 = vpop.permute.xlu0 %1322
  %1324 = vrot.lane.b32.xlu0 %v303, 48
  %v1325 = vpop.permute.xlu0 %1324
  %1326 = vrot.lane.b32.xlu0 %v304, 48
  %v1327 = vpop.permute.xlu0 %1326
  %1328 = vrot.lane.b32.xlu0 %v305, 48
  %v1329 = vpop.permute.xlu0 %1328
  %1330 = vrot.lane.b32.xlu0 %v306, 48
  %v1331 = vpop.permute.xlu0 %1330
  %1332 = vrot.lane.b32.xlu0 %v307, 48
  %v1333 = vpop.permute.xlu0 %1332
  %1334 = vrot.lane.b32.xlu0 %v308, 48
  %v1335 = vpop.permute.xlu0 %1334
  %1336 = vrot.lane.b32.xlu0 %v309, 48
  %v1337 = vpop.permute.xlu0 %1336
  %1338 = vrot.lane.b32.xlu0 %v310, 48
  %v1339 = vpop.permute.xlu0 %1338
  %1340 = vrot.lane.b32.xlu0 %v311, 48
  %v1341 = vpop.permute.xlu0 %1340
  %1342 = vrot.lane.b32.xlu0 %v312, 48
  %v1343 = vpop.permute.xlu0 %1342
  %1344 = vrot.lane.b32.xlu0 %v313, 48
  %v1345 = vpop.permute.xlu0 %1344
  %1346 = vrot.lane.b32.xlu0 %v314, 48
  %v1347 = vpop.permute.xlu0 %1346
  %1348 = vrot.lane.b32.xlu0 %v315, 48
  %v1349 = vpop.permute.xlu0 %1348
  %1350 = vrot.lane.b32.xlu0 %v316, 48
  %v1351 = vpop.permute.xlu0 %1350
  %1352 = vrot.lane.b32.xlu0 %v317, 48
  %v1353 = vpop.permute.xlu0 %1352
  %1354 = vrot.lane.b32.xlu0 %v318, 48
  %v1355 = vpop.permute.xlu0 %1354
  %1356 = vrot.lane.b32.xlu0 %v319, 48
  %v1357 = vpop.permute.xlu0 %1356
  %1358 = vrot.lane.b32.xlu0 %v320, 48
  %v1359 = vpop.permute.xlu0 %1358
  %1360 = vrot.lane.b32.xlu0 %v321, 48
  %v1361 = vpop.permute.xlu0 %1360
  %1362 = vrot.lane.b32.xlu0 %v322, 48
  %v1363 = vpop.permute.xlu0 %1362
  %1364 = vrot.lane.b32.xlu0 %v323, 48
  %v1365 = vpop.permute.xlu0 %1364
  %1366 = vrot.lane.b32.xlu0 %v324, 48
  %v1367 = vpop.permute.xlu0 %1366
  %1368 = vrot.lane.b32.xlu0 %v325, 48
  %v1369 = vpop.permute.xlu0 %1368
  %1370 = vrot.lane.b32.xlu0 %v326, 48
  %v1371 = vpop.permute.xlu0 %1370
  %1372 = vrot.lane.b32.xlu0 %v327, 48
  %v1373 = vpop.permute.xlu0 %1372
  %1374 = vrot.lane.b32.xlu0 %v328, 48
  %v1375 = vpop.permute.xlu0 %1374
  %1376 = vrot.lane.b32.xlu0 %v329, 48
  %v1377 = vpop.permute.xlu0 %1376
  %1378 = vrot.lane.b32.xlu0 %v330, 48
  %v1379 = vpop.permute.xlu0 %1378
  %1380 = vrot.lane.b32.xlu0 %v331, 48
  %v1381 = vpop.permute.xlu0 %1380
  %1382 = vrot.lane.b32.xlu0 %v332, 48
  %v1383 = vpop.permute.xlu0 %1382
  %1384 = vrot.lane.b32.xlu0 %v333, 48
  %v1385 = vpop.permute.xlu0 %1384
  %1386 = vrot.lane.b32.xlu0 %v334, 48
  %v1387 = vpop.permute.xlu0 %1386
  %1388 = vrot.lane.b32.xlu0 %v335, 48
  %v1389 = vpop.permute.xlu0 %1388
  %1390 = vrot.lane.b32.xlu0 %v336, 48
  %v1391 = vpop.permute.xlu0 %1390
  %1392 = vrot.lane.b32.xlu0 %v337, 48
  %v1393 = vpop.permute.xlu0 %1392
  %1394 = vrot.lane.b32.xlu0 %v338, 48
  %v1395 = vpop.permute.xlu0 %1394
  %1460 = vrot.lane.b32.xlu0 %v524, 64
  %v1461 = vpop.permute.xlu0 %1460
  %1462 = vrot.lane.b32.xlu0 %v527, 64
  %v1463 = vpop.permute.xlu0 %1462
  %1464 = vrot.lane.b32.xlu0 %v530, 64
  %v1465 = vpop.permute.xlu0 %1464
  %1466 = vrot.lane.b32.xlu0 %v533, 64
  %v1467 = vpop.permute.xlu0 %1466
  %1468 = vrot.lane.b32.xlu0 %v536, 64
  %v1469 = vpop.permute.xlu0 %1468
  %1470 = vrot.lane.b32.xlu0 %v539, 64
  %v1471 = vpop.permute.xlu0 %1470
  %1472 = vrot.lane.b32.xlu0 %v542, 64
  %v1473 = vpop.permute.xlu0 %1472
  %1474 = vrot.lane.b32.xlu0 %v880, 64
  %v1475 = vpop.permute.xlu0 %1474
  %1476 = vrot.lane.b32.xlu0 %v545, 64
  %v1477 = vpop.permute.xlu0 %1476
  %1478 = vrot.lane.b32.xlu0 %v548, 64
  %v1479 = vpop.permute.xlu0 %1478
  %1480 = vrot.lane.b32.xlu0 %v551, 64
  %v1481 = vpop.permute.xlu0 %1480
  %1482 = vrot.lane.b32.xlu0 %v554, 64
  %v1483 = vpop.permute.xlu0 %1482
  %1484 = vrot.lane.b32.xlu0 %v557, 64
  %v1485 = vpop.permute.xlu0 %1484
  %1486 = vrot.lane.b32.xlu0 %v560, 64
  %v1487 = vpop.permute.xlu0 %1486
  %1488 = vrot.lane.b32.xlu0 %v563, 64
  %v1489 = vpop.permute.xlu0 %1488
  %1490 = vrot.lane.b32.xlu0 %v883, 64
  %v1491 = vpop.permute.xlu0 %1490
  %1492 = vrot.lane.b32.xlu0 %v566, 64
  %v1493 = vpop.permute.xlu0 %1492
  %1494 = vrot.lane.b32.xlu0 %v569, 64
  %v1495 = vpop.permute.xlu0 %1494
  %1496 = vrot.lane.b32.xlu0 %v572, 64
  %v1497 = vpop.permute.xlu0 %1496
  %1498 = vrot.lane.b32.xlu0 %v575, 64
  %v1499 = vpop.permute.xlu0 %1498
  %1500 = vrot.lane.b32.xlu0 %v578, 64
  %v1501 = vpop.permute.xlu0 %1500
  %1502 = vrot.lane.b32.xlu0 %v581, 64
  %v1503 = vpop.permute.xlu0 %1502
  %1504 = vrot.lane.b32.xlu0 %v584, 64
  %v1505 = vpop.permute.xlu0 %1504
  %1506 = vrot.lane.b32.xlu0 %v886, 64
  %v1507 = vpop.permute.xlu0 %1506
  %1508 = vrot.lane.b32.xlu0 %v587, 64
  %v1509 = vpop.permute.xlu0 %1508
  %1510 = vrot.lane.b32.xlu0 %v590, 64
  %v1511 = vpop.permute.xlu0 %1510
  %1512 = vrot.lane.b32.xlu0 %v593, 64
  %v1513 = vpop.permute.xlu0 %1512
  %1514 = vrot.lane.b32.xlu0 %v596, 64
  %v1515 = vpop.permute.xlu0 %1514
  %1516 = vrot.lane.b32.xlu0 %v599, 64
  %v1517 = vpop.permute.xlu0 %1516
  %1518 = vrot.lane.b32.xlu0 %v602, 64
  %v1519 = vpop.permute.xlu0 %1518
  %1520 = vrot.lane.b32.xlu0 %v605, 64
  %v1521 = vpop.permute.xlu0 %1520
  %1522 = vrot.lane.b32.xlu0 %v889, 64
  %v1523 = vpop.permute.xlu0 %1522
  %1524 = vrot.lane.b32.xlu0 %v608, 64
  %v1525 = vpop.permute.xlu0 %1524
  %1526 = vrot.lane.b32.xlu0 %v611, 64
  %v1527 = vpop.permute.xlu0 %1526
  %1528 = vrot.lane.b32.xlu0 %v614, 64
  %v1529 = vpop.permute.xlu0 %1528
  %1530 = vrot.lane.b32.xlu0 %v617, 64
  %v1531 = vpop.permute.xlu0 %1530
  %1532 = vrot.lane.b32.xlu0 %v620, 64
  %v1533 = vpop.permute.xlu0 %1532
  %1534 = vrot.lane.b32.xlu0 %v623, 64
  %v1535 = vpop.permute.xlu0 %1534
  %1536 = vrot.lane.b32.xlu0 %v626, 64
  %v1537 = vpop.permute.xlu0 %1536
  %1538 = vrot.lane.b32.xlu0 %v892, 64
  %v1539 = vpop.permute.xlu0 %1538
  %1540 = vrot.lane.b32.xlu0 %v629, 64
  %v1541 = vpop.permute.xlu0 %1540
  %1542 = vrot.lane.b32.xlu0 %v632, 64
  %v1543 = vpop.permute.xlu0 %1542
  %1544 = vrot.lane.b32.xlu0 %v635, 64
  %v1545 = vpop.permute.xlu0 %1544
  %1546 = vrot.lane.b32.xlu0 %v638, 64
  %v1547 = vpop.permute.xlu0 %1546
  %1548 = vrot.lane.b32.xlu0 %v641, 64
  %v1549 = vpop.permute.xlu0 %1548
  %1550 = vrot.lane.b32.xlu0 %v644, 64
  %v1551 = vpop.permute.xlu0 %1550
  %1552 = vrot.lane.b32.xlu0 %v647, 64
  %v1553 = vpop.permute.xlu0 %1552
  %1554 = vrot.lane.b32.xlu0 %v895, 64
  %v1555 = vpop.permute.xlu0 %1554
  %1556 = vrot.lane.b32.xlu0 %v650, 64
  %v1557 = vpop.permute.xlu0 %1556
  %1558 = vrot.lane.b32.xlu0 %v653, 64
  %v1559 = vpop.permute.xlu0 %1558
  %1560 = vrot.lane.b32.xlu0 %v656, 64
  %v1561 = vpop.permute.xlu0 %1560
  %1562 = vrot.lane.b32.xlu0 %v659, 64
  %v1563 = vpop.permute.xlu0 %1562
  %1564 = vrot.lane.b32.xlu0 %v662, 64
  %v1565 = vpop.permute.xlu0 %1564
  %1566 = vrot.lane.b32.xlu0 %v665, 64
  %v1567 = vpop.permute.xlu0 %1566
  %1568 = vrot.lane.b32.xlu0 %v668, 64
  %v1569 = vpop.permute.xlu0 %1568
  %1570 = vrot.lane.b32.xlu0 %v898, 64
  %v1571 = vpop.permute.xlu0 %1570
  %1572 = vrot.lane.b32.xlu0 %v671, 64
  %v1573 = vpop.permute.xlu0 %1572
  %1574 = vrot.lane.b32.xlu0 %v674, 64
  %v1575 = vpop.permute.xlu0 %1574
  %1576 = vrot.lane.b32.xlu0 %v677, 64
  %v1577 = vpop.permute.xlu0 %1576
  %1578 = vrot.lane.b32.xlu0 %v680, 64
  %v1579 = vpop.permute.xlu0 %1578
  %1580 = vrot.lane.b32.xlu0 %v683, 64
  %v1581 = vpop.permute.xlu0 %1580
  %1582 = vrot.lane.b32.xlu0 %v686, 64
  %v1583 = vpop.permute.xlu0 %1582
  %1584 = vrot.lane.b32.xlu0 %v689, 64
  %v1585 = vpop.permute.xlu0 %1584
  %1586 = vrot.lane.b32.xlu0 %v901, 64
  %v1587 = vpop.permute.xlu0 %1586
  %1652 = vrot.lane.b32.xlu0 %v696, 80
  %v1653 = vpop.permute.xlu0 %1652
  %1654 = vrot.lane.b32.xlu0 %v699, 80
  %v1655 = vpop.permute.xlu0 %1654
  %1656 = vrot.lane.b32.xlu0 %v702, 80
  %v1657 = vpop.permute.xlu0 %1656
  %1658 = vrot.lane.b32.xlu0 %v705, 80
  %v1659 = vpop.permute.xlu0 %1658
  %1660 = vrot.lane.b32.xlu0 %v708, 80
  %v1661 = vpop.permute.xlu0 %1660
  %1662 = vrot.lane.b32.xlu0 %v711, 80
  %v1663 = vpop.permute.xlu0 %1662
  %1664 = vrot.lane.b32.xlu0 %v714, 80
  %v1665 = vpop.permute.xlu0 %1664
  %1666 = vrot.lane.b32.xlu0 %v904, 80
  %v1667 = vpop.permute.xlu0 %1666
  %1668 = vrot.lane.b32.xlu0 %v717, 80
  %v1669 = vpop.permute.xlu0 %1668
  %1670 = vrot.lane.b32.xlu0 %v720, 80
  %v1671 = vpop.permute.xlu0 %1670
  %1672 = vrot.lane.b32.xlu0 %v723, 80
  %v1673 = vpop.permute.xlu0 %1672
  %1674 = vrot.lane.b32.xlu0 %v726, 80
  %v1675 = vpop.permute.xlu0 %1674
  %1676 = vrot.lane.b32.xlu0 %v729, 80
  %v1677 = vpop.permute.xlu0 %1676
  %1678 = vrot.lane.b32.xlu0 %v732, 80
  %v1679 = vpop.permute.xlu0 %1678
  %1680 = vrot.lane.b32.xlu0 %v735, 80
  %v1681 = vpop.permute.xlu0 %1680
  %1682 = vrot.lane.b32.xlu0 %v907, 80
  %v1683 = vpop.permute.xlu0 %1682
  %1684 = vrot.lane.b32.xlu0 %v738, 80
  %v1685 = vpop.permute.xlu0 %1684
  %1686 = vrot.lane.b32.xlu0 %v741, 80
  %v1687 = vpop.permute.xlu0 %1686
  %1688 = vrot.lane.b32.xlu0 %v744, 80
  %v1689 = vpop.permute.xlu0 %1688
  %1690 = vrot.lane.b32.xlu0 %v747, 80
  %v1691 = vpop.permute.xlu0 %1690
  %1692 = vrot.lane.b32.xlu0 %v750, 80
  %v1693 = vpop.permute.xlu0 %1692
  %1694 = vrot.lane.b32.xlu0 %v753, 80
  %v1695 = vpop.permute.xlu0 %1694
  %1696 = vrot.lane.b32.xlu0 %v756, 80
  %v1697 = vpop.permute.xlu0 %1696
  %1698 = vrot.lane.b32.xlu0 %v910, 80
  %v1699 = vpop.permute.xlu0 %1698
  %1700 = vrot.lane.b32.xlu0 %v759, 80
  %v1701 = vpop.permute.xlu0 %1700
  %1702 = vrot.lane.b32.xlu0 %v762, 80
  %v1703 = vpop.permute.xlu0 %1702
  %1704 = vrot.lane.b32.xlu0 %v765, 80
  %v1705 = vpop.permute.xlu0 %1704
  %1706 = vrot.lane.b32.xlu0 %v768, 80
  %v1707 = vpop.permute.xlu0 %1706
  %1708 = vrot.lane.b32.xlu0 %v771, 80
  %v1709 = vpop.permute.xlu0 %1708
  %1710 = vrot.lane.b32.xlu0 %v774, 80
  %v1711 = vpop.permute.xlu0 %1710
  %1712 = vrot.lane.b32.xlu0 %v777, 80
  %v1713 = vpop.permute.xlu0 %1712
  %1714 = vrot.lane.b32.xlu0 %v913, 80
  %v1715 = vpop.permute.xlu0 %1714
  %1716 = vrot.lane.b32.xlu0 %v780, 80
  %v1717 = vpop.permute.xlu0 %1716
  %1718 = vrot.lane.b32.xlu0 %v783, 80
  %v1719 = vpop.permute.xlu0 %1718
  %1720 = vrot.lane.b32.xlu0 %v786, 80
  %v1721 = vpop.permute.xlu0 %1720
  %1722 = vrot.lane.b32.xlu0 %v789, 80
  %v1723 = vpop.permute.xlu0 %1722
  %1724 = vrot.lane.b32.xlu0 %v792, 80
  %v1725 = vpop.permute.xlu0 %1724
  %1726 = vrot.lane.b32.xlu0 %v795, 80
  %v1727 = vpop.permute.xlu0 %1726
  %1728 = vrot.lane.b32.xlu0 %v798, 80
  %v1729 = vpop.permute.xlu0 %1728
  %1730 = vrot.lane.b32.xlu0 %v916, 80
  %v1731 = vpop.permute.xlu0 %1730
  %1732 = vrot.lane.b32.xlu0 %v801, 80
  %v1733 = vpop.permute.xlu0 %1732
  %1734 = vrot.lane.b32.xlu0 %v804, 80
  %v1735 = vpop.permute.xlu0 %1734
  %1736 = vrot.lane.b32.xlu0 %v807, 80
  %v1737 = vpop.permute.xlu0 %1736
  %1738 = vrot.lane.b32.xlu0 %v810, 80
  %v1739 = vpop.permute.xlu0 %1738
  %1740 = vrot.lane.b32.xlu0 %v813, 80
  %v1741 = vpop.permute.xlu0 %1740
  %1742 = vrot.lane.b32.xlu0 %v816, 80
  %v1743 = vpop.permute.xlu0 %1742
  %1744 = vrot.lane.b32.xlu0 %v819, 80
  %v1745 = vpop.permute.xlu0 %1744
  %1746 = vrot.lane.b32.xlu0 %v919, 80
  %v1747 = vpop.permute.xlu0 %1746
  %1748 = vrot.lane.b32.xlu0 %v822, 80
  %v1749 = vpop.permute.xlu0 %1748
  %1750 = vrot.lane.b32.xlu0 %v825, 80
  %v1751 = vpop.permute.xlu0 %1750
  %1752 = vrot.lane.b32.xlu0 %v828, 80
  %v1753 = vpop.permute.xlu0 %1752
  %1754 = vrot.lane.b32.xlu0 %v831, 80
  %v1755 = vpop.permute.xlu0 %1754
  %1756 = vrot.lane.b32.xlu0 %v834, 80
  %v1757 = vpop.permute.xlu0 %1756
  %1758 = vrot.lane.b32.xlu0 %v837, 80
  %v1759 = vpop.permute.xlu0 %1758
  %1760 = vrot.lane.b32.xlu0 %v840, 80
  %v1761 = vpop.permute.xlu0 %1760
  %1762 = vrot.lane.b32.xlu0 %v922, 80
  %v1763 = vpop.permute.xlu0 %1762
  %1764 = vrot.lane.b32.xlu0 %v843, 80
  %v1765 = vpop.permute.xlu0 %1764
  %1766 = vrot.lane.b32.xlu0 %v846, 80
  %v1767 = vpop.permute.xlu0 %1766
  %1768 = vrot.lane.b32.xlu0 %v849, 80
  %v1769 = vpop.permute.xlu0 %1768
  %1770 = vrot.lane.b32.xlu0 %v852, 80
  %v1771 = vpop.permute.xlu0 %1770
  %1772 = vrot.lane.b32.xlu0 %v855, 80
  %v1773 = vpop.permute.xlu0 %1772
  %1774 = vrot.lane.b32.xlu0 %v858, 80
  %v1775 = vpop.permute.xlu0 %1774
  %1776 = vrot.lane.b32.xlu0 %v861, 80
  %v1777 = vpop.permute.xlu0 %1776
  %1778 = vrot.lane.b32.xlu0 %v925, 80
  %v1779 = vpop.permute.xlu0 %1778
  %1844 = vrot.lane.b32.xlu0 %v276, 96
  %v1845 = vpop.permute.xlu0 %1844
  %1846 = vrot.lane.b32.xlu0 %v277, 96
  %v1847 = vpop.permute.xlu0 %1846
  %1848 = vrot.lane.b32.xlu0 %v278, 96
  %v1849 = vpop.permute.xlu0 %1848
  %1850 = vrot.lane.b32.xlu0 %v279, 96
  %v1851 = vpop.permute.xlu0 %1850
  %1852 = vrot.lane.b32.xlu0 %v280, 96
  %v1853 = vpop.permute.xlu0 %1852
  %1854 = vrot.lane.b32.xlu0 %v281, 96
  %v1855 = vpop.permute.xlu0 %1854
  %1856 = vrot.lane.b32.xlu0 %v282, 96
  %v1857 = vpop.permute.xlu0 %1856
  %1858 = vrot.lane.b32.xlu0 %v274, 96
  %v1859 = vpop.permute.xlu0 %1858
  %1860 = vrot.lane.b32.xlu0 %v284, 96
  %v1861 = vpop.permute.xlu0 %1860
  %1862 = vrot.lane.b32.xlu0 %v285, 96
  %v1863 = vpop.permute.xlu0 %1862
  %1864 = vrot.lane.b32.xlu0 %v286, 96
  %v1865 = vpop.permute.xlu0 %1864
  %1866 = vrot.lane.b32.xlu0 %v287, 96
  %v1867 = vpop.permute.xlu0 %1866
  %1868 = vrot.lane.b32.xlu0 %v288, 96
  %v1869 = vpop.permute.xlu0 %1868
  %1870 = vrot.lane.b32.xlu0 %v289, 96
  %v1871 = vpop.permute.xlu0 %1870
  %1872 = vrot.lane.b32.xlu0 %v290, 96
  %v1873 = vpop.permute.xlu0 %1872
  %1874 = vrot.lane.b32.xlu0 %v292, 96
  %v1875 = vpop.permute.xlu0 %1874
  %1876 = vrot.lane.b32.xlu0 %v293, 96
  %v1877 = vpop.permute.xlu0 %1876
  %1878 = vrot.lane.b32.xlu0 %v294, 96
  %v1879 = vpop.permute.xlu0 %1878
  %1880 = vrot.lane.b32.xlu0 %v295, 96
  %v1881 = vpop.permute.xlu0 %1880
  %1882 = vrot.lane.b32.xlu0 %v296, 96
  %v1883 = vpop.permute.xlu0 %1882
  %1884 = vrot.lane.b32.xlu0 %v297, 96
  %v1885 = vpop.permute.xlu0 %1884
  %1886 = vrot.lane.b32.xlu0 %v298, 96
  %v1887 = vpop.permute.xlu0 %1886
  %1888 = vrot.lane.b32.xlu0 %v300, 96
  %v1889 = vpop.permute.xlu0 %1888
  %1890 = vrot.lane.b32.xlu0 %v301, 96
  %v1891 = vpop.permute.xlu0 %1890
  %1892 = vrot.lane.b32.xlu0 %v302, 96
  %v1893 = vpop.permute.xlu0 %1892
  %1894 = vrot.lane.b32.xlu0 %v303, 96
  %v1895 = vpop.permute.xlu0 %1894
  %1896 = vrot.lane.b32.xlu0 %v304, 96
  %v1897 = vpop.permute.xlu0 %1896
  %1898 = vrot.lane.b32.xlu0 %v305, 96
  %v1899 = vpop.permute.xlu0 %1898
  %1900 = vrot.lane.b32.xlu0 %v306, 96
  %v1901 = vpop.permute.xlu0 %1900
  %1902 = vrot.lane.b32.xlu0 %v308, 96
  %v1903 = vpop.permute.xlu0 %1902
  %1904 = vrot.lane.b32.xlu0 %v309, 96
  %v1905 = vpop.permute.xlu0 %1904
  %1906 = vrot.lane.b32.xlu0 %v310, 96
  %v1907 = vpop.permute.xlu0 %1906
  %1908 = vrot.lane.b32.xlu0 %v311, 96
  %v1909 = vpop.permute.xlu0 %1908
  %1910 = vrot.lane.b32.xlu0 %v312, 96
  %v1911 = vpop.permute.xlu0 %1910
  %1912 = vrot.lane.b32.xlu0 %v313, 96
  %v1913 = vpop.permute.xlu0 %1912
  %1914 = vrot.lane.b32.xlu0 %v314, 96
  %v1915 = vpop.permute.xlu0 %1914
  %1916 = vrot.lane.b32.xlu0 %v316, 96
  %v1917 = vpop.permute.xlu0 %1916
  %1918 = vrot.lane.b32.xlu0 %v317, 96
  %v1919 = vpop.permute.xlu0 %1918
  %1920 = vrot.lane.b32.xlu0 %v318, 96
  %v1921 = vpop.permute.xlu0 %1920
  %1922 = vrot.lane.b32.xlu0 %v319, 96
  %v1923 = vpop.permute.xlu0 %1922
  %1924 = vrot.lane.b32.xlu0 %v320, 96
  %v1925 = vpop.permute.xlu0 %1924
  %1926 = vrot.lane.b32.xlu0 %v321, 96
  %v1927 = vpop.permute.xlu0 %1926
  %1928 = vrot.lane.b32.xlu0 %v322, 96
  %v1929 = vpop.permute.xlu0 %1928
  %1930 = vrot.lane.b32.xlu0 %v324, 96
  %v1931 = vpop.permute.xlu0 %1930
  %1932 = vrot.lane.b32.xlu0 %v325, 96
  %v1933 = vpop.permute.xlu0 %1932
  %1934 = vrot.lane.b32.xlu0 %v326, 96
  %v1935 = vpop.permute.xlu0 %1934
  %1936 = vrot.lane.b32.xlu0 %v327, 96
  %v1937 = vpop.permute.xlu0 %1936
  %1938 = vrot.lane.b32.xlu0 %v328, 96
  %v1939 = vpop.permute.xlu0 %1938
  %1940 = vrot.lane.b32.xlu0 %v329, 96
  %v1941 = vpop.permute.xlu0 %1940
  %1942 = vrot.lane.b32.xlu0 %v330, 96
  %v1943 = vpop.permute.xlu0 %1942
  %1944 = vrot.lane.b32.xlu0 %v332, 96
  %v1945 = vpop.permute.xlu0 %1944
  %1946 = vrot.lane.b32.xlu0 %v333, 96
  %v1947 = vpop.permute.xlu0 %1946
  %1948 = vrot.lane.b32.xlu0 %v334, 96
  %v1949 = vpop.permute.xlu0 %1948
  %1950 = vrot.lane.b32.xlu0 %v335, 96
  %v1951 = vpop.permute.xlu0 %1950
  %1952 = vrot.lane.b32.xlu0 %v336, 96
  %v1953 = vpop.permute.xlu0 %1952
  %1954 = vrot.lane.b32.xlu0 %v337, 96
  %v1955 = vpop.permute.xlu0 %1954
  %1956 = vrot.lane.b32.xlu0 %v338, 96
  %v1957 = vpop.permute.xlu0 %1956
  %2015 = vrot.lane.b32.xlu0 %v527, 112
  %v2016 = vpop.permute.xlu0 %2015
  %2017 = vrot.lane.b32.xlu0 %v530, 112
  %v2018 = vpop.permute.xlu0 %2017
  %2019 = vrot.lane.b32.xlu0 %v533, 112
  %v2020 = vpop.permute.xlu0 %2019
  %2021 = vrot.lane.b32.xlu0 %v536, 112
  %v2022 = vpop.permute.xlu0 %2021
  %2023 = vrot.lane.b32.xlu0 %v539, 112
  %v2024 = vpop.permute.xlu0 %2023
  %2025 = vrot.lane.b32.xlu0 %v542, 112
  %v2026 = vpop.permute.xlu0 %2025
  %2027 = vrot.lane.b32.xlu0 %v880, 112
  %v2028 = vpop.permute.xlu0 %2027
  %2029 = vrot.lane.b32.xlu0 %v521, 112
  %v2030 = vpop.permute.xlu0 %2029
  %2031 = vrot.lane.b32.xlu0 %v548, 112
  %v2032 = vpop.permute.xlu0 %2031
  %2033 = vrot.lane.b32.xlu0 %v551, 112
  %v2034 = vpop.permute.xlu0 %2033
  %2035 = vrot.lane.b32.xlu0 %v554, 112
  %v2036 = vpop.permute.xlu0 %2035
  %2037 = vrot.lane.b32.xlu0 %v557, 112
  %v2038 = vpop.permute.xlu0 %2037
  %2039 = vrot.lane.b32.xlu0 %v560, 112
  %v2040 = vpop.permute.xlu0 %2039
  %2041 = vrot.lane.b32.xlu0 %v563, 112
  %v2042 = vpop.permute.xlu0 %2041
  %2043 = vrot.lane.b32.xlu0 %v883, 112
  %v2044 = vpop.permute.xlu0 %2043
  %2045 = vrot.lane.b32.xlu0 %v569, 112
  %v2046 = vpop.permute.xlu0 %2045
  %2047 = vrot.lane.b32.xlu0 %v572, 112
  %v2048 = vpop.permute.xlu0 %2047
  %2049 = vrot.lane.b32.xlu0 %v575, 112
  %v2050 = vpop.permute.xlu0 %2049
  %2051 = vrot.lane.b32.xlu0 %v578, 112
  %v2052 = vpop.permute.xlu0 %2051
  %2053 = vrot.lane.b32.xlu0 %v581, 112
  %v2054 = vpop.permute.xlu0 %2053
  %2055 = vrot.lane.b32.xlu0 %v584, 112
  %v2056 = vpop.permute.xlu0 %2055
  %2057 = vrot.lane.b32.xlu0 %v886, 112
  %v2058 = vpop.permute.xlu0 %2057
  %2059 = vrot.lane.b32.xlu0 %v590, 112
  %v2060 = vpop.permute.xlu0 %2059
  %2061 = vrot.lane.b32.xlu0 %v593, 112
  %v2062 = vpop.permute.xlu0 %2061
  %2063 = vrot.lane.b32.xlu0 %v596, 112
  %v2064 = vpop.permute.xlu0 %2063
  %2065 = vrot.lane.b32.xlu0 %v599, 112
  %v2066 = vpop.permute.xlu0 %2065
  %2067 = vrot.lane.b32.xlu0 %v602, 112
  %v2068 = vpop.permute.xlu0 %2067
  %2069 = vrot.lane.b32.xlu0 %v605, 112
  %v2070 = vpop.permute.xlu0 %2069
  %2071 = vrot.lane.b32.xlu0 %v889, 112
  %v2072 = vpop.permute.xlu0 %2071
  %2073 = vrot.lane.b32.xlu0 %v611, 112
  %v2074 = vpop.permute.xlu0 %2073
  %2075 = vrot.lane.b32.xlu0 %v614, 112
  %v2076 = vpop.permute.xlu0 %2075
  %2077 = vrot.lane.b32.xlu0 %v617, 112
  %v2078 = vpop.permute.xlu0 %2077
  %2079 = vrot.lane.b32.xlu0 %v620, 112
  %v2080 = vpop.permute.xlu0 %2079
  %2081 = vrot.lane.b32.xlu0 %v623, 112
  %v2082 = vpop.permute.xlu0 %2081
  %2083 = vrot.lane.b32.xlu0 %v626, 112
  %v2084 = vpop.permute.xlu0 %2083
  %2085 = vrot.lane.b32.xlu0 %v892, 112
  %v2086 = vpop.permute.xlu0 %2085
  %2087 = vrot.lane.b32.xlu0 %v632, 112
  %v2088 = vpop.permute.xlu0 %2087
  %2089 = vrot.lane.b32.xlu0 %v635, 112
  %v2090 = vpop.permute.xlu0 %2089
  %2091 = vrot.lane.b32.xlu0 %v638, 112
  %v2092 = vpop.permute.xlu0 %2091
  %2093 = vrot.lane.b32.xlu0 %v641, 112
  %v2094 = vpop.permute.xlu0 %2093
  %2095 = vrot.lane.b32.xlu0 %v644, 112
  %v2096 = vpop.permute.xlu0 %2095
  %2097 = vrot.lane.b32.xlu0 %v647, 112
  %v2098 = vpop.permute.xlu0 %2097
  %2099 = vrot.lane.b32.xlu0 %v895, 112
  %v2100 = vpop.permute.xlu0 %2099
  %2101 = vrot.lane.b32.xlu0 %v653, 112
  %v2102 = vpop.permute.xlu0 %2101
  %2103 = vrot.lane.b32.xlu0 %v656, 112
  %v2104 = vpop.permute.xlu0 %2103
  %2105 = vrot.lane.b32.xlu0 %v659, 112
  %v2106 = vpop.permute.xlu0 %2105
  %2107 = vrot.lane.b32.xlu0 %v662, 112
  %v2108 = vpop.permute.xlu0 %2107
  %2109 = vrot.lane.b32.xlu0 %v665, 112
  %v2110 = vpop.permute.xlu0 %2109
  %2111 = vrot.lane.b32.xlu0 %v668, 112
  %v2112 = vpop.permute.xlu0 %2111
  %2113 = vrot.lane.b32.xlu0 %v898, 112
  %v2114 = vpop.permute.xlu0 %2113
  %2115 = vrot.lane.b32.xlu0 %v674, 112
  %v2116 = vpop.permute.xlu0 %2115
  %2117 = vrot.lane.b32.xlu0 %v677, 112
  %v2118 = vpop.permute.xlu0 %2117
  %2119 = vrot.lane.b32.xlu0 %v680, 112
  %v2120 = vpop.permute.xlu0 %2119
  %2121 = vrot.lane.b32.xlu0 %v683, 112
  %v2122 = vpop.permute.xlu0 %2121
  %2123 = vrot.lane.b32.xlu0 %v686, 112
  %v2124 = vpop.permute.xlu0 %2123
  %2125 = vrot.lane.b32.xlu0 %v689, 112
  %v2126 = vpop.permute.xlu0 %2125
  %2127 = vrot.lane.b32.xlu0 %v901, 112
  %v2128 = vpop.permute.xlu0 %2127
  %vm2186 = vcmask 130048
  %v2187 = vsel %vm2186, %v274, %v927
  %v2188 = vsel %vm2186, %v275, %v929
  %v2189 = vsel %vm2186, %v276, %v931
  %v2190 = vsel %vm2186, %v277, %v933
  %v2191 = vsel %vm2186, %v278, %v935
  %v2192 = vsel %vm2186, %v279, %v937
  %v2193 = vsel %vm2186, %v280, %v939
  %v2194 = vsel %vm2186, %v281, %v941
  %v2195 = vsel %vm2186, %v283, %v943
  %v2196 = vsel %vm2186, %v284, %v945
  %v2197 = vsel %vm2186, %v285, %v947
  %v2198 = vsel %vm2186, %v286, %v949
  %v2199 = vsel %vm2186, %v287, %v951
  %v2200 = vsel %vm2186, %v288, %v953
  %v2201 = vsel %vm2186, %v289, %v955
  %v2202 = vsel %vm2186, %v291, %v957
  %v2203 = vsel %vm2186, %v292, %v959
  %v2204 = vsel %vm2186, %v293, %v961
  %v2205 = vsel %vm2186, %v294, %v963
  %v2206 = vsel %vm2186, %v295, %v965
  %v2207 = vsel %vm2186, %v296, %v967
  %v2208 = vsel %vm2186, %v297, %v969
  %v2209 = vsel %vm2186, %v299, %v971
  %v2210 = vsel %vm2186, %v300, %v973
  %v2211 = vsel %vm2186, %v301, %v975
  %v2212 = vsel %vm2186, %v302, %v977
  %v2213 = vsel %vm2186, %v303, %v979
  %v2214 = vsel %vm2186, %v304, %v981
  %v2215 = vsel %vm2186, %v305, %v983
  %v2216 = vsel %vm2186, %v307, %v985
  %v2217 = vsel %vm2186, %v308, %v987
  %v2218 = vsel %vm2186, %v309, %v989
  %v2219 = vsel %vm2186, %v310, %v991
  %v2220 = vsel %vm2186, %v311, %v993
  %v2221 = vsel %vm2186, %v312, %v995
  %v2222 = vsel %vm2186, %v313, %v997
  %v2223 = vsel %vm2186, %v315, %v999
  %v2224 = vsel %vm2186, %v316, %v1001
  %v2225 = vsel %vm2186, %v317, %v1003
  %v2226 = vsel %vm2186, %v318, %v1005
  %v2227 = vsel %vm2186, %v319, %v1007
  %v2228 = vsel %vm2186, %v320, %v1009
  %v2229 = vsel %vm2186, %v321, %v1011
  %v2230 = vsel %vm2186, %v323, %v1013
  %v2231 = vsel %vm2186, %v324, %v1015
  %v2232 = vsel %vm2186, %v325, %v1017
  %v2233 = vsel %vm2186, %v326, %v1019
  %v2234 = vsel %vm2186, %v327, %v1021
  %v2235 = vsel %vm2186, %v328, %v1023
  %v2236 = vsel %vm2186, %v329, %v1025
  %v2237 = vsel %vm2186, %v331, %v1027
  %v2238 = vsel %vm2186, %v332, %v1029
  %v2239 = vsel %vm2186, %v333, %v1031
  %v2240 = vsel %vm2186, %v334, %v1033
  %v2241 = vsel %vm2186, %v335, %v1035
  %v2242 = vsel %vm2186, %v336, %v1037
  %v2243 = vsel %vm2186, %v337, %v1039
  %vm2244 = vcmask 261120
  %v2245 = vsel %vm2244, %v2187, %v1098
  %v2246 = vsel %vm2244, %v2188, %v1100
  %v2247 = vsel %vm2244, %v2189, %v1102
  %v2248 = vsel %vm2244, %v2190, %v1104
  %v2249 = vsel %vm2244, %v2191, %v1106
  %v2250 = vsel %vm2244, %v2192, %v1108
  %v2251 = vsel %vm2244, %v2193, %v1110
  %v2252 = vsel %vm2244, %v2194, %v1112
  %v2253 = vsel %vm2244, %v2195, %v1114
  %v2254 = vsel %vm2244, %v2196, %v1116
  %v2255 = vsel %vm2244, %v2197, %v1118
  %v2256 = vsel %vm2244, %v2198, %v1120
  %v2257 = vsel %vm2244, %v2199, %v1122
  %v2258 = vsel %vm2244, %v2200, %v1124
  %v2259 = vsel %vm2244, %v2201, %v1126
  %v2260 = vsel %vm2244, %v2202, %v1128
  %v2261 = vsel %vm2244, %v2203, %v1130
  %v2262 = vsel %vm2244, %v2204, %v1132
  %v2263 = vsel %vm2244, %v2205, %v1134
  %v2264 = vsel %vm2244, %v2206, %v1136
  %v2265 = vsel %vm2244, %v2207, %v1138
  %v2266 = vsel %vm2244, %v2208, %v1140
  %v2267 = vsel %vm2244, %v2209, %v1142
  %v2268 = vsel %vm2244, %v2210, %v1144
  %v2269 = vsel %vm2244, %v2211, %v1146
  %v2270 = vsel %vm2244, %v2212, %v1148
  %v2271 = vsel %vm2244, %v2213, %v1150
  %v2272 = vsel %vm2244, %v2214, %v1152
  %v2273 = vsel %vm2244, %v2215, %v1154
  %v2274 = vsel %vm2244, %v2216, %v1156
  %v2275 = vsel %vm2244, %v2217, %v1158
  %v2276 = vsel %vm2244, %v2218, %v1160
  %v2277 = vsel %vm2244, %v2219, %v1162
  %v2278 = vsel %vm2244, %v2220, %v1164
  %v2279 = vsel %vm2244, %v2221, %v1166
  %v2280 = vsel %vm2244, %v2222, %v1168
  %v2281 = vsel %vm2244, %v2223, %v1170
  %v2282 = vsel %vm2244, %v2224, %v1172
  %v2283 = vsel %vm2244, %v2225, %v1174
  %v2284 = vsel %vm2244, %v2226, %v1176
  %v2285 = vsel %vm2244, %v2227, %v1178
  %v2286 = vsel %vm2244, %v2228, %v1180
  %v2287 = vsel %vm2244, %v2229, %v1182
  %v2288 = vsel %vm2244, %v2230, %v1184
  %v2289 = vsel %vm2244, %v2231, %v1186
  %v2290 = vsel %vm2244, %v2232, %v1188
  %v2291 = vsel %vm2244, %v2233, %v1190
  %v2292 = vsel %vm2244, %v2234, %v1192
  %v2293 = vsel %vm2244, %v2235, %v1194
  %v2294 = vsel %vm2244, %v2236, %v1196
  %v2295 = vsel %vm2244, %v2237, %v1198
  %v2296 = vsel %vm2244, %v2238, %v1200
  %v2297 = vsel %vm2244, %v2239, %v1202
  %v2298 = vsel %vm2244, %v2240, %v1204
  %v2299 = vsel %vm2244, %v2241, %v1206
  %v2300 = vsel %vm2244, %v2242, %v1208
  %v2301 = vsel %vm2244, %v2243, %v1210
  %vm2302 = vcmask 392192
  %v2303 = vsel %vm2302, %v2245, %v1269
  %v2304 = vsel %vm2302, %v2246, %v1271
  %v2305 = vsel %vm2302, %v2247, %v1273
  %v2306 = vsel %vm2302, %v2248, %v1275
  %v2307 = vsel %vm2302, %v2249, %v1277
  %v2308 = vsel %vm2302, %v2250, %v1279
  %v2309 = vsel %vm2302, %v2251, %v1281
  %v2310 = vsel %vm2302, %v2252, %v1283
  %v2311 = vsel %vm2302, %v2245, %v1285
  %v2312 = vsel %vm2302, %v2253, %v1287
  %v2313 = vsel %vm2302, %v2254, %v1289
  %v2314 = vsel %vm2302, %v2255, %v1291
  %v2315 = vsel %vm2302, %v2256, %v1293
  %v2316 = vsel %vm2302, %v2257, %v1295
  %v2317 = vsel %vm2302, %v2258, %v1297
  %v2318 = vsel %vm2302, %v2259, %v1299
  %v2319 = vsel %vm2302, %v2245, %v1301
  %v2320 = vsel %vm2302, %v2260, %v1303
  %v2321 = vsel %vm2302, %v2261, %v1305
  %v2322 = vsel %vm2302, %v2262, %v1307
  %v2323 = vsel %vm2302, %v2263, %v1309
  %v2324 = vsel %vm2302, %v2264, %v1311
  %v2325 = vsel %vm2302, %v2265, %v1313
  %v2326 = vsel %vm2302, %v2266, %v1315
  %v2327 = vsel %vm2302, %v2245, %v1317
  %v2328 = vsel %vm2302, %v2267, %v1319
  %v2329 = vsel %vm2302, %v2268, %v1321
  %v2330 = vsel %vm2302, %v2269, %v1323
  %v2331 = vsel %vm2302, %v2270, %v1325
  %v2332 = vsel %vm2302, %v2271, %v1327
  %v2333 = vsel %vm2302, %v2272, %v1329
  %v2334 = vsel %vm2302, %v2273, %v1331
  %v2335 = vsel %vm2302, %v2245, %v1333
  %v2336 = vsel %vm2302, %v2274, %v1335
  %v2337 = vsel %vm2302, %v2275, %v1337
  %v2338 = vsel %vm2302, %v2276, %v1339
  %v2339 = vsel %vm2302, %v2277, %v1341
  %v2340 = vsel %vm2302, %v2278, %v1343
  %v2341 = vsel %vm2302, %v2279, %v1345
  %v2342 = vsel %vm2302, %v2280, %v1347
  %v2343 = vsel %vm2302, %v2245, %v1349
  %v2344 = vsel %vm2302, %v2281, %v1351
  %v2345 = vsel %vm2302, %v2282, %v1353
  %v2346 = vsel %vm2302, %v2283, %v1355
  %v2347 = vsel %vm2302, %v2284, %v1357
  %v2348 = vsel %vm2302, %v2285, %v1359
  %v2349 = vsel %vm2302, %v2286, %v1361
  %v2350 = vsel %vm2302, %v2287, %v1363
  %v2351 = vsel %vm2302, %v2245, %v1365
  %v2352 = vsel %vm2302, %v2288, %v1367
  %v2353 = vsel %vm2302, %v2289, %v1369
  %v2354 = vsel %vm2302, %v2290, %v1371
  %v2355 = vsel %vm2302, %v2291, %v1373
  %v2356 = vsel %vm2302, %v2292, %v1375
  %v2357 = vsel %vm2302, %v2293, %v1377
  %v2358 = vsel %vm2302, %v2294, %v1379
  %v2359 = vsel %vm2302, %v2245, %v1381
  %v2360 = vsel %vm2302, %v2295, %v1383
  %v2361 = vsel %vm2302, %v2296, %v1385
  %v2362 = vsel %vm2302, %v2297, %v1387
  %v2363 = vsel %vm2302, %v2298, %v1389
  %v2364 = vsel %vm2302, %v2299, %v1391
  %v2365 = vsel %vm2302, %v2300, %v1393
  %v2366 = vsel %vm2302, %v2301, %v1395
  %vm2367 = vcmask 523264
  %v2368 = vsel %vm2367, %v2303, %v1461
  %v2369 = vsel %vm2367, %v2304, %v1463
  %v2370 = vsel %vm2367, %v2305, %v1465
  %v2371 = vsel %vm2367, %v2306, %v1467
  %v2372 = vsel %vm2367, %v2307, %v1469
  %v2373 = vsel %vm2367, %v2308, %v1471
  %v2374 = vsel %vm2367, %v2309, %v1473
  %v2375 = vsel %vm2367, %v2310, %v1475
  %v2376 = vsel %vm2367, %v2311, %v1477
  %v2377 = vsel %vm2367, %v2312, %v1479
  %v2378 = vsel %vm2367, %v2313, %v1481
  %v2379 = vsel %vm2367, %v2314, %v1483
  %v2380 = vsel %vm2367, %v2315, %v1485
  %v2381 = vsel %vm2367, %v2316, %v1487
  %v2382 = vsel %vm2367, %v2317, %v1489
  %v2383 = vsel %vm2367, %v2318, %v1491
  %v2384 = vsel %vm2367, %v2319, %v1493
  %v2385 = vsel %vm2367, %v2320, %v1495
  %v2386 = vsel %vm2367, %v2321, %v1497
  %v2387 = vsel %vm2367, %v2322, %v1499
  %v2388 = vsel %vm2367, %v2323, %v1501
  %v2389 = vsel %vm2367, %v2324, %v1503
  %v2390 = vsel %vm2367, %v2325, %v1505
  %v2391 = vsel %vm2367, %v2326, %v1507
  %v2392 = vsel %vm2367, %v2327, %v1509
  %v2393 = vsel %vm2367, %v2328, %v1511
  %v2394 = vsel %vm2367, %v2329, %v1513
  %v2395 = vsel %vm2367, %v2330, %v1515
  %v2396 = vsel %vm2367, %v2331, %v1517
  %v2397 = vsel %vm2367, %v2332, %v1519
  %v2398 = vsel %vm2367, %v2333, %v1521
  %v2399 = vsel %vm2367, %v2334, %v1523
  %v2400 = vsel %vm2367, %v2335, %v1525
  %v2401 = vsel %vm2367, %v2336, %v1527
  %v2402 = vsel %vm2367, %v2337, %v1529
  %v2403 = vsel %vm2367, %v2338, %v1531
  %v2404 = vsel %vm2367, %v2339, %v1533
  %v2405 = vsel %vm2367, %v2340, %v1535
  %v2406 = vsel %vm2367, %v2341, %v1537
  %v2407 = vsel %vm2367, %v2342, %v1539
  %v2408 = vsel %vm2367, %v2343, %v1541
  %v2409 = vsel %vm2367, %v2344, %v1543
  %v2410 = vsel %vm2367, %v2345, %v1545
  %v2411 = vsel %vm2367, %v2346, %v1547
  %v2412 = vsel %vm2367, %v2347, %v1549
  %v2413 = vsel %vm2367, %v2348, %v1551
  %v2414 = vsel %vm2367, %v2349, %v1553
  %v2415 = vsel %vm2367, %v2350, %v1555
  %v2416 = vsel %vm2367, %v2351, %v1557
  %v2417 = vsel %vm2367, %v2352, %v1559
  %v2418 = vsel %vm2367, %v2353, %v1561
  %v2419 = vsel %vm2367, %v2354, %v1563
  %v2420 = vsel %vm2367, %v2355, %v1565
  %v2421 = vsel %vm2367, %v2356, %v1567
  %v2422 = vsel %vm2367, %v2357, %v1569
  %v2423 = vsel %vm2367, %v2358, %v1571
  %v2424 = vsel %vm2367, %v2359, %v1573
  %v2425 = vsel %vm2367, %v2360, %v1575
  %v2426 = vsel %vm2367, %v2361, %v1577
  %v2427 = vsel %vm2367, %v2362, %v1579
  %v2428 = vsel %vm2367, %v2363, %v1581
  %v2429 = vsel %vm2367, %v2364, %v1583
  %v2430 = vsel %vm2367, %v2365, %v1585
  %v2431 = vsel %vm2367, %v2366, %v1587
  %vm2432 = vcmask 654336
  %v2433 = vsel %vm2432, %v2368, %v1653
  %v2434 = vsel %vm2432, %v2369, %v1655
  %v2435 = vsel %vm2432, %v2370, %v1657
  %v2436 = vsel %vm2432, %v2371, %v1659
  %v2437 = vsel %vm2432, %v2372, %v1661
  %v2438 = vsel %vm2432, %v2373, %v1663
  %v2439 = vsel %vm2432, %v2374, %v1665
  %v2440 = vsel %vm2432, %v2375, %v1667
  %v2441 = vsel %vm2432, %v2376, %v1669
  %v2442 = vsel %vm2432, %v2377, %v1671
  %v2443 = vsel %vm2432, %v2378, %v1673
  %v2444 = vsel %vm2432, %v2379, %v1675
  %v2445 = vsel %vm2432, %v2380, %v1677
  %v2446 = vsel %vm2432, %v2381, %v1679
  %v2447 = vsel %vm2432, %v2382, %v1681
  %v2448 = vsel %vm2432, %v2383, %v1683
  %v2449 = vsel %vm2432, %v2384, %v1685
  %v2450 = vsel %vm2432, %v2385, %v1687
  %v2451 = vsel %vm2432, %v2386, %v1689
  %v2452 = vsel %vm2432, %v2387, %v1691
  %v2453 = vsel %vm2432, %v2388, %v1693
  %v2454 = vsel %vm2432, %v2389, %v1695
  %v2455 = vsel %vm2432, %v2390, %v1697
  %v2456 = vsel %vm2432, %v2391, %v1699
  %v2457 = vsel %vm2432, %v2392, %v1701
  %v2458 = vsel %vm2432, %v2393, %v1703
  %v2459 = vsel %vm2432, %v2394, %v1705
  %v2460 = vsel %vm2432, %v2395, %v1707
  %v2461 = vsel %vm2432, %v2396, %v1709
  %v2462 = vsel %vm2432, %v2397, %v1711
  %v2463 = vsel %vm2432, %v2398, %v1713
  %v2464 = vsel %vm2432, %v2399, %v1715
  %v2465 = vsel %vm2432, %v2400, %v1717
  %v2466 = vsel %vm2432, %v2401, %v1719
  %v2467 = vsel %vm2432, %v2402, %v1721
  %v2468 = vsel %vm2432, %v2403, %v1723
  %v2469 = vsel %vm2432, %v2404, %v1725
  %v2470 = vsel %vm2432, %v2405, %v1727
  %v2471 = vsel %vm2432, %v2406, %v1729
  %v2472 = vsel %vm2432, %v2407, %v1731
  %v2473 = vsel %vm2432, %v2408, %v1733
  %v2474 = vsel %vm2432, %v2409, %v1735
  %v2475 = vsel %vm2432, %v2410, %v1737
  %v2476 = vsel %vm2432, %v2411, %v1739
  %v2477 = vsel %vm2432, %v2412, %v1741
  %v2478 = vsel %vm2432, %v2413, %v1743
  %v2479 = vsel %vm2432, %v2414, %v1745
  %v2480 = vsel %vm2432, %v2415, %v1747
  %v2481 = vsel %vm2432, %v2416, %v1749
  %v2482 = vsel %vm2432, %v2417, %v1751
  %v2483 = vsel %vm2432, %v2418, %v1753
  %v2484 = vsel %vm2432, %v2419, %v1755
  %v2485 = vsel %vm2432, %v2420, %v1757
  %v2486 = vsel %vm2432, %v2421, %v1759
  %v2487 = vsel %vm2432, %v2422, %v1761
  %v2488 = vsel %vm2432, %v2423, %v1763
  %v2489 = vsel %vm2432, %v2424, %v1765
  %v2490 = vsel %vm2432, %v2425, %v1767
  %v2491 = vsel %vm2432, %v2426, %v1769
  %v2492 = vsel %vm2432, %v2427, %v1771
  %v2493 = vsel %vm2432, %v2428, %v1773
  %v2494 = vsel %vm2432, %v2429, %v1775
  %v2495 = vsel %vm2432, %v2430, %v1777
  %v2496 = vsel %vm2432, %v2431, %v1779
  %vm2497 = vcmask 785408
  %v2498 = vsel %vm2497, %v2433, %v1845
  %v2499 = vsel %vm2497, %v2434, %v1847
  %v2500 = vsel %vm2497, %v2435, %v1849
  %v2501 = vsel %vm2497, %v2436, %v1851
  %v2502 = vsel %vm2497, %v2437, %v1853
  %v2503 = vsel %vm2497, %v2438, %v1855
  %v2504 = vsel %vm2497, %v2439, %v1857
  %v2505 = vsel %vm2497, %v2440, %v1859
  %v2506 = vsel %vm2497, %v2441, %v1861
  %v2507 = vsel %vm2497, %v2442, %v1863
  %v2508 = vsel %vm2497, %v2443, %v1865
  %v2509 = vsel %vm2497, %v2444, %v1867
  %v2510 = vsel %vm2497, %v2445, %v1869
  %v2511 = vsel %vm2497, %v2446, %v1871
  %v2512 = vsel %vm2497, %v2447, %v1873
  %v2513 = vsel %vm2497, %v2448, %v1859
  %v2514 = vsel %vm2497, %v2449, %v1875
  %v2515 = vsel %vm2497, %v2450, %v1877
  %v2516 = vsel %vm2497, %v2451, %v1879
  %v2517 = vsel %vm2497, %v2452, %v1881
  %v2518 = vsel %vm2497, %v2453, %v1883
  %v2519 = vsel %vm2497, %v2454, %v1885
  %v2520 = vsel %vm2497, %v2455, %v1887
  %v2521 = vsel %vm2497, %v2456, %v1859
  %v2522 = vsel %vm2497, %v2457, %v1889
  %v2523 = vsel %vm2497, %v2458, %v1891
  %v2524 = vsel %vm2497, %v2459, %v1893
  %v2525 = vsel %vm2497, %v2460, %v1895
  %v2526 = vsel %vm2497, %v2461, %v1897
  %v2527 = vsel %vm2497, %v2462, %v1899
  %v2528 = vsel %vm2497, %v2463, %v1901
  %v2529 = vsel %vm2497, %v2464, %v1859
  %v2530 = vsel %vm2497, %v2465, %v1903
  %v2531 = vsel %vm2497, %v2466, %v1905
  %v2532 = vsel %vm2497, %v2467, %v1907
  %v2533 = vsel %vm2497, %v2468, %v1909
  %v2534 = vsel %vm2497, %v2469, %v1911
  %v2535 = vsel %vm2497, %v2470, %v1913
  %v2536 = vsel %vm2497, %v2471, %v1915
  %v2537 = vsel %vm2497, %v2472, %v1859
  %v2538 = vsel %vm2497, %v2473, %v1917
  %v2539 = vsel %vm2497, %v2474, %v1919
  %v2540 = vsel %vm2497, %v2475, %v1921
  %v2541 = vsel %vm2497, %v2476, %v1923
  %v2542 = vsel %vm2497, %v2477, %v1925
  %v2543 = vsel %vm2497, %v2478, %v1927
  %v2544 = vsel %vm2497, %v2479, %v1929
  %v2545 = vsel %vm2497, %v2480, %v1859
  %v2546 = vsel %vm2497, %v2481, %v1931
  %v2547 = vsel %vm2497, %v2482, %v1933
  %v2548 = vsel %vm2497, %v2483, %v1935
  %v2549 = vsel %vm2497, %v2484, %v1937
  %v2550 = vsel %vm2497, %v2485, %v1939
  %v2551 = vsel %vm2497, %v2486, %v1941
  %v2552 = vsel %vm2497, %v2487, %v1943
  %v2553 = vsel %vm2497, %v2488, %v1859
  %v2554 = vsel %vm2497, %v2489, %v1945
  %v2555 = vsel %vm2497, %v2490, %v1947
  %v2556 = vsel %vm2497, %v2491, %v1949
  %v2557 = vsel %vm2497, %v2492, %v1951
  %v2558 = vsel %vm2497, %v2493, %v1953
  %v2559 = vsel %vm2497, %v2494, %v1955
  %v2560 = vsel %vm2497, %v2495, %v1957
  %v2561 = vsel %vm2497, %v2496, %v1859
  %vm2562 = vcmask 916480
  %v2563 = vsel %vm2562, %v2498, %v2016
  %v2564 = vsel %vm2562, %v2499, %v2018
  %v2565 = vsel %vm2562, %v2500, %v2020
  %v2566 = vsel %vm2562, %v2501, %v2022
  %v2567 = vsel %vm2562, %v2502, %v2024
  %v2568 = vsel %vm2562, %v2503, %v2026
  %v2569 = vsel %vm2562, %v2504, %v2028
  %v2570 = vsel %vm2562, %v2505, %v2030
  %v2571 = vsel %vm2562, %v2506, %v2032
  %v2572 = vsel %vm2562, %v2507, %v2034
  %v2573 = vsel %vm2562, %v2508, %v2036
  %v2574 = vsel %vm2562, %v2509, %v2038
  %v2575 = vsel %vm2562, %v2510, %v2040
  %v2576 = vsel %vm2562, %v2511, %v2042
  %v2577 = vsel %vm2562, %v2512, %v2044
  %v2578 = vsel %vm2562, %v2513, %v2030
  %v2579 = vsel %vm2562, %v2514, %v2046
  %v2580 = vsel %vm2562, %v2515, %v2048
  %v2581 = vsel %vm2562, %v2516, %v2050
  %v2582 = vsel %vm2562, %v2517, %v2052
  %v2583 = vsel %vm2562, %v2518, %v2054
  %v2584 = vsel %vm2562, %v2519, %v2056
  %v2585 = vsel %vm2562, %v2520, %v2058
  %v2586 = vsel %vm2562, %v2521, %v2030
  %v2587 = vsel %vm2562, %v2522, %v2060
  %v2588 = vsel %vm2562, %v2523, %v2062
  %v2589 = vsel %vm2562, %v2524, %v2064
  %v2590 = vsel %vm2562, %v2525, %v2066
  %v2591 = vsel %vm2562, %v2526, %v2068
  %v2592 = vsel %vm2562, %v2527, %v2070
  %v2593 = vsel %vm2562, %v2528, %v2072
  %v2594 = vsel %vm2562, %v2529, %v2030
  %v2595 = vsel %vm2562, %v2530, %v2074
  %v2596 = vsel %vm2562, %v2531, %v2076
  %v2597 = vsel %vm2562, %v2532, %v2078
  %v2598 = vsel %vm2562, %v2533, %v2080
  %v2599 = vsel %vm2562, %v2534, %v2082
  %v2600 = vsel %vm2562, %v2535, %v2084
  %v2601 = vsel %vm2562, %v2536, %v2086
  %v2602 = vsel %vm2562, %v2537, %v2030
  %v2603 = vsel %vm2562, %v2538, %v2088
  %v2604 = vsel %vm2562, %v2539, %v2090
  %v2605 = vsel %vm2562, %v2540, %v2092
  %v2606 = vsel %vm2562, %v2541, %v2094
  %v2607 = vsel %vm2562, %v2542, %v2096
  %v2608 = vsel %vm2562, %v2543, %v2098
  %v2609 = vsel %vm2562, %v2544, %v2100
  %v2610 = vsel %vm2562, %v2545, %v2030
  %v2611 = vsel %vm2562, %v2546, %v2102
  %v2612 = vsel %vm2562, %v2547, %v2104
  %v2613 = vsel %vm2562, %v2548, %v2106
  %v2614 = vsel %vm2562, %v2549, %v2108
  %v2615 = vsel %vm2562, %v2550, %v2110
  %v2616 = vsel %vm2562, %v2551, %v2112
  %v2617 = vsel %vm2562, %v2552, %v2114
  %v2618 = vsel %vm2562, %v2553, %v2030
  %v2619 = vsel %vm2562, %v2554, %v2116
  %v2620 = vsel %vm2562, %v2555, %v2118
  %v2621 = vsel %vm2562, %v2556, %v2120
  %v2622 = vsel %vm2562, %v2557, %v2122
  %v2623 = vsel %vm2562, %v2558, %v2124
  %v2624 = vsel %vm2562, %v2559, %v2126
  %v2625 = vsel %vm2562, %v2560, %v2128
  %v2626 = vsel %vm2562, %v2561, %v2030
  %v2627 = vld [vmem:[%s1] sm:$0xff]
  %v2628 = vld [vmem:[%s1 + $0x8] sm:$0xff]
  %v2629 = vld [vmem:[%s1 + $0x10] sm:$0xff]
  %v2630 = vld [vmem:[%s1 + $0x18] sm:$0xff]
  %v2631 = vld [vmem:[%s1 + $0x20] sm:$0xff]
  %v2632 = vld [vmem:[%s1 + $0x28] sm:$0xff]
  %v2633 = vld [vmem:[%s1 + $0x30] sm:$0xff]
  %v2634 = vld [vmem:[%s1 + $0x38] sm:$0xff]
  %v2635 = vld [vmem:[%s1 + $0x40] sm:$0xff]
  %v2636 = vld [vmem:[%s1 + $0x48] sm:$0xff]
  %v2637 = vld [vmem:[%s1 + $0x50] sm:$0xff]
  %v2638 = vld [vmem:[%s1 + $0x58] sm:$0xff]
  %v2639 = vld [vmem:[%s1 + $0x60] sm:$0xff]
  %v2640 = vld [vmem:[%s1 + $0x68] sm:$0xff]
  %v2641 = vld [vmem:[%s1 + $0x70] sm:$0xff]
  %v2642 = vld [vmem:[%s1 + $0x78] sm:$0xff]
  %v2643 = vld [vmem:[%s1 + $0x80] sm:$0xff]
  %v2644 = vld [vmem:[%s1 + $0x88] sm:$0xff]
  %v2645 = vld [vmem:[%s2] sm:$0x1]
  %v2647 = vlaneseq
  %v2648 = vshrl.u32 %v2647, 7
  %v2649 = vsub.s32 0, %v2648
  %v2650 = vrot.slane %v2645, %v2649
  %v2652 = vsel %vm2186, %v699, 0
  %v2654 = vsel %vm2186, %v702, 0
  %v2656 = vsel %vm2186, %v705, 0
  %v2658 = vsel %vm2186, %v708, 0
  %v2660 = vsel %vm2186, %v711, 0
  %v2662 = vsel %vm2186, %v714, 0
  %v2664 = vsel %vm2186, %v904, 0
  %v2666 = vsel %vm2186, %v693, 0
  %v2668 = vsel %vm2186, %v720, 0
  %v2670 = vsel %vm2186, %v723, 0
  %v2672 = vsel %vm2186, %v726, 0
  %v2674 = vsel %vm2186, %v729, 0
  %v2676 = vsel %vm2186, %v732, 0
  %v2678 = vsel %vm2186, %v735, 0
  %v2680 = vsel %vm2186, %v907, 0
  %v2682 = vsel %vm2186, %v741, 0
  %v2684 = vsel %vm2186, %v744, 0
  %v2686 = vsel %vm2186, %v747, 0
  %v2688 = vsel %vm2186, %v750, 0
  %v2690 = vsel %vm2186, %v753, 0
  %v2692 = vsel %vm2186, %v756, 0
  %v2694 = vsel %vm2186, %v910, 0
  %v2696 = vsel %vm2186, %v762, 0
  %v2698 = vsel %vm2186, %v765, 0
  %v2700 = vsel %vm2186, %v768, 0
  %v2702 = vsel %vm2186, %v771, 0
  %v2704 = vsel %vm2186, %v774, 0
  %v2706 = vsel %vm2186, %v777, 0
  %v2708 = vsel %vm2186, %v913, 0
  %v2710 = vsel %vm2186, %v783, 0
  %v2712 = vsel %vm2186, %v786, 0
  %v2714 = vsel %vm2186, %v789, 0
  %v2716 = vsel %vm2186, %v792, 0
  %v2718 = vsel %vm2186, %v795, 0
  %v2720 = vsel %vm2186, %v798, 0
  %v2722 = vsel %vm2186, %v916, 0
  %v2724 = vsel %vm2186, %v804, 0
  %v2726 = vsel %vm2186, %v807, 0
  %v2728 = vsel %vm2186, %v810, 0
  %v2730 = vsel %vm2186, %v813, 0
  %v2732 = vsel %vm2186, %v816, 0
  %v2734 = vsel %vm2186, %v819, 0
  %v2736 = vsel %vm2186, %v919, 0
  %v2738 = vsel %vm2186, %v825, 0
  %v2740 = vsel %vm2186, %v828, 0
  %v2742 = vsel %vm2186, %v831, 0
  %v2744 = vsel %vm2186, %v834, 0
  %v2746 = vsel %vm2186, %v837, 0
  %v2748 = vsel %vm2186, %v840, 0
  %v2750 = vsel %vm2186, %v922, 0
  %v2752 = vsel %vm2186, %v846, 0
  %v2754 = vsel %vm2186, %v849, 0
  %v2756 = vsel %vm2186, %v852, 0
  %v2758 = vsel %vm2186, %v855, 0
  %v2760 = vsel %vm2186, %v858, 0
  %v2762 = vsel %vm2186, %v861, 0
  %v2764 = vsel %vm2186, %v925, 0
  %2766 = vmatprep.subr.mxu0 0.0
  %2767 = vmatpush1.msra.mxu0 %v2627
  %2768 = vmatprep.subr.mxu0 0.0
  %2769 = vmatpush1.msra.mxu0 %v2628
  %2770 = vmatprep.subr.mxu0 0.0
  %2771 = vmatpush1.msra.mxu0 %v2629
  %2772 = vmatprep.subr.mxu0 0.0
  %2773 = vmatpush1.msra.mxu0 %v2630
  %2774 = vmatprep.subr.mxu0 0.0
  %2775 = vmatpush1.msra.mxu0 %v2631
  %2776 = vmatprep.subr.mxu0 0.0
  %2777 = vmatpush1.msra.mxu0 %v2632
  %2778 = vmatprep.subr.mxu0 0.0
  %2779 = vmatpush1.msra.mxu0 %v2633
  %2780 = vmatprep.subr.mxu0 0.0
  %2781 = vmatpush1.msra.mxu0 %v2634
  %2782 = vmatprep.subr.mxu0 0.0
  %2783 = vmatpush1.msra.mxu0 %v2635
  %2784 = vmatprep.subr.mxu0 0.0
  %2785 = vmatpush1.msra.mxu0 %v2636
  %2786 = vmatprep.subr.mxu0 0.0
  %2787 = vmatpush1.msra.mxu0 %v2637
  %2788 = vmatprep.subr.mxu0 0.0
  %2789 = vmatpush1.msra.mxu0 %v2638
  %2790 = vmatprep.subr.mxu0 0.0
  %2791 = vmatpush1.msra.mxu0 %v2639
  %2792 = vmatprep.subr.mxu0 0.0
  %2793 = vmatpush1.msra.mxu0 %v2640
  %2794 = vmatprep.subr.mxu0 0.0
  %2795 = vmatpush1.msra.mxu0 %v2641
  %2796 = vmatprep.subr.mxu0 0.0
  %2797 = vmatpush1.msra.mxu0 %v2642
  %2798 = vmatprep.subr.mxu0 0.0
  %2799 = vmatpush1.msra.mxu0 %v2643
  %2800 = vmatprep.subr.mxu0 0.0
  %2801 = vmatpush1.msra.mxu0 %v2644
  %2802 = vmatprep.subr.mxu0 0.0
  %2803 = vmatpush1.msra.mxu0 0.0
  %2804 = vmatprep.subr.mxu0 0.0
  %2805 = vmatpush1.msra.mxu0 0.0
  %2806 = vmatprep.subr.mxu0 0.0
  %2807 = vmatpush1.msra.mxu0 0.0
  %2808 = vmatprep.subr.mxu0 0.0
  %2809 = vmatpush1.msra.mxu0 0.0
  %2810 = vmatprep.subr.mxu0 0.0
  %2811 = vmatpush1.msra.mxu0 0.0
  %2812 = vmatprep.subr.mxu0 0.0
  %2813 = vmatpush1.msra.mxu0 0.0
  %2814 = vmatprep.subr.mxu0 0.0
  %2815 = vmatpush1.msra.mxu0 0.0
  %2816 = vmatprep.subr.mxu0 0.0
  %2817 = vmatpush1.msra.mxu0 0.0
  %2818 = vmatprep.subr.mxu0 0.0
  %2819 = vmatpush1.msra.mxu0 0.0
  %2820 = vmatprep.subr.mxu0 0.0
  %2821 = vmatpush1.msra.mxu0 0.0
  %2822 = vmatprep.subr.mxu0 0.0
  %2823 = vmatpush1.msra.mxu0 0.0
  %2824 = vmatprep.subr.mxu0 0.0
  %2825 = vmatpush1.msra.mxu0 0.0
  %2826 = vmatprep.subr.mxu0 0.0
  %2827 = vmatpush1.msra.mxu0 0.0
  %2828 = vmatprep.subr.mxu0 0.0
  %2829 = vmatpush1.msra.mxu0 0.0
  %2830 = vmatprep.mubr.f32.mxu0 %v2652
  %2831 = vmatmul.mubr.f32.gmra.mrb[0].mxu0 %v2563
  %v2832 = vpop.f32.mrb[0].mxu0
  %v2833 = vadd.f32 %v2650, %v2832
  %v2834 = vpop.f32.mrb[0].mxu0
  %2835 = vmatprep.mubr.f32.mxu0 %v2654
  %2836 = vmatmul.mubr.f32.gmra.mrb[0].mxu0 %v2564
  %v2837 = vpop.f32.mrb[0].mxu0
  %v2838 = vadd.f32 %v2650, %v2837
  %v2839 = vpop.f32.mrb[0].mxu0
  %2840 = vmatprep.mubr.f32.mxu0 %v2656
  %2841 = vmatmul.mubr.f32.gmra.mrb[0].mxu0 %v2565
  %v2842 = vpop.f32.mrb[0].mxu0
  %v2843 = vadd.f32 %v2650, %v2842
  %v2844 = vpop.f32.mrb[0].mxu0
  %2845 = vmatprep.mubr.f32.mxu0 %v2658
  %2846 = vmatmul.mubr.f32.gmra.mrb[0].mxu0 %v2566
  %v2847 = vpop.f32.mrb[0].mxu0
  %v2848 = vadd.f32 %v2650, %v2847
  %v2849 = vpop.f32.mrb[0].mxu0
  %2850 = vmatprep.mubr.f32.mxu0 %v2660
  %2851 = vmatmul.mubr.f32.gmra.mrb[0].mxu0 %v2567
  %v2852 = vpop.f32.mrb[0].mxu0
  %v2853 = vadd.f32 %v2650, %v2852
  %v2854 = vpop.f32.mrb[0].mxu0
  %2855 = vmatprep.mubr.f32.mxu0 %v2662
  %2856 = vmatmul.mubr.f32.gmra.mrb[0].mxu0 %v2568
  %v2857 = vpop.f32.mrb[0].mxu0
  %v2858 = vadd.f32 %v2650, %v2857
  %v2859 = vpop.f32.mrb[0].mxu0
  %2860 = vmatprep.mubr.f32.mxu0 %v2664
  %2861 = vmatmul.mubr.f32.gmra.mrb[0].mxu0 %v2569
  %v2862 = vpop.f32.mrb[0].mxu0
  %v2863 = vadd.f32 %v2650, %v2862
  %v2864 = vpop.f32.mrb[0].mxu0
  %2865 = vmatprep.mubr.f32.mxu0 %v2666
  %2866 = vmatmul.mubr.f32.gmra.mrb[0].mxu0 %v2570
  %v2867 = vpop.f32.mrb[0].mxu0
  %v2868 = vadd.f32 %v2650, %v2867
  %v2869 = vpop.f32.mrb[0].mxu0
  %2870 = vmatprep.mubr.f32.mxu0 %v2668
  %2871 = vmatmul.mubr.f32.gmra.mrb[0].mxu0 %v2571
  %v2872 = vpop.f32.mrb[0].mxu0
  %v2873 = vadd.f32 %v2650, %v2872
  %v2874 = vpop.f32.mrb[0].mxu0
  %2875 = vmatprep.mubr.f32.mxu0 %v2670
  %2876 = vmatmul.mubr.f32.gmra.mrb[0].mxu0 %v2572
  %v2877 = vpop.f32.mrb[0].mxu0
  %v2878 = vadd.f32 %v2650, %v2877
  %v2879 = vpop.f32.mrb[0].mxu0
  %2880 = vmatprep.mubr.f32.mxu0 %v2672
  %2881 = vmatmul.mubr.f32.gmra.mrb[0].mxu0 %v2573
  %v2882 = vpop.f32.mrb[0].mxu0
  %v2883 = vadd.f32 %v2650, %v2882
  %v2884 = vpop.f32.mrb[0].mxu0
  %2885 = vmatprep.mubr.f32.mxu0 %v2674
  %2886 = vmatmul.mubr.f32.gmra.mrb[0].mxu0 %v2574
  %v2887 = vpop.f32.mrb[0].mxu0
  %v2888 = vadd.f32 %v2650, %v2887
  %v2889 = vpop.f32.mrb[0].mxu0
  %2890 = vmatprep.mubr.f32.mxu0 %v2676
  %2891 = vmatmul.mubr.f32.gmra.mrb[0].mxu0 %v2575
  %v2892 = vpop.f32.mrb[0].mxu0
  %v2893 = vadd.f32 %v2650, %v2892
  %v2894 = vpop.f32.mrb[0].mxu0
  %2895 = vmatprep.mubr.f32.mxu0 %v2678
  %2896 = vmatmul.mubr.f32.gmra.mrb[0].mxu0 %v2576
  %v2897 = vpop.f32.mrb[0].mxu0
  %v2898 = vadd.f32 %v2650, %v2897
  %v2899 = vpop.f32.mrb[0].mxu0
  %2900 = vmatprep.mubr.f32.mxu0 %v2680
  %2901 = vmatmul.mubr.f32.gmra.mrb[0].mxu0 %v2577
  %v2902 = vpop.f32.mrb[0].mxu0
  %v2903 = vadd.f32 %v2650, %v2902
  %v2904 = vpop.f32.mrb[0].mxu0
  %2905 = vmatprep.mubr.f32.mxu0 %v2666
  %2906 = vmatmul.mubr.f32.gmra.mrb[0].mxu0 %v2578
  %v2907 = vpop.f32.mrb[0].mxu0
  %v2908 = vadd.f32 %v2650, %v2907
  %v2909 = vpop.f32.mrb[0].mxu0
  %2910 = vmatprep.mubr.f32.mxu0 %v2682
  %2911 = vmatmul.mubr.f32.gmra.mrb[0].mxu0 %v2579
  %v2912 = vpop.f32.mrb[0].mxu0
  %v2913 = vadd.f32 %v2650, %v2912
  %v2914 = vpop.f32.mrb[0].mxu0
  %2915 = vmatprep.mubr.f32.mxu0 %v2684
  %2916 = vmatmul.mubr.f32.gmra.mrb[0].mxu0 %v2580
  %v2917 = vpop.f32.mrb[0].mxu0
  %v2918 = vadd.f32 %v2650, %v2917
  %v2919 = vpop.f32.mrb[0].mxu0
  %2920 = vmatprep.mubr.f32.mxu0 %v2686
  %2921 = vmatmul.mubr.f32.gmra.mrb[0].mxu0 %v2581
  %v2922 = vpop.f32.mrb[0].mxu0
  %v2923 = vadd.f32 %v2650, %v2922
  %v2924 = vpop.f32.mrb[0].mxu0
  %2925 = vmatprep.mubr.f32.mxu0 %v2688
  %2926 = vmatmul.mubr.f32.gmra.mrb[0].mxu0 %v2582
  %v2927 = vpop.f32.mrb[0].mxu0
  %v2928 = vadd.f32 %v2650, %v2927
  %v2929 = vpop.f32.mrb[0].mxu0
  %2930 = vmatprep.mubr.f32.mxu0 %v2690
  %2931 = vmatmul.mubr.f32.gmra.mrb[0].mxu0 %v2583
  %v2932 = vpop.f32.mrb[0].mxu0
  %v2933 = vadd.f32 %v2650, %v2932
  %v2934 = vpop.f32.mrb[0].mxu0
  %2935 = vmatprep.mubr.f32.mxu0 %v2692
  %2936 = vmatmul.mubr.f32.gmra.mrb[0].mxu0 %v2584
  %v2937 = vpop.f32.mrb[0].mxu0
  %v2938 = vadd.f32 %v2650, %v2937
  %v2939 = vpop.f32.mrb[0].mxu0
  %2940 = vmatprep.mubr.f32.mxu0 %v2694
  %2941 = vmatmul.mubr.f32.gmra.mrb[0].mxu0 %v2585
  %v2942 = vpop.f32.mrb[0].mxu0
  %v2943 = vadd.f32 %v2650, %v2942
  %v2944 = vpop.f32.mrb[0].mxu0
  %2945 = vmatprep.mubr.f32.mxu0 %v2666
  %2946 = vmatmul.mubr.f32.gmra.mrb[0].mxu0 %v2586
  %v2947 = vpop.f32.mrb[0].mxu0
  %v2948 = vadd.f32 %v2650, %v2947
  %v2949 = vpop.f32.mrb[0].mxu0
  %2950 = vmatprep.mubr.f32.mxu0 %v2696
  %2951 = vmatmul.mubr.f32.gmra.mrb[0].mxu0 %v2587
  %v2952 = vpop.f32.mrb[0].mxu0
  %v2953 = vadd.f32 %v2650, %v2952
  %v2954 = vpop.f32.mrb[0].mxu0
  %2955 = vmatprep.mubr.f32.mxu0 %v2698
  %2956 = vmatmul.mubr.f32.gmra.mrb[0].mxu0 %v2588
  %v2957 = vpop.f32.mrb[0].mxu0
  %v2958 = vadd.f32 %v2650, %v2957
  %v2959 = vpop.f32.mrb[0].mxu0
  %2960 = vmatprep.mubr.f32.mxu0 %v2700
  %2961 = vmatmul.mubr.f32.gmra.mrb[0].mxu0 %v2589
  %v2962 = vpop.f32.mrb[0].mxu0
  %v2963 = vadd.f32 %v2650, %v2962
  %v2964 = vpop.f32.mrb[0].mxu0
  %2965 = vmatprep.mubr.f32.mxu0 %v2702
  %2966 = vmatmul.mubr.f32.gmra.mrb[0].mxu0 %v2590
  %v2967 = vpop.f32.mrb[0].mxu0
  %v2968 = vadd.f32 %v2650, %v2967
  %v2969 = vpop.f32.mrb[0].mxu0
  %2970 = vmatprep.mubr.f32.mxu0 %v2704
  %2971 = vmatmul.mubr.f32.gmra.mrb[0].mxu0 %v2591
  %v2972 = vpop.f32.mrb[0].mxu0
  %v2973 = vadd.f32 %v2650, %v2972
  %v2974 = vpop.f32.mrb[0].mxu0
  %2975 = vmatprep.mubr.f32.mxu0 %v2706
  %2976 = vmatmul.mubr.f32.gmra.mrb[0].mxu0 %v2592
  %v2977 = vpop.f32.mrb[0].mxu0
  %v2978 = vadd.f32 %v2650, %v2977
  %v2979 = vpop.f32.mrb[0].mxu0
  %2980 = vmatprep.mubr.f32.mxu0 %v2708
  %2981 = vmatmul.mubr.f32.gmra.mrb[0].mxu0 %v2593
  %v2982 = vpop.f32.mrb[0].mxu0
  %v2983 = vadd.f32 %v2650, %v2982
  %v2984 = vpop.f32.mrb[0].mxu0
  %2985 = vmatprep.mubr.f32.mxu0 %v2666
  %2986 = vmatmul.mubr.f32.gmra.mrb[0].mxu0 %v2594
  %v2987 = vpop.f32.mrb[0].mxu0
  %v2988 = vadd.f32 %v2650, %v2987
  %v2989 = vpop.f32.mrb[0].mxu0
  %2990 = vmatprep.mubr.f32.mxu0 %v2710
  %2991 = vmatmul.mubr.f32.gmra.mrb[0].mxu0 %v2595
  %v2992 = vpop.f32.mrb[0].mxu0
  %v2993 = vadd.f32 %v2650, %v2992
  %v2994 = vpop.f32.mrb[0].mxu0
  %2995 = vmatprep.mubr.f32.mxu0 %v2712
  %2996 = vmatmul.mubr.f32.gmra.mrb[0].mxu0 %v2596
  %v2997 = vpop.f32.mrb[0].mxu0
  %v2998 = vadd.f32 %v2650, %v2997
  %v2999 = vpop.f32.mrb[0].mxu0
  %3000 = vmatprep.mubr.f32.mxu0 %v2714
  %3001 = vmatmul.mubr.f32.gmra.mrb[0].mxu0 %v2597
  %v3002 = vpop.f32.mrb[0].mxu0
  %v3003 = vadd.f32 %v2650, %v3002
  %v3004 = vpop.f32.mrb[0].mxu0
  %3005 = vmatprep.mubr.f32.mxu0 %v2716
  %3006 = vmatmul.mubr.f32.gmra.mrb[0].mxu0 %v2598
  %v3007 = vpop.f32.mrb[0].mxu0
  %v3008 = vadd.f32 %v2650, %v3007
  %v3009 = vpop.f32.mrb[0].mxu0
  %3010 = vmatprep.mubr.f32.mxu0 %v2718
  %3011 = vmatmul.mubr.f32.gmra.mrb[0].mxu0 %v2599
  %v3012 = vpop.f32.mrb[0].mxu0
  %v3013 = vadd.f32 %v2650, %v3012
  %v3014 = vpop.f32.mrb[0].mxu0
  %3015 = vmatprep.mubr.f32.mxu0 %v2720
  %3016 = vmatmul.mubr.f32.gmra.mrb[0].mxu0 %v2600
  %v3017 = vpop.f32.mrb[0].mxu0
  %v3018 = vadd.f32 %v2650, %v3017
  %v3019 = vpop.f32.mrb[0].mxu0
  %3020 = vmatprep.mubr.f32.mxu0 %v2722
  %3021 = vmatmul.mubr.f32.gmra.mrb[0].mxu0 %v2601
  %v3022 = vpop.f32.mrb[0].mxu0
  %v3023 = vadd.f32 %v2650, %v3022
  %v3024 = vpop.f32.mrb[0].mxu0
  %3025 = vmatprep.mubr.f32.mxu0 %v2666
  %3026 = vmatmul.mubr.f32.gmra.mrb[0].mxu0 %v2602
  %v3027 = vpop.f32.mrb[0].mxu0
  %v3028 = vadd.f32 %v2650, %v3027
  %v3029 = vpop.f32.mrb[0].mxu0
  %3030 = vmatprep.mubr.f32.mxu0 %v2724
  %3031 = vmatmul.mubr.f32.gmra.mrb[0].mxu0 %v2603
  %v3032 = vpop.f32.mrb[0].mxu0
  %v3033 = vadd.f32 %v2650, %v3032
  %v3034 = vpop.f32.mrb[0].mxu0
  %3035 = vmatprep.mubr.f32.mxu0 %v2726
  %3036 = vmatmul.mubr.f32.gmra.mrb[0].mxu0 %v2604
  %v3037 = vpop.f32.mrb[0].mxu0
  %v3038 = vadd.f32 %v2650, %v3037
  %v3039 = vpop.f32.mrb[0].mxu0
  %3040 = vmatprep.mubr.f32.mxu0 %v2728
  %3041 = vmatmul.mubr.f32.gmra.mrb[0].mxu0 %v2605
  %v3042 = vpop.f32.mrb[0].mxu0
  %v3043 = vadd.f32 %v2650, %v3042
  %v3044 = vpop.f32.mrb[0].mxu0
  %3045 = vmatprep.mubr.f32.mxu0 %v2730
  %3046 = vmatmul.mubr.f32.gmra.mrb[0].mxu0 %v2606
  %v3047 = vpop.f32.mrb[0].mxu0
  %v3048 = vadd.f32 %v2650, %v3047
  %v3049 = vpop.f32.mrb[0].mxu0
  %3050 = vmatprep.mubr.f32.mxu0 %v2732
  %3051 = vmatmul.mubr.f32.gmra.mrb[0].mxu0 %v2607
  %v3052 = vpop.f32.mrb[0].mxu0
  %v3053 = vadd.f32 %v2650, %v3052
  %v3054 = vpop.f32.mrb[0].mxu0
  %3055 = vmatprep.mubr.f32.mxu0 %v2734
  %3056 = vmatmul.mubr.f32.gmra.mrb[0].mxu0 %v2608
  %v3057 = vpop.f32.mrb[0].mxu0
  %v3058 = vadd.f32 %v2650, %v3057
  %v3059 = vpop.f32.mrb[0].mxu0
  %3060 = vmatprep.mubr.f32.mxu0 %v2736
  %3061 = vmatmul.mubr.f32.gmra.mrb[0].mxu0 %v2609
  %v3062 = vpop.f32.mrb[0].mxu0
  %v3063 = vadd.f32 %v2650, %v3062
  %v3064 = vpop.f32.mrb[0].mxu0
  %3065 = vmatprep.mubr.f32.mxu0 %v2666
  %3066 = vmatmul.mubr.f32.gmra.mrb[0].mxu0 %v2610
  %v3067 = vpop.f32.mrb[0].mxu0
  %v3068 = vadd.f32 %v2650, %v3067
  %v3069 = vpop.f32.mrb[0].mxu0
  %3070 = vmatprep.mubr.f32.mxu0 %v2738
  %3071 = vmatmul.mubr.f32.gmra.mrb[0].mxu0 %v2611
  %v3072 = vpop.f32.mrb[0].mxu0
  %v3073 = vadd.f32 %v2650, %v3072
  %v3074 = vpop.f32.mrb[0].mxu0
  %3075 = vmatprep.mubr.f32.mxu0 %v2740
  %3076 = vmatmul.mubr.f32.gmra.mrb[0].mxu0 %v2612
  %v3077 = vpop.f32.mrb[0].mxu0
  %v3078 = vadd.f32 %v2650, %v3077
  %v3079 = vpop.f32.mrb[0].mxu0
  %3080 = vmatprep.mubr.f32.mxu0 %v2742
  %3081 = vmatmul.mubr.f32.gmra.mrb[0].mxu0 %v2613
  %v3082 = vpop.f32.mrb[0].mxu0
  %v3083 = vadd.f32 %v2650, %v3082
  %v3084 = vpop.f32.mrb[0].mxu0
  %3085 = vmatprep.mubr.f32.mxu0 %v2744
  %3086 = vmatmul.mubr.f32.gmra.mrb[0].mxu0 %v2614
  %v3087 = vpop.f32.mrb[0].mxu0
  %v3088 = vadd.f32 %v2650, %v3087
  %v3089 = vpop.f32.mrb[0].mxu0
  %3090 = vmatprep.mubr.f32.mxu0 %v2746
  %3091 = vmatmul.mubr.f32.gmra.mrb[0].mxu0 %v2615
  %v3092 = vpop.f32.mrb[0].mxu0
  %v3093 = vadd.f32 %v2650, %v3092
  %v3094 = vpop.f32.mrb[0].mxu0
  %3095 = vmatprep.mubr.f32.mxu0 %v2748
  %3096 = vmatmul.mubr.f32.gmra.mrb[0].mxu0 %v2616
  %v3097 = vpop.f32.mrb[0].mxu0
  %v3098 = vadd.f32 %v2650, %v3097
  %v3099 = vpop.f32.mrb[0].mxu0
  %3100 = vmatprep.mubr.f32.mxu0 %v2750
  %3101 = vmatmul.mubr.f32.gmra.mrb[0].mxu0 %v2617
  %v3102 = vpop.f32.mrb[0].mxu0
  %v3103 = vadd.f32 %v2650, %v3102
  %v3104 = vpop.f32.mrb[0].mxu0
  %3105 = vmatprep.mubr.f32.mxu0 %v2666
  %3106 = vmatmul.mubr.f32.gmra.mrb[0].mxu0 %v2618
  %v3107 = vpop.f32.mrb[0].mxu0
  %v3108 = vadd.f32 %v2650, %v3107
  %v3109 = vpop.f32.mrb[0].mxu0
  %3110 = vmatprep.mubr.f32.mxu0 %v2752
  %3111 = vmatmul.mubr.f32.gmra.mrb[0].mxu0 %v2619
  %v3112 = vpop.f32.mrb[0].mxu0
  %v3113 = vadd.f32 %v2650, %v3112
  %v3114 = vpop.f32.mrb[0].mxu0
  %3115 = vmatprep.mubr.f32.mxu0 %v2754
  %3116 = vmatmul.mubr.f32.gmra.mrb[0].mxu0 %v2620
  %v3117 = vpop.f32.mrb[0].mxu0
  %v3118 = vadd.f32 %v2650, %v3117
  %v3119 = vpop.f32.mrb[0].mxu0
  %3120 = vmatprep.mubr.f32.mxu0 %v2756
  %3121 = vmatmul.mubr.f32.gmra.mrb[0].mxu0 %v2621
  %v3122 = vpop.f32.mrb[0].mxu0
  %v3123 = vadd.f32 %v2650, %v3122
  %v3124 = vpop.f32.mrb[0].mxu0
  %3125 = vmatprep.mubr.f32.mxu0 %v2758
  %3126 = vmatmul.mubr.f32.gmra.mrb[0].mxu0 %v2622
  %v3127 = vpop.f32.mrb[0].mxu0
  %v3128 = vadd.f32 %v2650, %v3127
  %v3129 = vpop.f32.mrb[0].mxu0
  %3130 = vmatprep.mubr.f32.mxu0 %v2760
  %3131 = vmatmul.mubr.f32.gmra.mrb[0].mxu0 %v2623
  %v3132 = vpop.f32.mrb[0].mxu0
  %v3133 = vadd.f32 %v2650, %v3132
  %v3134 = vpop.f32.mrb[0].mxu0
  %3135 = vmatprep.mubr.f32.mxu0 %v2762
  %3136 = vmatmul.mubr.f32.gmra.mrb[0].mxu0 %v2624
  %v3137 = vpop.f32.mrb[0].mxu0
  %v3138 = vadd.f32 %v2650, %v3137
  %v3139 = vpop.f32.mrb[0].mxu0
  %3140 = vmatprep.mubr.f32.mxu0 %v2764
  %3141 = vmatmul.mubr.f32.gmra.mrb[0].mxu0 %v2625
  %v3142 = vpop.f32.mrb[0].mxu0
  %v3143 = vadd.f32 %v2650, %v3142
  %v3144 = vpop.f32.mrb[0].mxu0
  %3145 = vmatprep.mubr.f32.mxu0 %v2666
  %3146 = vmatmul.mubr.f32.gmra.mrb[0].mxu0 %v2626
  %v3147 = vpop.f32.mrb[0].mxu0
  %v3148 = vadd.f32 %v2650, %v3147
  %v3149 = vpop.f32.mrb[0].mxu0
  %3150 = vdwg.mxu0
  %vm3151 = vcmp.ge.f32.partialorder %v2833, 0.0
  %vm3152 = vcmp.ge.f32.partialorder %v2838, 0.0
  %vm3153 = vcmp.ge.f32.partialorder %v2843, 0.0
  %vm3154 = vcmp.ge.f32.partialorder %v2848, 0.0
  %vm3155 = vcmp.ge.f32.partialorder %v2853, 0.0
  %vm3156 = vcmp.ge.f32.partialorder %v2858, 0.0
  %vm3157 = vcmp.ge.f32.partialorder %v2863, 0.0
  %vm3158 = vcmp.ge.f32.partialorder %v2868, 0.0
  %vm3159 = vcmp.ge.f32.partialorder %v2873, 0.0
  %vm3160 = vcmp.ge.f32.partialorder %v2878, 0.0
  %vm3161 = vcmp.ge.f32.partialorder %v2883, 0.0
  %vm3162 = vcmp.ge.f32.partialorder %v2888, 0.0
  %vm3163 = vcmp.ge.f32.partialorder %v2893, 0.0
  %vm3164 = vcmp.ge.f32.partialorder %v2898, 0.0
  %vm3165 = vcmp.ge.f32.partialorder %v2903, 0.0
  %vm3166 = vcmp.ge.f32.partialorder %v2908, 0.0
  %vm3167 = vcmp.ge.f32.partialorder %v2913, 0.0
  %vm3168 = vcmp.ge.f32.partialorder %v2918, 0.0
  %vm3169 = vcmp.ge.f32.partialorder %v2923, 0.0
  %vm3170 = vcmp.ge.f32.partialorder %v2928, 0.0
  %vm3171 = vcmp.ge.f32.partialorder %v2933, 0.0
  %vm3172 = vcmp.ge.f32.partialorder %v2938, 0.0
  %vm3173 = vcmp.ge.f32.partialorder %v2943, 0.0
  %vm3174 = vcmp.ge.f32.partialorder %v2948, 0.0
  %vm3175 = vcmp.ge.f32.partialorder %v2953, 0.0
  %vm3176 = vcmp.ge.f32.partialorder %v2958, 0.0
  %vm3177 = vcmp.ge.f32.partialorder %v2963, 0.0
  %vm3178 = vcmp.ge.f32.partialorder %v2968, 0.0
  %vm3179 = vcmp.ge.f32.partialorder %v2973, 0.0
  %vm3180 = vcmp.ge.f32.partialorder %v2978, 0.0
  %vm3181 = vcmp.ge.f32.partialorder %v2983, 0.0
  %vm3182 = vcmp.ge.f32.partialorder %v2988, 0.0
  %vm3183 = vcmp.ge.f32.partialorder %v2993, 0.0
  %vm3184 = vcmp.ge.f32.partialorder %v2998, 0.0
  %vm3185 = vcmp.ge.f32.partialorder %v3003, 0.0
  %vm3186 = vcmp.ge.f32.partialorder %v3008, 0.0
  %vm3187 = vcmp.ge.f32.partialorder %v3013, 0.0
  %vm3188 = vcmp.ge.f32.partialorder %v3018, 0.0
  %vm3189 = vcmp.ge.f32.partialorder %v3023, 0.0
  %vm3190 = vcmp.ge.f32.partialorder %v3028, 0.0
  %vm3191 = vcmp.ge.f32.partialorder %v3033, 0.0
  %vm3192 = vcmp.ge.f32.partialorder %v3038, 0.0
  %vm3193 = vcmp.ge.f32.partialorder %v3043, 0.0
  %vm3194 = vcmp.ge.f32.partialorder %v3048, 0.0
  %vm3195 = vcmp.ge.f32.partialorder %v3053, 0.0
  %vm3196 = vcmp.ge.f32.partialorder %v3058, 0.0
  %vm3197 = vcmp.ge.f32.partialorder %v3063, 0.0
  %vm3198 = vcmp.ge.f32.partialorder %v3068, 0.0
  %vm3199 = vcmp.ge.f32.partialorder %v3073, 0.0
  %vm3200 = vcmp.ge.f32.partialorder %v3078, 0.0
  %vm3201 = vcmp.ge.f32.partialorder %v3083, 0.0
  %vm3202 = vcmp.ge.f32.partialorder %v3088, 0.0
  %vm3203 = vcmp.ge.f32.partialorder %v3093, 0.0
  %vm3204 = vcmp.ge.f32.partialorder %v3098, 0.0
  %vm3205 = vcmp.ge.f32.partialorder %v3103, 0.0
  %vm3206 = vcmp.ge.f32.partialorder %v3108, 0.0
  %vm3207 = vcmp.ge.f32.partialorder %v3113, 0.0
  %vm3208 = vcmp.ge.f32.partialorder %v3118, 0.0
  %vm3209 = vcmp.ge.f32.partialorder %v3123, 0.0
  %vm3210 = vcmp.ge.f32.partialorder %v3128, 0.0
  %vm3211 = vcmp.ge.f32.partialorder %v3133, 0.0
  %vm3212 = vcmp.ge.f32.partialorder %v3138, 0.0
  %vm3213 = vcmp.ge.f32.partialorder %v3143, 0.0
  %vm3214 = vcmp.ge.f32.partialorder %v3148, 0.0
  %v3215 = vmul.f32 %v2833, 0.01
  %v3216 = vmul.f32 %v2838, 0.01
  %v3217 = vmul.f32 %v2843, 0.01
  %v3218 = vmul.f32 %v2848, 0.01
  %v3219 = vmul.f32 %v2853, 0.01
  %v3220 = vmul.f32 %v2858, 0.01
  %v3221 = vmul.f32 %v2863, 0.01
  %v3222 = vmul.f32 %v2868, 0.01
  %v3223 = vmul.f32 %v2873, 0.01
  %v3224 = vmul.f32 %v2878, 0.01
  %v3225 = vmul.f32 %v2883, 0.01
  %v3226 = vmul.f32 %v2888, 0.01
  %v3227 = vmul.f32 %v2893, 0.01
  %v3228 = vmul.f32 %v2898, 0.01
  %v3229 = vmul.f32 %v2903, 0.01
  %v3230 = vmul.f32 %v2908, 0.01
  %v3231 = vmul.f32 %v2913, 0.01
  %v3232 = vmul.f32 %v2918, 0.01
  %v3233 = vmul.f32 %v2923, 0.01
  %v3234 = vmul.f32 %v2928, 0.01
  %v3235 = vmul.f32 %v2933, 0.01
  %v3236 = vmul.f32 %v2938, 0.01
  %v3237 = vmul.f32 %v2943, 0.01
  %v3238 = vmul.f32 %v2948, 0.01
  %v3239 = vmul.f32 %v2953, 0.01
  %v3240 = vmul.f32 %v2958, 0.01
  %v3241 = vmul.f32 %v2963, 0.01
  %v3242 = vmul.f32 %v2968, 0.01
  %v3243 = vmul.f32 %v2973, 0.01
  %v3244 = vmul.f32 %v2978, 0.01
  %v3245 = vmul.f32 %v2983, 0.01
  %v3246 = vmul.f32 %v2988, 0.01
  %v3247 = vmul.f32 %v2993, 0.01
  %v3248 = vmul.f32 %v2998, 0.01
  %v3249 = vmul.f32 %v3003, 0.01
  %v3250 = vmul.f32 %v3008, 0.01
  %v3251 = vmul.f32 %v3013, 0.01
  %v3252 = vmul.f32 %v3018, 0.01
  %v3253 = vmul.f32 %v3023, 0.01
  %v3254 = vmul.f32 %v3028, 0.01
  %v3255 = vmul.f32 %v3033, 0.01
  %v3256 = vmul.f32 %v3038, 0.01
  %v3257 = vmul.f32 %v3043, 0.01
  %v3258 = vmul.f32 %v3048, 0.01
  %v3259 = vmul.f32 %v3053, 0.01
  %v3260 = vmul.f32 %v3058, 0.01
  %v3261 = vmul.f32 %v3063, 0.01
  %v3262 = vmul.f32 %v3068, 0.01
  %v3263 = vmul.f32 %v3073, 0.01
  %v3264 = vmul.f32 %v3078, 0.01
  %v3265 = vmul.f32 %v3083, 0.01
  %v3266 = vmul.f32 %v3088, 0.01
  %v3267 = vmul.f32 %v3093, 0.01
  %v3268 = vmul.f32 %v3098, 0.01
  %v3269 = vmul.f32 %v3103, 0.01
  %v3270 = vmul.f32 %v3108, 0.01
  %v3271 = vmul.f32 %v3113, 0.01
  %v3272 = vmul.f32 %v3118, 0.01
  %v3273 = vmul.f32 %v3123, 0.01
  %v3274 = vmul.f32 %v3128, 0.01
  %v3275 = vmul.f32 %v3133, 0.01
  %v3276 = vmul.f32 %v3138, 0.01
  %v3277 = vmul.f32 %v3143, 0.01
  %v3278 = vmul.f32 %v3148, 0.01
  %v3279 = vsel %vm3151, %v2833, %v3215
  %v3280 = vsel %vm3152, %v2838, %v3216
  %v3281 = vsel %vm3153, %v2843, %v3217
  %v3282 = vsel %vm3154, %v2848, %v3218
  %v3283 = vsel %vm3155, %v2853, %v3219
  %v3284 = vsel %vm3156, %v2858, %v3220
  %v3285 = vsel %vm3157, %v2863, %v3221
  %v3286 = vsel %vm3158, %v2868, %v3222
  %v3287 = vsel %vm3159, %v2873, %v3223
  %v3288 = vsel %vm3160, %v2878, %v3224
  %v3289 = vsel %vm3161, %v2883, %v3225
  %v3290 = vsel %vm3162, %v2888, %v3226
  %v3291 = vsel %vm3163, %v2893, %v3227
  %v3292 = vsel %vm3164, %v2898, %v3228
  %v3293 = vsel %vm3165, %v2903, %v3229
  %v3294 = vsel %vm3166, %v2908, %v3230
  %v3295 = vsel %vm3167, %v2913, %v3231
  %v3296 = vsel %vm3168, %v2918, %v3232
  %v3297 = vsel %vm3169, %v2923, %v3233
  %v3298 = vsel %vm3170, %v2928, %v3234
  %v3299 = vsel %vm3171, %v2933, %v3235
  %v3300 = vsel %vm3172, %v2938, %v3236
  %v3301 = vsel %vm3173, %v2943, %v3237
  %v3302 = vsel %vm3174, %v2948, %v3238
  %v3303 = vsel %vm3175, %v2953, %v3239
  %v3304 = vsel %vm3176, %v2958, %v3240
  %v3305 = vsel %vm3177, %v2963, %v3241
  %v3306 = vsel %vm3178, %v2968, %v3242
  %v3307 = vsel %vm3179, %v2973, %v3243
  %v3308 = vsel %vm3180, %v2978, %v3244
  %v3309 = vsel %vm3181, %v2983, %v3245
  %v3310 = vsel %vm3182, %v2988, %v3246
  %v3311 = vsel %vm3183, %v2993, %v3247
  %v3312 = vsel %vm3184, %v2998, %v3248
  %v3313 = vsel %vm3185, %v3003, %v3249
  %v3314 = vsel %vm3186, %v3008, %v3250
  %v3315 = vsel %vm3187, %v3013, %v3251
  %v3316 = vsel %vm3188, %v3018, %v3252
  %v3317 = vsel %vm3189, %v3023, %v3253
  %v3318 = vsel %vm3190, %v3028, %v3254
  %v3319 = vsel %vm3191, %v3033, %v3255
  %v3320 = vsel %vm3192, %v3038, %v3256
  %v3321 = vsel %vm3193, %v3043, %v3257
  %v3322 = vsel %vm3194, %v3048, %v3258
  %v3323 = vsel %vm3195, %v3053, %v3259
  %v3324 = vsel %vm3196, %v3058, %v3260
  %v3325 = vsel %vm3197, %v3063, %v3261
  %v3326 = vsel %vm3198, %v3068, %v3262
  %v3327 = vsel %vm3199, %v3073, %v3263
  %v3328 = vsel %vm3200, %v3078, %v3264
  %v3329 = vsel %vm3201, %v3083, %v3265
  %v3330 = vsel %vm3202, %v3088, %v3266
  %v3331 = vsel %vm3203, %v3093, %v3267
  %v3332 = vsel %vm3204, %v3098, %v3268
  %v3333 = vsel %vm3205, %v3103, %v3269
  %v3334 = vsel %vm3206, %v3108, %v3270
  %v3335 = vsel %vm3207, %v3113, %v3271
  %v3336 = vsel %vm3208, %v3118, %v3272
  %v3337 = vsel %vm3209, %v3123, %v3273
  %v3338 = vsel %vm3210, %v3128, %v3274
  %v3339 = vsel %vm3211, %v3133, %v3275
  %v3340 = vsel %vm3212, %v3138, %v3276
  %v3341 = vsel %vm3213, %v3143, %v3277
  %v3342 = vsel %vm3214, %v3148, %v3278
  %3343 = vst.msk [vmem:[%s3] sm:$0xff] %vm2186, %v3279
  %3344 = vst.msk [vmem:[%s3 + $0x8] sm:$0xff] %vm2186, %v3280
  %3345 = vst.msk [vmem:[%s3 + $0x10] sm:$0xff] %vm2186, %v3281
  %3346 = vst.msk [vmem:[%s3 + $0x18] sm:$0xff] %vm2186, %v3282
  %3347 = vst.msk [vmem:[%s3 + $0x20] sm:$0xff] %vm2186, %v3283
  %3348 = vst.msk [vmem:[%s3 + $0x28] sm:$0xff] %vm2186, %v3284
  %3349 = vst.msk [vmem:[%s3 + $0x30] sm:$0xff] %vm2186, %v3285
  %3350 = vst.msk [vmem:[%s3 + $0x38] sm:$0xff] %vm2186, %v3286
  %3351 = vst.msk [vmem:[%s3 + $0x40] sm:$0xff] %vm2186, %v3287
  %3352 = vst.msk [vmem:[%s3 + $0x48] sm:$0xff] %vm2186, %v3288
  %3353 = vst.msk [vmem:[%s3 + $0x50] sm:$0xff] %vm2186, %v3289
  %3354 = vst.msk [vmem:[%s3 + $0x58] sm:$0xff] %vm2186, %v3290
  %3355 = vst.msk [vmem:[%s3 + $0x60] sm:$0xff] %vm2186, %v3291
  %3356 = vst.msk [vmem:[%s3 + $0x68] sm:$0xff] %vm2186, %v3292
  %3357 = vst.msk [vmem:[%s3 + $0x70] sm:$0xff] %vm2186, %v3293
  %3358 = vst.msk [vmem:[%s3 + $0x78] sm:$0xff] %vm2186, %v3294
  %3359 = vst.msk [vmem:[%s3 + $0x80] sm:$0xff] %vm2186, %v3295
  %3360 = vst.msk [vmem:[%s3 + $0x88] sm:$0xff] %vm2186, %v3296
  %3361 = vst.msk [vmem:[%s3 + $0x90] sm:$0xff] %vm2186, %v3297
  %3362 = vst.msk [vmem:[%s3 + $0x98] sm:$0xff] %vm2186, %v3298
  %3363 = vst.msk [vmem:[%s3 + $0xa0] sm:$0xff] %vm2186, %v3299
  %3364 = vst.msk [vmem:[%s3 + $0xa8] sm:$0xff] %vm2186, %v3300
  %3365 = vst.msk [vmem:[%s3 + $0xb0] sm:$0xff] %vm2186, %v3301
  %3366 = vst.msk [vmem:[%s3 + $0xb8] sm:$0xff] %vm2186, %v3302
  %3367 = vst.msk [vmem:[%s3 + $0xc0] sm:$0xff] %vm2186, %v3303
  %3368 = vst.msk [vmem:[%s3 + $0xc8] sm:$0xff] %vm2186, %v3304
  %3369 = vst.msk [vmem:[%s3 + $0xd0] sm:$0xff] %vm2186, %v3305
  %3370 = vst.msk [vmem:[%s3 + $0xd8] sm:$0xff] %vm2186, %v3306
  %3371 = vst.msk [vmem:[%s3 + $0xe0] sm:$0xff] %vm2186, %v3307
  %3372 = vst.msk [vmem:[%s3 + $0xe8] sm:$0xff] %vm2186, %v3308
  %3373 = vst.msk [vmem:[%s3 + $0xf0] sm:$0xff] %vm2186, %v3309
  %3374 = vst.msk [vmem:[%s3 + $0xf8] sm:$0xff] %vm2186, %v3310
  %3375 = vst.msk [vmem:[%s3 + $0x100] sm:$0xff] %vm2186, %v3311
  %3376 = vst.msk [vmem:[%s3 + $0x108] sm:$0xff] %vm2186, %v3312
  %3377 = vst.msk [vmem:[%s3 + $0x110] sm:$0xff] %vm2186, %v3313
  %3378 = vst.msk [vmem:[%s3 + $0x118] sm:$0xff] %vm2186, %v3314
  %3379 = vst.msk [vmem:[%s3 + $0x120] sm:$0xff] %vm2186, %v3315
  %3380 = vst.msk [vmem:[%s3 + $0x128] sm:$0xff] %vm2186, %v3316
  %3381 = vst.msk [vmem:[%s3 + $0x130] sm:$0xff] %vm2186, %v3317
  %3382 = vst.msk [vmem:[%s3 + $0x138] sm:$0xff] %vm2186, %v3318
  %3383 = vst.msk [vmem:[%s3 + $0x140] sm:$0xff] %vm2186, %v3319
  %3384 = vst.msk [vmem:[%s3 + $0x148] sm:$0xff] %vm2186, %v3320
  %3385 = vst.msk [vmem:[%s3 + $0x150] sm:$0xff] %vm2186, %v3321
  %3386 = vst.msk [vmem:[%s3 + $0x158] sm:$0xff] %vm2186, %v3322
  %3387 = vst.msk [vmem:[%s3 + $0x160] sm:$0xff] %vm2186, %v3323
  %3388 = vst.msk [vmem:[%s3 + $0x168] sm:$0xff] %vm2186, %v3324
  %3389 = vst.msk [vmem:[%s3 + $0x170] sm:$0xff] %vm2186, %v3325
  %3390 = vst.msk [vmem:[%s3 + $0x178] sm:$0xff] %vm2186, %v3326
  %3391 = vst.msk [vmem:[%s3 + $0x180] sm:$0xff] %vm2186, %v3327
  %3392 = vst.msk [vmem:[%s3 + $0x188] sm:$0xff] %vm2186, %v3328
  %3393 = vst.msk [vmem:[%s3 + $0x190] sm:$0xff] %vm2186, %v3329
  %3394 = vst.msk [vmem:[%s3 + $0x198] sm:$0xff] %vm2186, %v3330
  %3395 = vst.msk [vmem:[%s3 + $0x1a0] sm:$0xff] %vm2186, %v3331
  %3396 = vst.msk [vmem:[%s3 + $0x1a8] sm:$0xff] %vm2186, %v3332
  %3397 = vst.msk [vmem:[%s3 + $0x1b0] sm:$0xff] %vm2186, %v3333
  %3398 = vst.msk [vmem:[%s3 + $0x1b8] sm:$0xff] %vm2186, %v3334
  %3399 = vst.msk [vmem:[%s3 + $0x1c0] sm:$0xff] %vm2186, %v3335
  %3400 = vst.msk [vmem:[%s3 + $0x1c8] sm:$0xff] %vm2186, %v3336
  %3401 = vst.msk [vmem:[%s3 + $0x1d0] sm:$0xff] %vm2186, %v3337
  %3402 = vst.msk [vmem:[%s3 + $0x1d8] sm:$0xff] %vm2186, %v3338
  %3403 = vst.msk [vmem:[%s3 + $0x1e0] sm:$0xff] %vm2186, %v3339
  %3404 = vst.msk [vmem:[%s3 + $0x1e8] sm:$0xff] %vm2186, %v3340
  %3405 = vst.msk [vmem:[%s3 + $0x1f0] sm:$0xff] %vm2186, %v3341
  %3406 = vst.msk [vmem:[%s3 + $0x1f8] sm:$0xff] %vm2186, %v3342
  // Predicated region
  $region14: #{mixed_3b_forward.9} parent=0 // pred_check
    _
  $region15: #{mixed_3b_forward.9} parent=0 // pred_check_branch
    %3408 = sbr.rel (0) target = $region17
  $region16: #{mixed_3b_forward.9} parent=0 // pred_region
    _
  $region17: #{mixed_3b_forward.9} parent=0 // pred_fallthru
    _
  // Predicated region
  $region18: #{mixed_3b_forward.9} parent=0 // pred_check
    _
  $region19: #{mixed_3b_forward.9} parent=0 // pred_check_branch
    %3410 = sbr.rel (0) target = $region21
  $region20: #{mixed_3b_forward.9} parent=0 // pred_region
    _
  $region21: #{mixed_3b_forward.9} parent=0 // pred_fallthru
    _

</llo_original>
